<compile_context>
chip_gen: v6e
topology: v6e:2x2x1
jax: 0.10.0
libtpu: 0.0.40
codegen_flags: <defaults>
</compile_context>

<pallas_src>
import math

import jax
import jax.numpy as jnp
from jax.experimental import pallas as pl
from jax.experimental.pallas import tpu as pltpu


# ------------------------------------------------------------------ config ---
class Cfg:
    residual = True
    num_layers = 3
    hidden_channels = [8, 16]     # per-layer hidden channels (len = num_layers-1)
    kernel = 3
    pad = 1
    stride = 2
    in_channel = 1
    num_conds = 4
    out_channel = 8
    negative_slope = 0.2
    final_dim = (1, 2, 2)         # spatial extent entering avg_final


def _as_list(v, n):
    return list(v) if isinstance(v, (list, tuple)) else [v] * n


def _conv_out(n, k, s, p):
    return (n + 2 * p - k) // s + 1


# ----------------------------------------------------- weight preprocessing --
def _fold_conv_weight(w, h_in, w_in, h_out, w_out, stride, pad):
    """w: [kT,kH,kW,Ci,Co] -> [kT, Ci*h_in*w_in, Co*h_out*w_out].

    The H/W taps, the stride and the H/W zero padding of the Conv3d are absorbed into
    one (sparse, structured) matrix per depth tap, built once from the tiny weights.
    Row index    = ci*h_in*w_in + hi*w_in + wi
    Column index = co*h_out*w_out + oh*w_out + ow
    """
    kT, kH, kW, ci, co = w.shape
    hi = jnp.arange(h_in)
    oh = jnp.arange(h_out)
    kh = hi[:, None] - stride * oh[None, :] + pad            # [h_in, h_out]
    vh = (kh >= 0) & (kh < kH)
    khc = jnp.clip(kh, 0, kH - 1)
    wi = jnp.arange(w_in)
    ow = jnp.arange(w_out)
    kw = wi[:, None] - stride * ow[None, :] + pad            # [w_in, w_out]
    vw = (kw >= 0) & (kw < kW)
    kwc = jnp.clip(kw, 0, kW - 1)
    valid = (vh[:, :, None, None] & vw[None, None, :, :]).astype(w.dtype)
    mats = []
    for kt in range(kT):
        g = w[kt][khc]              # [h_in, h_out, kW, Ci, Co]
        g = g[:, :, kwc]            # [h_in, h_out, w_in, w_out, Ci, Co]
        g = g * valid[:, :, :, :, None, None]
        g = jnp.transpose(g, (4, 0, 2, 5, 1, 3))   # [Ci, h_in, w_in, Co, h_out, w_out]
        mats.append(g.reshape(ci * h_in * w_in, co * h_out * w_out))
    return jnp.stack(mats, axis=0)


# --------------------------------------------------------------- the kernel --
def _make_kernel(layer_meta, slope):
    """layer_meta[li] = (d_in, d_out, kT, stride, pad)."""
    num_layers = len(layer_meta)

    def kernel(*refs):
        x0_ref, cslab_ref = refs[0], refs[1]
        layer_refs = refs[2:2 + 4 * num_layers]
        wf_ref = refs[2 + 4 * num_layers]
        bf_ref = refs[3 + 4 * num_layers]
        out_ref = refs[4 + 4 * num_layers]

        def leaky(v):
            return jnp.where(v >= 0.0, v, v * slope)

        def enc_block(x_list, meta, w_ref, b_ref, bd_ref, bb_ref):
            d_in, d_out, k_t, stride, pad = meta
            bias = b_ref[...]                        # [1, N] f32
            bias11 = bb_ref[...]                     # [1, N] f32
            bd = bd_ref[...]                         # [N, N] bf16 block-diag 1x1 conv
            wk = [w_ref[kt] for kt in range(k_t)]    # k_t x [K, N] bf16 tap matrices
            xb = [x.astype(jnp.bfloat16) for x in x_list]
            n = bias.shape[1]
            b = x_list[0].shape[0]
            outs = []
            for od in range(d_out):                  # static: <= 4 iterations
                acc = jnp.zeros((b, n), dtype=jnp.float32)
                for kt in range(k_t):                # static: 3 depth taps
                    d = stride * od + kt - pad       # input depth plane (unpadded)
                    if 0 <= d < d_in:                # depth zero-padding = skip tap
                        acc = acc + jnp.dot(xb[d], wk[kt],
                                            preferred_element_type=jnp.float32)
                y = leaky(acc + bias)                # enc_conv[i] + LeakyReLU
                z = leaky(jnp.dot(y.astype(jnp.bfloat16), bd,
                                  preferred_element_type=jnp.float32)
                          + bias11) + y              # conv11[i] + act + residual
                outs.append(z)
            return outs

        # activations: one [B, C*H*W] slab per depth plane (Python list over depth)
        x = [x0_ref[d] for d in range(x0_ref.shape[0])]
        for li in range(num_layers):
            w_ref, b_ref, bd_ref, bb_ref = layer_refs[4 * li:4 * li + 4]
            x = enc_block(x, layer_meta[li], w_ref, b_ref, bd_ref, bb_ref)
            if li == 0:
                # channel concat of broadcast conditions == lane-aligned concat of
                # the precomputed condition slab (channel-major folding).
                cs = cslab_ref[...]
                x = [jnp.concatenate([z, cs], axis=1) for z in x]

        # AvgPool3d(final_dim) + conv_final, folded into one [1, C*S] row (wf already
        # carries the 1/prod(final_dim) factor), then bias.
        zsum = x[0]
        for z in x[1:]:
            zsum = zsum + z
        out_ref[...] = (jnp.sum(zsum * wf_ref[...], axis=1, keepdims=True)
                        + bf_ref[...])

    return kernel


# ----------------------------------------------------------- parameters ------
def _xavier_normal(key, shape, fan_in, fan_out):
    std = math.sqrt(2.0 / (fan_in + fan_out))
    return jax.random.normal(key, shape, dtype=jnp.float32) * std


def init_params(cfg, key):
    nl = cfg.num_layers
    h = _as_list(cfg.hidden_channels, nl - 1)
    kern = _as_list(cfg.kernel, nl)

    enc_in = [cfg.in_channel] + [h[0] + cfg.num_conds] + h[1:]
    enc_out = h + [cfg.out_channel]
    c11_ch = h + [cfg.out_channel]

    params = {"enc_w": [], "enc_b": [], "c11_w": [], "c11_b": []}
    keys = jax.random.split(key, 2 * nl + 1)
    for li, (ci, co, k) in enumerate(zip(enc_in, enc_out, kern)):
        kw_key, kb_key = jax.random.split(keys[li])
        fan_in, fan_out = ci * k ** 3, co * k ** 3
        params["enc_w"].append(_xavier_normal(kw_key, (k, k, k, ci, co), fan_in, fan_out))
        bound = 1.0 / math.sqrt(fan_in)
        params["enc_b"].append(jax.random.uniform(kb_key, (co,), jnp.float32, -bound, bound))
    for li, ch in enumerate(c11_ch):
        kw_key, kb_key = jax.random.split(keys[nl + li])
        params["c11_w"].append(_xavier_normal(kw_key, (ch, ch), ch, ch))
        bound = 1.0 / math.sqrt(ch)
        params["c11_b"].append(jax.random.uniform(kb_key, (ch,), jnp.float32, -bound, bound))
    fw_key, fb_key = jax.random.split(keys[-1])
    params["final_w"] = _xavier_normal(fw_key, (cfg.out_channel, 1), cfg.out_channel, 1)
    bound = 1.0 / math.sqrt(cfg.out_channel)
    params["final_b"] = jax.random.uniform(fb_key, (1,), jnp.float32, -bound, bound)
    return params


# --------------------------------------------------------------- forward -----
def discriminator_forward(params, x_ncdhw, c, cfg):
    nl = cfg.num_layers
    h = _as_list(cfg.hidden_channels, nl - 1)
    kern = _as_list(cfg.kernel, nl)
    pad = _as_list(cfg.pad, nl)
    stride = _as_list(cfg.stride, nl)

    assert cfg.residual, "only the residual forward path is implemented"
    # TODO(synk): non-residual branch -- the reference torch code concatenates an
    # unexpanded `c` there and would itself error, so it is not translated.

    bs, cin, D, H, W = x_ncdhw.shape

    # per-layer spatial dims
    dims = []
    d, hh, ww = D, H, W
    for li in range(nl):
        od = _conv_out(d, kern[li], stride[li], pad[li])
        oh = _conv_out(hh, kern[li], stride[li], pad[li])
        ow = _conv_out(ww, kern[li], stride[li], pad[li])
        dims.append(((d, hh, ww), (od, oh, ow)))
        d, hh, ww = od, oh, ow
    assert (d, hh, ww) == tuple(cfg.final_dim), \
        "AvgPool3d(final_dim) must cover the full remaining spatial extent"

    # fold input NCDHW -> per-depth [D, B, Cin*H*W] slabs (channel-major folding)
    x0 = jnp.transpose(x_ncdhw.astype(jnp.float32), (2, 0, 1, 3, 4)).reshape(
        D, bs, cin * H * W)
    # broadcast conditions once into a [B, num_conds*H1*W1] slab (layer-1 extra channels)
    h1, w1 = dims[0][1][1], dims[0][1][2]
    cslab = jnp.repeat(c.astype(jnp.float32), h1 * w1, axis=1)

    operands = [x0, cslab]
    layer_meta = []
    for li in range(nl):
        (di, hi, wi), (do, ho, wo) = dims[li]
        wmat = _fold_conv_weight(params["enc_w"][li], hi, wi, ho, wo,
                                 stride[li], pad[li]).astype(jnp.bfloat16)
        brow = jnp.repeat(params["enc_b"][li], ho * wo)[None, :].astype(jnp.float32)
        bd = jnp.kron(params["c11_w"][li],
                      jnp.eye(ho * wo, dtype=jnp.float32)).astype(jnp.bfloat16)
        bbrow = jnp.repeat(params["c11_b"][li], ho * wo)[None, :].astype(jnp.float32)
        operands += [wmat, brow, bd, bbrow]
        layer_meta.append((di, do, kern[li], stride[li], pad[li]))

    # avg_final + conv_final folded into one row
    s_last = dims[-1][1][1] * dims[-1][1][2]
    wf_row = (jnp.repeat(params["final_w"][:, 0], s_last)
              / float(math.prod(cfg.final_dim)))[None, :].astype(jnp.float32)
    bf_row = params["final_b"].reshape(1, 1).astype(jnp.float32)
    operands += [wf_row, bf_row]

    kernel = _make_kernel(layer_meta, float(cfg.negative_slope))
    vspec = pl.BlockSpec(memory_space=pltpu.MemorySpace.VMEM)
    out = pl.pallas_call(
        kernel,
        out_shape=jax.ShapeDtypeStruct((bs, 1), jnp.float32),
        in_specs=[vspec] * len(operands),
        out_specs=vspec,
    )(*operands)
    return jnp.squeeze(out)   # matches torch .squeeze(): [B] for B > 1


# ------------------------------------------------------------------- main ----
if __name__ == "__main__":
    cfg = Cfg()
    key = jax.random.PRNGKey(0)
    kp, kx, kc = jax.random.split(key, 3)

    params = init_params(cfg, kp)
    # x: [bs, 1, t, h, w] (PyTorch NCDHW), c: [bs, num_conds]
    x = jax.random.normal(kx, (2, cfg.in_channel, 8, 16, 16), dtype=jnp.float32)
    c = jax.random.normal(kc, (2, cfg.num_conds), dtype=jnp.float32)

    fwd = jax.jit(lambda p, xx, cc: discriminator_forward(p, xx, cc, cfg))
    out = fwd(params, x, c)
    jax.block_until_ready(out)
    assert out.shape == (2,)
    print("KERNEL_OK")
</pallas_src>

<mosaic_0001>
module attributes {stable_mosaic.version = 11 : i64} {
  func.func @kernel(%arg0: memref<8x2x256xf32, #tpu.memory_space<vmem>>, %arg1: memref<2x256xf32, #tpu.memory_space<vmem>>, %arg2: memref<3x256x512xbf16, #tpu.memory_space<vmem>>, %arg3: memref<1x512xf32, #tpu.memory_space<vmem>>, %arg4: memref<512x512xbf16, #tpu.memory_space<vmem>>, %arg5: memref<1x512xf32, #tpu.memory_space<vmem>>, %arg6: memref<3x768x256xbf16, #tpu.memory_space<vmem>>, %arg7: memref<1x256xf32, #tpu.memory_space<vmem>>, %arg8: memref<256x256xbf16, #tpu.memory_space<vmem>>, %arg9: memref<1x256xf32, #tpu.memory_space<vmem>>, %arg10: memref<3x256x32xbf16, #tpu.memory_space<vmem>>, %arg11: memref<1x32xf32, #tpu.memory_space<vmem>>, %arg12: memref<32x32xbf16, #tpu.memory_space<vmem>>, %arg13: memref<1x32xf32, #tpu.memory_space<vmem>>, %arg14: memref<1x32xf32, #tpu.memory_space<vmem>>, %arg15: memref<1x1xf32, #tpu.memory_space<vmem>>, %arg16: memref<2x1xf32, #tpu.memory_space<vmem>>) attributes {dimension_semantics = [], scalar_prefetch = 0 : i64, scratch_operands = 0 : i64, tpu.core_type = #tpu.core_type<tc>} {
    %c0 = arith.constant 0 : index
    %c0_0 = arith.constant 0 : index
    %c0_1 = arith.constant 0 : index
    %0 = vector.load %arg0[%c0, %c0_0, %c0_1] : memref<8x2x256xf32, #tpu.memory_space<vmem>>, vector<1x2x256xf32>
    %1 = vector.shape_cast %0 : vector<1x2x256xf32> to vector<2x256xf32>
    %c1 = arith.constant 1 : index
    %c0_2 = arith.constant 0 : index
    %c0_3 = arith.constant 0 : index
    %2 = vector.load %arg0[%c1, %c0_2, %c0_3] : memref<8x2x256xf32, #tpu.memory_space<vmem>>, vector<1x2x256xf32>
    %3 = vector.shape_cast %2 : vector<1x2x256xf32> to vector<2x256xf32>
    %c2 = arith.constant 2 : index
    %c0_4 = arith.constant 0 : index
    %c0_5 = arith.constant 0 : index
    %4 = vector.load %arg0[%c2, %c0_4, %c0_5] : memref<8x2x256xf32, #tpu.memory_space<vmem>>, vector<1x2x256xf32>
    %5 = vector.shape_cast %4 : vector<1x2x256xf32> to vector<2x256xf32>
    %c3 = arith.constant 3 : index
    %c0_6 = arith.constant 0 : index
    %c0_7 = arith.constant 0 : index
    %6 = vector.load %arg0[%c3, %c0_6, %c0_7] : memref<8x2x256xf32, #tpu.memory_space<vmem>>, vector<1x2x256xf32>
    %7 = vector.shape_cast %6 : vector<1x2x256xf32> to vector<2x256xf32>
    %c4 = arith.constant 4 : index
    %c0_8 = arith.constant 0 : index
    %c0_9 = arith.constant 0 : index
    %8 = vector.load %arg0[%c4, %c0_8, %c0_9] : memref<8x2x256xf32, #tpu.memory_space<vmem>>, vector<1x2x256xf32>
    %9 = vector.shape_cast %8 : vector<1x2x256xf32> to vector<2x256xf32>
    %c5 = arith.constant 5 : index
    %c0_10 = arith.constant 0 : index
    %c0_11 = arith.constant 0 : index
    %10 = vector.load %arg0[%c5, %c0_10, %c0_11] : memref<8x2x256xf32, #tpu.memory_space<vmem>>, vector<1x2x256xf32>
    %11 = vector.shape_cast %10 : vector<1x2x256xf32> to vector<2x256xf32>
    %c6 = arith.constant 6 : index
    %c0_12 = arith.constant 0 : index
    %c0_13 = arith.constant 0 : index
    %12 = vector.load %arg0[%c6, %c0_12, %c0_13] : memref<8x2x256xf32, #tpu.memory_space<vmem>>, vector<1x2x256xf32>
    %13 = vector.shape_cast %12 : vector<1x2x256xf32> to vector<2x256xf32>
    %c7 = arith.constant 7 : index
    %c0_14 = arith.constant 0 : index
    %c0_15 = arith.constant 0 : index
    %14 = vector.load %arg0[%c7, %c0_14, %c0_15] : memref<8x2x256xf32, #tpu.memory_space<vmem>>, vector<1x2x256xf32>
    %15 = vector.shape_cast %14 : vector<1x2x256xf32> to vector<2x256xf32>
    %c0_16 = arith.constant 0 : index
    %c0_17 = arith.constant 0 : index
    %16 = vector.load %arg3[%c0_16, %c0_17] : memref<1x512xf32, #tpu.memory_space<vmem>>, vector<1x512xf32>
    %c0_18 = arith.constant 0 : index
    %c0_19 = arith.constant 0 : index
    %17 = vector.load %arg5[%c0_18, %c0_19] : memref<1x512xf32, #tpu.memory_space<vmem>>, vector<1x512xf32>
    %c0_20 = arith.constant 0 : index
    %c0_21 = arith.constant 0 : index
    %18 = vector.load %arg4[%c0_20, %c0_21] : memref<512x512xbf16, #tpu.memory_space<vmem>>, vector<512x512xbf16>
    %c0_22 = arith.constant 0 : index
    %c0_23 = arith.constant 0 : index
    %c0_24 = arith.constant 0 : index
    %19 = vector.load %arg2[%c0_22, %c0_23, %c0_24] : memref<3x256x512xbf16, #tpu.memory_space<vmem>>, vector<1x256x512xbf16>
    %20 = vector.shape_cast %19 : vector<1x256x512xbf16> to vector<256x512xbf16>
    %c1_25 = arith.constant 1 : index
    %c0_26 = arith.constant 0 : index
    %c0_27 = arith.constant 0 : index
    %21 = vector.load %arg2[%c1_25, %c0_26, %c0_27] : memref<3x256x512xbf16, #tpu.memory_space<vmem>>, vector<1x256x512xbf16>
    %22 = vector.shape_cast %21 : vector<1x256x512xbf16> to vector<256x512xbf16>
    %c2_28 = arith.constant 2 : index
    %c0_29 = arith.constant 0 : index
    %c0_30 = arith.constant 0 : index
    %23 = vector.load %arg2[%c2_28, %c0_29, %c0_30] : memref<3x256x512xbf16, #tpu.memory_space<vmem>>, vector<1x256x512xbf16>
    %24 = vector.shape_cast %23 : vector<1x256x512xbf16> to vector<256x512xbf16>
    %25 = arith.truncf %1 : vector<2x256xf32> to vector<2x256xbf16>
    %26 = arith.truncf %3 : vector<2x256xf32> to vector<2x256xbf16>
    %27 = arith.truncf %5 : vector<2x256xf32> to vector<2x256xbf16>
    %28 = arith.truncf %7 : vector<2x256xf32> to vector<2x256xbf16>
    %29 = arith.truncf %9 : vector<2x256xf32> to vector<2x256xbf16>
    %30 = arith.truncf %11 : vector<2x256xf32> to vector<2x256xbf16>
    %31 = arith.truncf %13 : vector<2x256xf32> to vector<2x256xbf16>
    %32 = arith.truncf %15 : vector<2x256xf32> to vector<2x256xbf16>
    %cst = arith.constant 0.000000e+00 : f32
    %33 = vector.broadcast %cst : f32 to vector<2x512xf32>
    %cst_31 = arith.constant dense<0.000000e+00> : vector<2x512xf32>
    %34 = tpu.matmul %25, %22, %cst_31 {dimension_numbers = #tpu.dot_dimension_numbers<[1], [0], [0], [1], [0, 0, 1, 1], [], []>} : vector<2x256xbf16>, vector<256x512xbf16>, vector<2x512xf32> -> vector<2x512xf32>
    %35 = arith.addf %33, %34 : vector<2x512xf32>
    %cst_32 = arith.constant dense<0.000000e+00> : vector<2x512xf32>
    %36 = tpu.matmul %26, %24, %cst_32 {dimension_numbers = #tpu.dot_dimension_numbers<[1], [0], [0], [1], [0, 0, 1, 1], [], []>} : vector<2x256xbf16>, vector<256x512xbf16>, vector<2x512xf32> -> vector<2x512xf32>
    %37 = arith.addf %35, %36 : vector<2x512xf32>
    %38 = vector.broadcast %16 : vector<1x512xf32> to vector<2x512xf32>
    %39 = arith.addf %37, %38 : vector<2x512xf32>
    %cst_33 = arith.constant 0.000000e+00 : f32
    %40 = vector.broadcast %cst_33 : f32 to vector<2x512xf32>
    %41 = arith.cmpf oge, %39, %40 : vector<2x512xf32>
    %cst_34 = arith.constant 2.000000e-01 : f32
    %42 = vector.broadcast %cst_34 : f32 to vector<2x512xf32>
    %43 = arith.mulf %39, %42 : vector<2x512xf32>
    %44 = arith.select %41, %39, %43 : vector<2x512xi1>, vector<2x512xf32>
    %45 = arith.truncf %44 : vector<2x512xf32> to vector<2x512xbf16>
    %cst_35 = arith.constant dense<0.000000e+00> : vector<2x512xf32>
    %46 = tpu.matmul %45, %18, %cst_35 {dimension_numbers = #tpu.dot_dimension_numbers<[1], [0], [0], [1], [0, 0, 1, 1], [], []>} : vector<2x512xbf16>, vector<512x512xbf16>, vector<2x512xf32> -> vector<2x512xf32>
    %47 = vector.broadcast %17 : vector<1x512xf32> to vector<2x512xf32>
    %48 = arith.addf %46, %47 : vector<2x512xf32>
    %cst_36 = arith.constant 0.000000e+00 : f32
    %49 = vector.broadcast %cst_36 : f32 to vector<2x512xf32>
    %50 = arith.cmpf oge, %48, %49 : vector<2x512xf32>
    %cst_37 = arith.constant 2.000000e-01 : f32
    %51 = vector.broadcast %cst_37 : f32 to vector<2x512xf32>
    %52 = arith.mulf %48, %51 : vector<2x512xf32>
    %53 = arith.select %50, %48, %52 : vector<2x512xi1>, vector<2x512xf32>
    %54 = arith.addf %53, %44 : vector<2x512xf32>
    %cst_38 = arith.constant 0.000000e+00 : f32
    %55 = vector.broadcast %cst_38 : f32 to vector<2x512xf32>
    %cst_39 = arith.constant dense<0.000000e+00> : vector<2x512xf32>
    %56 = tpu.matmul %26, %20, %cst_39 {dimension_numbers = #tpu.dot_dimension_numbers<[1], [0], [0], [1], [0, 0, 1, 1], [], []>} : vector<2x256xbf16>, vector<256x512xbf16>, vector<2x512xf32> -> vector<2x512xf32>
    %57 = arith.addf %55, %56 : vector<2x512xf32>
    %cst_40 = arith.constant dense<0.000000e+00> : vector<2x512xf32>
    %58 = tpu.matmul %27, %22, %cst_40 {dimension_numbers = #tpu.dot_dimension_numbers<[1], [0], [0], [1], [0, 0, 1, 1], [], []>} : vector<2x256xbf16>, vector<256x512xbf16>, vector<2x512xf32> -> vector<2x512xf32>
    %59 = arith.addf %57, %58 : vector<2x512xf32>
    %cst_41 = arith.constant dense<0.000000e+00> : vector<2x512xf32>
    %60 = tpu.matmul %28, %24, %cst_41 {dimension_numbers = #tpu.dot_dimension_numbers<[1], [0], [0], [1], [0, 0, 1, 1], [], []>} : vector<2x256xbf16>, vector<256x512xbf16>, vector<2x512xf32> -> vector<2x512xf32>
    %61 = arith.addf %59, %60 : vector<2x512xf32>
    %62 = vector.broadcast %16 : vector<1x512xf32> to vector<2x512xf32>
    %63 = arith.addf %61, %62 : vector<2x512xf32>
    %cst_42 = arith.constant 0.000000e+00 : f32
    %64 = vector.broadcast %cst_42 : f32 to vector<2x512xf32>
    %65 = arith.cmpf oge, %63, %64 : vector<2x512xf32>
    %cst_43 = arith.constant 2.000000e-01 : f32
    %66 = vector.broadcast %cst_43 : f32 to vector<2x512xf32>
    %67 = arith.mulf %63, %66 : vector<2x512xf32>
    %68 = arith.select %65, %63, %67 : vector<2x512xi1>, vector<2x512xf32>
    %69 = arith.truncf %68 : vector<2x512xf32> to vector<2x512xbf16>
    %cst_44 = arith.constant dense<0.000000e+00> : vector<2x512xf32>
    %70 = tpu.matmul %69, %18, %cst_44 {dimension_numbers = #tpu.dot_dimension_numbers<[1], [0], [0], [1], [0, 0, 1, 1], [], []>} : vector<2x512xbf16>, vector<512x512xbf16>, vector<2x512xf32> -> vector<2x512xf32>
    %71 = vector.broadcast %17 : vector<1x512xf32> to vector<2x512xf32>
    %72 = arith.addf %70, %71 : vector<2x512xf32>
    %cst_45 = arith.constant 0.000000e+00 : f32
    %73 = vector.broadcast %cst_45 : f32 to vector<2x512xf32>
    %74 = arith.cmpf oge, %72, %73 : vector<2x512xf32>
    %cst_46 = arith.constant 2.000000e-01 : f32
    %75 = vector.broadcast %cst_46 : f32 to vector<2x512xf32>
    %76 = arith.mulf %72, %75 : vector<2x512xf32>
    %77 = arith.select %74, %72, %76 : vector<2x512xi1>, vector<2x512xf32>
    %78 = arith.addf %77, %68 : vector<2x512xf32>
    %cst_47 = arith.constant 0.000000e+00 : f32
    %79 = vector.broadcast %cst_47 : f32 to vector<2x512xf32>
    %cst_48 = arith.constant dense<0.000000e+00> : vector<2x512xf32>
    %80 = tpu.matmul %28, %20, %cst_48 {dimension_numbers = #tpu.dot_dimension_numbers<[1], [0], [0], [1], [0, 0, 1, 1], [], []>} : vector<2x256xbf16>, vector<256x512xbf16>, vector<2x512xf32> -> vector<2x512xf32>
    %81 = arith.addf %79, %80 : vector<2x512xf32>
    %cst_49 = arith.constant dense<0.000000e+00> : vector<2x512xf32>
    %82 = tpu.matmul %29, %22, %cst_49 {dimension_numbers = #tpu.dot_dimension_numbers<[1], [0], [0], [1], [0, 0, 1, 1], [], []>} : vector<2x256xbf16>, vector<256x512xbf16>, vector<2x512xf32> -> vector<2x512xf32>
    %83 = arith.addf %81, %82 : vector<2x512xf32>
    %cst_50 = arith.constant dense<0.000000e+00> : vector<2x512xf32>
    %84 = tpu.matmul %30, %24, %cst_50 {dimension_numbers = #tpu.dot_dimension_numbers<[1], [0], [0], [1], [0, 0, 1, 1], [], []>} : vector<2x256xbf16>, vector<256x512xbf16>, vector<2x512xf32> -> vector<2x512xf32>
    %85 = arith.addf %83, %84 : vector<2x512xf32>
    %86 = vector.broadcast %16 : vector<1x512xf32> to vector<2x512xf32>
    %87 = arith.addf %85, %86 : vector<2x512xf32>
    %cst_51 = arith.constant 0.000000e+00 : f32
    %88 = vector.broadcast %cst_51 : f32 to vector<2x512xf32>
    %89 = arith.cmpf oge, %87, %88 : vector<2x512xf32>
    %cst_52 = arith.constant 2.000000e-01 : f32
    %90 = vector.broadcast %cst_52 : f32 to vector<2x512xf32>
    %91 = arith.mulf %87, %90 : vector<2x512xf32>
    %92 = arith.select %89, %87, %91 : vector<2x512xi1>, vector<2x512xf32>
    %93 = arith.truncf %92 : vector<2x512xf32> to vector<2x512xbf16>
    %cst_53 = arith.constant dense<0.000000e+00> : vector<2x512xf32>
    %94 = tpu.matmul %93, %18, %cst_53 {dimension_numbers = #tpu.dot_dimension_numbers<[1], [0], [0], [1], [0, 0, 1, 1], [], []>} : vector<2x512xbf16>, vector<512x512xbf16>, vector<2x512xf32> -> vector<2x512xf32>
    %95 = vector.broadcast %17 : vector<1x512xf32> to vector<2x512xf32>
    %96 = arith.addf %94, %95 : vector<2x512xf32>
    %cst_54 = arith.constant 0.000000e+00 : f32
    %97 = vector.broadcast %cst_54 : f32 to vector<2x512xf32>
    %98 = arith.cmpf oge, %96, %97 : vector<2x512xf32>
    %cst_55 = arith.constant 2.000000e-01 : f32
    %99 = vector.broadcast %cst_55 : f32 to vector<2x512xf32>
    %100 = arith.mulf %96, %99 : vector<2x512xf32>
    %101 = arith.select %98, %96, %100 : vector<2x512xi1>, vector<2x512xf32>
    %102 = arith.addf %101, %92 : vector<2x512xf32>
    %cst_56 = arith.constant 0.000000e+00 : f32
    %103 = vector.broadcast %cst_56 : f32 to vector<2x512xf32>
    %cst_57 = arith.constant dense<0.000000e+00> : vector<2x512xf32>
    %104 = tpu.matmul %30, %20, %cst_57 {dimension_numbers = #tpu.dot_dimension_numbers<[1], [0], [0], [1], [0, 0, 1, 1], [], []>} : vector<2x256xbf16>, vector<256x512xbf16>, vector<2x512xf32> -> vector<2x512xf32>
    %105 = arith.addf %103, %104 : vector<2x512xf32>
    %cst_58 = arith.constant dense<0.000000e+00> : vector<2x512xf32>
    %106 = tpu.matmul %31, %22, %cst_58 {dimension_numbers = #tpu.dot_dimension_numbers<[1], [0], [0], [1], [0, 0, 1, 1], [], []>} : vector<2x256xbf16>, vector<256x512xbf16>, vector<2x512xf32> -> vector<2x512xf32>
    %107 = arith.addf %105, %106 : vector<2x512xf32>
    %cst_59 = arith.constant dense<0.000000e+00> : vector<2x512xf32>
    %108 = tpu.matmul %32, %24, %cst_59 {dimension_numbers = #tpu.dot_dimension_numbers<[1], [0], [0], [1], [0, 0, 1, 1], [], []>} : vector<2x256xbf16>, vector<256x512xbf16>, vector<2x512xf32> -> vector<2x512xf32>
    %109 = arith.addf %107, %108 : vector<2x512xf32>
    %110 = vector.broadcast %16 : vector<1x512xf32> to vector<2x512xf32>
    %111 = arith.addf %109, %110 : vector<2x512xf32>
    %cst_60 = arith.constant 0.000000e+00 : f32
    %112 = vector.broadcast %cst_60 : f32 to vector<2x512xf32>
    %113 = arith.cmpf oge, %111, %112 : vector<2x512xf32>
    %cst_61 = arith.constant 2.000000e-01 : f32
    %114 = vector.broadcast %cst_61 : f32 to vector<2x512xf32>
    %115 = arith.mulf %111, %114 : vector<2x512xf32>
    %116 = arith.select %113, %111, %115 : vector<2x512xi1>, vector<2x512xf32>
    %117 = arith.truncf %116 : vector<2x512xf32> to vector<2x512xbf16>
    %cst_62 = arith.constant dense<0.000000e+00> : vector<2x512xf32>
    %118 = tpu.matmul %117, %18, %cst_62 {dimension_numbers = #tpu.dot_dimension_numbers<[1], [0], [0], [1], [0, 0, 1, 1], [], []>} : vector<2x512xbf16>, vector<512x512xbf16>, vector<2x512xf32> -> vector<2x512xf32>
    %119 = vector.broadcast %17 : vector<1x512xf32> to vector<2x512xf32>
    %120 = arith.addf %118, %119 : vector<2x512xf32>
    %cst_63 = arith.constant 0.000000e+00 : f32
    %121 = vector.broadcast %cst_63 : f32 to vector<2x512xf32>
    %122 = arith.cmpf oge, %120, %121 : vector<2x512xf32>
    %cst_64 = arith.constant 2.000000e-01 : f32
    %123 = vector.broadcast %cst_64 : f32 to vector<2x512xf32>
    %124 = arith.mulf %120, %123 : vector<2x512xf32>
    %125 = arith.select %122, %120, %124 : vector<2x512xi1>, vector<2x512xf32>
    %126 = arith.addf %125, %116 : vector<2x512xf32>
    %c0_65 = arith.constant 0 : index
    %c0_66 = arith.constant 0 : index
    %127 = vector.load %arg1[%c0_65, %c0_66] : memref<2x256xf32, #tpu.memory_space<vmem>>, vector<2x256xf32>
    %128 = tpu.concatenate %54, %127 in 1 : vector<2x512xf32>, vector<2x256xf32> -> vector<2x768xf32>
    %129 = tpu.concatenate %78, %127 in 1 : vector<2x512xf32>, vector<2x256xf32> -> vector<2x768xf32>
    %130 = tpu.concatenate %102, %127 in 1 : vector<2x512xf32>, vector<2x256xf32> -> vector<2x768xf32>
    %131 = tpu.concatenate %126, %127 in 1 : vector<2x512xf32>, vector<2x256xf32> -> vector<2x768xf32>
    %c0_67 = arith.constant 0 : index
    %c0_68 = arith.constant 0 : index
    %132 = vector.load %arg7[%c0_67, %c0_68] : memref<1x256xf32, #tpu.memory_space<vmem>>, vector<1x256xf32>
    %c0_69 = arith.constant 0 : index
    %c0_70 = arith.constant 0 : index
    %133 = vector.load %arg9[%c0_69, %c0_70] : memref<1x256xf32, #tpu.memory_space<vmem>>, vector<1x256xf32>
    %c0_71 = arith.constant 0 : index
    %c0_72 = arith.constant 0 : index
    %134 = vector.load %arg8[%c0_71, %c0_72] : memref<256x256xbf16, #tpu.memory_space<vmem>>, vector<256x256xbf16>
    %c0_73 = arith.constant 0 : index
    %c0_74 = arith.constant 0 : index
    %c0_75 = arith.constant 0 : index
    %135 = vector.load %arg6[%c0_73, %c0_74, %c0_75] : memref<3x768x256xbf16, #tpu.memory_space<vmem>>, vector<1x768x256xbf16>
    %136 = vector.shape_cast %135 : vector<1x768x256xbf16> to vector<768x256xbf16>
    %c1_76 = arith.constant 1 : index
    %c0_77 = arith.constant 0 : index
    %c0_78 = arith.constant 0 : index
    %137 = vector.load %arg6[%c1_76, %c0_77, %c0_78] : memref<3x768x256xbf16, #tpu.memory_space<vmem>>, vector<1x768x256xbf16>
    %138 = vector.shape_cast %137 : vector<1x768x256xbf16> to vector<768x256xbf16>
    %c2_79 = arith.constant 2 : index
    %c0_80 = arith.constant 0 : index
    %c0_81 = arith.constant 0 : index
    %139 = vector.load %arg6[%c2_79, %c0_80, %c0_81] : memref<3x768x256xbf16, #tpu.memory_space<vmem>>, vector<1x768x256xbf16>
    %140 = vector.shape_cast %139 : vector<1x768x256xbf16> to vector<768x256xbf16>
    %141 = arith.truncf %128 : vector<2x768xf32> to vector<2x768xbf16>
    %142 = arith.truncf %129 : vector<2x768xf32> to vector<2x768xbf16>
    %143 = arith.truncf %130 : vector<2x768xf32> to vector<2x768xbf16>
    %144 = arith.truncf %131 : vector<2x768xf32> to vector<2x768xbf16>
    %cst_82 = arith.constant 0.000000e+00 : f32
    %145 = vector.broadcast %cst_82 : f32 to vector<2x256xf32>
    %cst_83 = arith.constant dense<0.000000e+00> : vector<2x256xf32>
    %146 = tpu.matmul %141, %138, %cst_83 {dimension_numbers = #tpu.dot_dimension_numbers<[1], [0], [0], [1], [0, 0, 1, 1], [], []>} : vector<2x768xbf16>, vector<768x256xbf16>, vector<2x256xf32> -> vector<2x256xf32>
    %147 = arith.addf %145, %146 : vector<2x256xf32>
    %cst_84 = arith.constant dense<0.000000e+00> : vector<2x256xf32>
    %148 = tpu.matmul %142, %140, %cst_84 {dimension_numbers = #tpu.dot_dimension_numbers<[1], [0], [0], [1], [0, 0, 1, 1], [], []>} : vector<2x768xbf16>, vector<768x256xbf16>, vector<2x256xf32> -> vector<2x256xf32>
    %149 = arith.addf %147, %148 : vector<2x256xf32>
    %150 = vector.broadcast %132 : vector<1x256xf32> to vector<2x256xf32>
    %151 = arith.addf %149, %150 : vector<2x256xf32>
    %cst_85 = arith.constant 0.000000e+00 : f32
    %152 = vector.broadcast %cst_85 : f32 to vector<2x256xf32>
    %153 = arith.cmpf oge, %151, %152 : vector<2x256xf32>
    %cst_86 = arith.constant 2.000000e-01 : f32
    %154 = vector.broadcast %cst_86 : f32 to vector<2x256xf32>
    %155 = arith.mulf %151, %154 : vector<2x256xf32>
    %156 = arith.select %153, %151, %155 : vector<2x256xi1>, vector<2x256xf32>
    %157 = arith.truncf %156 : vector<2x256xf32> to vector<2x256xbf16>
    %cst_87 = arith.constant dense<0.000000e+00> : vector<2x256xf32>
    %158 = tpu.matmul %157, %134, %cst_87 {dimension_numbers = #tpu.dot_dimension_numbers<[1], [0], [0], [1], [0, 0, 1, 1], [], []>} : vector<2x256xbf16>, vector<256x256xbf16>, vector<2x256xf32> -> vector<2x256xf32>
    %159 = vector.broadcast %133 : vector<1x256xf32> to vector<2x256xf32>
    %160 = arith.addf %158, %159 : vector<2x256xf32>
    %cst_88 = arith.constant 0.000000e+00 : f32
    %161 = vector.broadcast %cst_88 : f32 to vector<2x256xf32>
    %162 = arith.cmpf oge, %160, %161 : vector<2x256xf32>
    %cst_89 = arith.constant 2.000000e-01 : f32
    %163 = vector.broadcast %cst_89 : f32 to vector<2x256xf32>
    %164 = arith.mulf %160, %163 : vector<2x256xf32>
    %165 = arith.select %162, %160, %164 : vector<2x256xi1>, vector<2x256xf32>
    %166 = arith.addf %165, %156 : vector<2x256xf32>
    %cst_90 = arith.constant 0.000000e+00 : f32
    %167 = vector.broadcast %cst_90 : f32 to vector<2x256xf32>
    %cst_91 = arith.constant dense<0.000000e+00> : vector<2x256xf32>
    %168 = tpu.matmul %142, %136, %cst_91 {dimension_numbers = #tpu.dot_dimension_numbers<[1], [0], [0], [1], [0, 0, 1, 1], [], []>} : vector<2x768xbf16>, vector<768x256xbf16>, vector<2x256xf32> -> vector<2x256xf32>
    %169 = arith.addf %167, %168 : vector<2x256xf32>
    %cst_92 = arith.constant dense<0.000000e+00> : vector<2x256xf32>
    %170 = tpu.matmul %143, %138, %cst_92 {dimension_numbers = #tpu.dot_dimension_numbers<[1], [0], [0], [1], [0, 0, 1, 1], [], []>} : vector<2x768xbf16>, vector<768x256xbf16>, vector<2x256xf32> -> vector<2x256xf32>
    %171 = arith.addf %169, %170 : vector<2x256xf32>
    %cst_93 = arith.constant dense<0.000000e+00> : vector<2x256xf32>
    %172 = tpu.matmul %144, %140, %cst_93 {dimension_numbers = #tpu.dot_dimension_numbers<[1], [0], [0], [1], [0, 0, 1, 1], [], []>} : vector<2x768xbf16>, vector<768x256xbf16>, vector<2x256xf32> -> vector<2x256xf32>
    %173 = arith.addf %171, %172 : vector<2x256xf32>
    %174 = vector.broadcast %132 : vector<1x256xf32> to vector<2x256xf32>
    %175 = arith.addf %173, %174 : vector<2x256xf32>
    %cst_94 = arith.constant 0.000000e+00 : f32
    %176 = vector.broadcast %cst_94 : f32 to vector<2x256xf32>
    %177 = arith.cmpf oge, %175, %176 : vector<2x256xf32>
    %cst_95 = arith.constant 2.000000e-01 : f32
    %178 = vector.broadcast %cst_95 : f32 to vector<2x256xf32>
    %179 = arith.mulf %175, %178 : vector<2x256xf32>
    %180 = arith.select %177, %175, %179 : vector<2x256xi1>, vector<2x256xf32>
    %181 = arith.truncf %180 : vector<2x256xf32> to vector<2x256xbf16>
    %cst_96 = arith.constant dense<0.000000e+00> : vector<2x256xf32>
    %182 = tpu.matmul %181, %134, %cst_96 {dimension_numbers = #tpu.dot_dimension_numbers<[1], [0], [0], [1], [0, 0, 1, 1], [], []>} : vector<2x256xbf16>, vector<256x256xbf16>, vector<2x256xf32> -> vector<2x256xf32>
    %183 = vector.broadcast %133 : vector<1x256xf32> to vector<2x256xf32>
    %184 = arith.addf %182, %183 : vector<2x256xf32>
    %cst_97 = arith.constant 0.000000e+00 : f32
    %185 = vector.broadcast %cst_97 : f32 to vector<2x256xf32>
    %186 = arith.cmpf oge, %184, %185 : vector<2x256xf32>
    %cst_98 = arith.constant 2.000000e-01 : f32
    %187 = vector.broadcast %cst_98 : f32 to vector<2x256xf32>
    %188 = arith.mulf %184, %187 : vector<2x256xf32>
    %189 = arith.select %186, %184, %188 : vector<2x256xi1>, vector<2x256xf32>
    %190 = arith.addf %189, %180 : vector<2x256xf32>
    %c0_99 = arith.constant 0 : index
    %c0_100 = arith.constant 0 : index
    %191 = vector.load %arg11[%c0_99, %c0_100] : memref<1x32xf32, #tpu.memory_space<vmem>>, vector<1x32xf32>
    %c0_101 = arith.constant 0 : index
    %c0_102 = arith.constant 0 : index
    %192 = vector.load %arg13[%c0_101, %c0_102] : memref<1x32xf32, #tpu.memory_space<vmem>>, vector<1x32xf32>
    %c0_103 = arith.constant 0 : index
    %c0_104 = arith.constant 0 : index
    %193 = vector.load %arg12[%c0_103, %c0_104] : memref<32x32xbf16, #tpu.memory_space<vmem>>, vector<32x32xbf16>
    %c1_105 = arith.constant 1 : index
    %c0_106 = arith.constant 0 : index
    %c0_107 = arith.constant 0 : index
    %194 = vector.load %arg10[%c1_105, %c0_106, %c0_107] : memref<3x256x32xbf16, #tpu.memory_space<vmem>>, vector<1x256x32xbf16>
    %195 = vector.shape_cast %194 : vector<1x256x32xbf16> to vector<256x32xbf16>
    %c2_108 = arith.constant 2 : index
    %c0_109 = arith.constant 0 : index
    %c0_110 = arith.constant 0 : index
    %196 = vector.load %arg10[%c2_108, %c0_109, %c0_110] : memref<3x256x32xbf16, #tpu.memory_space<vmem>>, vector<1x256x32xbf16>
    %197 = vector.shape_cast %196 : vector<1x256x32xbf16> to vector<256x32xbf16>
    %198 = arith.truncf %166 : vector<2x256xf32> to vector<2x256xbf16>
    %199 = arith.truncf %190 : vector<2x256xf32> to vector<2x256xbf16>
    %cst_111 = arith.constant 0.000000e+00 : f32
    %200 = vector.broadcast %cst_111 : f32 to vector<2x32xf32>
    %cst_112 = arith.constant dense<0.000000e+00> : vector<2x32xf32>
    %201 = tpu.matmul %198, %195, %cst_112 {dimension_numbers = #tpu.dot_dimension_numbers<[1], [0], [0], [1], [0, 0, 1, 1], [], []>} : vector<2x256xbf16>, vector<256x32xbf16>, vector<2x32xf32> -> vector<2x32xf32>
    %202 = arith.addf %200, %201 : vector<2x32xf32>
    %cst_113 = arith.constant dense<0.000000e+00> : vector<2x32xf32>
    %203 = tpu.matmul %199, %197, %cst_113 {dimension_numbers = #tpu.dot_dimension_numbers<[1], [0], [0], [1], [0, 0, 1, 1], [], []>} : vector<2x256xbf16>, vector<256x32xbf16>, vector<2x32xf32> -> vector<2x32xf32>
    %204 = arith.addf %202, %203 : vector<2x32xf32>
    %205 = vector.broadcast %191 : vector<1x32xf32> to vector<2x32xf32>
    %206 = arith.addf %204, %205 : vector<2x32xf32>
    %cst_114 = arith.constant 0.000000e+00 : f32
    %207 = vector.broadcast %cst_114 : f32 to vector<2x32xf32>
    %208 = arith.cmpf oge, %206, %207 : vector<2x32xf32>
    %cst_115 = arith.constant 2.000000e-01 : f32
    %209 = vector.broadcast %cst_115 : f32 to vector<2x32xf32>
    %210 = arith.mulf %206, %209 : vector<2x32xf32>
    %211 = arith.select %208, %206, %210 : vector<2x32xi1>, vector<2x32xf32>
    %212 = arith.truncf %211 : vector<2x32xf32> to vector<2x32xbf16>
    %cst_116 = arith.constant dense<0.000000e+00> : vector<2x32xf32>
    %213 = tpu.matmul %212, %193, %cst_116 {dimension_numbers = #tpu.dot_dimension_numbers<[1], [0], [0], [1], [0, 0, 1, 1], [], []>} : vector<2x32xbf16>, vector<32x32xbf16>, vector<2x32xf32> -> vector<2x32xf32>
    %214 = vector.broadcast %192 : vector<1x32xf32> to vector<2x32xf32>
    %215 = arith.addf %213, %214 : vector<2x32xf32>
    %cst_117 = arith.constant 0.000000e+00 : f32
    %216 = vector.broadcast %cst_117 : f32 to vector<2x32xf32>
    %217 = arith.cmpf oge, %215, %216 : vector<2x32xf32>
    %cst_118 = arith.constant 2.000000e-01 : f32
    %218 = vector.broadcast %cst_118 : f32 to vector<2x32xf32>
    %219 = arith.mulf %215, %218 : vector<2x32xf32>
    %220 = arith.select %217, %215, %219 : vector<2x32xi1>, vector<2x32xf32>
    %221 = arith.addf %220, %211 : vector<2x32xf32>
    %c0_119 = arith.constant 0 : index
    %c0_120 = arith.constant 0 : index
    %222 = vector.load %arg14[%c0_119, %c0_120] : memref<1x32xf32, #tpu.memory_space<vmem>>, vector<1x32xf32>
    %223 = vector.broadcast %222 : vector<1x32xf32> to vector<2x32xf32>
    %224 = arith.mulf %221, %223 : vector<2x32xf32>
    %cst_121 = arith.constant dense<0.000000e+00> : vector<2xf32>
    %225 = vector.multi_reduction <add>, %224, %cst_121 [1] : vector<2x32xf32> to vector<2xf32>
    %226 = vector.shape_cast %225 : vector<2xf32> to vector<2x1xf32>
    %c0_122 = arith.constant 0 : index
    %c0_123 = arith.constant 0 : index
    %227 = vector.load %arg15[%c0_122, %c0_123] : memref<1x1xf32, #tpu.memory_space<vmem>>, vector<1x1xf32>
    %228 = vector.broadcast %227 : vector<1x1xf32> to vector<2x1xf32>
    %229 = arith.addf %226, %228 : vector<2x1xf32>
    %c0_124 = arith.constant 0 : index
    %c0_125 = arith.constant 0 : index
    %230 = vector.load %arg16[%c0_124, %c0_125] : memref<2x1xf32, #tpu.memory_space<vmem>>, vector<2x1xf32>
    tpu.vector_store %arg16[%c0_124, %c0_125], %229 {strides = array<i32>} : memref<2x1xf32, #tpu.memory_space<vmem>>, vector<2x1xf32>,
    return
  }
}

</mosaic_0001>

<llo_original>
// kernel: _lambda_.1
$region0: #{_lambda_.1}
  #allocation0 [shape = 'u32[]', space=smem, size = 0x4, offset = 0x4, fixed_abs, tag = 'smem constant byte address 0x4 - core index']
  #allocation1 [shape = 'u32[144,128]{1,0:T(1,128)}', space=vmem, size = 0x12000, scoped, tag = 'internal scratch']
  #allocation2 [shape = 'f32[1,1]{1,0:T(1,128)S(1)}', space=vmem, size = 0x200, scoped, tag = 'scoped memory for _lambda_.1']
  %s0 = inlined_call_operand.vmem [shape: f32[8,2,256], index: 0, kind: input, shape index: {}]
  %s1 = inlined_call_operand.vmem [shape: f32[2,256], index: 1, kind: input, shape index: {}]
  %s2 = inlined_call_operand.vmem [shape: bf16[3,256,512], index: 2, kind: input, shape index: {}]
  %s3 = inlined_call_operand.vmem [shape: f32[1,512], index: 3, kind: input, shape index: {}]
  %s4 = inlined_call_operand.vmem [shape: bf16[512,512], index: 4, kind: input, shape index: {}]
  %s5 = inlined_call_operand.vmem [shape: f32[1,512], index: 5, kind: input, shape index: {}]
  %s6 = inlined_call_operand.vmem [shape: bf16[3,768,256], index: 6, kind: input, shape index: {}]
  %s7 = inlined_call_operand.vmem [shape: f32[1,256], index: 7, kind: input, shape index: {}]
  %s8 = inlined_call_operand.vmem [shape: bf16[256,256], index: 8, kind: input, shape index: {}]
  %s9 = inlined_call_operand.vmem [shape: f32[1,256], index: 9, kind: input, shape index: {}]
  %s10 = inlined_call_operand.vmem [shape: bf16[3,256,32], index: 10, kind: input, shape index: {}]
  %s11 = inlined_call_operand.vmem [shape: f32[1,32], index: 11, kind: input, shape index: {}]
  %s12 = inlined_call_operand.vmem [shape: bf16[32,32], index: 12, kind: input, shape index: {}]
  %s13 = inlined_call_operand.vmem [shape: f32[1,32], index: 13, kind: input, shape index: {}]
  %s14 = inlined_call_operand.vmem [shape: f32[1,32], index: 14, kind: input, shape index: {}]
  %s15 = inlined_call_operand.<no memory space> [shape: f32[1,1], index: 15, kind: input, shape index: {}]
  %s16 = inlined_call_operand.vmem [shape: f32[2,1], index: 16, kind: output, shape index: {}]
  %s17 = sld [smem:[#allocation0]]
  $region74: #{_lambda_.1} parent=0
    _
  %s19 = ssub.s32 1, %s17
  %s20 = scalar_select 0, %s19, %s17
  %v21 = vstv %s15
  %22 = vst [vmem:[#allocation2] sm:$0x1] %v21
  // Predicated region
  $region2: #{_lambda_.1} parent=0 // pred_check
    _
  $region3: #{_lambda_.1} parent=0 // pred_check_branch
    %24 = sbr.rel (0) target = $region5
  $region4: #{_lambda_.1} parent=0 // pred_region
    _
  $region5: #{_lambda_.1} parent=0 // pred_fallthru
    _
  // Predicated region
  $region6: #{_lambda_.1} parent=0 // pred_check
    _
  $region7: #{_lambda_.1} parent=0 // pred_check_branch
    %26 = sbr.rel (0) target = $region9
  $region8: #{_lambda_.1} parent=0 // pred_region
    _
  $region9: #{_lambda_.1} parent=0 // pred_fallthru
    _
  // Predicated region
  $region10: #{_lambda_.1} parent=0 // pred_check
    _
  $region11: #{_lambda_.1} parent=0 // pred_check_branch
    %28 = sbr.rel (0) target = $region13
  $region12: #{_lambda_.1} parent=0 // pred_region
    _
  $region13: #{_lambda_.1} parent=0 // pred_fallthru
    _
  // Predicated region
  $region14: #{_lambda_.1} parent=0 // pred_check
    _
  $region15: #{_lambda_.1} parent=0 // pred_check_branch
    %30 = sbr.rel (0) target = $region17
  $region16: #{_lambda_.1} parent=0 // pred_region
    _
  $region17: #{_lambda_.1} parent=0 // pred_fallthru
    _
  // Predicated region
  $region18: #{_lambda_.1} parent=0 // pred_check
    _
  $region19: #{_lambda_.1} parent=0 // pred_check_branch
    %32 = sbr.rel (0) target = $region21
  $region20: #{_lambda_.1} parent=0 // pred_region
    _
  $region21: #{_lambda_.1} parent=0 // pred_fallthru
    _
  // Predicated region
  $region22: #{_lambda_.1} parent=0 // pred_check
    _
  $region23: #{_lambda_.1} parent=0 // pred_check_branch
    %34 = sbr.rel (0) target = $region25
  $region24: #{_lambda_.1} parent=0 // pred_region
    _
  $region25: #{_lambda_.1} parent=0 // pred_fallthru
    _
  // Predicated region
  $region26: #{_lambda_.1} parent=0 // pred_check
    _
  $region27: #{_lambda_.1} parent=0 // pred_check_branch
    %36 = sbr.rel (0) target = $region29
  $region28: #{_lambda_.1} parent=0 // pred_region
    _
  $region29: #{_lambda_.1} parent=0 // pred_fallthru
    _
  // Predicated region
  $region30: #{_lambda_.1} parent=0 // pred_check
    _
  $region31: #{_lambda_.1} parent=0 // pred_check_branch
    %38 = sbr.rel (0) target = $region33
  $region32: #{_lambda_.1} parent=0 // pred_region
    _
  $region33: #{_lambda_.1} parent=0 // pred_fallthru
    _
  // Predicated region
  $region34: #{_lambda_.1} parent=0 // pred_check
    _
  $region35: #{_lambda_.1} parent=0 // pred_check_branch
    %40 = sbr.rel (0) target = $region37
  $region36: #{_lambda_.1} parent=0 // pred_region
    _
  $region37: #{_lambda_.1} parent=0 // pred_fallthru
    _
  // Predicated region
  $region38: #{_lambda_.1} parent=0 // pred_check
    _
  $region39: #{_lambda_.1} parent=0 // pred_check_branch
    %42 = sbr.rel (0) target = $region41
  $region40: #{_lambda_.1} parent=0 // pred_region
    _
  $region41: #{_lambda_.1} parent=0 // pred_fallthru
    _
  // Predicated region
  $region42: #{_lambda_.1} parent=0 // pred_check
    _
  $region43: #{_lambda_.1} parent=0 // pred_check_branch
    %44 = sbr.rel (0) target = $region45
  $region44: #{_lambda_.1} parent=0 // pred_region
    _
  $region45: #{_lambda_.1} parent=0 // pred_fallthru
    _
  // Predicated region
  $region46: #{_lambda_.1} parent=0 // pred_check
    _
  $region47: #{_lambda_.1} parent=0 // pred_check_branch
    %46 = sbr.rel (0) target = $region49
  $region48: #{_lambda_.1} parent=0 // pred_region
    _
  $region49: #{_lambda_.1} parent=0 // pred_fallthru
    _
  // Predicated region
  $region50: #{_lambda_.1} parent=0 // pred_check
    _
  $region51: #{_lambda_.1} parent=0 // pred_check_branch
    %48 = sbr.rel (0) target = $region53
  $region52: #{_lambda_.1} parent=0 // pred_region
    _
  $region53: #{_lambda_.1} parent=0 // pred_fallthru
    _
  // Predicated region
  $region54: #{_lambda_.1} parent=0 // pred_check
    _
  $region55: #{_lambda_.1} parent=0 // pred_check_branch
    %50 = sbr.rel (0) target = $region57
  $region56: #{_lambda_.1} parent=0 // pred_region
    _
  $region57: #{_lambda_.1} parent=0 // pred_fallthru
    _
  // Predicated region
  $region58: #{_lambda_.1} parent=0 // pred_check
    _
  $region59: #{_lambda_.1} parent=0 // pred_check_branch
    %52 = sbr.rel (0) target = $region61
  $region60: #{_lambda_.1} parent=0 // pred_region
    _
  $region61: #{_lambda_.1} parent=0 // pred_fallthru
    _
  // Predicated region
  $region62: #{_lambda_.1} parent=0 // pred_check
    _
  $region63: #{_lambda_.1} parent=0 // pred_check_branch
    %54 = sbr.rel (0) target = $region65
  $region64: #{_lambda_.1} parent=0 // pred_region
    _
  $region65: #{_lambda_.1} parent=0 // pred_fallthru
    _
  %v56 = vld [vmem:[%s0] sm:$0xf]
  %s57 = scalar_lea.vmem %s0, 4
  %v58 = vld [vmem:[%s57] sm:$0xf]
  %s59 = scalar_lea.vmem %s0, 8
  %v60 = vld [vmem:[%s59] sm:$0xf]
  %s61 = scalar_lea.vmem %s0, 12
  %v62 = vld [vmem:[%s61] sm:$0xf]
  %s63 = scalar_lea.vmem %s0, 16
  %v64 = vld [vmem:[%s63] sm:$0xf]
  %s65 = scalar_lea.vmem %s0, 20
  %v66 = vld [vmem:[%s65] sm:$0xf]
  %s67 = scalar_lea.vmem %s0, 24
  %v68 = vld [vmem:[%s67] sm:$0xf]
  %s69 = scalar_lea.vmem %s0, 28
  %v70 = vld [vmem:[%s69] sm:$0xf]
  %v71 = vld [vmem:[%s3] sm:$0xf]
  %v72 = vld [vmem:[%s5] sm:$0xf]
  %v73 = vld [vmem:[%s4] sm:$0xff]
  %v74 = vld [vmem:[%s4 + $0x8] sm:$0xff]
  %v75 = vld [vmem:[%s4 + $0x10] sm:$0xff]
  %v76 = vld [vmem:[%s4 + $0x18] sm:$0xff]
  %v77 = vld [vmem:[%s4 + $0x20] sm:$0xff]
  %v78 = vld [vmem:[%s4 + $0x28] sm:$0xff]
  %v79 = vld [vmem:[%s4 + $0x30] sm:$0xff]
  %v80 = vld [vmem:[%s4 + $0x38] sm:$0xff]
  %v81 = vld [vmem:[%s4 + $0x40] sm:$0xff]
  %v82 = vld [vmem:[%s4 + $0x48] sm:$0xff]
  %v83 = vld [vmem:[%s4 + $0x50] sm:$0xff]
  %v84 = vld [vmem:[%s4 + $0x58] sm:$0xff]
  %v85 = vld [vmem:[%s4 + $0x60] sm:$0xff]
  %v86 = vld [vmem:[%s4 + $0x68] sm:$0xff]
  %v87 = vld [vmem:[%s4 + $0x70] sm:$0xff]
  %v88 = vld [vmem:[%s4 + $0x78] sm:$0xff]
  %v89 = vld [vmem:[%s4 + $0x80] sm:$0xff]
  %v90 = vld [vmem:[%s4 + $0x88] sm:$0xff]
  %v91 = vld [vmem:[%s4 + $0x90] sm:$0xff]
  %v92 = vld [vmem:[%s4 + $0x98] sm:$0xff]
  %v93 = vld [vmem:[%s4 + $0xa0] sm:$0xff]
  %v94 = vld [vmem:[%s4 + $0xa8] sm:$0xff]
  %v95 = vld [vmem:[%s4 + $0xb0] sm:$0xff]
  %v96 = vld [vmem:[%s4 + $0xb8] sm:$0xff]
  %v97 = vld [vmem:[%s4 + $0xc0] sm:$0xff]
  %v98 = vld [vmem:[%s4 + $0xc8] sm:$0xff]
  %v99 = vld [vmem:[%s4 + $0xd0] sm:$0xff]
  %v100 = vld [vmem:[%s4 + $0xd8] sm:$0xff]
  %v101 = vld [vmem:[%s4 + $0xe0] sm:$0xff]
  %v102 = vld [vmem:[%s4 + $0xe8] sm:$0xff]
  %v103 = vld [vmem:[%s4 + $0xf0] sm:$0xff]
  %v104 = vld [vmem:[%s4 + $0xf8] sm:$0xff]
  %v105 = vld [vmem:[%s4 + $0x100] sm:$0xff]
  %v106 = vld [vmem:[%s4 + $0x108] sm:$0xff]
  %v107 = vld [vmem:[%s4 + $0x110] sm:$0xff]
  %v108 = vld [vmem:[%s4 + $0x118] sm:$0xff]
  %v109 = vld [vmem:[%s4 + $0x120] sm:$0xff]
  %v110 = vld [vmem:[%s4 + $0x128] sm:$0xff]
  %v111 = vld [vmem:[%s4 + $0x130] sm:$0xff]
  %v112 = vld [vmem:[%s4 + $0x138] sm:$0xff]
  %v113 = vld [vmem:[%s4 + $0x140] sm:$0xff]
  %v114 = vld [vmem:[%s4 + $0x148] sm:$0xff]
  %v115 = vld [vmem:[%s4 + $0x150] sm:$0xff]
  %v116 = vld [vmem:[%s4 + $0x158] sm:$0xff]
  %v117 = vld [vmem:[%s4 + $0x160] sm:$0xff]
  %v118 = vld [vmem:[%s4 + $0x168] sm:$0xff]
  %v119 = vld [vmem:[%s4 + $0x170] sm:$0xff]
  %v120 = vld [vmem:[%s4 + $0x178] sm:$0xff]
  %v121 = vld [vmem:[%s4 + $0x180] sm:$0xff]
  %v122 = vld [vmem:[%s4 + $0x188] sm:$0xff]
  %v123 = vld [vmem:[%s4 + $0x190] sm:$0xff]
  %v124 = vld [vmem:[%s4 + $0x198] sm:$0xff]
  %v125 = vld [vmem:[%s4 + $0x1a0] sm:$0xff]
  %v126 = vld [vmem:[%s4 + $0x1a8] sm:$0xff]
  %v127 = vld [vmem:[%s4 + $0x1b0] sm:$0xff]
  %v128 = vld [vmem:[%s4 + $0x1b8] sm:$0xff]
  %v129 = vld [vmem:[%s4 + $0x1c0] sm:$0xff]
  %v130 = vld [vmem:[%s4 + $0x1c8] sm:$0xff]
  %v131 = vld [vmem:[%s4 + $0x1d0] sm:$0xff]
  %v132 = vld [vmem:[%s4 + $0x1d8] sm:$0xff]
  %v133 = vld [vmem:[%s4 + $0x1e0] sm:$0xff]
  %v134 = vld [vmem:[%s4 + $0x1e8] sm:$0xff]
  %v135 = vld [vmem:[%s4 + $0x1f0] sm:$0xff]
  %v136 = vld [vmem:[%s4 + $0x1f8] sm:$0xff]
  %v137 = vld [vmem:[%s4 + $0x200] sm:$0xff]
  %v138 = vld [vmem:[%s4 + $0x208] sm:$0xff]
  %v139 = vld [vmem:[%s4 + $0x210] sm:$0xff]
  %v140 = vld [vmem:[%s4 + $0x218] sm:$0xff]
  %v141 = vld [vmem:[%s4 + $0x220] sm:$0xff]
  %v142 = vld [vmem:[%s4 + $0x228] sm:$0xff]
  %v143 = vld [vmem:[%s4 + $0x230] sm:$0xff]
  %v144 = vld [vmem:[%s4 + $0x238] sm:$0xff]
  %v145 = vld [vmem:[%s4 + $0x240] sm:$0xff]
  %v146 = vld [vmem:[%s4 + $0x248] sm:$0xff]
  %v147 = vld [vmem:[%s4 + $0x250] sm:$0xff]
  %v148 = vld [vmem:[%s4 + $0x258] sm:$0xff]
  %v149 = vld [vmem:[%s4 + $0x260] sm:$0xff]
  %v150 = vld [vmem:[%s4 + $0x268] sm:$0xff]
  %v151 = vld [vmem:[%s4 + $0x270] sm:$0xff]
  %v152 = vld [vmem:[%s4 + $0x278] sm:$0xff]
  %v153 = vld [vmem:[%s4 + $0x280] sm:$0xff]
  %v154 = vld [vmem:[%s4 + $0x288] sm:$0xff]
  %v155 = vld [vmem:[%s4 + $0x290] sm:$0xff]
  %v156 = vld [vmem:[%s4 + $0x298] sm:$0xff]
  %v157 = vld [vmem:[%s4 + $0x2a0] sm:$0xff]
  %v158 = vld [vmem:[%s4 + $0x2a8] sm:$0xff]
  %v159 = vld [vmem:[%s4 + $0x2b0] sm:$0xff]
  %v160 = vld [vmem:[%s4 + $0x2b8] sm:$0xff]
  %v161 = vld [vmem:[%s4 + $0x2c0] sm:$0xff]
  %v162 = vld [vmem:[%s4 + $0x2c8] sm:$0xff]
  %v163 = vld [vmem:[%s4 + $0x2d0] sm:$0xff]
  %v164 = vld [vmem:[%s4 + $0x2d8] sm:$0xff]
  %v165 = vld [vmem:[%s4 + $0x2e0] sm:$0xff]
  %v166 = vld [vmem:[%s4 + $0x2e8] sm:$0xff]
  %v167 = vld [vmem:[%s4 + $0x2f0] sm:$0xff]
  %v168 = vld [vmem:[%s4 + $0x2f8] sm:$0xff]
  %v169 = vld [vmem:[%s4 + $0x300] sm:$0xff]
  %v170 = vld [vmem:[%s4 + $0x308] sm:$0xff]
  %v171 = vld [vmem:[%s4 + $0x310] sm:$0xff]
  %v172 = vld [vmem:[%s4 + $0x318] sm:$0xff]
  %v173 = vld [vmem:[%s4 + $0x320] sm:$0xff]
  %v174 = vld [vmem:[%s4 + $0x328] sm:$0xff]
  %v175 = vld [vmem:[%s4 + $0x330] sm:$0xff]
  %v176 = vld [vmem:[%s4 + $0x338] sm:$0xff]
  %v177 = vld [vmem:[%s4 + $0x340] sm:$0xff]
  %v178 = vld [vmem:[%s4 + $0x348] sm:$0xff]
  %v179 = vld [vmem:[%s4 + $0x350] sm:$0xff]
  %v180 = vld [vmem:[%s4 + $0x358] sm:$0xff]
  %v181 = vld [vmem:[%s4 + $0x360] sm:$0xff]
  %v182 = vld [vmem:[%s4 + $0x368] sm:$0xff]
  %v183 = vld [vmem:[%s4 + $0x370] sm:$0xff]
  %v184 = vld [vmem:[%s4 + $0x378] sm:$0xff]
  %v185 = vld [vmem:[%s4 + $0x380] sm:$0xff]
  %v186 = vld [vmem:[%s4 + $0x388] sm:$0xff]
  %v187 = vld [vmem:[%s4 + $0x390] sm:$0xff]
  %v188 = vld [vmem:[%s4 + $0x398] sm:$0xff]
  %v189 = vld [vmem:[%s4 + $0x3a0] sm:$0xff]
  %v190 = vld [vmem:[%s4 + $0x3a8] sm:$0xff]
  %v191 = vld [vmem:[%s4 + $0x3b0] sm:$0xff]
  %v192 = vld [vmem:[%s4 + $0x3b8] sm:$0xff]
  %v193 = vld [vmem:[%s4 + $0x3c0] sm:$0xff]
  %v194 = vld [vmem:[%s4 + $0x3c8] sm:$0xff]
  %v195 = vld [vmem:[%s4 + $0x3d0] sm:$0xff]
  %v196 = vld [vmem:[%s4 + $0x3d8] sm:$0xff]
  %v197 = vld [vmem:[%s4 + $0x3e0] sm:$0xff]
  %v198 = vld [vmem:[%s4 + $0x3e8] sm:$0xff]
  %v199 = vld [vmem:[%s4 + $0x3f0] sm:$0xff]
  %v200 = vld [vmem:[%s4 + $0x3f8] sm:$0xff]
  %v201 = vld [vmem:[%s2] sm:$0xff]
  %v202 = vld [vmem:[%s2 + $0x8] sm:$0xff]
  %v203 = vld [vmem:[%s2 + $0x10] sm:$0xff]
  %v204 = vld [vmem:[%s2 + $0x18] sm:$0xff]
  %v205 = vld [vmem:[%s2 + $0x20] sm:$0xff]
  %v206 = vld [vmem:[%s2 + $0x28] sm:$0xff]
  %v207 = vld [vmem:[%s2 + $0x30] sm:$0xff]
  %v208 = vld [vmem:[%s2 + $0x38] sm:$0xff]
  %v209 = vld [vmem:[%s2 + $0x40] sm:$0xff]
  %v210 = vld [vmem:[%s2 + $0x48] sm:$0xff]
  %v211 = vld [vmem:[%s2 + $0x50] sm:$0xff]
  %v212 = vld [vmem:[%s2 + $0x58] sm:$0xff]
  %v213 = vld [vmem:[%s2 + $0x60] sm:$0xff]
  %v214 = vld [vmem:[%s2 + $0x68] sm:$0xff]
  %v215 = vld [vmem:[%s2 + $0x70] sm:$0xff]
  %v216 = vld [vmem:[%s2 + $0x78] sm:$0xff]
  %v217 = vld [vmem:[%s2 + $0x80] sm:$0xff]
  %v218 = vld [vmem:[%s2 + $0x88] sm:$0xff]
  %v219 = vld [vmem:[%s2 + $0x90] sm:$0xff]
  %v220 = vld [vmem:[%s2 + $0x98] sm:$0xff]
  %v221 = vld [vmem:[%s2 + $0xa0] sm:$0xff]
  %v222 = vld [vmem:[%s2 + $0xa8] sm:$0xff]
  %v223 = vld [vmem:[%s2 + $0xb0] sm:$0xff]
  %v224 = vld [vmem:[%s2 + $0xb8] sm:$0xff]
  %v225 = vld [vmem:[%s2 + $0xc0] sm:$0xff]
  %v226 = vld [vmem:[%s2 + $0xc8] sm:$0xff]
  %v227 = vld [vmem:[%s2 + $0xd0] sm:$0xff]
  %v228 = vld [vmem:[%s2 + $0xd8] sm:$0xff]
  %v229 = vld [vmem:[%s2 + $0xe0] sm:$0xff]
  %v230 = vld [vmem:[%s2 + $0xe8] sm:$0xff]
  %v231 = vld [vmem:[%s2 + $0xf0] sm:$0xff]
  %v232 = vld [vmem:[%s2 + $0xf8] sm:$0xff]
  %v233 = vld [vmem:[%s2 + $0x100] sm:$0xff]
  %v234 = vld [vmem:[%s2 + $0x108] sm:$0xff]
  %v235 = vld [vmem:[%s2 + $0x110] sm:$0xff]
  %v236 = vld [vmem:[%s2 + $0x118] sm:$0xff]
  %v237 = vld [vmem:[%s2 + $0x120] sm:$0xff]
  %v238 = vld [vmem:[%s2 + $0x128] sm:$0xff]
  %v239 = vld [vmem:[%s2 + $0x130] sm:$0xff]
  %v240 = vld [vmem:[%s2 + $0x138] sm:$0xff]
  %v241 = vld [vmem:[%s2 + $0x140] sm:$0xff]
  %v242 = vld [vmem:[%s2 + $0x148] sm:$0xff]
  %v243 = vld [vmem:[%s2 + $0x150] sm:$0xff]
  %v244 = vld [vmem:[%s2 + $0x158] sm:$0xff]
  %v245 = vld [vmem:[%s2 + $0x160] sm:$0xff]
  %v246 = vld [vmem:[%s2 + $0x168] sm:$0xff]
  %v247 = vld [vmem:[%s2 + $0x170] sm:$0xff]
  %v248 = vld [vmem:[%s2 + $0x178] sm:$0xff]
  %v249 = vld [vmem:[%s2 + $0x180] sm:$0xff]
  %v250 = vld [vmem:[%s2 + $0x188] sm:$0xff]
  %v251 = vld [vmem:[%s2 + $0x190] sm:$0xff]
  %v252 = vld [vmem:[%s2 + $0x198] sm:$0xff]
  %v253 = vld [vmem:[%s2 + $0x1a0] sm:$0xff]
  %v254 = vld [vmem:[%s2 + $0x1a8] sm:$0xff]
  %v255 = vld [vmem:[%s2 + $0x1b0] sm:$0xff]
  %v256 = vld [vmem:[%s2 + $0x1b8] sm:$0xff]
  %v257 = vld [vmem:[%s2 + $0x1c0] sm:$0xff]
  %v258 = vld [vmem:[%s2 + $0x1c8] sm:$0xff]
  %v259 = vld [vmem:[%s2 + $0x1d0] sm:$0xff]
  %v260 = vld [vmem:[%s2 + $0x1d8] sm:$0xff]
  %v261 = vld [vmem:[%s2 + $0x1e0] sm:$0xff]
  %v262 = vld [vmem:[%s2 + $0x1e8] sm:$0xff]
  %v263 = vld [vmem:[%s2 + $0x1f0] sm:$0xff]
  %v264 = vld [vmem:[%s2 + $0x1f8] sm:$0xff]
  %s265 = scalar_lea.vmem %s2, 512
  %v266 = vld [vmem:[%s265] sm:$0xff]
  %v267 = vld [vmem:[%s265 + $0x8] sm:$0xff]
  %v268 = vld [vmem:[%s265 + $0x10] sm:$0xff]
  %v269 = vld [vmem:[%s265 + $0x18] sm:$0xff]
  %v270 = vld [vmem:[%s265 + $0x20] sm:$0xff]
  %v271 = vld [vmem:[%s265 + $0x28] sm:$0xff]
  %v272 = vld [vmem:[%s265 + $0x30] sm:$0xff]
  %v273 = vld [vmem:[%s265 + $0x38] sm:$0xff]
  %v274 = vld [vmem:[%s265 + $0x40] sm:$0xff]
  %v275 = vld [vmem:[%s265 + $0x48] sm:$0xff]
  %v276 = vld [vmem:[%s265 + $0x50] sm:$0xff]
  %v277 = vld [vmem:[%s265 + $0x58] sm:$0xff]
  %v278 = vld [vmem:[%s265 + $0x60] sm:$0xff]
  %v279 = vld [vmem:[%s265 + $0x68] sm:$0xff]
  %v280 = vld [vmem:[%s265 + $0x70] sm:$0xff]
  %v281 = vld [vmem:[%s265 + $0x78] sm:$0xff]
  %v282 = vld [vmem:[%s265 + $0x80] sm:$0xff]
  %v283 = vld [vmem:[%s265 + $0x88] sm:$0xff]
  %v284 = vld [vmem:[%s265 + $0x90] sm:$0xff]
  %v285 = vld [vmem:[%s265 + $0x98] sm:$0xff]
  %v286 = vld [vmem:[%s265 + $0xa0] sm:$0xff]
  %v287 = vld [vmem:[%s265 + $0xa8] sm:$0xff]
  %v288 = vld [vmem:[%s265 + $0xb0] sm:$0xff]
  %v289 = vld [vmem:[%s265 + $0xb8] sm:$0xff]
  %v290 = vld [vmem:[%s265 + $0xc0] sm:$0xff]
  %v291 = vld [vmem:[%s265 + $0xc8] sm:$0xff]
  %v292 = vld [vmem:[%s265 + $0xd0] sm:$0xff]
  %v293 = vld [vmem:[%s265 + $0xd8] sm:$0xff]
  %v294 = vld [vmem:[%s265 + $0xe0] sm:$0xff]
  %v295 = vld [vmem:[%s265 + $0xe8] sm:$0xff]
  %v296 = vld [vmem:[%s265 + $0xf0] sm:$0xff]
  %v297 = vld [vmem:[%s265 + $0xf8] sm:$0xff]
  %v298 = vld [vmem:[%s265 + $0x100] sm:$0xff]
  %v299 = vld [vmem:[%s265 + $0x108] sm:$0xff]
  %v300 = vld [vmem:[%s265 + $0x110] sm:$0xff]
  %v301 = vld [vmem:[%s265 + $0x118] sm:$0xff]
  %v302 = vld [vmem:[%s265 + $0x120] sm:$0xff]
  %v303 = vld [vmem:[%s265 + $0x128] sm:$0xff]
  %v304 = vld [vmem:[%s265 + $0x130] sm:$0xff]
  %v305 = vld [vmem:[%s265 + $0x138] sm:$0xff]
  %v306 = vld [vmem:[%s265 + $0x140] sm:$0xff]
  %v307 = vld [vmem:[%s265 + $0x148] sm:$0xff]
  %v308 = vld [vmem:[%s265 + $0x150] sm:$0xff]
  %v309 = vld [vmem:[%s265 + $0x158] sm:$0xff]
  %v310 = vld [vmem:[%s265 + $0x160] sm:$0xff]
  %v311 = vld [vmem:[%s265 + $0x168] sm:$0xff]
  %v312 = vld [vmem:[%s265 + $0x170] sm:$0xff]
  %v313 = vld [vmem:[%s265 + $0x178] sm:$0xff]
  %v314 = vld [vmem:[%s265 + $0x180] sm:$0xff]
  %v315 = vld [vmem:[%s265 + $0x188] sm:$0xff]
  %v316 = vld [vmem:[%s265 + $0x190] sm:$0xff]
  %v317 = vld [vmem:[%s265 + $0x198] sm:$0xff]
  %v318 = vld [vmem:[%s265 + $0x1a0] sm:$0xff]
  %v319 = vld [vmem:[%s265 + $0x1a8] sm:$0xff]
  %v320 = vld [vmem:[%s265 + $0x1b0] sm:$0xff]
  %v321 = vld [vmem:[%s265 + $0x1b8] sm:$0xff]
  %v322 = vld [vmem:[%s265 + $0x1c0] sm:$0xff]
  %v323 = vld [vmem:[%s265 + $0x1c8] sm:$0xff]
  %v324 = vld [vmem:[%s265 + $0x1d0] sm:$0xff]
  %v325 = vld [vmem:[%s265 + $0x1d8] sm:$0xff]
  %v326 = vld [vmem:[%s265 + $0x1e0] sm:$0xff]
  %v327 = vld [vmem:[%s265 + $0x1e8] sm:$0xff]
  %v328 = vld [vmem:[%s265 + $0x1f0] sm:$0xff]
  %v329 = vld [vmem:[%s265 + $0x1f8] sm:$0xff]
  %s330 = scalar_lea.vmem %s2, 1024
  %v331 = vld [vmem:[%s330] sm:$0xff]
  %v332 = vld [vmem:[%s330 + $0x8] sm:$0xff]
  %v333 = vld [vmem:[%s330 + $0x10] sm:$0xff]
  %v334 = vld [vmem:[%s330 + $0x18] sm:$0xff]
  %v335 = vld [vmem:[%s330 + $0x20] sm:$0xff]
  %v336 = vld [vmem:[%s330 + $0x28] sm:$0xff]
  %v337 = vld [vmem:[%s330 + $0x30] sm:$0xff]
  %v338 = vld [vmem:[%s330 + $0x38] sm:$0xff]
  %v339 = vld [vmem:[%s330 + $0x40] sm:$0xff]
  %v340 = vld [vmem:[%s330 + $0x48] sm:$0xff]
  %v341 = vld [vmem:[%s330 + $0x50] sm:$0xff]
  %v342 = vld [vmem:[%s330 + $0x58] sm:$0xff]
  %v343 = vld [vmem:[%s330 + $0x60] sm:$0xff]
  %v344 = vld [vmem:[%s330 + $0x68] sm:$0xff]
  %v345 = vld [vmem:[%s330 + $0x70] sm:$0xff]
  %v346 = vld [vmem:[%s330 + $0x78] sm:$0xff]
  %v347 = vld [vmem:[%s330 + $0x80] sm:$0xff]
  %v348 = vld [vmem:[%s330 + $0x88] sm:$0xff]
  %v349 = vld [vmem:[%s330 + $0x90] sm:$0xff]
  %v350 = vld [vmem:[%s330 + $0x98] sm:$0xff]
  %v351 = vld [vmem:[%s330 + $0xa0] sm:$0xff]
  %v352 = vld [vmem:[%s330 + $0xa8] sm:$0xff]
  %v353 = vld [vmem:[%s330 + $0xb0] sm:$0xff]
  %v354 = vld [vmem:[%s330 + $0xb8] sm:$0xff]
  %v355 = vld [vmem:[%s330 + $0xc0] sm:$0xff]
  %v356 = vld [vmem:[%s330 + $0xc8] sm:$0xff]
  %v357 = vld [vmem:[%s330 + $0xd0] sm:$0xff]
  %v358 = vld [vmem:[%s330 + $0xd8] sm:$0xff]
  %v359 = vld [vmem:[%s330 + $0xe0] sm:$0xff]
  %v360 = vld [vmem:[%s330 + $0xe8] sm:$0xff]
  %v361 = vld [vmem:[%s330 + $0xf0] sm:$0xff]
  %v362 = vld [vmem:[%s330 + $0xf8] sm:$0xff]
  %v363 = vld [vmem:[%s330 + $0x100] sm:$0xff]
  %v364 = vld [vmem:[%s330 + $0x108] sm:$0xff]
  %v365 = vld [vmem:[%s330 + $0x110] sm:$0xff]
  %v366 = vld [vmem:[%s330 + $0x118] sm:$0xff]
  %v367 = vld [vmem:[%s330 + $0x120] sm:$0xff]
  %v368 = vld [vmem:[%s330 + $0x128] sm:$0xff]
  %v369 = vld [vmem:[%s330 + $0x130] sm:$0xff]
  %v370 = vld [vmem:[%s330 + $0x138] sm:$0xff]
  %v371 = vld [vmem:[%s330 + $0x140] sm:$0xff]
  %v372 = vld [vmem:[%s330 + $0x148] sm:$0xff]
  %v373 = vld [vmem:[%s330 + $0x150] sm:$0xff]
  %v374 = vld [vmem:[%s330 + $0x158] sm:$0xff]
  %v375 = vld [vmem:[%s330 + $0x160] sm:$0xff]
  %v376 = vld [vmem:[%s330 + $0x168] sm:$0xff]
  %v377 = vld [vmem:[%s330 + $0x170] sm:$0xff]
  %v378 = vld [vmem:[%s330 + $0x178] sm:$0xff]
  %v379 = vld [vmem:[%s330 + $0x180] sm:$0xff]
  %v380 = vld [vmem:[%s330 + $0x188] sm:$0xff]
  %v381 = vld [vmem:[%s330 + $0x190] sm:$0xff]
  %v382 = vld [vmem:[%s330 + $0x198] sm:$0xff]
  %v383 = vld [vmem:[%s330 + $0x1a0] sm:$0xff]
  %v384 = vld [vmem:[%s330 + $0x1a8] sm:$0xff]
  %v385 = vld [vmem:[%s330 + $0x1b0] sm:$0xff]
  %v386 = vld [vmem:[%s330 + $0x1b8] sm:$0xff]
  %v387 = vld [vmem:[%s330 + $0x1c0] sm:$0xff]
  %v388 = vld [vmem:[%s330 + $0x1c8] sm:$0xff]
  %v389 = vld [vmem:[%s330 + $0x1d0] sm:$0xff]
  %v390 = vld [vmem:[%s330 + $0x1d8] sm:$0xff]
  %v391 = vld [vmem:[%s330 + $0x1e0] sm:$0xff]
  %v392 = vld [vmem:[%s330 + $0x1e8] sm:$0xff]
  %v393 = vld [vmem:[%s330 + $0x1f0] sm:$0xff]
  %v394 = vld [vmem:[%s330 + $0x1f8] sm:$0xff]
  %v397 = vunpack.c.l.s4 1983009808
  %v398 = vunpack.c.0.s8 %v397
  %v399 = vlaneseq
  %v400 = vshrl.u32 %v399, 7
  %v401 = vsub.s32 %v398, %v400
  %v402 = vrot.slane %v56, %v401
  %v403 = vcombine.high %v402, %v402
  %v406 = vpack.c.bf16 %v402, %v402
  %v407 = vpack.c.bf16 %v403, %v403
  %v410 = vunpack.c.l.s4 1983009808
  %v411 = vunpack.c.0.s8 %v410
  %v412 = vlaneseq
  %v413 = vshrl.u32 %v412, 7
  %v414 = vsub.s32 %v411, %v413
  %v415 = vrot.slane %v58, %v414
  %v416 = vcombine.high %v415, %v415
  %v419 = vpack.c.bf16 %v415, %v415
  %v420 = vpack.c.bf16 %v416, %v416
  %v423 = vunpack.c.l.s4 1983009808
  %v424 = vunpack.c.0.s8 %v423
  %v425 = vlaneseq
  %v426 = vshrl.u32 %v425, 7
  %v427 = vsub.s32 %v424, %v426
  %v428 = vrot.slane %v60, %v427
  %v429 = vcombine.high %v428, %v428
  %v432 = vpack.c.bf16 %v428, %v428
  %v433 = vpack.c.bf16 %v429, %v429
  %v436 = vunpack.c.l.s4 1983009808
  %v437 = vunpack.c.0.s8 %v436
  %v438 = vlaneseq
  %v439 = vshrl.u32 %v438, 7
  %v440 = vsub.s32 %v437, %v439
  %v441 = vrot.slane %v62, %v440
  %v442 = vcombine.high %v441, %v441
  %v445 = vpack.c.bf16 %v441, %v441
  %v446 = vpack.c.bf16 %v442, %v442
  %v449 = vunpack.c.l.s4 1983009808
  %v450 = vunpack.c.0.s8 %v449
  %v451 = vlaneseq
  %v452 = vshrl.u32 %v451, 7
  %v453 = vsub.s32 %v450, %v452
  %v454 = vrot.slane %v64, %v453
  %v455 = vcombine.high %v454, %v454
  %v458 = vpack.c.bf16 %v454, %v454
  %v459 = vpack.c.bf16 %v455, %v455
  %v462 = vunpack.c.l.s4 1983009808
  %v463 = vunpack.c.0.s8 %v462
  %v464 = vlaneseq
  %v465 = vshrl.u32 %v464, 7
  %v466 = vsub.s32 %v463, %v465
  %v467 = vrot.slane %v66, %v466
  %v468 = vcombine.high %v467, %v467
  %v471 = vpack.c.bf16 %v467, %v467
  %v472 = vpack.c.bf16 %v468, %v468
  %v475 = vunpack.c.l.s4 1983009808
  %v476 = vunpack.c.0.s8 %v475
  %v477 = vlaneseq
  %v478 = vshrl.u32 %v477, 7
  %v479 = vsub.s32 %v476, %v478
  %v480 = vrot.slane %v68, %v479
  %v481 = vcombine.high %v480, %v480
  %v484 = vpack.c.bf16 %v480, %v480
  %v485 = vpack.c.bf16 %v481, %v481
  %v488 = vunpack.c.l.s4 1983009808
  %v489 = vunpack.c.0.s8 %v488
  %v490 = vlaneseq
  %v491 = vshrl.u32 %v490, 7
  %v492 = vsub.s32 %v489, %v491
  %v493 = vrot.slane %v70, %v492
  %v494 = vcombine.high %v493, %v493
  %v497 = vpack.c.bf16 %v493, %v493
  %v498 = vpack.c.bf16 %v494, %v494
  %v563 = vunpack.c.l.b16 %v331
  %v564 = vunpack.c.h.b16 %v331
  %v565 = vunpack.c.l.b16 %v332
  %v566 = vunpack.c.h.b16 %v332
  %v567 = vunpack.c.l.b16 %v333
  %v568 = vunpack.c.h.b16 %v333
  %v569 = vunpack.c.l.b16 %v334
  %v570 = vunpack.c.h.b16 %v334
  %v571 = vunpack.c.l.b16 %v335
  %v572 = vunpack.c.h.b16 %v335
  %v573 = vunpack.c.l.b16 %v336
  %v574 = vunpack.c.h.b16 %v336
  %v575 = vunpack.c.l.b16 %v337
  %v576 = vunpack.c.h.b16 %v337
  %v577 = vunpack.c.l.b16 %v338
  %v578 = vunpack.c.h.b16 %v338
  %v579 = vunpack.c.l.b16 %v339
  %v580 = vunpack.c.h.b16 %v339
  %v581 = vunpack.c.l.b16 %v340
  %v582 = vunpack.c.h.b16 %v340
  %v583 = vunpack.c.l.b16 %v341
  %v584 = vunpack.c.h.b16 %v341
  %v585 = vunpack.c.l.b16 %v342
  %v586 = vunpack.c.h.b16 %v342
  %v587 = vunpack.c.l.b16 %v343
  %v588 = vunpack.c.h.b16 %v343
  %v589 = vunpack.c.l.b16 %v344
  %v590 = vunpack.c.h.b16 %v344
  %v591 = vunpack.c.l.b16 %v345
  %v592 = vunpack.c.h.b16 %v345
  %v593 = vunpack.c.l.b16 %v346
  %v594 = vunpack.c.h.b16 %v346
  %v595 = vunpack.c.l.b16 %v347
  %v596 = vunpack.c.h.b16 %v347
  %v597 = vunpack.c.l.b16 %v348
  %v598 = vunpack.c.h.b16 %v348
  %v599 = vunpack.c.l.b16 %v349
  %v600 = vunpack.c.h.b16 %v349
  %v601 = vunpack.c.l.b16 %v350
  %v602 = vunpack.c.h.b16 %v350
  %v603 = vunpack.c.l.b16 %v351
  %v604 = vunpack.c.h.b16 %v351
  %v605 = vunpack.c.l.b16 %v352
  %v606 = vunpack.c.h.b16 %v352
  %v607 = vunpack.c.l.b16 %v353
  %v608 = vunpack.c.h.b16 %v353
  %v609 = vunpack.c.l.b16 %v354
  %v610 = vunpack.c.h.b16 %v354
  %v611 = vunpack.c.l.b16 %v355
  %v612 = vunpack.c.h.b16 %v355
  %v613 = vunpack.c.l.b16 %v356
  %v614 = vunpack.c.h.b16 %v356
  %v615 = vunpack.c.l.b16 %v357
  %v616 = vunpack.c.h.b16 %v357
  %v617 = vunpack.c.l.b16 %v358
  %v618 = vunpack.c.h.b16 %v358
  %v619 = vunpack.c.l.b16 %v359
  %v620 = vunpack.c.h.b16 %v359
  %v621 = vunpack.c.l.b16 %v360
  %v622 = vunpack.c.h.b16 %v360
  %v623 = vunpack.c.l.b16 %v361
  %v624 = vunpack.c.h.b16 %v361
  %v625 = vunpack.c.l.b16 %v362
  %v626 = vunpack.c.h.b16 %v362
  %v627 = vunpack.c.l.b16 %v363
  %v628 = vunpack.c.h.b16 %v363
  %v629 = vunpack.c.l.b16 %v364
  %v630 = vunpack.c.h.b16 %v364
  %v631 = vunpack.c.l.b16 %v365
  %v632 = vunpack.c.h.b16 %v365
  %v633 = vunpack.c.l.b16 %v366
  %v634 = vunpack.c.h.b16 %v366
  %v635 = vunpack.c.l.b16 %v367
  %v636 = vunpack.c.h.b16 %v367
  %v637 = vunpack.c.l.b16 %v368
  %v638 = vunpack.c.h.b16 %v368
  %v639 = vunpack.c.l.b16 %v369
  %v640 = vunpack.c.h.b16 %v369
  %v641 = vunpack.c.l.b16 %v370
  %v642 = vunpack.c.h.b16 %v370
  %v643 = vunpack.c.l.b16 %v371
  %v644 = vunpack.c.h.b16 %v371
  %v645 = vunpack.c.l.b16 %v372
  %v646 = vunpack.c.h.b16 %v372
  %v647 = vunpack.c.l.b16 %v373
  %v648 = vunpack.c.h.b16 %v373
  %v649 = vunpack.c.l.b16 %v374
  %v650 = vunpack.c.h.b16 %v374
  %v651 = vunpack.c.l.b16 %v375
  %v652 = vunpack.c.h.b16 %v375
  %v653 = vunpack.c.l.b16 %v376
  %v654 = vunpack.c.h.b16 %v376
  %v655 = vunpack.c.l.b16 %v377
  %v656 = vunpack.c.h.b16 %v377
  %v657 = vunpack.c.l.b16 %v378
  %v658 = vunpack.c.h.b16 %v378
  %v659 = vunpack.c.l.b16 %v379
  %v660 = vunpack.c.h.b16 %v379
  %v661 = vunpack.c.l.b16 %v380
  %v662 = vunpack.c.h.b16 %v380
  %v663 = vunpack.c.l.b16 %v381
  %v664 = vunpack.c.h.b16 %v381
  %v665 = vunpack.c.l.b16 %v382
  %v666 = vunpack.c.h.b16 %v382
  %v667 = vunpack.c.l.b16 %v383
  %v668 = vunpack.c.h.b16 %v383
  %v669 = vunpack.c.l.b16 %v384
  %v670 = vunpack.c.h.b16 %v384
  %v671 = vunpack.c.l.b16 %v385
  %v672 = vunpack.c.h.b16 %v385
  %v673 = vunpack.c.l.b16 %v386
  %v674 = vunpack.c.h.b16 %v386
  %v675 = vunpack.c.l.b16 %v387
  %v676 = vunpack.c.h.b16 %v387
  %v677 = vunpack.c.l.b16 %v388
  %v678 = vunpack.c.h.b16 %v388
  %v679 = vunpack.c.l.b16 %v389
  %v680 = vunpack.c.h.b16 %v389
  %v681 = vunpack.c.l.b16 %v390
  %v682 = vunpack.c.h.b16 %v390
  %v683 = vunpack.c.l.b16 %v391
  %v684 = vunpack.c.h.b16 %v391
  %v685 = vunpack.c.l.b16 %v392
  %v686 = vunpack.c.h.b16 %v392
  %v687 = vunpack.c.l.b16 %v393
  %v688 = vunpack.c.h.b16 %v393
  %v689 = vunpack.c.l.b16 %v394
  %v690 = vunpack.c.h.b16 %v394
  %v691 = vpack.c.b16 %v567, %v563
  %v692 = vpack.c.b16 %v568, %v564
  %v693 = vpack.c.b16 %v569, %v565
  %v694 = vpack.c.b16 %v570, %v566
  %v695 = vpack.c.b16 %v575, %v571
  %v696 = vpack.c.b16 %v576, %v572
  %v697 = vpack.c.b16 %v577, %v573
  %v698 = vpack.c.b16 %v578, %v574
  %v699 = vpack.c.b16 %v583, %v579
  %v700 = vpack.c.b16 %v584, %v580
  %v701 = vpack.c.b16 %v585, %v581
  %v702 = vpack.c.b16 %v586, %v582
  %v703 = vpack.c.b16 %v591, %v587
  %v704 = vpack.c.b16 %v592, %v588
  %v705 = vpack.c.b16 %v593, %v589
  %v706 = vpack.c.b16 %v594, %v590
  %v707 = vpack.c.b16 %v599, %v595
  %v708 = vpack.c.b16 %v600, %v596
  %v709 = vpack.c.b16 %v601, %v597
  %v710 = vpack.c.b16 %v602, %v598
  %v711 = vpack.c.b16 %v607, %v603
  %v712 = vpack.c.b16 %v608, %v604
  %v713 = vpack.c.b16 %v609, %v605
  %v714 = vpack.c.b16 %v610, %v606
  %v715 = vpack.c.b16 %v615, %v611
  %v716 = vpack.c.b16 %v616, %v612
  %v717 = vpack.c.b16 %v617, %v613
  %v718 = vpack.c.b16 %v618, %v614
  %v719 = vpack.c.b16 %v623, %v619
  %v720 = vpack.c.b16 %v624, %v620
  %v721 = vpack.c.b16 %v625, %v621
  %v722 = vpack.c.b16 %v626, %v622
  %v723 = vpack.c.b16 %v631, %v627
  %v724 = vpack.c.b16 %v632, %v628
  %v725 = vpack.c.b16 %v633, %v629
  %v726 = vpack.c.b16 %v634, %v630
  %v727 = vpack.c.b16 %v639, %v635
  %v728 = vpack.c.b16 %v640, %v636
  %v729 = vpack.c.b16 %v641, %v637
  %v730 = vpack.c.b16 %v642, %v638
  %v731 = vpack.c.b16 %v647, %v643
  %v732 = vpack.c.b16 %v648, %v644
  %v733 = vpack.c.b16 %v649, %v645
  %v734 = vpack.c.b16 %v650, %v646
  %v735 = vpack.c.b16 %v655, %v651
  %v736 = vpack.c.b16 %v656, %v652
  %v737 = vpack.c.b16 %v657, %v653
  %v738 = vpack.c.b16 %v658, %v654
  %v739 = vpack.c.b16 %v663, %v659
  %v740 = vpack.c.b16 %v664, %v660
  %v741 = vpack.c.b16 %v665, %v661
  %v742 = vpack.c.b16 %v666, %v662
  %v743 = vpack.c.b16 %v671, %v667
  %v744 = vpack.c.b16 %v672, %v668
  %v745 = vpack.c.b16 %v673, %v669
  %v746 = vpack.c.b16 %v674, %v670
  %v747 = vpack.c.b16 %v679, %v675
  %v748 = vpack.c.b16 %v680, %v676
  %v749 = vpack.c.b16 %v681, %v677
  %v750 = vpack.c.b16 %v682, %v678
  %v751 = vpack.c.b16 %v687, %v683
  %v752 = vpack.c.b16 %v688, %v684
  %v753 = vpack.c.b16 %v689, %v685
  %v754 = vpack.c.b16 %v690, %v686
  %819 = vmatprep.subr.bf16.mxu0 %v720
  %820 = vmatpush1.bf16.msra.mxu0 %v719
  %821 = vmatprep.subr.bf16.mxu0 %v716
  %822 = vmatpush1.bf16.msra.mxu0 %v715
  %823 = vmatprep.subr.bf16.mxu0 %v712
  %824 = vmatpush1.bf16.msra.mxu0 %v711
  %825 = vmatprep.subr.bf16.mxu0 %v708
  %826 = vmatpush1.bf16.msra.mxu0 %v707
  %827 = vmatprep.subr.bf16.mxu0 %v704
  %828 = vmatpush1.bf16.msra.mxu0 %v703
  %829 = vmatprep.subr.bf16.mxu0 %v700
  %830 = vmatpush1.bf16.msra.mxu0 %v699
  %831 = vmatprep.subr.bf16.mxu0 %v696
  %832 = vmatpush1.bf16.msra.mxu0 %v695
  %833 = vmatprep.subr.bf16.mxu0 %v692
  %834 = vmatpush1.bf16.msra.mxu0 %v691
  %835 = vmatprep.subr.bf16.mxu0 %v752
  %836 = vmatpush2.bf16.msra.mxu0 %v751
  %837 = vmatprep.subr.bf16.mxu0 %v748
  %838 = vmatpush2.bf16.msra.mxu0 %v747
  %839 = vmatprep.subr.bf16.mxu0 %v744
  %840 = vmatpush2.bf16.msra.mxu0 %v743
  %841 = vmatprep.subr.bf16.mxu0 %v740
  %842 = vmatpush2.bf16.msra.mxu0 %v739
  %843 = vmatprep.subr.bf16.mxu0 %v736
  %844 = vmatpush2.bf16.msra.mxu0 %v735
  %845 = vmatprep.subr.bf16.mxu0 %v732
  %846 = vmatpush2.bf16.msra.mxu0 %v731
  %847 = vmatprep.subr.bf16.mxu0 %v728
  %848 = vmatpush2.bf16.msra.mxu0 %v727
  %849 = vmatprep.subr.bf16.mxu0 %v724
  %850 = vmatpush2.bf16.msra.mxu0 %v723
  %851 = vmatprep.mubr.bf16.mxu0 %v420
  %852 = vmatmul.mubr.bf16.gmra.mxu0 %v419
  %v853 = vpop.f32.mrf.mxu0
  %v854 = vadd.f32 0.0, %v853
  %v855 = vpop.f32.mrf.mxu0
  %v856 = vadd.f32 0.0, %v855
  %v857 = vpop.f32.mrf.mxu0
  %v858 = vpop.f32.mrf.mxu0
  %859 = vdwg.mxu0
  %860 = vmatprep.subr.bf16.mxu0 %v722
  %861 = vmatpush1.bf16.msra.mxu0 %v721
  %862 = vmatprep.subr.bf16.mxu0 %v718
  %863 = vmatpush1.bf16.msra.mxu0 %v717
  %864 = vmatprep.subr.bf16.mxu0 %v714
  %865 = vmatpush1.bf16.msra.mxu0 %v713
  %866 = vmatprep.subr.bf16.mxu0 %v710
  %867 = vmatpush1.bf16.msra.mxu0 %v709
  %868 = vmatprep.subr.bf16.mxu0 %v706
  %869 = vmatpush1.bf16.msra.mxu0 %v705
  %870 = vmatprep.subr.bf16.mxu0 %v702
  %871 = vmatpush1.bf16.msra.mxu0 %v701
  %872 = vmatprep.subr.bf16.mxu0 %v698
  %873 = vmatpush1.bf16.msra.mxu0 %v697
  %874 = vmatprep.subr.bf16.mxu0 %v694
  %875 = vmatpush1.bf16.msra.mxu0 %v693
  %876 = vmatprep.subr.bf16.mxu0 %v754
  %877 = vmatpush2.bf16.msra.mxu0 %v753
  %878 = vmatprep.subr.bf16.mxu0 %v750
  %879 = vmatpush2.bf16.msra.mxu0 %v749
  %880 = vmatprep.subr.bf16.mxu0 %v746
  %881 = vmatpush2.bf16.msra.mxu0 %v745
  %882 = vmatprep.subr.bf16.mxu0 %v742
  %883 = vmatpush2.bf16.msra.mxu0 %v741
  %884 = vmatprep.subr.bf16.mxu0 %v738
  %885 = vmatpush2.bf16.msra.mxu0 %v737
  %886 = vmatprep.subr.bf16.mxu0 %v734
  %887 = vmatpush2.bf16.msra.mxu0 %v733
  %888 = vmatprep.subr.bf16.mxu0 %v730
  %889 = vmatpush2.bf16.msra.mxu0 %v729
  %890 = vmatprep.subr.bf16.mxu0 %v726
  %891 = vmatpush2.bf16.msra.mxu0 %v725
  %892 = vmatprep.mubr.bf16.mxu0 %v420
  %893 = vmatmul.mubr.bf16.gmra.mxu0 %v419
  %v894 = vpop.f32.mrf.mxu0
  %v895 = vadd.f32 0.0, %v894
  %v896 = vpop.f32.mrf.mxu0
  %v897 = vadd.f32 0.0, %v896
  %v898 = vpop.f32.mrf.mxu0
  %v899 = vpop.f32.mrf.mxu0
  %900 = vdwg.mxu0
  %v965 = vunpack.c.l.b16 %v266
  %v966 = vunpack.c.h.b16 %v266
  %v967 = vunpack.c.l.b16 %v267
  %v968 = vunpack.c.h.b16 %v267
  %v969 = vunpack.c.l.b16 %v268
  %v970 = vunpack.c.h.b16 %v268
  %v971 = vunpack.c.l.b16 %v269
  %v972 = vunpack.c.h.b16 %v269
  %v973 = vunpack.c.l.b16 %v270
  %v974 = vunpack.c.h.b16 %v270
  %v975 = vunpack.c.l.b16 %v271
  %v976 = vunpack.c.h.b16 %v271
  %v977 = vunpack.c.l.b16 %v272
  %v978 = vunpack.c.h.b16 %v272
  %v979 = vunpack.c.l.b16 %v273
  %v980 = vunpack.c.h.b16 %v273
  %v981 = vunpack.c.l.b16 %v274
  %v982 = vunpack.c.h.b16 %v274
  %v983 = vunpack.c.l.b16 %v275
  %v984 = vunpack.c.h.b16 %v275
  %v985 = vunpack.c.l.b16 %v276
  %v986 = vunpack.c.h.b16 %v276
  %v987 = vunpack.c.l.b16 %v277
  %v988 = vunpack.c.h.b16 %v277
  %v989 = vunpack.c.l.b16 %v278
  %v990 = vunpack.c.h.b16 %v278
  %v991 = vunpack.c.l.b16 %v279
  %v992 = vunpack.c.h.b16 %v279
  %v993 = vunpack.c.l.b16 %v280
  %v994 = vunpack.c.h.b16 %v280
  %v995 = vunpack.c.l.b16 %v281
  %v996 = vunpack.c.h.b16 %v281
  %v997 = vunpack.c.l.b16 %v282
  %v998 = vunpack.c.h.b16 %v282
  %v999 = vunpack.c.l.b16 %v283
  %v1000 = vunpack.c.h.b16 %v283
  %v1001 = vunpack.c.l.b16 %v284
  %v1002 = vunpack.c.h.b16 %v284
  %v1003 = vunpack.c.l.b16 %v285
  %v1004 = vunpack.c.h.b16 %v285
  %v1005 = vunpack.c.l.b16 %v286
  %v1006 = vunpack.c.h.b16 %v286
  %v1007 = vunpack.c.l.b16 %v287
  %v1008 = vunpack.c.h.b16 %v287
  %v1009 = vunpack.c.l.b16 %v288
  %v1010 = vunpack.c.h.b16 %v288
  %v1011 = vunpack.c.l.b16 %v289
  %v1012 = vunpack.c.h.b16 %v289
  %v1013 = vunpack.c.l.b16 %v290
  %v1014 = vunpack.c.h.b16 %v290
  %v1015 = vunpack.c.l.b16 %v291
  %v1016 = vunpack.c.h.b16 %v291
  %v1017 = vunpack.c.l.b16 %v292
  %v1018 = vunpack.c.h.b16 %v292
  %v1019 = vunpack.c.l.b16 %v293
  %v1020 = vunpack.c.h.b16 %v293
  %v1021 = vunpack.c.l.b16 %v294
  %v1022 = vunpack.c.h.b16 %v294
  %v1023 = vunpack.c.l.b16 %v295
  %v1024 = vunpack.c.h.b16 %v295
  %v1025 = vunpack.c.l.b16 %v296
  %v1026 = vunpack.c.h.b16 %v296
  %v1027 = vunpack.c.l.b16 %v297
  %v1028 = vunpack.c.h.b16 %v297
  %v1029 = vunpack.c.l.b16 %v298
  %v1030 = vunpack.c.h.b16 %v298
  %v1031 = vunpack.c.l.b16 %v299
  %v1032 = vunpack.c.h.b16 %v299
  %v1033 = vunpack.c.l.b16 %v300
  %v1034 = vunpack.c.h.b16 %v300
  %v1035 = vunpack.c.l.b16 %v301
  %v1036 = vunpack.c.h.b16 %v301
  %v1037 = vunpack.c.l.b16 %v302
  %v1038 = vunpack.c.h.b16 %v302
  %v1039 = vunpack.c.l.b16 %v303
  %v1040 = vunpack.c.h.b16 %v303
  %v1041 = vunpack.c.l.b16 %v304
  %v1042 = vunpack.c.h.b16 %v304
  %v1043 = vunpack.c.l.b16 %v305
  %v1044 = vunpack.c.h.b16 %v305
  %v1045 = vunpack.c.l.b16 %v306
  %v1046 = vunpack.c.h.b16 %v306
  %v1047 = vunpack.c.l.b16 %v307
  %v1048 = vunpack.c.h.b16 %v307
  %v1049 = vunpack.c.l.b16 %v308
  %v1050 = vunpack.c.h.b16 %v308
  %v1051 = vunpack.c.l.b16 %v309
  %v1052 = vunpack.c.h.b16 %v309
  %v1053 = vunpack.c.l.b16 %v310
  %v1054 = vunpack.c.h.b16 %v310
  %v1055 = vunpack.c.l.b16 %v311
  %v1056 = vunpack.c.h.b16 %v311
  %v1057 = vunpack.c.l.b16 %v312
  %v1058 = vunpack.c.h.b16 %v312
  %v1059 = vunpack.c.l.b16 %v313
  %v1060 = vunpack.c.h.b16 %v313
  %v1061 = vunpack.c.l.b16 %v314
  %v1062 = vunpack.c.h.b16 %v314
  %v1063 = vunpack.c.l.b16 %v315
  %v1064 = vunpack.c.h.b16 %v315
  %v1065 = vunpack.c.l.b16 %v316
  %v1066 = vunpack.c.h.b16 %v316
  %v1067 = vunpack.c.l.b16 %v317
  %v1068 = vunpack.c.h.b16 %v317
  %v1069 = vunpack.c.l.b16 %v318
  %v1070 = vunpack.c.h.b16 %v318
  %v1071 = vunpack.c.l.b16 %v319
  %v1072 = vunpack.c.h.b16 %v319
  %v1073 = vunpack.c.l.b16 %v320
  %v1074 = vunpack.c.h.b16 %v320
  %v1075 = vunpack.c.l.b16 %v321
  %v1076 = vunpack.c.h.b16 %v321
  %v1077 = vunpack.c.l.b16 %v322
  %v1078 = vunpack.c.h.b16 %v322
  %v1079 = vunpack.c.l.b16 %v323
  %v1080 = vunpack.c.h.b16 %v323
  %v1081 = vunpack.c.l.b16 %v324
  %v1082 = vunpack.c.h.b16 %v324
  %v1083 = vunpack.c.l.b16 %v325
  %v1084 = vunpack.c.h.b16 %v325
  %v1085 = vunpack.c.l.b16 %v326
  %v1086 = vunpack.c.h.b16 %v326
  %v1087 = vunpack.c.l.b16 %v327
  %v1088 = vunpack.c.h.b16 %v327
  %v1089 = vunpack.c.l.b16 %v328
  %v1090 = vunpack.c.h.b16 %v328
  %v1091 = vunpack.c.l.b16 %v329
  %v1092 = vunpack.c.h.b16 %v329
  %v1093 = vpack.c.b16 %v969, %v965
  %v1094 = vpack.c.b16 %v970, %v966
  %v1095 = vpack.c.b16 %v971, %v967
  %v1096 = vpack.c.b16 %v972, %v968
  %v1097 = vpack.c.b16 %v977, %v973
  %v1098 = vpack.c.b16 %v978, %v974
  %v1099 = vpack.c.b16 %v979, %v975
  %v1100 = vpack.c.b16 %v980, %v976
  %v1101 = vpack.c.b16 %v985, %v981
  %v1102 = vpack.c.b16 %v986, %v982
  %v1103 = vpack.c.b16 %v987, %v983
  %v1104 = vpack.c.b16 %v988, %v984
  %v1105 = vpack.c.b16 %v993, %v989
  %v1106 = vpack.c.b16 %v994, %v990
  %v1107 = vpack.c.b16 %v995, %v991
  %v1108 = vpack.c.b16 %v996, %v992
  %v1109 = vpack.c.b16 %v1001, %v997
  %v1110 = vpack.c.b16 %v1002, %v998
  %v1111 = vpack.c.b16 %v1003, %v999
  %v1112 = vpack.c.b16 %v1004, %v1000
  %v1113 = vpack.c.b16 %v1009, %v1005
  %v1114 = vpack.c.b16 %v1010, %v1006
  %v1115 = vpack.c.b16 %v1011, %v1007
  %v1116 = vpack.c.b16 %v1012, %v1008
  %v1117 = vpack.c.b16 %v1017, %v1013
  %v1118 = vpack.c.b16 %v1018, %v1014
  %v1119 = vpack.c.b16 %v1019, %v1015
  %v1120 = vpack.c.b16 %v1020, %v1016
  %v1121 = vpack.c.b16 %v1025, %v1021
  %v1122 = vpack.c.b16 %v1026, %v1022
  %v1123 = vpack.c.b16 %v1027, %v1023
  %v1124 = vpack.c.b16 %v1028, %v1024
  %v1125 = vpack.c.b16 %v1033, %v1029
  %v1126 = vpack.c.b16 %v1034, %v1030
  %v1127 = vpack.c.b16 %v1035, %v1031
  %v1128 = vpack.c.b16 %v1036, %v1032
  %v1129 = vpack.c.b16 %v1041, %v1037
  %v1130 = vpack.c.b16 %v1042, %v1038
  %v1131 = vpack.c.b16 %v1043, %v1039
  %v1132 = vpack.c.b16 %v1044, %v1040
  %v1133 = vpack.c.b16 %v1049, %v1045
  %v1134 = vpack.c.b16 %v1050, %v1046
  %v1135 = vpack.c.b16 %v1051, %v1047
  %v1136 = vpack.c.b16 %v1052, %v1048
  %v1137 = vpack.c.b16 %v1057, %v1053
  %v1138 = vpack.c.b16 %v1058, %v1054
  %v1139 = vpack.c.b16 %v1059, %v1055
  %v1140 = vpack.c.b16 %v1060, %v1056
  %v1141 = vpack.c.b16 %v1065, %v1061
  %v1142 = vpack.c.b16 %v1066, %v1062
  %v1143 = vpack.c.b16 %v1067, %v1063
  %v1144 = vpack.c.b16 %v1068, %v1064
  %v1145 = vpack.c.b16 %v1073, %v1069
  %v1146 = vpack.c.b16 %v1074, %v1070
  %v1147 = vpack.c.b16 %v1075, %v1071
  %v1148 = vpack.c.b16 %v1076, %v1072
  %v1149 = vpack.c.b16 %v1081, %v1077
  %v1150 = vpack.c.b16 %v1082, %v1078
  %v1151 = vpack.c.b16 %v1083, %v1079
  %v1152 = vpack.c.b16 %v1084, %v1080
  %v1153 = vpack.c.b16 %v1089, %v1085
  %v1154 = vpack.c.b16 %v1090, %v1086
  %v1155 = vpack.c.b16 %v1091, %v1087
  %v1156 = vpack.c.b16 %v1092, %v1088
  %1221 = vmatprep.subr.bf16.mxu0 %v1122
  %1222 = vmatpush1.bf16.msra.mxu0 %v1121
  %1223 = vmatprep.subr.bf16.mxu0 %v1118
  %1224 = vmatpush1.bf16.msra.mxu0 %v1117
  %1225 = vmatprep.subr.bf16.mxu0 %v1114
  %1226 = vmatpush1.bf16.msra.mxu0 %v1113
  %1227 = vmatprep.subr.bf16.mxu0 %v1110
  %1228 = vmatpush1.bf16.msra.mxu0 %v1109
  %1229 = vmatprep.subr.bf16.mxu0 %v1106
  %1230 = vmatpush1.bf16.msra.mxu0 %v1105
  %1231 = vmatprep.subr.bf16.mxu0 %v1102
  %1232 = vmatpush1.bf16.msra.mxu0 %v1101
  %1233 = vmatprep.subr.bf16.mxu0 %v1098
  %1234 = vmatpush1.bf16.msra.mxu0 %v1097
  %1235 = vmatprep.subr.bf16.mxu0 %v1094
  %1236 = vmatpush1.bf16.msra.mxu0 %v1093
  %1237 = vmatprep.subr.bf16.mxu0 %v1154
  %1238 = vmatpush2.bf16.msra.mxu0 %v1153
  %1239 = vmatprep.subr.bf16.mxu0 %v1150
  %1240 = vmatpush2.bf16.msra.mxu0 %v1149
  %1241 = vmatprep.subr.bf16.mxu0 %v1146
  %1242 = vmatpush2.bf16.msra.mxu0 %v1145
  %1243 = vmatprep.subr.bf16.mxu0 %v1142
  %1244 = vmatpush2.bf16.msra.mxu0 %v1141
  %1245 = vmatprep.subr.bf16.mxu0 %v1138
  %1246 = vmatpush2.bf16.msra.mxu0 %v1137
  %1247 = vmatprep.subr.bf16.mxu0 %v1134
  %1248 = vmatpush2.bf16.msra.mxu0 %v1133
  %1249 = vmatprep.subr.bf16.mxu0 %v1130
  %1250 = vmatpush2.bf16.msra.mxu0 %v1129
  %1251 = vmatprep.subr.bf16.mxu0 %v1126
  %1252 = vmatpush2.bf16.msra.mxu0 %v1125
  %1253 = vmatprep.mubr.bf16.mxu0 %v407
  %1254 = vmatmul.mubr.bf16.gmra.mxu0 %v406
  %v1255 = vpop.f32.mrf.mxu0
  %v1256 = vadd.f32 %v854, %v1255
  %v1257 = vpop.f32.mrf.mxu0
  %v1258 = vadd.f32 %v856, %v1257
  %v1259 = vpop.f32.mrf.mxu0
  %v1260 = vpop.f32.mrf.mxu0
  %1261 = vdwg.mxu0
  %1262 = vmatprep.subr.bf16.mxu0 %v1124
  %1263 = vmatpush1.bf16.msra.mxu0 %v1123
  %1264 = vmatprep.subr.bf16.mxu0 %v1120
  %1265 = vmatpush1.bf16.msra.mxu0 %v1119
  %1266 = vmatprep.subr.bf16.mxu0 %v1116
  %1267 = vmatpush1.bf16.msra.mxu0 %v1115
  %1268 = vmatprep.subr.bf16.mxu0 %v1112
  %1269 = vmatpush1.bf16.msra.mxu0 %v1111
  %1270 = vmatprep.subr.bf16.mxu0 %v1108
  %1271 = vmatpush1.bf16.msra.mxu0 %v1107
  %1272 = vmatprep.subr.bf16.mxu0 %v1104
  %1273 = vmatpush1.bf16.msra.mxu0 %v1103
  %1274 = vmatprep.subr.bf16.mxu0 %v1100
  %1275 = vmatpush1.bf16.msra.mxu0 %v1099
  %1276 = vmatprep.subr.bf16.mxu0 %v1096
  %1277 = vmatpush1.bf16.msra.mxu0 %v1095
  %1278 = vmatprep.subr.bf16.mxu0 %v1156
  %1279 = vmatpush2.bf16.msra.mxu0 %v1155
  %1280 = vmatprep.subr.bf16.mxu0 %v1152
  %1281 = vmatpush2.bf16.msra.mxu0 %v1151
  %1282 = vmatprep.subr.bf16.mxu0 %v1148
  %1283 = vmatpush2.bf16.msra.mxu0 %v1147
  %1284 = vmatprep.subr.bf16.mxu0 %v1144
  %1285 = vmatpush2.bf16.msra.mxu0 %v1143
  %1286 = vmatprep.subr.bf16.mxu0 %v1140
  %1287 = vmatpush2.bf16.msra.mxu0 %v1139
  %1288 = vmatprep.subr.bf16.mxu0 %v1136
  %1289 = vmatpush2.bf16.msra.mxu0 %v1135
  %1290 = vmatprep.subr.bf16.mxu0 %v1132
  %1291 = vmatpush2.bf16.msra.mxu0 %v1131
  %1292 = vmatprep.subr.bf16.mxu0 %v1128
  %1293 = vmatpush2.bf16.msra.mxu0 %v1127
  %1294 = vmatprep.mubr.bf16.mxu0 %v407
  %1295 = vmatmul.mubr.bf16.gmra.mxu0 %v406
  %v1296 = vpop.f32.mrf.mxu0
  %v1297 = vadd.f32 %v895, %v1296
  %v1298 = vpop.f32.mrf.mxu0
  %v1299 = vadd.f32 %v897, %v1298
  %v1300 = vpop.f32.mrf.mxu0
  %v1301 = vpop.f32.mrf.mxu0
  %1302 = vdwg.mxu0
  %v1304 = vlaneseq
  %v1305 = vshrl.u32 %v1304, 7
  %v1306 = vsub.s32 0, %v1305
  %v1307 = vrot.slane %v71, %v1306
  %v1308 = vlaneseq
  %v1309 = vshrl.u32 %v1308, 7
  %v1310 = vsub.s32 1, %v1309
  %v1311 = vrot.slane %v71, %v1310
  %v1312 = vlaneseq
  %v1313 = vshrl.u32 %v1312, 7
  %v1314 = vsub.s32 2, %v1313
  %v1315 = vrot.slane %v71, %v1314
  %v1316 = vlaneseq
  %v1317 = vshrl.u32 %v1316, 7
  %v1318 = vsub.s32 3, %v1317
  %v1319 = vrot.slane %v71, %v1318
  %v1324 = vadd.f32 %v1256, %v1307
  %v1325 = vadd.f32 %v1258, %v1311
  %v1326 = vadd.f32 %v1297, %v1315
  %v1327 = vadd.f32 %v1299, %v1319
  %vm1328 = vcmp.ge.f32.partialorder %v1324, 0.0
  %vm1329 = vcmp.ge.f32.partialorder %v1325, 0.0
  %vm1330 = vcmp.ge.f32.partialorder %v1326, 0.0
  %vm1331 = vcmp.ge.f32.partialorder %v1327, 0.0
  %v1332 = vmul.f32 %v1324, 0.2
  %v1333 = vmul.f32 %v1325, 0.2
  %v1334 = vmul.f32 %v1326, 0.2
  %v1335 = vmul.f32 %v1327, 0.2
  %v1336 = vsel %vm1328, %v1324, %v1332
  %v1337 = vsel %vm1329, %v1325, %v1333
  %v1338 = vsel %vm1330, %v1326, %v1334
  %v1339 = vsel %vm1331, %v1327, %v1335
  %v1340 = vpack.c.bf16 %v1336, %v1336
  %v1341 = vpack.c.bf16 %v1337, %v1337
  %v1342 = vpack.c.bf16 %v1338, %v1338
  %v1343 = vpack.c.bf16 %v1339, %v1339
  %v1345 = vlaneseq
  %v1346 = vshrl.u32 %v1345, 7
  %v1347 = vsub.s32 0, %v1346
  %v1348 = vrot.slane %v72, %v1347
  %v1349 = vlaneseq
  %v1350 = vshrl.u32 %v1349, 7
  %v1351 = vsub.s32 1, %v1350
  %v1352 = vrot.slane %v72, %v1351
  %v1353 = vlaneseq
  %v1354 = vshrl.u32 %v1353, 7
  %v1355 = vsub.s32 2, %v1354
  %v1356 = vrot.slane %v72, %v1355
  %v1357 = vlaneseq
  %v1358 = vshrl.u32 %v1357, 7
  %v1359 = vsub.s32 3, %v1358
  %v1360 = vrot.slane %v72, %v1359
  %v1493 = vunpack.c.l.b16 %v73
  %v1494 = vunpack.c.h.b16 %v73
  %v1495 = vunpack.c.l.b16 %v74
  %v1496 = vunpack.c.h.b16 %v74
  %v1497 = vunpack.c.l.b16 %v75
  %v1498 = vunpack.c.h.b16 %v75
  %v1499 = vunpack.c.l.b16 %v76
  %v1500 = vunpack.c.h.b16 %v76
  %v1501 = vunpack.c.l.b16 %v77
  %v1502 = vunpack.c.h.b16 %v77
  %v1503 = vunpack.c.l.b16 %v78
  %v1504 = vunpack.c.h.b16 %v78
  %v1505 = vunpack.c.l.b16 %v79
  %v1506 = vunpack.c.h.b16 %v79
  %v1507 = vunpack.c.l.b16 %v80
  %v1508 = vunpack.c.h.b16 %v80
  %v1509 = vunpack.c.l.b16 %v81
  %v1510 = vunpack.c.h.b16 %v81
  %v1511 = vunpack.c.l.b16 %v82
  %v1512 = vunpack.c.h.b16 %v82
  %v1513 = vunpack.c.l.b16 %v83
  %v1514 = vunpack.c.h.b16 %v83
  %v1515 = vunpack.c.l.b16 %v84
  %v1516 = vunpack.c.h.b16 %v84
  %v1517 = vunpack.c.l.b16 %v85
  %v1518 = vunpack.c.h.b16 %v85
  %v1519 = vunpack.c.l.b16 %v86
  %v1520 = vunpack.c.h.b16 %v86
  %v1521 = vunpack.c.l.b16 %v87
  %v1522 = vunpack.c.h.b16 %v87
  %v1523 = vunpack.c.l.b16 %v88
  %v1524 = vunpack.c.h.b16 %v88
  %v1525 = vunpack.c.l.b16 %v89
  %v1526 = vunpack.c.h.b16 %v89
  %v1527 = vunpack.c.l.b16 %v90
  %v1528 = vunpack.c.h.b16 %v90
  %v1529 = vunpack.c.l.b16 %v91
  %v1530 = vunpack.c.h.b16 %v91
  %v1531 = vunpack.c.l.b16 %v92
  %v1532 = vunpack.c.h.b16 %v92
  %v1533 = vunpack.c.l.b16 %v93
  %v1534 = vunpack.c.h.b16 %v93
  %v1535 = vunpack.c.l.b16 %v94
  %v1536 = vunpack.c.h.b16 %v94
  %v1537 = vunpack.c.l.b16 %v95
  %v1538 = vunpack.c.h.b16 %v95
  %v1539 = vunpack.c.l.b16 %v96
  %v1540 = vunpack.c.h.b16 %v96
  %v1541 = vunpack.c.l.b16 %v97
  %v1542 = vunpack.c.h.b16 %v97
  %v1543 = vunpack.c.l.b16 %v98
  %v1544 = vunpack.c.h.b16 %v98
  %v1545 = vunpack.c.l.b16 %v99
  %v1546 = vunpack.c.h.b16 %v99
  %v1547 = vunpack.c.l.b16 %v100
  %v1548 = vunpack.c.h.b16 %v100
  %v1549 = vunpack.c.l.b16 %v101
  %v1550 = vunpack.c.h.b16 %v101
  %v1551 = vunpack.c.l.b16 %v102
  %v1552 = vunpack.c.h.b16 %v102
  %v1553 = vunpack.c.l.b16 %v103
  %v1554 = vunpack.c.h.b16 %v103
  %v1555 = vunpack.c.l.b16 %v104
  %v1556 = vunpack.c.h.b16 %v104
  %v1557 = vunpack.c.l.b16 %v105
  %v1558 = vunpack.c.h.b16 %v105
  %v1559 = vunpack.c.l.b16 %v106
  %v1560 = vunpack.c.h.b16 %v106
  %v1561 = vunpack.c.l.b16 %v107
  %v1562 = vunpack.c.h.b16 %v107
  %v1563 = vunpack.c.l.b16 %v108
  %v1564 = vunpack.c.h.b16 %v108
  %v1565 = vunpack.c.l.b16 %v109
  %v1566 = vunpack.c.h.b16 %v109
  %v1567 = vunpack.c.l.b16 %v110
  %v1568 = vunpack.c.h.b16 %v110
  %v1569 = vunpack.c.l.b16 %v111
  %v1570 = vunpack.c.h.b16 %v111
  %v1571 = vunpack.c.l.b16 %v112
  %v1572 = vunpack.c.h.b16 %v112
  %v1573 = vunpack.c.l.b16 %v113
  %v1574 = vunpack.c.h.b16 %v113
  %v1575 = vunpack.c.l.b16 %v114
  %v1576 = vunpack.c.h.b16 %v114
  %v1577 = vunpack.c.l.b16 %v115
  %v1578 = vunpack.c.h.b16 %v115
  %v1579 = vunpack.c.l.b16 %v116
  %v1580 = vunpack.c.h.b16 %v116
  %v1581 = vunpack.c.l.b16 %v117
  %v1582 = vunpack.c.h.b16 %v117
  %v1583 = vunpack.c.l.b16 %v118
  %v1584 = vunpack.c.h.b16 %v118
  %v1585 = vunpack.c.l.b16 %v119
  %v1586 = vunpack.c.h.b16 %v119
  %v1587 = vunpack.c.l.b16 %v120
  %v1588 = vunpack.c.h.b16 %v120
  %v1589 = vunpack.c.l.b16 %v121
  %v1590 = vunpack.c.h.b16 %v121
  %v1591 = vunpack.c.l.b16 %v122
  %v1592 = vunpack.c.h.b16 %v122
  %v1593 = vunpack.c.l.b16 %v123
  %v1594 = vunpack.c.h.b16 %v123
  %v1595 = vunpack.c.l.b16 %v124
  %v1596 = vunpack.c.h.b16 %v124
  %v1597 = vunpack.c.l.b16 %v125
  %v1598 = vunpack.c.h.b16 %v125
  %v1599 = vunpack.c.l.b16 %v126
  %v1600 = vunpack.c.h.b16 %v126
  %v1601 = vunpack.c.l.b16 %v127
  %v1602 = vunpack.c.h.b16 %v127
  %v1603 = vunpack.c.l.b16 %v128
  %v1604 = vunpack.c.h.b16 %v128
  %v1605 = vunpack.c.l.b16 %v129
  %v1606 = vunpack.c.h.b16 %v129
  %v1607 = vunpack.c.l.b16 %v130
  %v1608 = vunpack.c.h.b16 %v130
  %v1609 = vunpack.c.l.b16 %v131
  %v1610 = vunpack.c.h.b16 %v131
  %v1611 = vunpack.c.l.b16 %v132
  %v1612 = vunpack.c.h.b16 %v132
  %v1613 = vunpack.c.l.b16 %v133
  %v1614 = vunpack.c.h.b16 %v133
  %v1615 = vunpack.c.l.b16 %v134
  %v1616 = vunpack.c.h.b16 %v134
  %v1617 = vunpack.c.l.b16 %v135
  %v1618 = vunpack.c.h.b16 %v135
  %v1619 = vunpack.c.l.b16 %v136
  %v1620 = vunpack.c.h.b16 %v136
  %v1621 = vunpack.c.l.b16 %v137
  %v1622 = vunpack.c.h.b16 %v137
  %v1623 = vunpack.c.l.b16 %v138
  %v1624 = vunpack.c.h.b16 %v138
  %v1625 = vunpack.c.l.b16 %v139
  %v1626 = vunpack.c.h.b16 %v139
  %v1627 = vunpack.c.l.b16 %v140
  %v1628 = vunpack.c.h.b16 %v140
  %v1629 = vunpack.c.l.b16 %v141
  %v1630 = vunpack.c.h.b16 %v141
  %v1631 = vunpack.c.l.b16 %v142
  %v1632 = vunpack.c.h.b16 %v142
  %v1633 = vunpack.c.l.b16 %v143
  %v1634 = vunpack.c.h.b16 %v143
  %v1635 = vunpack.c.l.b16 %v144
  %v1636 = vunpack.c.h.b16 %v144
  %v1637 = vunpack.c.l.b16 %v145
  %v1638 = vunpack.c.h.b16 %v145
  %v1639 = vunpack.c.l.b16 %v146
  %v1640 = vunpack.c.h.b16 %v146
  %v1641 = vunpack.c.l.b16 %v147
  %v1642 = vunpack.c.h.b16 %v147
  %v1643 = vunpack.c.l.b16 %v148
  %v1644 = vunpack.c.h.b16 %v148
  %v1645 = vunpack.c.l.b16 %v149
  %v1646 = vunpack.c.h.b16 %v149
  %v1647 = vunpack.c.l.b16 %v150
  %v1648 = vunpack.c.h.b16 %v150
  %v1649 = vunpack.c.l.b16 %v151
  %v1650 = vunpack.c.h.b16 %v151
  %v1651 = vunpack.c.l.b16 %v152
  %v1652 = vunpack.c.h.b16 %v152
  %v1653 = vunpack.c.l.b16 %v153
  %v1654 = vunpack.c.h.b16 %v153
  %v1655 = vunpack.c.l.b16 %v154
  %v1656 = vunpack.c.h.b16 %v154
  %v1657 = vunpack.c.l.b16 %v155
  %v1658 = vunpack.c.h.b16 %v155
  %v1659 = vunpack.c.l.b16 %v156
  %v1660 = vunpack.c.h.b16 %v156
  %v1661 = vunpack.c.l.b16 %v157
  %v1662 = vunpack.c.h.b16 %v157
  %v1663 = vunpack.c.l.b16 %v158
  %v1664 = vunpack.c.h.b16 %v158
  %v1665 = vunpack.c.l.b16 %v159
  %v1666 = vunpack.c.h.b16 %v159
  %v1667 = vunpack.c.l.b16 %v160
  %v1668 = vunpack.c.h.b16 %v160
  %v1669 = vunpack.c.l.b16 %v161
  %v1670 = vunpack.c.h.b16 %v161
  %v1671 = vunpack.c.l.b16 %v162
  %v1672 = vunpack.c.h.b16 %v162
  %v1673 = vunpack.c.l.b16 %v163
  %v1674 = vunpack.c.h.b16 %v163
  %v1675 = vunpack.c.l.b16 %v164
  %v1676 = vunpack.c.h.b16 %v164
  %v1677 = vunpack.c.l.b16 %v165
  %v1678 = vunpack.c.h.b16 %v165
  %v1679 = vunpack.c.l.b16 %v166
  %v1680 = vunpack.c.h.b16 %v166
  %v1681 = vunpack.c.l.b16 %v167
  %v1682 = vunpack.c.h.b16 %v167
  %v1683 = vunpack.c.l.b16 %v168
  %v1684 = vunpack.c.h.b16 %v168
  %v1685 = vunpack.c.l.b16 %v169
  %v1686 = vunpack.c.h.b16 %v169
  %v1687 = vunpack.c.l.b16 %v170
  %v1688 = vunpack.c.h.b16 %v170
  %v1689 = vunpack.c.l.b16 %v171
  %v1690 = vunpack.c.h.b16 %v171
  %v1691 = vunpack.c.l.b16 %v172
  %v1692 = vunpack.c.h.b16 %v172
  %v1693 = vunpack.c.l.b16 %v173
  %v1694 = vunpack.c.h.b16 %v173
  %v1695 = vunpack.c.l.b16 %v174
  %v1696 = vunpack.c.h.b16 %v174
  %v1697 = vunpack.c.l.b16 %v175
  %v1698 = vunpack.c.h.b16 %v175
  %v1699 = vunpack.c.l.b16 %v176
  %v1700 = vunpack.c.h.b16 %v176
  %v1701 = vunpack.c.l.b16 %v177
  %v1702 = vunpack.c.h.b16 %v177
  %v1703 = vunpack.c.l.b16 %v178
  %v1704 = vunpack.c.h.b16 %v178
  %v1705 = vunpack.c.l.b16 %v179
  %v1706 = vunpack.c.h.b16 %v179
  %v1707 = vunpack.c.l.b16 %v180
  %v1708 = vunpack.c.h.b16 %v180
  %v1709 = vunpack.c.l.b16 %v181
  %v1710 = vunpack.c.h.b16 %v181
  %v1711 = vunpack.c.l.b16 %v182
  %v1712 = vunpack.c.h.b16 %v182
  %v1713 = vunpack.c.l.b16 %v183
  %v1714 = vunpack.c.h.b16 %v183
  %v1715 = vunpack.c.l.b16 %v184
  %v1716 = vunpack.c.h.b16 %v184
  %v1717 = vunpack.c.l.b16 %v185
  %v1718 = vunpack.c.h.b16 %v185
  %v1719 = vunpack.c.l.b16 %v186
  %v1720 = vunpack.c.h.b16 %v186
  %v1721 = vunpack.c.l.b16 %v187
  %v1722 = vunpack.c.h.b16 %v187
  %v1723 = vunpack.c.l.b16 %v188
  %v1724 = vunpack.c.h.b16 %v188
  %v1725 = vunpack.c.l.b16 %v189
  %v1726 = vunpack.c.h.b16 %v189
  %v1727 = vunpack.c.l.b16 %v190
  %v1728 = vunpack.c.h.b16 %v190
  %v1729 = vunpack.c.l.b16 %v191
  %v1730 = vunpack.c.h.b16 %v191
  %v1731 = vunpack.c.l.b16 %v192
  %v1732 = vunpack.c.h.b16 %v192
  %v1733 = vunpack.c.l.b16 %v193
  %v1734 = vunpack.c.h.b16 %v193
  %v1735 = vunpack.c.l.b16 %v194
  %v1736 = vunpack.c.h.b16 %v194
  %v1737 = vunpack.c.l.b16 %v195
  %v1738 = vunpack.c.h.b16 %v195
  %v1739 = vunpack.c.l.b16 %v196
  %v1740 = vunpack.c.h.b16 %v196
  %v1741 = vunpack.c.l.b16 %v197
  %v1742 = vunpack.c.h.b16 %v197
  %v1743 = vunpack.c.l.b16 %v198
  %v1744 = vunpack.c.h.b16 %v198
  %v1745 = vunpack.c.l.b16 %v199
  %v1746 = vunpack.c.h.b16 %v199
  %v1747 = vunpack.c.l.b16 %v200
  %v1748 = vunpack.c.h.b16 %v200
  %v1749 = vpack.c.b16 %v1497, %v1493
  %v1750 = vpack.c.b16 %v1498, %v1494
  %v1751 = vpack.c.b16 %v1499, %v1495
  %v1752 = vpack.c.b16 %v1500, %v1496
  %v1753 = vpack.c.b16 %v1505, %v1501
  %v1754 = vpack.c.b16 %v1506, %v1502
  %v1755 = vpack.c.b16 %v1507, %v1503
  %v1756 = vpack.c.b16 %v1508, %v1504
  %v1757 = vpack.c.b16 %v1513, %v1509
  %v1758 = vpack.c.b16 %v1514, %v1510
  %v1759 = vpack.c.b16 %v1515, %v1511
  %v1760 = vpack.c.b16 %v1516, %v1512
  %v1761 = vpack.c.b16 %v1521, %v1517
  %v1762 = vpack.c.b16 %v1522, %v1518
  %v1763 = vpack.c.b16 %v1523, %v1519
  %v1764 = vpack.c.b16 %v1524, %v1520
  %v1765 = vpack.c.b16 %v1529, %v1525
  %v1766 = vpack.c.b16 %v1530, %v1526
  %v1767 = vpack.c.b16 %v1531, %v1527
  %v1768 = vpack.c.b16 %v1532, %v1528
  %v1769 = vpack.c.b16 %v1537, %v1533
  %v1770 = vpack.c.b16 %v1538, %v1534
  %v1771 = vpack.c.b16 %v1539, %v1535
  %v1772 = vpack.c.b16 %v1540, %v1536
  %v1773 = vpack.c.b16 %v1545, %v1541
  %v1774 = vpack.c.b16 %v1546, %v1542
  %v1775 = vpack.c.b16 %v1547, %v1543
  %v1776 = vpack.c.b16 %v1548, %v1544
  %v1777 = vpack.c.b16 %v1553, %v1549
  %v1778 = vpack.c.b16 %v1554, %v1550
  %v1779 = vpack.c.b16 %v1555, %v1551
  %v1780 = vpack.c.b16 %v1556, %v1552
  %v1781 = vpack.c.b16 %v1561, %v1557
  %v1782 = vpack.c.b16 %v1562, %v1558
  %v1783 = vpack.c.b16 %v1563, %v1559
  %v1784 = vpack.c.b16 %v1564, %v1560
  %v1785 = vpack.c.b16 %v1569, %v1565
  %v1786 = vpack.c.b16 %v1570, %v1566
  %v1787 = vpack.c.b16 %v1571, %v1567
  %v1788 = vpack.c.b16 %v1572, %v1568
  %v1789 = vpack.c.b16 %v1577, %v1573
  %v1790 = vpack.c.b16 %v1578, %v1574
  %v1791 = vpack.c.b16 %v1579, %v1575
  %v1792 = vpack.c.b16 %v1580, %v1576
  %v1793 = vpack.c.b16 %v1585, %v1581
  %v1794 = vpack.c.b16 %v1586, %v1582
  %v1795 = vpack.c.b16 %v1587, %v1583
  %v1796 = vpack.c.b16 %v1588, %v1584
  %v1797 = vpack.c.b16 %v1593, %v1589
  %v1798 = vpack.c.b16 %v1594, %v1590
  %v1799 = vpack.c.b16 %v1595, %v1591
  %v1800 = vpack.c.b16 %v1596, %v1592
  %v1801 = vpack.c.b16 %v1601, %v1597
  %v1802 = vpack.c.b16 %v1602, %v1598
  %v1803 = vpack.c.b16 %v1603, %v1599
  %v1804 = vpack.c.b16 %v1604, %v1600
  %v1805 = vpack.c.b16 %v1609, %v1605
  %v1806 = vpack.c.b16 %v1610, %v1606
  %v1807 = vpack.c.b16 %v1611, %v1607
  %v1808 = vpack.c.b16 %v1612, %v1608
  %v1809 = vpack.c.b16 %v1617, %v1613
  %v1810 = vpack.c.b16 %v1618, %v1614
  %v1811 = vpack.c.b16 %v1619, %v1615
  %v1812 = vpack.c.b16 %v1620, %v1616
  %v1813 = vpack.c.b16 %v1625, %v1621
  %v1814 = vpack.c.b16 %v1626, %v1622
  %v1815 = vpack.c.b16 %v1627, %v1623
  %v1816 = vpack.c.b16 %v1628, %v1624
  %v1817 = vpack.c.b16 %v1633, %v1629
  %v1818 = vpack.c.b16 %v1634, %v1630
  %v1819 = vpack.c.b16 %v1635, %v1631
  %v1820 = vpack.c.b16 %v1636, %v1632
  %v1821 = vpack.c.b16 %v1641, %v1637
  %v1822 = vpack.c.b16 %v1642, %v1638
  %v1823 = vpack.c.b16 %v1643, %v1639
  %v1824 = vpack.c.b16 %v1644, %v1640
  %v1825 = vpack.c.b16 %v1649, %v1645
  %v1826 = vpack.c.b16 %v1650, %v1646
  %v1827 = vpack.c.b16 %v1651, %v1647
  %v1828 = vpack.c.b16 %v1652, %v1648
  %v1829 = vpack.c.b16 %v1657, %v1653
  %v1830 = vpack.c.b16 %v1658, %v1654
  %v1831 = vpack.c.b16 %v1659, %v1655
  %v1832 = vpack.c.b16 %v1660, %v1656
  %v1833 = vpack.c.b16 %v1665, %v1661
  %v1834 = vpack.c.b16 %v1666, %v1662
  %v1835 = vpack.c.b16 %v1667, %v1663
  %v1836 = vpack.c.b16 %v1668, %v1664
  %v1837 = vpack.c.b16 %v1673, %v1669
  %v1838 = vpack.c.b16 %v1674, %v1670
  %v1839 = vpack.c.b16 %v1675, %v1671
  %v1840 = vpack.c.b16 %v1676, %v1672
  %v1841 = vpack.c.b16 %v1681, %v1677
  %v1842 = vpack.c.b16 %v1682, %v1678
  %v1843 = vpack.c.b16 %v1683, %v1679
  %v1844 = vpack.c.b16 %v1684, %v1680
  %v1845 = vpack.c.b16 %v1689, %v1685
  %v1846 = vpack.c.b16 %v1690, %v1686
  %v1847 = vpack.c.b16 %v1691, %v1687
  %v1848 = vpack.c.b16 %v1692, %v1688
  %v1849 = vpack.c.b16 %v1697, %v1693
  %v1850 = vpack.c.b16 %v1698, %v1694
  %v1851 = vpack.c.b16 %v1699, %v1695
  %v1852 = vpack.c.b16 %v1700, %v1696
  %v1853 = vpack.c.b16 %v1705, %v1701
  %v1854 = vpack.c.b16 %v1706, %v1702
  %v1855 = vpack.c.b16 %v1707, %v1703
  %v1856 = vpack.c.b16 %v1708, %v1704
  %v1857 = vpack.c.b16 %v1713, %v1709
  %v1858 = vpack.c.b16 %v1714, %v1710
  %v1859 = vpack.c.b16 %v1715, %v1711
  %v1860 = vpack.c.b16 %v1716, %v1712
  %v1861 = vpack.c.b16 %v1721, %v1717
  %v1862 = vpack.c.b16 %v1722, %v1718
  %v1863 = vpack.c.b16 %v1723, %v1719
  %v1864 = vpack.c.b16 %v1724, %v1720
  %v1865 = vpack.c.b16 %v1729, %v1725
  %v1866 = vpack.c.b16 %v1730, %v1726
  %v1867 = vpack.c.b16 %v1731, %v1727
  %v1868 = vpack.c.b16 %v1732, %v1728
  %v1869 = vpack.c.b16 %v1737, %v1733
  %v1870 = vpack.c.b16 %v1738, %v1734
  %v1871 = vpack.c.b16 %v1739, %v1735
  %v1872 = vpack.c.b16 %v1740, %v1736
  %v1873 = vpack.c.b16 %v1745, %v1741
  %v1874 = vpack.c.b16 %v1746, %v1742
  %v1875 = vpack.c.b16 %v1747, %v1743
  %v1876 = vpack.c.b16 %v1748, %v1744
  %2005 = vmatprep.subr.bf16.mxu0 %v1778
  %2006 = vmatpush1.bf16.msra.mxu0 %v1777
  %2007 = vmatprep.subr.bf16.mxu0 %v1774
  %2008 = vmatpush1.bf16.msra.mxu0 %v1773
  %2009 = vmatprep.subr.bf16.mxu0 %v1770
  %2010 = vmatpush1.bf16.msra.mxu0 %v1769
  %2011 = vmatprep.subr.bf16.mxu0 %v1766
  %2012 = vmatpush1.bf16.msra.mxu0 %v1765
  %2013 = vmatprep.subr.bf16.mxu0 %v1762
  %2014 = vmatpush1.bf16.msra.mxu0 %v1761
  %2015 = vmatprep.subr.bf16.mxu0 %v1758
  %2016 = vmatpush1.bf16.msra.mxu0 %v1757
  %2017 = vmatprep.subr.bf16.mxu0 %v1754
  %2018 = vmatpush1.bf16.msra.mxu0 %v1753
  %2019 = vmatprep.subr.bf16.mxu0 %v1750
  %2020 = vmatpush1.bf16.msra.mxu0 %v1749
  %2021 = vmatprep.subr.bf16.mxu0 %v1810
  %2022 = vmatpush2.bf16.msra.mxu0 %v1809
  %2023 = vmatprep.subr.bf16.mxu0 %v1806
  %2024 = vmatpush2.bf16.msra.mxu0 %v1805
  %2025 = vmatprep.subr.bf16.mxu0 %v1802
  %2026 = vmatpush2.bf16.msra.mxu0 %v1801
  %2027 = vmatprep.subr.bf16.mxu0 %v1798
  %2028 = vmatpush2.bf16.msra.mxu0 %v1797
  %2029 = vmatprep.subr.bf16.mxu0 %v1794
  %2030 = vmatpush2.bf16.msra.mxu0 %v1793
  %2031 = vmatprep.subr.bf16.mxu0 %v1790
  %2032 = vmatpush2.bf16.msra.mxu0 %v1789
  %2033 = vmatprep.subr.bf16.mxu0 %v1786
  %2034 = vmatpush2.bf16.msra.mxu0 %v1785
  %2035 = vmatprep.subr.bf16.mxu0 %v1782
  %2036 = vmatpush2.bf16.msra.mxu0 %v1781
  %2037 = vmatprep.mubr.bf16.mxu0 %v1341
  %2038 = vmatmul.mubr.bf16.gmra.mxu0 %v1340
  %v2039 = vpop.f32.mrf.mxu0
  %v2040 = vadd.f32 %v1348, %v2039
  %v2041 = vpop.f32.mrf.mxu0
  %v2042 = vadd.f32 %v1352, %v2041
  %v2043 = vpop.f32.mrf.mxu0
  %v2044 = vpop.f32.mrf.mxu0
  %2045 = vdwg.mxu0
  %2046 = vmatprep.subr.bf16.mxu0 %v1842
  %2047 = vmatpush1.bf16.msra.mxu0 %v1841
  %2048 = vmatprep.subr.bf16.mxu0 %v1838
  %2049 = vmatpush1.bf16.msra.mxu0 %v1837
  %2050 = vmatprep.subr.bf16.mxu0 %v1834
  %2051 = vmatpush1.bf16.msra.mxu0 %v1833
  %2052 = vmatprep.subr.bf16.mxu0 %v1830
  %2053 = vmatpush1.bf16.msra.mxu0 %v1829
  %2054 = vmatprep.subr.bf16.mxu0 %v1826
  %2055 = vmatpush1.bf16.msra.mxu0 %v1825
  %2056 = vmatprep.subr.bf16.mxu0 %v1822
  %2057 = vmatpush1.bf16.msra.mxu0 %v1821
  %2058 = vmatprep.subr.bf16.mxu0 %v1818
  %2059 = vmatpush1.bf16.msra.mxu0 %v1817
  %2060 = vmatprep.subr.bf16.mxu0 %v1814
  %2061 = vmatpush1.bf16.msra.mxu0 %v1813
  %2062 = vmatprep.subr.bf16.mxu0 %v1874
  %2063 = vmatpush2.bf16.msra.mxu0 %v1873
  %2064 = vmatprep.subr.bf16.mxu0 %v1870
  %2065 = vmatpush2.bf16.msra.mxu0 %v1869
  %2066 = vmatprep.subr.bf16.mxu0 %v1866
  %2067 = vmatpush2.bf16.msra.mxu0 %v1865
  %2068 = vmatprep.subr.bf16.mxu0 %v1862
  %2069 = vmatpush2.bf16.msra.mxu0 %v1861
  %2070 = vmatprep.subr.bf16.mxu0 %v1858
  %2071 = vmatpush2.bf16.msra.mxu0 %v1857
  %2072 = vmatprep.subr.bf16.mxu0 %v1854
  %2073 = vmatpush2.bf16.msra.mxu0 %v1853
  %2074 = vmatprep.subr.bf16.mxu0 %v1850
  %2075 = vmatpush2.bf16.msra.mxu0 %v1849
  %2076 = vmatprep.subr.bf16.mxu0 %v1846
  %2077 = vmatpush2.bf16.msra.mxu0 %v1845
  %2078 = vmatprep.mubr.bf16.mxu0 %v1343
  %2079 = vmatmul.mubr.bf16.gmra.mxu0 %v1342
  %v2080 = vpop.f32.mrf.mxu0
  %v2081 = vadd.f32 %v2040, %v2080
  %v2082 = vpop.f32.mrf.mxu0
  %v2083 = vadd.f32 %v2042, %v2082
  %v2084 = vpop.f32.mrf.mxu0
  %v2085 = vpop.f32.mrf.mxu0
  %2086 = vdwg.mxu0
  %2087 = vmatprep.subr.bf16.mxu0 %v1780
  %2088 = vmatpush1.bf16.msra.mxu0 %v1779
  %2089 = vmatprep.subr.bf16.mxu0 %v1776
  %2090 = vmatpush1.bf16.msra.mxu0 %v1775
  %2091 = vmatprep.subr.bf16.mxu0 %v1772
  %2092 = vmatpush1.bf16.msra.mxu0 %v1771
  %2093 = vmatprep.subr.bf16.mxu0 %v1768
  %2094 = vmatpush1.bf16.msra.mxu0 %v1767
  %2095 = vmatprep.subr.bf16.mxu0 %v1764
  %2096 = vmatpush1.bf16.msra.mxu0 %v1763
  %2097 = vmatprep.subr.bf16.mxu0 %v1760
  %2098 = vmatpush1.bf16.msra.mxu0 %v1759
  %2099 = vmatprep.subr.bf16.mxu0 %v1756
  %2100 = vmatpush1.bf16.msra.mxu0 %v1755
  %2101 = vmatprep.subr.bf16.mxu0 %v1752
  %2102 = vmatpush1.bf16.msra.mxu0 %v1751
  %2103 = vmatprep.subr.bf16.mxu0 %v1812
  %2104 = vmatpush2.bf16.msra.mxu0 %v1811
  %2105 = vmatprep.subr.bf16.mxu0 %v1808
  %2106 = vmatpush2.bf16.msra.mxu0 %v1807
  %2107 = vmatprep.subr.bf16.mxu0 %v1804
  %2108 = vmatpush2.bf16.msra.mxu0 %v1803
  %2109 = vmatprep.subr.bf16.mxu0 %v1800
  %2110 = vmatpush2.bf16.msra.mxu0 %v1799
  %2111 = vmatprep.subr.bf16.mxu0 %v1796
  %2112 = vmatpush2.bf16.msra.mxu0 %v1795
  %2113 = vmatprep.subr.bf16.mxu0 %v1792
  %2114 = vmatpush2.bf16.msra.mxu0 %v1791
  %2115 = vmatprep.subr.bf16.mxu0 %v1788
  %2116 = vmatpush2.bf16.msra.mxu0 %v1787
  %2117 = vmatprep.subr.bf16.mxu0 %v1784
  %2118 = vmatpush2.bf16.msra.mxu0 %v1783
  %2119 = vmatprep.mubr.bf16.mxu0 %v1341
  %2120 = vmatmul.mubr.bf16.gmra.mxu0 %v1340
  %v2121 = vpop.f32.mrf.mxu0
  %v2122 = vadd.f32 %v1356, %v2121
  %v2123 = vpop.f32.mrf.mxu0
  %v2124 = vadd.f32 %v1360, %v2123
  %v2125 = vpop.f32.mrf.mxu0
  %v2126 = vpop.f32.mrf.mxu0
  %2127 = vdwg.mxu0
  %2128 = vmatprep.subr.bf16.mxu0 %v1844
  %2129 = vmatpush1.bf16.msra.mxu0 %v1843
  %2130 = vmatprep.subr.bf16.mxu0 %v1840
  %2131 = vmatpush1.bf16.msra.mxu0 %v1839
  %2132 = vmatprep.subr.bf16.mxu0 %v1836
  %2133 = vmatpush1.bf16.msra.mxu0 %v1835
  %2134 = vmatprep.subr.bf16.mxu0 %v1832
  %2135 = vmatpush1.bf16.msra.mxu0 %v1831
  %2136 = vmatprep.subr.bf16.mxu0 %v1828
  %2137 = vmatpush1.bf16.msra.mxu0 %v1827
  %2138 = vmatprep.subr.bf16.mxu0 %v1824
  %2139 = vmatpush1.bf16.msra.mxu0 %v1823
  %2140 = vmatprep.subr.bf16.mxu0 %v1820
  %2141 = vmatpush1.bf16.msra.mxu0 %v1819
  %2142 = vmatprep.subr.bf16.mxu0 %v1816
  %2143 = vmatpush1.bf16.msra.mxu0 %v1815
  %2144 = vmatprep.subr.bf16.mxu0 %v1876
  %2145 = vmatpush2.bf16.msra.mxu0 %v1875
  %2146 = vmatprep.subr.bf16.mxu0 %v1872
  %2147 = vmatpush2.bf16.msra.mxu0 %v1871
  %2148 = vmatprep.subr.bf16.mxu0 %v1868
  %2149 = vmatpush2.bf16.msra.mxu0 %v1867
  %2150 = vmatprep.subr.bf16.mxu0 %v1864
  %2151 = vmatpush2.bf16.msra.mxu0 %v1863
  %2152 = vmatprep.subr.bf16.mxu0 %v1860
  %2153 = vmatpush2.bf16.msra.mxu0 %v1859
  %2154 = vmatprep.subr.bf16.mxu0 %v1856
  %2155 = vmatpush2.bf16.msra.mxu0 %v1855
  %2156 = vmatprep.subr.bf16.mxu0 %v1852
  %2157 = vmatpush2.bf16.msra.mxu0 %v1851
  %2158 = vmatprep.subr.bf16.mxu0 %v1848
  %2159 = vmatpush2.bf16.msra.mxu0 %v1847
  %2160 = vmatprep.mubr.bf16.mxu0 %v1343
  %2161 = vmatmul.mubr.bf16.gmra.mxu0 %v1342
  %v2162 = vpop.f32.mrf.mxu0
  %v2163 = vadd.f32 %v2122, %v2162
  %v2164 = vpop.f32.mrf.mxu0
  %v2165 = vadd.f32 %v2124, %v2164
  %v2166 = vpop.f32.mrf.mxu0
  %v2167 = vpop.f32.mrf.mxu0
  %2168 = vdwg.mxu0
  %vm2169 = vcmp.ge.f32.partialorder %v2081, 0.0
  %vm2170 = vcmp.ge.f32.partialorder %v2083, 0.0
  %vm2171 = vcmp.ge.f32.partialorder %v2163, 0.0
  %vm2172 = vcmp.ge.f32.partialorder %v2165, 0.0
  %v2173 = vmul.f32 %v2081, 0.2
  %v2174 = vmul.f32 %v2083, 0.2
  %v2175 = vmul.f32 %v2163, 0.2
  %v2176 = vmul.f32 %v2165, 0.2
  %v2177 = vsel %vm2169, %v2081, %v2173
  %v2178 = vsel %vm2170, %v2083, %v2174
  %v2179 = vsel %vm2171, %v2163, %v2175
  %v2180 = vsel %vm2172, %v2165, %v2176
  %v2181 = vadd.f32 %v2177, %v1336
  %v2182 = vadd.f32 %v2178, %v1337
  %v2183 = vadd.f32 %v2179, %v1338
  %v2184 = vadd.f32 %v2180, %v1339
  %2185 = vmatprep.subr.bf16.mxu0 %v1122
  %2186 = vmatpush1.bf16.msra.mxu0 %v1121
  %2187 = vmatprep.subr.bf16.mxu0 %v1118
  %2188 = vmatpush1.bf16.msra.mxu0 %v1117
  %2189 = vmatprep.subr.bf16.mxu0 %v1114
  %2190 = vmatpush1.bf16.msra.mxu0 %v1113
  %2191 = vmatprep.subr.bf16.mxu0 %v1110
  %2192 = vmatpush1.bf16.msra.mxu0 %v1109
  %2193 = vmatprep.subr.bf16.mxu0 %v1106
  %2194 = vmatpush1.bf16.msra.mxu0 %v1105
  %2195 = vmatprep.subr.bf16.mxu0 %v1102
  %2196 = vmatpush1.bf16.msra.mxu0 %v1101
  %2197 = vmatprep.subr.bf16.mxu0 %v1098
  %2198 = vmatpush1.bf16.msra.mxu0 %v1097
  %2199 = vmatprep.subr.bf16.mxu0 %v1094
  %2200 = vmatpush1.bf16.msra.mxu0 %v1093
  %2201 = vmatprep.subr.bf16.mxu0 %v1154
  %2202 = vmatpush2.bf16.msra.mxu0 %v1153
  %2203 = vmatprep.subr.bf16.mxu0 %v1150
  %2204 = vmatpush2.bf16.msra.mxu0 %v1149
  %2205 = vmatprep.subr.bf16.mxu0 %v1146
  %2206 = vmatpush2.bf16.msra.mxu0 %v1145
  %2207 = vmatprep.subr.bf16.mxu0 %v1142
  %2208 = vmatpush2.bf16.msra.mxu0 %v1141
  %2209 = vmatprep.subr.bf16.mxu0 %v1138
  %2210 = vmatpush2.bf16.msra.mxu0 %v1137
  %2211 = vmatprep.subr.bf16.mxu0 %v1134
  %2212 = vmatpush2.bf16.msra.mxu0 %v1133
  %2213 = vmatprep.subr.bf16.mxu0 %v1130
  %2214 = vmatpush2.bf16.msra.mxu0 %v1129
  %2215 = vmatprep.subr.bf16.mxu0 %v1126
  %2216 = vmatpush2.bf16.msra.mxu0 %v1125
  %2217 = vmatprep.mubr.bf16.mxu0 %v433
  %2218 = vmatmul.mubr.bf16.gmra.mxu0 %v432
  %v2219 = vpop.f32.mrf.mxu0
  %v2220 = vadd.f32 0.0, %v2219
  %v2221 = vpop.f32.mrf.mxu0
  %v2222 = vadd.f32 0.0, %v2221
  %v2223 = vpop.f32.mrf.mxu0
  %v2224 = vpop.f32.mrf.mxu0
  %2225 = vdwg.mxu0
  %2226 = vmatprep.subr.bf16.mxu0 %v1124
  %2227 = vmatpush1.bf16.msra.mxu0 %v1123
  %2228 = vmatprep.subr.bf16.mxu0 %v1120
  %2229 = vmatpush1.bf16.msra.mxu0 %v1119
  %2230 = vmatprep.subr.bf16.mxu0 %v1116
  %2231 = vmatpush1.bf16.msra.mxu0 %v1115
  %2232 = vmatprep.subr.bf16.mxu0 %v1112
  %2233 = vmatpush1.bf16.msra.mxu0 %v1111
  %2234 = vmatprep.subr.bf16.mxu0 %v1108
  %2235 = vmatpush1.bf16.msra.mxu0 %v1107
  %2236 = vmatprep.subr.bf16.mxu0 %v1104
  %2237 = vmatpush1.bf16.msra.mxu0 %v1103
  %2238 = vmatprep.subr.bf16.mxu0 %v1100
  %2239 = vmatpush1.bf16.msra.mxu0 %v1099
  %2240 = vmatprep.subr.bf16.mxu0 %v1096
  %2241 = vmatpush1.bf16.msra.mxu0 %v1095
  %2242 = vmatprep.subr.bf16.mxu0 %v1156
  %2243 = vmatpush2.bf16.msra.mxu0 %v1155
  %2244 = vmatprep.subr.bf16.mxu0 %v1152
  %2245 = vmatpush2.bf16.msra.mxu0 %v1151
  %2246 = vmatprep.subr.bf16.mxu0 %v1148
  %2247 = vmatpush2.bf16.msra.mxu0 %v1147
  %2248 = vmatprep.subr.bf16.mxu0 %v1144
  %2249 = vmatpush2.bf16.msra.mxu0 %v1143
  %2250 = vmatprep.subr.bf16.mxu0 %v1140
  %2251 = vmatpush2.bf16.msra.mxu0 %v1139
  %2252 = vmatprep.subr.bf16.mxu0 %v1136
  %2253 = vmatpush2.bf16.msra.mxu0 %v1135
  %2254 = vmatprep.subr.bf16.mxu0 %v1132
  %2255 = vmatpush2.bf16.msra.mxu0 %v1131
  %2256 = vmatprep.subr.bf16.mxu0 %v1128
  %2257 = vmatpush2.bf16.msra.mxu0 %v1127
  %2258 = vmatprep.mubr.bf16.mxu0 %v433
  %2259 = vmatmul.mubr.bf16.gmra.mxu0 %v432
  %v2260 = vpop.f32.mrf.mxu0
  %v2261 = vadd.f32 0.0, %v2260
  %v2262 = vpop.f32.mrf.mxu0
  %v2263 = vadd.f32 0.0, %v2262
  %v2264 = vpop.f32.mrf.mxu0
  %v2265 = vpop.f32.mrf.mxu0
  %2266 = vdwg.mxu0
  %v2331 = vunpack.c.l.b16 %v201
  %v2332 = vunpack.c.h.b16 %v201
  %v2333 = vunpack.c.l.b16 %v202
  %v2334 = vunpack.c.h.b16 %v202
  %v2335 = vunpack.c.l.b16 %v203
  %v2336 = vunpack.c.h.b16 %v203
  %v2337 = vunpack.c.l.b16 %v204
  %v2338 = vunpack.c.h.b16 %v204
  %v2339 = vunpack.c.l.b16 %v205
  %v2340 = vunpack.c.h.b16 %v205
  %v2341 = vunpack.c.l.b16 %v206
  %v2342 = vunpack.c.h.b16 %v206
  %v2343 = vunpack.c.l.b16 %v207
  %v2344 = vunpack.c.h.b16 %v207
  %v2345 = vunpack.c.l.b16 %v208
  %v2346 = vunpack.c.h.b16 %v208
  %v2347 = vunpack.c.l.b16 %v209
  %v2348 = vunpack.c.h.b16 %v209
  %v2349 = vunpack.c.l.b16 %v210
  %v2350 = vunpack.c.h.b16 %v210
  %v2351 = vunpack.c.l.b16 %v211
  %v2352 = vunpack.c.h.b16 %v211
  %v2353 = vunpack.c.l.b16 %v212
  %v2354 = vunpack.c.h.b16 %v212
  %v2355 = vunpack.c.l.b16 %v213
  %v2356 = vunpack.c.h.b16 %v213
  %v2357 = vunpack.c.l.b16 %v214
  %v2358 = vunpack.c.h.b16 %v214
  %v2359 = vunpack.c.l.b16 %v215
  %v2360 = vunpack.c.h.b16 %v215
  %v2361 = vunpack.c.l.b16 %v216
  %v2362 = vunpack.c.h.b16 %v216
  %v2363 = vunpack.c.l.b16 %v217
  %v2364 = vunpack.c.h.b16 %v217
  %v2365 = vunpack.c.l.b16 %v218
  %v2366 = vunpack.c.h.b16 %v218
  %v2367 = vunpack.c.l.b16 %v219
  %v2368 = vunpack.c.h.b16 %v219
  %v2369 = vunpack.c.l.b16 %v220
  %v2370 = vunpack.c.h.b16 %v220
  %v2371 = vunpack.c.l.b16 %v221
  %v2372 = vunpack.c.h.b16 %v221
  %v2373 = vunpack.c.l.b16 %v222
  %v2374 = vunpack.c.h.b16 %v222
  %v2375 = vunpack.c.l.b16 %v223
  %v2376 = vunpack.c.h.b16 %v223
  %v2377 = vunpack.c.l.b16 %v224
  %v2378 = vunpack.c.h.b16 %v224
  %v2379 = vunpack.c.l.b16 %v225
  %v2380 = vunpack.c.h.b16 %v225
  %v2381 = vunpack.c.l.b16 %v226
  %v2382 = vunpack.c.h.b16 %v226
  %v2383 = vunpack.c.l.b16 %v227
  %v2384 = vunpack.c.h.b16 %v227
  %v2385 = vunpack.c.l.b16 %v228
  %v2386 = vunpack.c.h.b16 %v228
  %v2387 = vunpack.c.l.b16 %v229
  %v2388 = vunpack.c.h.b16 %v229
  %v2389 = vunpack.c.l.b16 %v230
  %v2390 = vunpack.c.h.b16 %v230
  %v2391 = vunpack.c.l.b16 %v231
  %v2392 = vunpack.c.h.b16 %v231
  %v2393 = vunpack.c.l.b16 %v232
  %v2394 = vunpack.c.h.b16 %v232
  %v2395 = vunpack.c.l.b16 %v233
  %v2396 = vunpack.c.h.b16 %v233
  %v2397 = vunpack.c.l.b16 %v234
  %v2398 = vunpack.c.h.b16 %v234
  %v2399 = vunpack.c.l.b16 %v235
  %v2400 = vunpack.c.h.b16 %v235
  %v2401 = vunpack.c.l.b16 %v236
  %v2402 = vunpack.c.h.b16 %v236
  %v2403 = vunpack.c.l.b16 %v237
  %v2404 = vunpack.c.h.b16 %v237
  %v2405 = vunpack.c.l.b16 %v238
  %v2406 = vunpack.c.h.b16 %v238
  %v2407 = vunpack.c.l.b16 %v239
  %v2408 = vunpack.c.h.b16 %v239
  %v2409 = vunpack.c.l.b16 %v240
  %v2410 = vunpack.c.h.b16 %v240
  %v2411 = vunpack.c.l.b16 %v241
  %v2412 = vunpack.c.h.b16 %v241
  %v2413 = vunpack.c.l.b16 %v242
  %v2414 = vunpack.c.h.b16 %v242
  %v2415 = vunpack.c.l.b16 %v243
  %v2416 = vunpack.c.h.b16 %v243
  %v2417 = vunpack.c.l.b16 %v244
  %v2418 = vunpack.c.h.b16 %v244
  %v2419 = vunpack.c.l.b16 %v245
  %v2420 = vunpack.c.h.b16 %v245
  %v2421 = vunpack.c.l.b16 %v246
  %v2422 = vunpack.c.h.b16 %v246
  %v2423 = vunpack.c.l.b16 %v247
  %v2424 = vunpack.c.h.b16 %v247
  %v2425 = vunpack.c.l.b16 %v248
  %v2426 = vunpack.c.h.b16 %v248
  %v2427 = vunpack.c.l.b16 %v249
  %v2428 = vunpack.c.h.b16 %v249
  %v2429 = vunpack.c.l.b16 %v250
  %v2430 = vunpack.c.h.b16 %v250
  %v2431 = vunpack.c.l.b16 %v251
  %v2432 = vunpack.c.h.b16 %v251
  %v2433 = vunpack.c.l.b16 %v252
  %v2434 = vunpack.c.h.b16 %v252
  %v2435 = vunpack.c.l.b16 %v253
  %v2436 = vunpack.c.h.b16 %v253
  %v2437 = vunpack.c.l.b16 %v254
  %v2438 = vunpack.c.h.b16 %v254
  %v2439 = vunpack.c.l.b16 %v255
  %v2440 = vunpack.c.h.b16 %v255
  %v2441 = vunpack.c.l.b16 %v256
  %v2442 = vunpack.c.h.b16 %v256
  %v2443 = vunpack.c.l.b16 %v257
  %v2444 = vunpack.c.h.b16 %v257
  %v2445 = vunpack.c.l.b16 %v258
  %v2446 = vunpack.c.h.b16 %v258
  %v2447 = vunpack.c.l.b16 %v259
  %v2448 = vunpack.c.h.b16 %v259
  %v2449 = vunpack.c.l.b16 %v260
  %v2450 = vunpack.c.h.b16 %v260
  %v2451 = vunpack.c.l.b16 %v261
  %v2452 = vunpack.c.h.b16 %v261
  %v2453 = vunpack.c.l.b16 %v262
  %v2454 = vunpack.c.h.b16 %v262
  %v2455 = vunpack.c.l.b16 %v263
  %v2456 = vunpack.c.h.b16 %v263
  %v2457 = vunpack.c.l.b16 %v264
  %v2458 = vunpack.c.h.b16 %v264
  %v2459 = vpack.c.b16 %v2335, %v2331
  %v2460 = vpack.c.b16 %v2336, %v2332
  %v2461 = vpack.c.b16 %v2337, %v2333
  %v2462 = vpack.c.b16 %v2338, %v2334
  %v2463 = vpack.c.b16 %v2343, %v2339
  %v2464 = vpack.c.b16 %v2344, %v2340
  %v2465 = vpack.c.b16 %v2345, %v2341
  %v2466 = vpack.c.b16 %v2346, %v2342
  %v2467 = vpack.c.b16 %v2351, %v2347
  %v2468 = vpack.c.b16 %v2352, %v2348
  %v2469 = vpack.c.b16 %v2353, %v2349
  %v2470 = vpack.c.b16 %v2354, %v2350
  %v2471 = vpack.c.b16 %v2359, %v2355
  %v2472 = vpack.c.b16 %v2360, %v2356
  %v2473 = vpack.c.b16 %v2361, %v2357
  %v2474 = vpack.c.b16 %v2362, %v2358
  %v2475 = vpack.c.b16 %v2367, %v2363
  %v2476 = vpack.c.b16 %v2368, %v2364
  %v2477 = vpack.c.b16 %v2369, %v2365
  %v2478 = vpack.c.b16 %v2370, %v2366
  %v2479 = vpack.c.b16 %v2375, %v2371
  %v2480 = vpack.c.b16 %v2376, %v2372
  %v2481 = vpack.c.b16 %v2377, %v2373
  %v2482 = vpack.c.b16 %v2378, %v2374
  %v2483 = vpack.c.b16 %v2383, %v2379
  %v2484 = vpack.c.b16 %v2384, %v2380
  %v2485 = vpack.c.b16 %v2385, %v2381
  %v2486 = vpack.c.b16 %v2386, %v2382
  %v2487 = vpack.c.b16 %v2391, %v2387
  %v2488 = vpack.c.b16 %v2392, %v2388
  %v2489 = vpack.c.b16 %v2393, %v2389
  %v2490 = vpack.c.b16 %v2394, %v2390
  %v2491 = vpack.c.b16 %v2399, %v2395
  %v2492 = vpack.c.b16 %v2400, %v2396
  %v2493 = vpack.c.b16 %v2401, %v2397
  %v2494 = vpack.c.b16 %v2402, %v2398
  %v2495 = vpack.c.b16 %v2407, %v2403
  %v2496 = vpack.c.b16 %v2408, %v2404
  %v2497 = vpack.c.b16 %v2409, %v2405
  %v2498 = vpack.c.b16 %v2410, %v2406
  %v2499 = vpack.c.b16 %v2415, %v2411
  %v2500 = vpack.c.b16 %v2416, %v2412
  %v2501 = vpack.c.b16 %v2417, %v2413
  %v2502 = vpack.c.b16 %v2418, %v2414
  %v2503 = vpack.c.b16 %v2423, %v2419
  %v2504 = vpack.c.b16 %v2424, %v2420
  %v2505 = vpack.c.b16 %v2425, %v2421
  %v2506 = vpack.c.b16 %v2426, %v2422
  %v2507 = vpack.c.b16 %v2431, %v2427
  %v2508 = vpack.c.b16 %v2432, %v2428
  %v2509 = vpack.c.b16 %v2433, %v2429
  %v2510 = vpack.c.b16 %v2434, %v2430
  %v2511 = vpack.c.b16 %v2439, %v2435
  %v2512 = vpack.c.b16 %v2440, %v2436
  %v2513 = vpack.c.b16 %v2441, %v2437
  %v2514 = vpack.c.b16 %v2442, %v2438
  %v2515 = vpack.c.b16 %v2447, %v2443
  %v2516 = vpack.c.b16 %v2448, %v2444
  %v2517 = vpack.c.b16 %v2449, %v2445
  %v2518 = vpack.c.b16 %v2450, %v2446
  %v2519 = vpack.c.b16 %v2455, %v2451
  %v2520 = vpack.c.b16 %v2456, %v2452
  %v2521 = vpack.c.b16 %v2457, %v2453
  %v2522 = vpack.c.b16 %v2458, %v2454
  %2587 = vmatprep.subr.bf16.mxu0 %v2488
  %2588 = vmatpush1.bf16.msra.mxu0 %v2487
  %2589 = vmatprep.subr.bf16.mxu0 %v2484
  %2590 = vmatpush1.bf16.msra.mxu0 %v2483
  %2591 = vmatprep.subr.bf16.mxu0 %v2480
  %2592 = vmatpush1.bf16.msra.mxu0 %v2479
  %2593 = vmatprep.subr.bf16.mxu0 %v2476
  %2594 = vmatpush1.bf16.msra.mxu0 %v2475
  %2595 = vmatprep.subr.bf16.mxu0 %v2472
  %2596 = vmatpush1.bf16.msra.mxu0 %v2471
  %2597 = vmatprep.subr.bf16.mxu0 %v2468
  %2598 = vmatpush1.bf16.msra.mxu0 %v2467
  %2599 = vmatprep.subr.bf16.mxu0 %v2464
  %2600 = vmatpush1.bf16.msra.mxu0 %v2463
  %2601 = vmatprep.subr.bf16.mxu0 %v2460
  %2602 = vmatpush1.bf16.msra.mxu0 %v2459
  %2603 = vmatprep.subr.bf16.mxu0 %v2520
  %2604 = vmatpush2.bf16.msra.mxu0 %v2519
  %2605 = vmatprep.subr.bf16.mxu0 %v2516
  %2606 = vmatpush2.bf16.msra.mxu0 %v2515
  %2607 = vmatprep.subr.bf16.mxu0 %v2512
  %2608 = vmatpush2.bf16.msra.mxu0 %v2511
  %2609 = vmatprep.subr.bf16.mxu0 %v2508
  %2610 = vmatpush2.bf16.msra.mxu0 %v2507
  %2611 = vmatprep.subr.bf16.mxu0 %v2504
  %2612 = vmatpush2.bf16.msra.mxu0 %v2503
  %2613 = vmatprep.subr.bf16.mxu0 %v2500
  %2614 = vmatpush2.bf16.msra.mxu0 %v2499
  %2615 = vmatprep.subr.bf16.mxu0 %v2496
  %2616 = vmatpush2.bf16.msra.mxu0 %v2495
  %2617 = vmatprep.subr.bf16.mxu0 %v2492
  %2618 = vmatpush2.bf16.msra.mxu0 %v2491
  %2619 = vmatprep.mubr.bf16.mxu0 %v420
  %2620 = vmatmul.mubr.bf16.gmra.mxu0 %v419
  %v2621 = vpop.f32.mrf.mxu0
  %v2622 = vadd.f32 %v2220, %v2621
  %v2623 = vpop.f32.mrf.mxu0
  %v2624 = vadd.f32 %v2222, %v2623
  %v2625 = vpop.f32.mrf.mxu0
  %v2626 = vpop.f32.mrf.mxu0
  %2627 = vdwg.mxu0
  %2628 = vmatprep.subr.bf16.mxu0 %v2490
  %2629 = vmatpush1.bf16.msra.mxu0 %v2489
  %2630 = vmatprep.subr.bf16.mxu0 %v2486
  %2631 = vmatpush1.bf16.msra.mxu0 %v2485
  %2632 = vmatprep.subr.bf16.mxu0 %v2482
  %2633 = vmatpush1.bf16.msra.mxu0 %v2481
  %2634 = vmatprep.subr.bf16.mxu0 %v2478
  %2635 = vmatpush1.bf16.msra.mxu0 %v2477
  %2636 = vmatprep.subr.bf16.mxu0 %v2474
  %2637 = vmatpush1.bf16.msra.mxu0 %v2473
  %2638 = vmatprep.subr.bf16.mxu0 %v2470
  %2639 = vmatpush1.bf16.msra.mxu0 %v2469
  %2640 = vmatprep.subr.bf16.mxu0 %v2466
  %2641 = vmatpush1.bf16.msra.mxu0 %v2465
  %2642 = vmatprep.subr.bf16.mxu0 %v2462
  %2643 = vmatpush1.bf16.msra.mxu0 %v2461
  %2644 = vmatprep.subr.bf16.mxu0 %v2522
  %2645 = vmatpush2.bf16.msra.mxu0 %v2521
  %2646 = vmatprep.subr.bf16.mxu0 %v2518
  %2647 = vmatpush2.bf16.msra.mxu0 %v2517
  %2648 = vmatprep.subr.bf16.mxu0 %v2514
  %2649 = vmatpush2.bf16.msra.mxu0 %v2513
  %2650 = vmatprep.subr.bf16.mxu0 %v2510
  %2651 = vmatpush2.bf16.msra.mxu0 %v2509
  %2652 = vmatprep.subr.bf16.mxu0 %v2506
  %2653 = vmatpush2.bf16.msra.mxu0 %v2505
  %2654 = vmatprep.subr.bf16.mxu0 %v2502
  %2655 = vmatpush2.bf16.msra.mxu0 %v2501
  %2656 = vmatprep.subr.bf16.mxu0 %v2498
  %2657 = vmatpush2.bf16.msra.mxu0 %v2497
  %2658 = vmatprep.subr.bf16.mxu0 %v2494
  %2659 = vmatpush2.bf16.msra.mxu0 %v2493
  %2660 = vmatprep.mubr.bf16.mxu0 %v420
  %2661 = vmatmul.mubr.bf16.gmra.mxu0 %v419
  %v2662 = vpop.f32.mrf.mxu0
  %v2663 = vadd.f32 %v2261, %v2662
  %v2664 = vpop.f32.mrf.mxu0
  %v2665 = vadd.f32 %v2263, %v2664
  %v2666 = vpop.f32.mrf.mxu0
  %v2667 = vpop.f32.mrf.mxu0
  %2668 = vdwg.mxu0
  %2669 = vmatprep.subr.bf16.mxu0 %v720
  %2670 = vmatpush1.bf16.msra.mxu0 %v719
  %2671 = vmatprep.subr.bf16.mxu0 %v716
  %2672 = vmatpush1.bf16.msra.mxu0 %v715
  %2673 = vmatprep.subr.bf16.mxu0 %v712
  %2674 = vmatpush1.bf16.msra.mxu0 %v711
  %2675 = vmatprep.subr.bf16.mxu0 %v708
  %2676 = vmatpush1.bf16.msra.mxu0 %v707
  %2677 = vmatprep.subr.bf16.mxu0 %v704
  %2678 = vmatpush1.bf16.msra.mxu0 %v703
  %2679 = vmatprep.subr.bf16.mxu0 %v700
  %2680 = vmatpush1.bf16.msra.mxu0 %v699
  %2681 = vmatprep.subr.bf16.mxu0 %v696
  %2682 = vmatpush1.bf16.msra.mxu0 %v695
  %2683 = vmatprep.subr.bf16.mxu0 %v692
  %2684 = vmatpush1.bf16.msra.mxu0 %v691
  %2685 = vmatprep.subr.bf16.mxu0 %v752
  %2686 = vmatpush2.bf16.msra.mxu0 %v751
  %2687 = vmatprep.subr.bf16.mxu0 %v748
  %2688 = vmatpush2.bf16.msra.mxu0 %v747
  %2689 = vmatprep.subr.bf16.mxu0 %v744
  %2690 = vmatpush2.bf16.msra.mxu0 %v743
  %2691 = vmatprep.subr.bf16.mxu0 %v740
  %2692 = vmatpush2.bf16.msra.mxu0 %v739
  %2693 = vmatprep.subr.bf16.mxu0 %v736
  %2694 = vmatpush2.bf16.msra.mxu0 %v735
  %2695 = vmatprep.subr.bf16.mxu0 %v732
  %2696 = vmatpush2.bf16.msra.mxu0 %v731
  %2697 = vmatprep.subr.bf16.mxu0 %v728
  %2698 = vmatpush2.bf16.msra.mxu0 %v727
  %2699 = vmatprep.subr.bf16.mxu0 %v724
  %2700 = vmatpush2.bf16.msra.mxu0 %v723
  %2701 = vmatprep.mubr.bf16.mxu0 %v446
  %2702 = vmatmul.mubr.bf16.gmra.mxu0 %v445
  %v2703 = vpop.f32.mrf.mxu0
  %v2704 = vadd.f32 0.0, %v2703
  %v2705 = vpop.f32.mrf.mxu0
  %v2706 = vadd.f32 0.0, %v2705
  %v2707 = vpop.f32.mrf.mxu0
  %v2708 = vpop.f32.mrf.mxu0
  %2709 = vdwg.mxu0
  %2710 = vmatprep.subr.bf16.mxu0 %v722
  %2711 = vmatpush1.bf16.msra.mxu0 %v721
  %2712 = vmatprep.subr.bf16.mxu0 %v718
  %2713 = vmatpush1.bf16.msra.mxu0 %v717
  %2714 = vmatprep.subr.bf16.mxu0 %v714
  %2715 = vmatpush1.bf16.msra.mxu0 %v713
  %2716 = vmatprep.subr.bf16.mxu0 %v710
  %2717 = vmatpush1.bf16.msra.mxu0 %v709
  %2718 = vmatprep.subr.bf16.mxu0 %v706
  %2719 = vmatpush1.bf16.msra.mxu0 %v705
  %2720 = vmatprep.subr.bf16.mxu0 %v702
  %2721 = vmatpush1.bf16.msra.mxu0 %v701
  %2722 = vmatprep.subr.bf16.mxu0 %v698
  %2723 = vmatpush1.bf16.msra.mxu0 %v697
  %2724 = vmatprep.subr.bf16.mxu0 %v694
  %2725 = vmatpush1.bf16.msra.mxu0 %v693
  %2726 = vmatprep.subr.bf16.mxu0 %v754
  %2727 = vmatpush2.bf16.msra.mxu0 %v753
  %2728 = vmatprep.subr.bf16.mxu0 %v750
  %2729 = vmatpush2.bf16.msra.mxu0 %v749
  %2730 = vmatprep.subr.bf16.mxu0 %v746
  %2731 = vmatpush2.bf16.msra.mxu0 %v745
  %2732 = vmatprep.subr.bf16.mxu0 %v742
  %2733 = vmatpush2.bf16.msra.mxu0 %v741
  %2734 = vmatprep.subr.bf16.mxu0 %v738
  %2735 = vmatpush2.bf16.msra.mxu0 %v737
  %2736 = vmatprep.subr.bf16.mxu0 %v734
  %2737 = vmatpush2.bf16.msra.mxu0 %v733
  %2738 = vmatprep.subr.bf16.mxu0 %v730
  %2739 = vmatpush2.bf16.msra.mxu0 %v729
  %2740 = vmatprep.subr.bf16.mxu0 %v726
  %2741 = vmatpush2.bf16.msra.mxu0 %v725
  %2742 = vmatprep.mubr.bf16.mxu0 %v446
  %2743 = vmatmul.mubr.bf16.gmra.mxu0 %v445
  %v2744 = vpop.f32.mrf.mxu0
  %v2745 = vadd.f32 0.0, %v2744
  %v2746 = vpop.f32.mrf.mxu0
  %v2747 = vadd.f32 0.0, %v2746
  %v2748 = vpop.f32.mrf.mxu0
  %v2749 = vpop.f32.mrf.mxu0
  %2750 = vdwg.mxu0
  %v2751 = vadd.f32 %v2622, %v2704
  %v2752 = vadd.f32 %v2624, %v2706
  %v2753 = vadd.f32 %v2663, %v2745
  %v2754 = vadd.f32 %v2665, %v2747
  %v2755 = vadd.f32 %v2751, %v1307
  %v2756 = vadd.f32 %v2752, %v1311
  %v2757 = vadd.f32 %v2753, %v1315
  %v2758 = vadd.f32 %v2754, %v1319
  %vm2759 = vcmp.ge.f32.partialorder %v2755, 0.0
  %vm2760 = vcmp.ge.f32.partialorder %v2756, 0.0
  %vm2761 = vcmp.ge.f32.partialorder %v2757, 0.0
  %vm2762 = vcmp.ge.f32.partialorder %v2758, 0.0
  %v2763 = vmul.f32 %v2755, 0.2
  %v2764 = vmul.f32 %v2756, 0.2
  %v2765 = vmul.f32 %v2757, 0.2
  %v2766 = vmul.f32 %v2758, 0.2
  %v2767 = vsel %vm2759, %v2755, %v2763
  %v2768 = vsel %vm2760, %v2756, %v2764
  %v2769 = vsel %vm2761, %v2757, %v2765
  %v2770 = vsel %vm2762, %v2758, %v2766
  %v2771 = vpack.c.bf16 %v2767, %v2767
  %v2772 = vpack.c.bf16 %v2768, %v2768
  %v2773 = vpack.c.bf16 %v2769, %v2769
  %v2774 = vpack.c.bf16 %v2770, %v2770
  %2775 = vmatprep.subr.bf16.mxu0 %v1778
  %2776 = vmatpush1.bf16.msra.mxu0 %v1777
  %2777 = vmatprep.subr.bf16.mxu0 %v1774
  %2778 = vmatpush1.bf16.msra.mxu0 %v1773
  %2779 = vmatprep.subr.bf16.mxu0 %v1770
  %2780 = vmatpush1.bf16.msra.mxu0 %v1769
  %2781 = vmatprep.subr.bf16.mxu0 %v1766
  %2782 = vmatpush1.bf16.msra.mxu0 %v1765
  %2783 = vmatprep.subr.bf16.mxu0 %v1762
  %2784 = vmatpush1.bf16.msra.mxu0 %v1761
  %2785 = vmatprep.subr.bf16.mxu0 %v1758
  %2786 = vmatpush1.bf16.msra.mxu0 %v1757
  %2787 = vmatprep.subr.bf16.mxu0 %v1754
  %2788 = vmatpush1.bf16.msra.mxu0 %v1753
  %2789 = vmatprep.subr.bf16.mxu0 %v1750
  %2790 = vmatpush1.bf16.msra.mxu0 %v1749
  %2791 = vmatprep.subr.bf16.mxu0 %v1810
  %2792 = vmatpush2.bf16.msra.mxu0 %v1809
  %2793 = vmatprep.subr.bf16.mxu0 %v1806
  %2794 = vmatpush2.bf16.msra.mxu0 %v1805
  %2795 = vmatprep.subr.bf16.mxu0 %v1802
  %2796 = vmatpush2.bf16.msra.mxu0 %v1801
  %2797 = vmatprep.subr.bf16.mxu0 %v1798
  %2798 = vmatpush2.bf16.msra.mxu0 %v1797
  %2799 = vmatprep.subr.bf16.mxu0 %v1794
  %2800 = vmatpush2.bf16.msra.mxu0 %v1793
  %2801 = vmatprep.subr.bf16.mxu0 %v1790
  %2802 = vmatpush2.bf16.msra.mxu0 %v1789
  %2803 = vmatprep.subr.bf16.mxu0 %v1786
  %2804 = vmatpush2.bf16.msra.mxu0 %v1785
  %2805 = vmatprep.subr.bf16.mxu0 %v1782
  %2806 = vmatpush2.bf16.msra.mxu0 %v1781
  %2807 = vmatprep.mubr.bf16.mxu0 %v2772
  %2808 = vmatmul.mubr.bf16.gmra.mxu0 %v2771
  %v2809 = vpop.f32.mrf.mxu0
  %v2810 = vadd.f32 %v1348, %v2809
  %v2811 = vpop.f32.mrf.mxu0
  %v2812 = vadd.f32 %v1352, %v2811
  %v2813 = vpop.f32.mrf.mxu0
  %v2814 = vpop.f32.mrf.mxu0
  %2815 = vdwg.mxu0
  %2816 = vmatprep.subr.bf16.mxu0 %v1842
  %2817 = vmatpush1.bf16.msra.mxu0 %v1841
  %2818 = vmatprep.subr.bf16.mxu0 %v1838
  %2819 = vmatpush1.bf16.msra.mxu0 %v1837
  %2820 = vmatprep.subr.bf16.mxu0 %v1834
  %2821 = vmatpush1.bf16.msra.mxu0 %v1833
  %2822 = vmatprep.subr.bf16.mxu0 %v1830
  %2823 = vmatpush1.bf16.msra.mxu0 %v1829
  %2824 = vmatprep.subr.bf16.mxu0 %v1826
  %2825 = vmatpush1.bf16.msra.mxu0 %v1825
  %2826 = vmatprep.subr.bf16.mxu0 %v1822
  %2827 = vmatpush1.bf16.msra.mxu0 %v1821
  %2828 = vmatprep.subr.bf16.mxu0 %v1818
  %2829 = vmatpush1.bf16.msra.mxu0 %v1817
  %2830 = vmatprep.subr.bf16.mxu0 %v1814
  %2831 = vmatpush1.bf16.msra.mxu0 %v1813
  %2832 = vmatprep.subr.bf16.mxu0 %v1874
  %2833 = vmatpush2.bf16.msra.mxu0 %v1873
  %2834 = vmatprep.subr.bf16.mxu0 %v1870
  %2835 = vmatpush2.bf16.msra.mxu0 %v1869
  %2836 = vmatprep.subr.bf16.mxu0 %v1866
  %2837 = vmatpush2.bf16.msra.mxu0 %v1865
  %2838 = vmatprep.subr.bf16.mxu0 %v1862
  %2839 = vmatpush2.bf16.msra.mxu0 %v1861
  %2840 = vmatprep.subr.bf16.mxu0 %v1858
  %2841 = vmatpush2.bf16.msra.mxu0 %v1857
  %2842 = vmatprep.subr.bf16.mxu0 %v1854
  %2843 = vmatpush2.bf16.msra.mxu0 %v1853
  %2844 = vmatprep.subr.bf16.mxu0 %v1850
  %2845 = vmatpush2.bf16.msra.mxu0 %v1849
  %2846 = vmatprep.subr.bf16.mxu0 %v1846
  %2847 = vmatpush2.bf16.msra.mxu0 %v1845
  %2848 = vmatprep.mubr.bf16.mxu0 %v2774
  %2849 = vmatmul.mubr.bf16.gmra.mxu0 %v2773
  %v2850 = vpop.f32.mrf.mxu0
  %v2851 = vadd.f32 %v2810, %v2850
  %v2852 = vpop.f32.mrf.mxu0
  %v2853 = vadd.f32 %v2812, %v2852
  %v2854 = vpop.f32.mrf.mxu0
  %v2855 = vpop.f32.mrf.mxu0
  %2856 = vdwg.mxu0
  %2857 = vmatprep.subr.bf16.mxu0 %v1780
  %2858 = vmatpush1.bf16.msra.mxu0 %v1779
  %2859 = vmatprep.subr.bf16.mxu0 %v1776
  %2860 = vmatpush1.bf16.msra.mxu0 %v1775
  %2861 = vmatprep.subr.bf16.mxu0 %v1772
  %2862 = vmatpush1.bf16.msra.mxu0 %v1771
  %2863 = vmatprep.subr.bf16.mxu0 %v1768
  %2864 = vmatpush1.bf16.msra.mxu0 %v1767
  %2865 = vmatprep.subr.bf16.mxu0 %v1764
  %2866 = vmatpush1.bf16.msra.mxu0 %v1763
  %2867 = vmatprep.subr.bf16.mxu0 %v1760
  %2868 = vmatpush1.bf16.msra.mxu0 %v1759
  %2869 = vmatprep.subr.bf16.mxu0 %v1756
  %2870 = vmatpush1.bf16.msra.mxu0 %v1755
  %2871 = vmatprep.subr.bf16.mxu0 %v1752
  %2872 = vmatpush1.bf16.msra.mxu0 %v1751
  %2873 = vmatprep.subr.bf16.mxu0 %v1812
  %2874 = vmatpush2.bf16.msra.mxu0 %v1811
  %2875 = vmatprep.subr.bf16.mxu0 %v1808
  %2876 = vmatpush2.bf16.msra.mxu0 %v1807
  %2877 = vmatprep.subr.bf16.mxu0 %v1804
  %2878 = vmatpush2.bf16.msra.mxu0 %v1803
  %2879 = vmatprep.subr.bf16.mxu0 %v1800
  %2880 = vmatpush2.bf16.msra.mxu0 %v1799
  %2881 = vmatprep.subr.bf16.mxu0 %v1796
  %2882 = vmatpush2.bf16.msra.mxu0 %v1795
  %2883 = vmatprep.subr.bf16.mxu0 %v1792
  %2884 = vmatpush2.bf16.msra.mxu0 %v1791
  %2885 = vmatprep.subr.bf16.mxu0 %v1788
  %2886 = vmatpush2.bf16.msra.mxu0 %v1787
  %2887 = vmatprep.subr.bf16.mxu0 %v1784
  %2888 = vmatpush2.bf16.msra.mxu0 %v1783
  %2889 = vmatprep.mubr.bf16.mxu0 %v2772
  %2890 = vmatmul.mubr.bf16.gmra.mxu0 %v2771
  %v2891 = vpop.f32.mrf.mxu0
  %v2892 = vadd.f32 %v1356, %v2891
  %v2893 = vpop.f32.mrf.mxu0
  %v2894 = vadd.f32 %v1360, %v2893
  %v2895 = vpop.f32.mrf.mxu0
  %v2896 = vpop.f32.mrf.mxu0
  %2897 = vdwg.mxu0
  %2898 = vmatprep.subr.bf16.mxu0 %v1844
  %2899 = vmatpush1.bf16.msra.mxu0 %v1843
  %2900 = vmatprep.subr.bf16.mxu0 %v1840
  %2901 = vmatpush1.bf16.msra.mxu0 %v1839
  %2902 = vmatprep.subr.bf16.mxu0 %v1836
  %2903 = vmatpush1.bf16.msra.mxu0 %v1835
  %2904 = vmatprep.subr.bf16.mxu0 %v1832
  %2905 = vmatpush1.bf16.msra.mxu0 %v1831
  %2906 = vmatprep.subr.bf16.mxu0 %v1828
  %2907 = vmatpush1.bf16.msra.mxu0 %v1827
  %2908 = vmatprep.subr.bf16.mxu0 %v1824
  %2909 = vmatpush1.bf16.msra.mxu0 %v1823
  %2910 = vmatprep.subr.bf16.mxu0 %v1820
  %2911 = vmatpush1.bf16.msra.mxu0 %v1819
  %2912 = vmatprep.subr.bf16.mxu0 %v1816
  %2913 = vmatpush1.bf16.msra.mxu0 %v1815
  %2914 = vmatprep.subr.bf16.mxu0 %v1876
  %2915 = vmatpush2.bf16.msra.mxu0 %v1875
  %2916 = vmatprep.subr.bf16.mxu0 %v1872
  %2917 = vmatpush2.bf16.msra.mxu0 %v1871
  %2918 = vmatprep.subr.bf16.mxu0 %v1868
  %2919 = vmatpush2.bf16.msra.mxu0 %v1867
  %2920 = vmatprep.subr.bf16.mxu0 %v1864
  %2921 = vmatpush2.bf16.msra.mxu0 %v1863
  %2922 = vmatprep.subr.bf16.mxu0 %v1860
  %2923 = vmatpush2.bf16.msra.mxu0 %v1859
  %2924 = vmatprep.subr.bf16.mxu0 %v1856
  %2925 = vmatpush2.bf16.msra.mxu0 %v1855
  %2926 = vmatprep.subr.bf16.mxu0 %v1852
  %2927 = vmatpush2.bf16.msra.mxu0 %v1851
  %2928 = vmatprep.subr.bf16.mxu0 %v1848
  %2929 = vmatpush2.bf16.msra.mxu0 %v1847
  %2930 = vmatprep.mubr.bf16.mxu0 %v2774
  %2931 = vmatmul.mubr.bf16.gmra.mxu0 %v2773
  %v2932 = vpop.f32.mrf.mxu0
  %v2933 = vadd.f32 %v2892, %v2932
  %v2934 = vpop.f32.mrf.mxu0
  %v2935 = vadd.f32 %v2894, %v2934
  %v2936 = vpop.f32.mrf.mxu0
  %v2937 = vpop.f32.mrf.mxu0
  %2938 = vdwg.mxu0
  %vm2939 = vcmp.ge.f32.partialorder %v2851, 0.0
  %vm2940 = vcmp.ge.f32.partialorder %v2853, 0.0
  %vm2941 = vcmp.ge.f32.partialorder %v2933, 0.0
  %vm2942 = vcmp.ge.f32.partialorder %v2935, 0.0
  %v2943 = vmul.f32 %v2851, 0.2
  %v2944 = vmul.f32 %v2853, 0.2
  %v2945 = vmul.f32 %v2933, 0.2
  %v2946 = vmul.f32 %v2935, 0.2
  %v2947 = vsel %vm2939, %v2851, %v2943
  %v2948 = vsel %vm2940, %v2853, %v2944
  %v2949 = vsel %vm2941, %v2933, %v2945
  %v2950 = vsel %vm2942, %v2935, %v2946
  %v2951 = vadd.f32 %v2947, %v2767
  %v2952 = vadd.f32 %v2948, %v2768
  %v2953 = vadd.f32 %v2949, %v2769
  %v2954 = vadd.f32 %v2950, %v2770
  %2955 = vmatprep.subr.bf16.mxu0 %v1122
  %2956 = vmatpush1.bf16.msra.mxu0 %v1121
  %2957 = vmatprep.subr.bf16.mxu0 %v1118
  %2958 = vmatpush1.bf16.msra.mxu0 %v1117
  %2959 = vmatprep.subr.bf16.mxu0 %v1114
  %2960 = vmatpush1.bf16.msra.mxu0 %v1113
  %2961 = vmatprep.subr.bf16.mxu0 %v1110
  %2962 = vmatpush1.bf16.msra.mxu0 %v1109
  %2963 = vmatprep.subr.bf16.mxu0 %v1106
  %2964 = vmatpush1.bf16.msra.mxu0 %v1105
  %2965 = vmatprep.subr.bf16.mxu0 %v1102
  %2966 = vmatpush1.bf16.msra.mxu0 %v1101
  %2967 = vmatprep.subr.bf16.mxu0 %v1098
  %2968 = vmatpush1.bf16.msra.mxu0 %v1097
  %2969 = vmatprep.subr.bf16.mxu0 %v1094
  %2970 = vmatpush1.bf16.msra.mxu0 %v1093
  %2971 = vmatprep.subr.bf16.mxu0 %v1154
  %2972 = vmatpush2.bf16.msra.mxu0 %v1153
  %2973 = vmatprep.subr.bf16.mxu0 %v1150
  %2974 = vmatpush2.bf16.msra.mxu0 %v1149
  %2975 = vmatprep.subr.bf16.mxu0 %v1146
  %2976 = vmatpush2.bf16.msra.mxu0 %v1145
  %2977 = vmatprep.subr.bf16.mxu0 %v1142
  %2978 = vmatpush2.bf16.msra.mxu0 %v1141
  %2979 = vmatprep.subr.bf16.mxu0 %v1138
  %2980 = vmatpush2.bf16.msra.mxu0 %v1137
  %2981 = vmatprep.subr.bf16.mxu0 %v1134
  %2982 = vmatpush2.bf16.msra.mxu0 %v1133
  %2983 = vmatprep.subr.bf16.mxu0 %v1130
  %2984 = vmatpush2.bf16.msra.mxu0 %v1129
  %2985 = vmatprep.subr.bf16.mxu0 %v1126
  %2986 = vmatpush2.bf16.msra.mxu0 %v1125
  %2987 = vmatprep.mubr.bf16.mxu0 %v459
  %2988 = vmatmul.mubr.bf16.gmra.mxu0 %v458
  %v2989 = vpop.f32.mrf.mxu0
  %v2990 = vadd.f32 0.0, %v2989
  %v2991 = vpop.f32.mrf.mxu0
  %v2992 = vadd.f32 0.0, %v2991
  %v2993 = vpop.f32.mrf.mxu0
  %v2994 = vpop.f32.mrf.mxu0
  %2995 = vdwg.mxu0
  %2996 = vmatprep.subr.bf16.mxu0 %v1124
  %2997 = vmatpush1.bf16.msra.mxu0 %v1123
  %2998 = vmatprep.subr.bf16.mxu0 %v1120
  %2999 = vmatpush1.bf16.msra.mxu0 %v1119
  %3000 = vmatprep.subr.bf16.mxu0 %v1116
  %3001 = vmatpush1.bf16.msra.mxu0 %v1115
  %3002 = vmatprep.subr.bf16.mxu0 %v1112
  %3003 = vmatpush1.bf16.msra.mxu0 %v1111
  %3004 = vmatprep.subr.bf16.mxu0 %v1108
  %3005 = vmatpush1.bf16.msra.mxu0 %v1107
  %3006 = vmatprep.subr.bf16.mxu0 %v1104
  %3007 = vmatpush1.bf16.msra.mxu0 %v1103
  %3008 = vmatprep.subr.bf16.mxu0 %v1100
  %3009 = vmatpush1.bf16.msra.mxu0 %v1099
  %3010 = vmatprep.subr.bf16.mxu0 %v1096
  %3011 = vmatpush1.bf16.msra.mxu0 %v1095
  %3012 = vmatprep.subr.bf16.mxu0 %v1156
  %3013 = vmatpush2.bf16.msra.mxu0 %v1155
  %3014 = vmatprep.subr.bf16.mxu0 %v1152
  %3015 = vmatpush2.bf16.msra.mxu0 %v1151
  %3016 = vmatprep.subr.bf16.mxu0 %v1148
  %3017 = vmatpush2.bf16.msra.mxu0 %v1147
  %3018 = vmatprep.subr.bf16.mxu0 %v1144
  %3019 = vmatpush2.bf16.msra.mxu0 %v1143
  %3020 = vmatprep.subr.bf16.mxu0 %v1140
  %3021 = vmatpush2.bf16.msra.mxu0 %v1139
  %3022 = vmatprep.subr.bf16.mxu0 %v1136
  %3023 = vmatpush2.bf16.msra.mxu0 %v1135
  %3024 = vmatprep.subr.bf16.mxu0 %v1132
  %3025 = vmatpush2.bf16.msra.mxu0 %v1131
  %3026 = vmatprep.subr.bf16.mxu0 %v1128
  %3027 = vmatpush2.bf16.msra.mxu0 %v1127
  %3028 = vmatprep.mubr.bf16.mxu0 %v459
  %3029 = vmatmul.mubr.bf16.gmra.mxu0 %v458
  %v3030 = vpop.f32.mrf.mxu0
  %v3031 = vadd.f32 0.0, %v3030
  %v3032 = vpop.f32.mrf.mxu0
  %v3033 = vadd.f32 0.0, %v3032
  %v3034 = vpop.f32.mrf.mxu0
  %v3035 = vpop.f32.mrf.mxu0
  %3036 = vdwg.mxu0
  %3037 = vmatprep.subr.bf16.mxu0 %v2488
  %3038 = vmatpush1.bf16.msra.mxu0 %v2487
  %3039 = vmatprep.subr.bf16.mxu0 %v2484
  %3040 = vmatpush1.bf16.msra.mxu0 %v2483
  %3041 = vmatprep.subr.bf16.mxu0 %v2480
  %3042 = vmatpush1.bf16.msra.mxu0 %v2479
  %3043 = vmatprep.subr.bf16.mxu0 %v2476
  %3044 = vmatpush1.bf16.msra.mxu0 %v2475
  %3045 = vmatprep.subr.bf16.mxu0 %v2472
  %3046 = vmatpush1.bf16.msra.mxu0 %v2471
  %3047 = vmatprep.subr.bf16.mxu0 %v2468
  %3048 = vmatpush1.bf16.msra.mxu0 %v2467
  %3049 = vmatprep.subr.bf16.mxu0 %v2464
  %3050 = vmatpush1.bf16.msra.mxu0 %v2463
  %3051 = vmatprep.subr.bf16.mxu0 %v2460
  %3052 = vmatpush1.bf16.msra.mxu0 %v2459
  %3053 = vmatprep.subr.bf16.mxu0 %v2520
  %3054 = vmatpush2.bf16.msra.mxu0 %v2519
  %3055 = vmatprep.subr.bf16.mxu0 %v2516
  %3056 = vmatpush2.bf16.msra.mxu0 %v2515
  %3057 = vmatprep.subr.bf16.mxu0 %v2512
  %3058 = vmatpush2.bf16.msra.mxu0 %v2511
  %3059 = vmatprep.subr.bf16.mxu0 %v2508
  %3060 = vmatpush2.bf16.msra.mxu0 %v2507
  %3061 = vmatprep.subr.bf16.mxu0 %v2504
  %3062 = vmatpush2.bf16.msra.mxu0 %v2503
  %3063 = vmatprep.subr.bf16.mxu0 %v2500
  %3064 = vmatpush2.bf16.msra.mxu0 %v2499
  %3065 = vmatprep.subr.bf16.mxu0 %v2496
  %3066 = vmatpush2.bf16.msra.mxu0 %v2495
  %3067 = vmatprep.subr.bf16.mxu0 %v2492
  %3068 = vmatpush2.bf16.msra.mxu0 %v2491
  %3069 = vmatprep.mubr.bf16.mxu0 %v446
  %3070 = vmatmul.mubr.bf16.gmra.mxu0 %v445
  %v3071 = vpop.f32.mrf.mxu0
  %v3072 = vadd.f32 %v2990, %v3071
  %v3073 = vpop.f32.mrf.mxu0
  %v3074 = vadd.f32 %v2992, %v3073
  %v3075 = vpop.f32.mrf.mxu0
  %v3076 = vpop.f32.mrf.mxu0
  %3077 = vdwg.mxu0
  %3078 = vmatprep.subr.bf16.mxu0 %v2490
  %3079 = vmatpush1.bf16.msra.mxu0 %v2489
  %3080 = vmatprep.subr.bf16.mxu0 %v2486
  %3081 = vmatpush1.bf16.msra.mxu0 %v2485
  %3082 = vmatprep.subr.bf16.mxu0 %v2482
  %3083 = vmatpush1.bf16.msra.mxu0 %v2481
  %3084 = vmatprep.subr.bf16.mxu0 %v2478
  %3085 = vmatpush1.bf16.msra.mxu0 %v2477
  %3086 = vmatprep.subr.bf16.mxu0 %v2474
  %3087 = vmatpush1.bf16.msra.mxu0 %v2473
  %3088 = vmatprep.subr.bf16.mxu0 %v2470
  %3089 = vmatpush1.bf16.msra.mxu0 %v2469
  %3090 = vmatprep.subr.bf16.mxu0 %v2466
  %3091 = vmatpush1.bf16.msra.mxu0 %v2465
  %3092 = vmatprep.subr.bf16.mxu0 %v2462
  %3093 = vmatpush1.bf16.msra.mxu0 %v2461
  %3094 = vmatprep.subr.bf16.mxu0 %v2522
  %3095 = vmatpush2.bf16.msra.mxu0 %v2521
  %3096 = vmatprep.subr.bf16.mxu0 %v2518
  %3097 = vmatpush2.bf16.msra.mxu0 %v2517
  %3098 = vmatprep.subr.bf16.mxu0 %v2514
  %3099 = vmatpush2.bf16.msra.mxu0 %v2513
  %3100 = vmatprep.subr.bf16.mxu0 %v2510
  %3101 = vmatpush2.bf16.msra.mxu0 %v2509
  %3102 = vmatprep.subr.bf16.mxu0 %v2506
  %3103 = vmatpush2.bf16.msra.mxu0 %v2505
  %3104 = vmatprep.subr.bf16.mxu0 %v2502
  %3105 = vmatpush2.bf16.msra.mxu0 %v2501
  %3106 = vmatprep.subr.bf16.mxu0 %v2498
  %3107 = vmatpush2.bf16.msra.mxu0 %v2497
  %3108 = vmatprep.subr.bf16.mxu0 %v2494
  %3109 = vmatpush2.bf16.msra.mxu0 %v2493
  %3110 = vmatprep.mubr.bf16.mxu0 %v446
  %3111 = vmatmul.mubr.bf16.gmra.mxu0 %v445
  %v3112 = vpop.f32.mrf.mxu0
  %v3113 = vadd.f32 %v3031, %v3112
  %v3114 = vpop.f32.mrf.mxu0
  %v3115 = vadd.f32 %v3033, %v3114
  %v3116 = vpop.f32.mrf.mxu0
  %v3117 = vpop.f32.mrf.mxu0
  %3118 = vdwg.mxu0
  %3119 = vmatprep.subr.bf16.mxu0 %v720
  %3120 = vmatpush1.bf16.msra.mxu0 %v719
  %3121 = vmatprep.subr.bf16.mxu0 %v716
  %3122 = vmatpush1.bf16.msra.mxu0 %v715
  %3123 = vmatprep.subr.bf16.mxu0 %v712
  %3124 = vmatpush1.bf16.msra.mxu0 %v711
  %3125 = vmatprep.subr.bf16.mxu0 %v708
  %3126 = vmatpush1.bf16.msra.mxu0 %v707
  %3127 = vmatprep.subr.bf16.mxu0 %v704
  %3128 = vmatpush1.bf16.msra.mxu0 %v703
  %3129 = vmatprep.subr.bf16.mxu0 %v700
  %3130 = vmatpush1.bf16.msra.mxu0 %v699
  %3131 = vmatprep.subr.bf16.mxu0 %v696
  %3132 = vmatpush1.bf16.msra.mxu0 %v695
  %3133 = vmatprep.subr.bf16.mxu0 %v692
  %3134 = vmatpush1.bf16.msra.mxu0 %v691
  %3135 = vmatprep.subr.bf16.mxu0 %v752
  %3136 = vmatpush2.bf16.msra.mxu0 %v751
  %3137 = vmatprep.subr.bf16.mxu0 %v748
  %3138 = vmatpush2.bf16.msra.mxu0 %v747
  %3139 = vmatprep.subr.bf16.mxu0 %v744
  %3140 = vmatpush2.bf16.msra.mxu0 %v743
  %3141 = vmatprep.subr.bf16.mxu0 %v740
  %3142 = vmatpush2.bf16.msra.mxu0 %v739
  %3143 = vmatprep.subr.bf16.mxu0 %v736
  %3144 = vmatpush2.bf16.msra.mxu0 %v735
  %3145 = vmatprep.subr.bf16.mxu0 %v732
  %3146 = vmatpush2.bf16.msra.mxu0 %v731
  %3147 = vmatprep.subr.bf16.mxu0 %v728
  %3148 = vmatpush2.bf16.msra.mxu0 %v727
  %3149 = vmatprep.subr.bf16.mxu0 %v724
  %3150 = vmatpush2.bf16.msra.mxu0 %v723
  %3151 = vmatprep.mubr.bf16.mxu0 %v472
  %3152 = vmatmul.mubr.bf16.gmra.mxu0 %v471
  %v3153 = vpop.f32.mrf.mxu0
  %v3154 = vadd.f32 0.0, %v3153
  %v3155 = vpop.f32.mrf.mxu0
  %v3156 = vadd.f32 0.0, %v3155
  %v3157 = vpop.f32.mrf.mxu0
  %v3158 = vpop.f32.mrf.mxu0
  %3159 = vdwg.mxu0
  %3160 = vmatprep.subr.bf16.mxu0 %v722
  %3161 = vmatpush1.bf16.msra.mxu0 %v721
  %3162 = vmatprep.subr.bf16.mxu0 %v718
  %3163 = vmatpush1.bf16.msra.mxu0 %v717
  %3164 = vmatprep.subr.bf16.mxu0 %v714
  %3165 = vmatpush1.bf16.msra.mxu0 %v713
  %3166 = vmatprep.subr.bf16.mxu0 %v710
  %3167 = vmatpush1.bf16.msra.mxu0 %v709
  %3168 = vmatprep.subr.bf16.mxu0 %v706
  %3169 = vmatpush1.bf16.msra.mxu0 %v705
  %3170 = vmatprep.subr.bf16.mxu0 %v702
  %3171 = vmatpush1.bf16.msra.mxu0 %v701
  %3172 = vmatprep.subr.bf16.mxu0 %v698
  %3173 = vmatpush1.bf16.msra.mxu0 %v697
  %3174 = vmatprep.subr.bf16.mxu0 %v694
  %3175 = vmatpush1.bf16.msra.mxu0 %v693
  %3176 = vmatprep.subr.bf16.mxu0 %v754
  %3177 = vmatpush2.bf16.msra.mxu0 %v753
  %3178 = vmatprep.subr.bf16.mxu0 %v750
  %3179 = vmatpush2.bf16.msra.mxu0 %v749
  %3180 = vmatprep.subr.bf16.mxu0 %v746
  %3181 = vmatpush2.bf16.msra.mxu0 %v745
  %3182 = vmatprep.subr.bf16.mxu0 %v742
  %3183 = vmatpush2.bf16.msra.mxu0 %v741
  %3184 = vmatprep.subr.bf16.mxu0 %v738
  %3185 = vmatpush2.bf16.msra.mxu0 %v737
  %3186 = vmatprep.subr.bf16.mxu0 %v734
  %3187 = vmatpush2.bf16.msra.mxu0 %v733
  %3188 = vmatprep.subr.bf16.mxu0 %v730
  %3189 = vmatpush2.bf16.msra.mxu0 %v729
  %3190 = vmatprep.subr.bf16.mxu0 %v726
  %3191 = vmatpush2.bf16.msra.mxu0 %v725
  %3192 = vmatprep.mubr.bf16.mxu0 %v472
  %3193 = vmatmul.mubr.bf16.gmra.mxu0 %v471
  %v3194 = vpop.f32.mrf.mxu0
  %v3195 = vadd.f32 0.0, %v3194
  %v3196 = vpop.f32.mrf.mxu0
  %v3197 = vadd.f32 0.0, %v3196
  %v3198 = vpop.f32.mrf.mxu0
  %v3199 = vpop.f32.mrf.mxu0
  %3200 = vdwg.mxu0
  %v3201 = vadd.f32 %v3072, %v3154
  %v3202 = vadd.f32 %v3074, %v3156
  %v3203 = vadd.f32 %v3113, %v3195
  %v3204 = vadd.f32 %v3115, %v3197
  %v3205 = vadd.f32 %v3201, %v1307
  %v3206 = vadd.f32 %v3202, %v1311
  %v3207 = vadd.f32 %v3203, %v1315
  %v3208 = vadd.f32 %v3204, %v1319
  %vm3209 = vcmp.ge.f32.partialorder %v3205, 0.0
  %vm3210 = vcmp.ge.f32.partialorder %v3206, 0.0
  %vm3211 = vcmp.ge.f32.partialorder %v3207, 0.0
  %vm3212 = vcmp.ge.f32.partialorder %v3208, 0.0
  %v3213 = vmul.f32 %v3205, 0.2
  %v3214 = vmul.f32 %v3206, 0.2
  %v3215 = vmul.f32 %v3207, 0.2
  %v3216 = vmul.f32 %v3208, 0.2
  %v3217 = vsel %vm3209, %v3205, %v3213
  %v3218 = vsel %vm3210, %v3206, %v3214
  %v3219 = vsel %vm3211, %v3207, %v3215
  %v3220 = vsel %vm3212, %v3208, %v3216
  %v3221 = vpack.c.bf16 %v3217, %v3217
  %v3222 = vpack.c.bf16 %v3218, %v3218
  %v3223 = vpack.c.bf16 %v3219, %v3219
  %v3224 = vpack.c.bf16 %v3220, %v3220
  %3225 = vmatprep.subr.bf16.mxu0 %v1778
  %3226 = vmatpush1.bf16.msra.mxu0 %v1777
  %3227 = vmatprep.subr.bf16.mxu0 %v1774
  %3228 = vmatpush1.bf16.msra.mxu0 %v1773
  %3229 = vmatprep.subr.bf16.mxu0 %v1770
  %3230 = vmatpush1.bf16.msra.mxu0 %v1769
  %3231 = vmatprep.subr.bf16.mxu0 %v1766
  %3232 = vmatpush1.bf16.msra.mxu0 %v1765
  %3233 = vmatprep.subr.bf16.mxu0 %v1762
  %3234 = vmatpush1.bf16.msra.mxu0 %v1761
  %3235 = vmatprep.subr.bf16.mxu0 %v1758
  %3236 = vmatpush1.bf16.msra.mxu0 %v1757
  %3237 = vmatprep.subr.bf16.mxu0 %v1754
  %3238 = vmatpush1.bf16.msra.mxu0 %v1753
  %3239 = vmatprep.subr.bf16.mxu0 %v1750
  %3240 = vmatpush1.bf16.msra.mxu0 %v1749
  %3241 = vmatprep.subr.bf16.mxu0 %v1810
  %3242 = vmatpush2.bf16.msra.mxu0 %v1809
  %3243 = vmatprep.subr.bf16.mxu0 %v1806
  %3244 = vmatpush2.bf16.msra.mxu0 %v1805
  %3245 = vmatprep.subr.bf16.mxu0 %v1802
  %3246 = vmatpush2.bf16.msra.mxu0 %v1801
  %3247 = vmatprep.subr.bf16.mxu0 %v1798
  %3248 = vmatpush2.bf16.msra.mxu0 %v1797
  %3249 = vmatprep.subr.bf16.mxu0 %v1794
  %3250 = vmatpush2.bf16.msra.mxu0 %v1793
  %3251 = vmatprep.subr.bf16.mxu0 %v1790
  %3252 = vmatpush2.bf16.msra.mxu0 %v1789
  %3253 = vmatprep.subr.bf16.mxu0 %v1786
  %3254 = vmatpush2.bf16.msra.mxu0 %v1785
  %3255 = vmatprep.subr.bf16.mxu0 %v1782
  %3256 = vmatpush2.bf16.msra.mxu0 %v1781
  %3257 = vmatprep.mubr.bf16.mxu0 %v3222
  %3258 = vmatmul.mubr.bf16.gmra.mxu0 %v3221
  %v3259 = vpop.f32.mrf.mxu0
  %v3260 = vadd.f32 %v1348, %v3259
  %v3261 = vpop.f32.mrf.mxu0
  %v3262 = vadd.f32 %v1352, %v3261
  %v3263 = vpop.f32.mrf.mxu0
  %v3264 = vpop.f32.mrf.mxu0
  %3265 = vdwg.mxu0
  %3266 = vmatprep.subr.bf16.mxu0 %v1842
  %3267 = vmatpush1.bf16.msra.mxu0 %v1841
  %3268 = vmatprep.subr.bf16.mxu0 %v1838
  %3269 = vmatpush1.bf16.msra.mxu0 %v1837
  %3270 = vmatprep.subr.bf16.mxu0 %v1834
  %3271 = vmatpush1.bf16.msra.mxu0 %v1833
  %3272 = vmatprep.subr.bf16.mxu0 %v1830
  %3273 = vmatpush1.bf16.msra.mxu0 %v1829
  %3274 = vmatprep.subr.bf16.mxu0 %v1826
  %3275 = vmatpush1.bf16.msra.mxu0 %v1825
  %3276 = vmatprep.subr.bf16.mxu0 %v1822
  %3277 = vmatpush1.bf16.msra.mxu0 %v1821
  %3278 = vmatprep.subr.bf16.mxu0 %v1818
  %3279 = vmatpush1.bf16.msra.mxu0 %v1817
  %3280 = vmatprep.subr.bf16.mxu0 %v1814
  %3281 = vmatpush1.bf16.msra.mxu0 %v1813
  %3282 = vmatprep.subr.bf16.mxu0 %v1874
  %3283 = vmatpush2.bf16.msra.mxu0 %v1873
  %3284 = vmatprep.subr.bf16.mxu0 %v1870
  %3285 = vmatpush2.bf16.msra.mxu0 %v1869
  %3286 = vmatprep.subr.bf16.mxu0 %v1866
  %3287 = vmatpush2.bf16.msra.mxu0 %v1865
  %3288 = vmatprep.subr.bf16.mxu0 %v1862
  %3289 = vmatpush2.bf16.msra.mxu0 %v1861
  %3290 = vmatprep.subr.bf16.mxu0 %v1858
  %3291 = vmatpush2.bf16.msra.mxu0 %v1857
  %3292 = vmatprep.subr.bf16.mxu0 %v1854
  %3293 = vmatpush2.bf16.msra.mxu0 %v1853
  %3294 = vmatprep.subr.bf16.mxu0 %v1850
  %3295 = vmatpush2.bf16.msra.mxu0 %v1849
  %3296 = vmatprep.subr.bf16.mxu0 %v1846
  %3297 = vmatpush2.bf16.msra.mxu0 %v1845
  %3298 = vmatprep.mubr.bf16.mxu0 %v3224
  %3299 = vmatmul.mubr.bf16.gmra.mxu0 %v3223
  %v3300 = vpop.f32.mrf.mxu0
  %v3301 = vadd.f32 %v3260, %v3300
  %v3302 = vpop.f32.mrf.mxu0
  %v3303 = vadd.f32 %v3262, %v3302
  %v3304 = vpop.f32.mrf.mxu0
  %v3305 = vpop.f32.mrf.mxu0
  %3306 = vdwg.mxu0
  %3307 = vmatprep.subr.bf16.mxu0 %v1780
  %3308 = vmatpush1.bf16.msra.mxu0 %v1779
  %3309 = vmatprep.subr.bf16.mxu0 %v1776
  %3310 = vmatpush1.bf16.msra.mxu0 %v1775
  %3311 = vmatprep.subr.bf16.mxu0 %v1772
  %3312 = vmatpush1.bf16.msra.mxu0 %v1771
  %3313 = vmatprep.subr.bf16.mxu0 %v1768
  %3314 = vmatpush1.bf16.msra.mxu0 %v1767
  %3315 = vmatprep.subr.bf16.mxu0 %v1764
  %3316 = vmatpush1.bf16.msra.mxu0 %v1763
  %3317 = vmatprep.subr.bf16.mxu0 %v1760
  %3318 = vmatpush1.bf16.msra.mxu0 %v1759
  %3319 = vmatprep.subr.bf16.mxu0 %v1756
  %3320 = vmatpush1.bf16.msra.mxu0 %v1755
  %3321 = vmatprep.subr.bf16.mxu0 %v1752
  %3322 = vmatpush1.bf16.msra.mxu0 %v1751
  %3323 = vmatprep.subr.bf16.mxu0 %v1812
  %3324 = vmatpush2.bf16.msra.mxu0 %v1811
  %3325 = vmatprep.subr.bf16.mxu0 %v1808
  %3326 = vmatpush2.bf16.msra.mxu0 %v1807
  %3327 = vmatprep.subr.bf16.mxu0 %v1804
  %3328 = vmatpush2.bf16.msra.mxu0 %v1803
  %3329 = vmatprep.subr.bf16.mxu0 %v1800
  %3330 = vmatpush2.bf16.msra.mxu0 %v1799
  %3331 = vmatprep.subr.bf16.mxu0 %v1796
  %3332 = vmatpush2.bf16.msra.mxu0 %v1795
  %3333 = vmatprep.subr.bf16.mxu0 %v1792
  %3334 = vmatpush2.bf16.msra.mxu0 %v1791
  %3335 = vmatprep.subr.bf16.mxu0 %v1788
  %3336 = vmatpush2.bf16.msra.mxu0 %v1787
  %3337 = vmatprep.subr.bf16.mxu0 %v1784
  %3338 = vmatpush2.bf16.msra.mxu0 %v1783
  %3339 = vmatprep.mubr.bf16.mxu0 %v3222
  %3340 = vmatmul.mubr.bf16.gmra.mxu0 %v3221
  %v3341 = vpop.f32.mrf.mxu0
  %v3342 = vadd.f32 %v1356, %v3341
  %v3343 = vpop.f32.mrf.mxu0
  %v3344 = vadd.f32 %v1360, %v3343
  %v3345 = vpop.f32.mrf.mxu0
  %v3346 = vpop.f32.mrf.mxu0
  %3347 = vdwg.mxu0
  %3348 = vmatprep.subr.bf16.mxu0 %v1844
  %3349 = vmatpush1.bf16.msra.mxu0 %v1843
  %3350 = vmatprep.subr.bf16.mxu0 %v1840
  %3351 = vmatpush1.bf16.msra.mxu0 %v1839
  %3352 = vmatprep.subr.bf16.mxu0 %v1836
  %3353 = vmatpush1.bf16.msra.mxu0 %v1835
  %3354 = vmatprep.subr.bf16.mxu0 %v1832
  %3355 = vmatpush1.bf16.msra.mxu0 %v1831
  %3356 = vmatprep.subr.bf16.mxu0 %v1828
  %3357 = vmatpush1.bf16.msra.mxu0 %v1827
  %3358 = vmatprep.subr.bf16.mxu0 %v1824
  %3359 = vmatpush1.bf16.msra.mxu0 %v1823
  %3360 = vmatprep.subr.bf16.mxu0 %v1820
  %3361 = vmatpush1.bf16.msra.mxu0 %v1819
  %3362 = vmatprep.subr.bf16.mxu0 %v1816
  %3363 = vmatpush1.bf16.msra.mxu0 %v1815
  %3364 = vmatprep.subr.bf16.mxu0 %v1876
  %3365 = vmatpush2.bf16.msra.mxu0 %v1875
  %3366 = vmatprep.subr.bf16.mxu0 %v1872
  %3367 = vmatpush2.bf16.msra.mxu0 %v1871
  %3368 = vmatprep.subr.bf16.mxu0 %v1868
  %3369 = vmatpush2.bf16.msra.mxu0 %v1867
  %3370 = vmatprep.subr.bf16.mxu0 %v1864
  %3371 = vmatpush2.bf16.msra.mxu0 %v1863
  %3372 = vmatprep.subr.bf16.mxu0 %v1860
  %3373 = vmatpush2.bf16.msra.mxu0 %v1859
  %3374 = vmatprep.subr.bf16.mxu0 %v1856
  %3375 = vmatpush2.bf16.msra.mxu0 %v1855
  %3376 = vmatprep.subr.bf16.mxu0 %v1852
  %3377 = vmatpush2.bf16.msra.mxu0 %v1851
  %3378 = vmatprep.subr.bf16.mxu0 %v1848
  %3379 = vmatpush2.bf16.msra.mxu0 %v1847
  %3380 = vmatprep.mubr.bf16.mxu0 %v3224
  %3381 = vmatmul.mubr.bf16.gmra.mxu0 %v3223
  %v3382 = vpop.f32.mrf.mxu0
  %v3383 = vadd.f32 %v3342, %v3382
  %v3384 = vpop.f32.mrf.mxu0
  %v3385 = vadd.f32 %v3344, %v3384
  %v3386 = vpop.f32.mrf.mxu0
  %v3387 = vpop.f32.mrf.mxu0
  %3388 = vdwg.mxu0
  %vm3389 = vcmp.ge.f32.partialorder %v3301, 0.0
  %vm3390 = vcmp.ge.f32.partialorder %v3303, 0.0
  %vm3391 = vcmp.ge.f32.partialorder %v3383, 0.0
  %vm3392 = vcmp.ge.f32.partialorder %v3385, 0.0
  %v3393 = vmul.f32 %v3301, 0.2
  %v3394 = vmul.f32 %v3303, 0.2
  %v3395 = vmul.f32 %v3383, 0.2
  %v3396 = vmul.f32 %v3385, 0.2
  %v3397 = vsel %vm3389, %v3301, %v3393
  %v3398 = vsel %vm3390, %v3303, %v3394
  %v3399 = vsel %vm3391, %v3383, %v3395
  %v3400 = vsel %vm3392, %v3385, %v3396
  %v3401 = vadd.f32 %v3397, %v3217
  %v3402 = vadd.f32 %v3398, %v3218
  %v3403 = vadd.f32 %v3399, %v3219
  %v3404 = vadd.f32 %v3400, %v3220
  %3405 = vmatprep.subr.bf16.mxu0 %v1122
  %3406 = vmatpush1.bf16.msra.mxu0 %v1121
  %3407 = vmatprep.subr.bf16.mxu0 %v1118
  %3408 = vmatpush1.bf16.msra.mxu0 %v1117
  %3409 = vmatprep.subr.bf16.mxu0 %v1114
  %3410 = vmatpush1.bf16.msra.mxu0 %v1113
  %3411 = vmatprep.subr.bf16.mxu0 %v1110
  %3412 = vmatpush1.bf16.msra.mxu0 %v1109
  %3413 = vmatprep.subr.bf16.mxu0 %v1106
  %3414 = vmatpush1.bf16.msra.mxu0 %v1105
  %3415 = vmatprep.subr.bf16.mxu0 %v1102
  %3416 = vmatpush1.bf16.msra.mxu0 %v1101
  %3417 = vmatprep.subr.bf16.mxu0 %v1098
  %3418 = vmatpush1.bf16.msra.mxu0 %v1097
  %3419 = vmatprep.subr.bf16.mxu0 %v1094
  %3420 = vmatpush1.bf16.msra.mxu0 %v1093
  %3421 = vmatprep.subr.bf16.mxu0 %v1154
  %3422 = vmatpush2.bf16.msra.mxu0 %v1153
  %3423 = vmatprep.subr.bf16.mxu0 %v1150
  %3424 = vmatpush2.bf16.msra.mxu0 %v1149
  %3425 = vmatprep.subr.bf16.mxu0 %v1146
  %3426 = vmatpush2.bf16.msra.mxu0 %v1145
  %3427 = vmatprep.subr.bf16.mxu0 %v1142
  %3428 = vmatpush2.bf16.msra.mxu0 %v1141
  %3429 = vmatprep.subr.bf16.mxu0 %v1138
  %3430 = vmatpush2.bf16.msra.mxu0 %v1137
  %3431 = vmatprep.subr.bf16.mxu0 %v1134
  %3432 = vmatpush2.bf16.msra.mxu0 %v1133
  %3433 = vmatprep.subr.bf16.mxu0 %v1130
  %3434 = vmatpush2.bf16.msra.mxu0 %v1129
  %3435 = vmatprep.subr.bf16.mxu0 %v1126
  %3436 = vmatpush2.bf16.msra.mxu0 %v1125
  %3437 = vmatprep.mubr.bf16.mxu0 %v485
  %3438 = vmatmul.mubr.bf16.gmra.mxu0 %v484
  %v3439 = vpop.f32.mrf.mxu0
  %v3440 = vadd.f32 0.0, %v3439
  %v3441 = vpop.f32.mrf.mxu0
  %v3442 = vadd.f32 0.0, %v3441
  %v3443 = vpop.f32.mrf.mxu0
  %v3444 = vpop.f32.mrf.mxu0
  %3445 = vdwg.mxu0
  %3446 = vmatprep.subr.bf16.mxu0 %v1124
  %3447 = vmatpush1.bf16.msra.mxu0 %v1123
  %3448 = vmatprep.subr.bf16.mxu0 %v1120
  %3449 = vmatpush1.bf16.msra.mxu0 %v1119
  %3450 = vmatprep.subr.bf16.mxu0 %v1116
  %3451 = vmatpush1.bf16.msra.mxu0 %v1115
  %3452 = vmatprep.subr.bf16.mxu0 %v1112
  %3453 = vmatpush1.bf16.msra.mxu0 %v1111
  %3454 = vmatprep.subr.bf16.mxu0 %v1108
  %3455 = vmatpush1.bf16.msra.mxu0 %v1107
  %3456 = vmatprep.subr.bf16.mxu0 %v1104
  %3457 = vmatpush1.bf16.msra.mxu0 %v1103
  %3458 = vmatprep.subr.bf16.mxu0 %v1100
  %3459 = vmatpush1.bf16.msra.mxu0 %v1099
  %3460 = vmatprep.subr.bf16.mxu0 %v1096
  %3461 = vmatpush1.bf16.msra.mxu0 %v1095
  %3462 = vmatprep.subr.bf16.mxu0 %v1156
  %3463 = vmatpush2.bf16.msra.mxu0 %v1155
  %3464 = vmatprep.subr.bf16.mxu0 %v1152
  %3465 = vmatpush2.bf16.msra.mxu0 %v1151
  %3466 = vmatprep.subr.bf16.mxu0 %v1148
  %3467 = vmatpush2.bf16.msra.mxu0 %v1147
  %3468 = vmatprep.subr.bf16.mxu0 %v1144
  %3469 = vmatpush2.bf16.msra.mxu0 %v1143
  %3470 = vmatprep.subr.bf16.mxu0 %v1140
  %3471 = vmatpush2.bf16.msra.mxu0 %v1139
  %3472 = vmatprep.subr.bf16.mxu0 %v1136
  %3473 = vmatpush2.bf16.msra.mxu0 %v1135
  %3474 = vmatprep.subr.bf16.mxu0 %v1132
  %3475 = vmatpush2.bf16.msra.mxu0 %v1131
  %3476 = vmatprep.subr.bf16.mxu0 %v1128
  %3477 = vmatpush2.bf16.msra.mxu0 %v1127
  %3478 = vmatprep.mubr.bf16.mxu0 %v485
  %3479 = vmatmul.mubr.bf16.gmra.mxu0 %v484
  %v3480 = vpop.f32.mrf.mxu0
  %v3481 = vadd.f32 0.0, %v3480
  %v3482 = vpop.f32.mrf.mxu0
  %v3483 = vadd.f32 0.0, %v3482
  %v3484 = vpop.f32.mrf.mxu0
  %v3485 = vpop.f32.mrf.mxu0
  %3486 = vdwg.mxu0
  %3487 = vmatprep.subr.bf16.mxu0 %v2488
  %3488 = vmatpush1.bf16.msra.mxu0 %v2487
  %3489 = vmatprep.subr.bf16.mxu0 %v2484
  %3490 = vmatpush1.bf16.msra.mxu0 %v2483
  %3491 = vmatprep.subr.bf16.mxu0 %v2480
  %3492 = vmatpush1.bf16.msra.mxu0 %v2479
  %3493 = vmatprep.subr.bf16.mxu0 %v2476
  %3494 = vmatpush1.bf16.msra.mxu0 %v2475
  %3495 = vmatprep.subr.bf16.mxu0 %v2472
  %3496 = vmatpush1.bf16.msra.mxu0 %v2471
  %3497 = vmatprep.subr.bf16.mxu0 %v2468
  %3498 = vmatpush1.bf16.msra.mxu0 %v2467
  %3499 = vmatprep.subr.bf16.mxu0 %v2464
  %3500 = vmatpush1.bf16.msra.mxu0 %v2463
  %3501 = vmatprep.subr.bf16.mxu0 %v2460
  %3502 = vmatpush1.bf16.msra.mxu0 %v2459
  %3503 = vmatprep.subr.bf16.mxu0 %v2520
  %3504 = vmatpush2.bf16.msra.mxu0 %v2519
  %3505 = vmatprep.subr.bf16.mxu0 %v2516
  %3506 = vmatpush2.bf16.msra.mxu0 %v2515
  %3507 = vmatprep.subr.bf16.mxu0 %v2512
  %3508 = vmatpush2.bf16.msra.mxu0 %v2511
  %3509 = vmatprep.subr.bf16.mxu0 %v2508
  %3510 = vmatpush2.bf16.msra.mxu0 %v2507
  %3511 = vmatprep.subr.bf16.mxu0 %v2504
  %3512 = vmatpush2.bf16.msra.mxu0 %v2503
  %3513 = vmatprep.subr.bf16.mxu0 %v2500
  %3514 = vmatpush2.bf16.msra.mxu0 %v2499
  %3515 = vmatprep.subr.bf16.mxu0 %v2496
  %3516 = vmatpush2.bf16.msra.mxu0 %v2495
  %3517 = vmatprep.subr.bf16.mxu0 %v2492
  %3518 = vmatpush2.bf16.msra.mxu0 %v2491
  %3519 = vmatprep.mubr.bf16.mxu0 %v472
  %3520 = vmatmul.mubr.bf16.gmra.mxu0 %v471
  %v3521 = vpop.f32.mrf.mxu0
  %v3522 = vadd.f32 %v3440, %v3521
  %v3523 = vpop.f32.mrf.mxu0
  %v3524 = vadd.f32 %v3442, %v3523
  %v3525 = vpop.f32.mrf.mxu0
  %v3526 = vpop.f32.mrf.mxu0
  %3527 = vdwg.mxu0
  %3528 = vmatprep.subr.bf16.mxu0 %v2490
  %3529 = vmatpush1.bf16.msra.mxu0 %v2489
  %3530 = vmatprep.subr.bf16.mxu0 %v2486
  %3531 = vmatpush1.bf16.msra.mxu0 %v2485
  %3532 = vmatprep.subr.bf16.mxu0 %v2482
  %3533 = vmatpush1.bf16.msra.mxu0 %v2481
  %3534 = vmatprep.subr.bf16.mxu0 %v2478
  %3535 = vmatpush1.bf16.msra.mxu0 %v2477
  %3536 = vmatprep.subr.bf16.mxu0 %v2474
  %3537 = vmatpush1.bf16.msra.mxu0 %v2473
  %3538 = vmatprep.subr.bf16.mxu0 %v2470
  %3539 = vmatpush1.bf16.msra.mxu0 %v2469
  %3540 = vmatprep.subr.bf16.mxu0 %v2466
  %3541 = vmatpush1.bf16.msra.mxu0 %v2465
  %3542 = vmatprep.subr.bf16.mxu0 %v2462
  %3543 = vmatpush1.bf16.msra.mxu0 %v2461
  %3544 = vmatprep.subr.bf16.mxu0 %v2522
  %3545 = vmatpush2.bf16.msra.mxu0 %v2521
  %3546 = vmatprep.subr.bf16.mxu0 %v2518
  %3547 = vmatpush2.bf16.msra.mxu0 %v2517
  %3548 = vmatprep.subr.bf16.mxu0 %v2514
  %3549 = vmatpush2.bf16.msra.mxu0 %v2513
  %3550 = vmatprep.subr.bf16.mxu0 %v2510
  %3551 = vmatpush2.bf16.msra.mxu0 %v2509
  %3552 = vmatprep.subr.bf16.mxu0 %v2506
  %3553 = vmatpush2.bf16.msra.mxu0 %v2505
  %3554 = vmatprep.subr.bf16.mxu0 %v2502
  %3555 = vmatpush2.bf16.msra.mxu0 %v2501
  %3556 = vmatprep.subr.bf16.mxu0 %v2498
  %3557 = vmatpush2.bf16.msra.mxu0 %v2497
  %3558 = vmatprep.subr.bf16.mxu0 %v2494
  %3559 = vmatpush2.bf16.msra.mxu0 %v2493
  %3560 = vmatprep.mubr.bf16.mxu0 %v472
  %3561 = vmatmul.mubr.bf16.gmra.mxu0 %v471
  %v3562 = vpop.f32.mrf.mxu0
  %v3563 = vadd.f32 %v3481, %v3562
  %v3564 = vpop.f32.mrf.mxu0
  %v3565 = vadd.f32 %v3483, %v3564
  %v3566 = vpop.f32.mrf.mxu0
  %v3567 = vpop.f32.mrf.mxu0
  %3568 = vdwg.mxu0
  %3569 = vmatprep.subr.bf16.mxu0 %v720
  %3570 = vmatpush1.bf16.msra.mxu0 %v719
  %3571 = vmatprep.subr.bf16.mxu0 %v716
  %3572 = vmatpush1.bf16.msra.mxu0 %v715
  %3573 = vmatprep.subr.bf16.mxu0 %v712
  %3574 = vmatpush1.bf16.msra.mxu0 %v711
  %3575 = vmatprep.subr.bf16.mxu0 %v708
  %3576 = vmatpush1.bf16.msra.mxu0 %v707
  %3577 = vmatprep.subr.bf16.mxu0 %v704
  %3578 = vmatpush1.bf16.msra.mxu0 %v703
  %3579 = vmatprep.subr.bf16.mxu0 %v700
  %3580 = vmatpush1.bf16.msra.mxu0 %v699
  %3581 = vmatprep.subr.bf16.mxu0 %v696
  %3582 = vmatpush1.bf16.msra.mxu0 %v695
  %3583 = vmatprep.subr.bf16.mxu0 %v692
  %3584 = vmatpush1.bf16.msra.mxu0 %v691
  %3585 = vmatprep.subr.bf16.mxu0 %v752
  %3586 = vmatpush2.bf16.msra.mxu0 %v751
  %3587 = vmatprep.subr.bf16.mxu0 %v748
  %3588 = vmatpush2.bf16.msra.mxu0 %v747
  %3589 = vmatprep.subr.bf16.mxu0 %v744
  %3590 = vmatpush2.bf16.msra.mxu0 %v743
  %3591 = vmatprep.subr.bf16.mxu0 %v740
  %3592 = vmatpush2.bf16.msra.mxu0 %v739
  %3593 = vmatprep.subr.bf16.mxu0 %v736
  %3594 = vmatpush2.bf16.msra.mxu0 %v735
  %3595 = vmatprep.subr.bf16.mxu0 %v732
  %3596 = vmatpush2.bf16.msra.mxu0 %v731
  %3597 = vmatprep.subr.bf16.mxu0 %v728
  %3598 = vmatpush2.bf16.msra.mxu0 %v727
  %3599 = vmatprep.subr.bf16.mxu0 %v724
  %3600 = vmatpush2.bf16.msra.mxu0 %v723
  %3601 = vmatprep.mubr.bf16.mxu0 %v498
  %3602 = vmatmul.mubr.bf16.gmra.mxu0 %v497
  %v3603 = vpop.f32.mrf.mxu0
  %v3604 = vadd.f32 0.0, %v3603
  %v3605 = vpop.f32.mrf.mxu0
  %v3606 = vadd.f32 0.0, %v3605
  %v3607 = vpop.f32.mrf.mxu0
  %v3608 = vpop.f32.mrf.mxu0
  %3609 = vdwg.mxu0
  %3610 = vmatprep.subr.bf16.mxu0 %v722
  %3611 = vmatpush1.bf16.msra.mxu0 %v721
  %3612 = vmatprep.subr.bf16.mxu0 %v718
  %3613 = vmatpush1.bf16.msra.mxu0 %v717
  %3614 = vmatprep.subr.bf16.mxu0 %v714
  %3615 = vmatpush1.bf16.msra.mxu0 %v713
  %3616 = vmatprep.subr.bf16.mxu0 %v710
  %3617 = vmatpush1.bf16.msra.mxu0 %v709
  %3618 = vmatprep.subr.bf16.mxu0 %v706
  %3619 = vmatpush1.bf16.msra.mxu0 %v705
  %3620 = vmatprep.subr.bf16.mxu0 %v702
  %3621 = vmatpush1.bf16.msra.mxu0 %v701
  %3622 = vmatprep.subr.bf16.mxu0 %v698
  %3623 = vmatpush1.bf16.msra.mxu0 %v697
  %3624 = vmatprep.subr.bf16.mxu0 %v694
  %3625 = vmatpush1.bf16.msra.mxu0 %v693
  %3626 = vmatprep.subr.bf16.mxu0 %v754
  %3627 = vmatpush2.bf16.msra.mxu0 %v753
  %3628 = vmatprep.subr.bf16.mxu0 %v750
  %3629 = vmatpush2.bf16.msra.mxu0 %v749
  %3630 = vmatprep.subr.bf16.mxu0 %v746
  %3631 = vmatpush2.bf16.msra.mxu0 %v745
  %3632 = vmatprep.subr.bf16.mxu0 %v742
  %3633 = vmatpush2.bf16.msra.mxu0 %v741
  %3634 = vmatprep.subr.bf16.mxu0 %v738
  %3635 = vmatpush2.bf16.msra.mxu0 %v737
  %3636 = vmatprep.subr.bf16.mxu0 %v734
  %3637 = vmatpush2.bf16.msra.mxu0 %v733
  %3638 = vmatprep.subr.bf16.mxu0 %v730
  %3639 = vmatpush2.bf16.msra.mxu0 %v729
  %3640 = vmatprep.subr.bf16.mxu0 %v726
  %3641 = vmatpush2.bf16.msra.mxu0 %v725
  %3642 = vmatprep.mubr.bf16.mxu0 %v498
  %3643 = vmatmul.mubr.bf16.gmra.mxu0 %v497
  %v3644 = vpop.f32.mrf.mxu0
  %v3645 = vadd.f32 0.0, %v3644
  %v3646 = vpop.f32.mrf.mxu0
  %v3647 = vadd.f32 0.0, %v3646
  %v3648 = vpop.f32.mrf.mxu0
  %v3649 = vpop.f32.mrf.mxu0
  %3650 = vdwg.mxu0
  %v3651 = vadd.f32 %v3522, %v3604
  %v3652 = vadd.f32 %v3524, %v3606
  %v3653 = vadd.f32 %v3563, %v3645
  %v3654 = vadd.f32 %v3565, %v3647
  %v3655 = vadd.f32 %v3651, %v1307
  %v3656 = vadd.f32 %v3652, %v1311
  %v3657 = vadd.f32 %v3653, %v1315
  %v3658 = vadd.f32 %v3654, %v1319
  %vm3659 = vcmp.ge.f32.partialorder %v3655, 0.0
  %vm3660 = vcmp.ge.f32.partialorder %v3656, 0.0
  %vm3661 = vcmp.ge.f32.partialorder %v3657, 0.0
  %vm3662 = vcmp.ge.f32.partialorder %v3658, 0.0
  %v3663 = vmul.f32 %v3655, 0.2
  %v3664 = vmul.f32 %v3656, 0.2
  %v3665 = vmul.f32 %v3657, 0.2
  %v3666 = vmul.f32 %v3658, 0.2
  %v3667 = vsel %vm3659, %v3655, %v3663
  %v3668 = vsel %vm3660, %v3656, %v3664
  %v3669 = vsel %vm3661, %v3657, %v3665
  %v3670 = vsel %vm3662, %v3658, %v3666
  %v3671 = vpack.c.bf16 %v3667, %v3667
  %v3672 = vpack.c.bf16 %v3668, %v3668
  %v3673 = vpack.c.bf16 %v3669, %v3669
  %v3674 = vpack.c.bf16 %v3670, %v3670
  %3675 = vmatprep.subr.bf16.mxu0 %v1778
  %3676 = vmatpush1.bf16.msra.mxu0 %v1777
  %3677 = vmatprep.subr.bf16.mxu0 %v1774
  %3678 = vmatpush1.bf16.msra.mxu0 %v1773
  %3679 = vmatprep.subr.bf16.mxu0 %v1770
  %3680 = vmatpush1.bf16.msra.mxu0 %v1769
  %3681 = vmatprep.subr.bf16.mxu0 %v1766
  %3682 = vmatpush1.bf16.msra.mxu0 %v1765
  %3683 = vmatprep.subr.bf16.mxu0 %v1762
  %3684 = vmatpush1.bf16.msra.mxu0 %v1761
  %3685 = vmatprep.subr.bf16.mxu0 %v1758
  %3686 = vmatpush1.bf16.msra.mxu0 %v1757
  %3687 = vmatprep.subr.bf16.mxu0 %v1754
  %3688 = vmatpush1.bf16.msra.mxu0 %v1753
  %3689 = vmatprep.subr.bf16.mxu0 %v1750
  %3690 = vmatpush1.bf16.msra.mxu0 %v1749
  %3691 = vmatprep.subr.bf16.mxu0 %v1810
  %3692 = vmatpush2.bf16.msra.mxu0 %v1809
  %3693 = vmatprep.subr.bf16.mxu0 %v1806
  %3694 = vmatpush2.bf16.msra.mxu0 %v1805
  %3695 = vmatprep.subr.bf16.mxu0 %v1802
  %3696 = vmatpush2.bf16.msra.mxu0 %v1801
  %3697 = vmatprep.subr.bf16.mxu0 %v1798
  %3698 = vmatpush2.bf16.msra.mxu0 %v1797
  %3699 = vmatprep.subr.bf16.mxu0 %v1794
  %3700 = vmatpush2.bf16.msra.mxu0 %v1793
  %3701 = vmatprep.subr.bf16.mxu0 %v1790
  %3702 = vmatpush2.bf16.msra.mxu0 %v1789
  %3703 = vmatprep.subr.bf16.mxu0 %v1786
  %3704 = vmatpush2.bf16.msra.mxu0 %v1785
  %3705 = vmatprep.subr.bf16.mxu0 %v1782
  %3706 = vmatpush2.bf16.msra.mxu0 %v1781
  %3707 = vmatprep.mubr.bf16.mxu0 %v3672
  %3708 = vmatmul.mubr.bf16.gmra.mxu0 %v3671
  %v3709 = vpop.f32.mrf.mxu0
  %v3710 = vadd.f32 %v1348, %v3709
  %v3711 = vpop.f32.mrf.mxu0
  %v3712 = vadd.f32 %v1352, %v3711
  %v3713 = vpop.f32.mrf.mxu0
  %v3714 = vpop.f32.mrf.mxu0
  %3715 = vdwg.mxu0
  %3716 = vmatprep.subr.bf16.mxu0 %v1842
  %3717 = vmatpush1.bf16.msra.mxu0 %v1841
  %3718 = vmatprep.subr.bf16.mxu0 %v1838
  %3719 = vmatpush1.bf16.msra.mxu0 %v1837
  %3720 = vmatprep.subr.bf16.mxu0 %v1834
  %3721 = vmatpush1.bf16.msra.mxu0 %v1833
  %3722 = vmatprep.subr.bf16.mxu0 %v1830
  %3723 = vmatpush1.bf16.msra.mxu0 %v1829
  %3724 = vmatprep.subr.bf16.mxu0 %v1826
  %3725 = vmatpush1.bf16.msra.mxu0 %v1825
  %3726 = vmatprep.subr.bf16.mxu0 %v1822
  %3727 = vmatpush1.bf16.msra.mxu0 %v1821
  %3728 = vmatprep.subr.bf16.mxu0 %v1818
  %3729 = vmatpush1.bf16.msra.mxu0 %v1817
  %3730 = vmatprep.subr.bf16.mxu0 %v1814
  %3731 = vmatpush1.bf16.msra.mxu0 %v1813
  %3732 = vmatprep.subr.bf16.mxu0 %v1874
  %3733 = vmatpush2.bf16.msra.mxu0 %v1873
  %3734 = vmatprep.subr.bf16.mxu0 %v1870
  %3735 = vmatpush2.bf16.msra.mxu0 %v1869
  %3736 = vmatprep.subr.bf16.mxu0 %v1866
  %3737 = vmatpush2.bf16.msra.mxu0 %v1865
  %3738 = vmatprep.subr.bf16.mxu0 %v1862
  %3739 = vmatpush2.bf16.msra.mxu0 %v1861
  %3740 = vmatprep.subr.bf16.mxu0 %v1858
  %3741 = vmatpush2.bf16.msra.mxu0 %v1857
  %3742 = vmatprep.subr.bf16.mxu0 %v1854
  %3743 = vmatpush2.bf16.msra.mxu0 %v1853
  %3744 = vmatprep.subr.bf16.mxu0 %v1850
  %3745 = vmatpush2.bf16.msra.mxu0 %v1849
  %3746 = vmatprep.subr.bf16.mxu0 %v1846
  %3747 = vmatpush2.bf16.msra.mxu0 %v1845
  %3748 = vmatprep.mubr.bf16.mxu0 %v3674
  %3749 = vmatmul.mubr.bf16.gmra.mxu0 %v3673
  %v3750 = vpop.f32.mrf.mxu0
  %v3751 = vadd.f32 %v3710, %v3750
  %v3752 = vpop.f32.mrf.mxu0
  %v3753 = vadd.f32 %v3712, %v3752
  %v3754 = vpop.f32.mrf.mxu0
  %v3755 = vpop.f32.mrf.mxu0
  %3756 = vdwg.mxu0
  %3757 = vmatprep.subr.bf16.mxu0 %v1780
  %3758 = vmatpush1.bf16.msra.mxu0 %v1779
  %3759 = vmatprep.subr.bf16.mxu0 %v1776
  %3760 = vmatpush1.bf16.msra.mxu0 %v1775
  %3761 = vmatprep.subr.bf16.mxu0 %v1772
  %3762 = vmatpush1.bf16.msra.mxu0 %v1771
  %3763 = vmatprep.subr.bf16.mxu0 %v1768
  %3764 = vmatpush1.bf16.msra.mxu0 %v1767
  %3765 = vmatprep.subr.bf16.mxu0 %v1764
  %3766 = vmatpush1.bf16.msra.mxu0 %v1763
  %3767 = vmatprep.subr.bf16.mxu0 %v1760
  %3768 = vmatpush1.bf16.msra.mxu0 %v1759
  %3769 = vmatprep.subr.bf16.mxu0 %v1756
  %3770 = vmatpush1.bf16.msra.mxu0 %v1755
  %3771 = vmatprep.subr.bf16.mxu0 %v1752
  %3772 = vmatpush1.bf16.msra.mxu0 %v1751
  %3773 = vmatprep.subr.bf16.mxu0 %v1812
  %3774 = vmatpush2.bf16.msra.mxu0 %v1811
  %3775 = vmatprep.subr.bf16.mxu0 %v1808
  %3776 = vmatpush2.bf16.msra.mxu0 %v1807
  %3777 = vmatprep.subr.bf16.mxu0 %v1804
  %3778 = vmatpush2.bf16.msra.mxu0 %v1803
  %3779 = vmatprep.subr.bf16.mxu0 %v1800
  %3780 = vmatpush2.bf16.msra.mxu0 %v1799
  %3781 = vmatprep.subr.bf16.mxu0 %v1796
  %3782 = vmatpush2.bf16.msra.mxu0 %v1795
  %3783 = vmatprep.subr.bf16.mxu0 %v1792
  %3784 = vmatpush2.bf16.msra.mxu0 %v1791
  %3785 = vmatprep.subr.bf16.mxu0 %v1788
  %3786 = vmatpush2.bf16.msra.mxu0 %v1787
  %3787 = vmatprep.subr.bf16.mxu0 %v1784
  %3788 = vmatpush2.bf16.msra.mxu0 %v1783
  %3789 = vmatprep.mubr.bf16.mxu0 %v3672
  %3790 = vmatmul.mubr.bf16.gmra.mxu0 %v3671
  %v3791 = vpop.f32.mrf.mxu0
  %v3792 = vadd.f32 %v1356, %v3791
  %v3793 = vpop.f32.mrf.mxu0
  %v3794 = vadd.f32 %v1360, %v3793
  %v3795 = vpop.f32.mrf.mxu0
  %v3796 = vpop.f32.mrf.mxu0
  %3797 = vdwg.mxu0
  %3798 = vmatprep.subr.bf16.mxu0 %v1844
  %3799 = vmatpush1.bf16.msra.mxu0 %v1843
  %3800 = vmatprep.subr.bf16.mxu0 %v1840
  %3801 = vmatpush1.bf16.msra.mxu0 %v1839
  %3802 = vmatprep.subr.bf16.mxu0 %v1836
  %3803 = vmatpush1.bf16.msra.mxu0 %v1835
  %3804 = vmatprep.subr.bf16.mxu0 %v1832
  %3805 = vmatpush1.bf16.msra.mxu0 %v1831
  %3806 = vmatprep.subr.bf16.mxu0 %v1828
  %3807 = vmatpush1.bf16.msra.mxu0 %v1827
  %3808 = vmatprep.subr.bf16.mxu0 %v1824
  %3809 = vmatpush1.bf16.msra.mxu0 %v1823
  %3810 = vmatprep.subr.bf16.mxu0 %v1820
  %3811 = vmatpush1.bf16.msra.mxu0 %v1819
  %3812 = vmatprep.subr.bf16.mxu0 %v1816
  %3813 = vmatpush1.bf16.msra.mxu0 %v1815
  %3814 = vmatprep.subr.bf16.mxu0 %v1876
  %3815 = vmatpush2.bf16.msra.mxu0 %v1875
  %3816 = vmatprep.subr.bf16.mxu0 %v1872
  %3817 = vmatpush2.bf16.msra.mxu0 %v1871
  %3818 = vmatprep.subr.bf16.mxu0 %v1868
  %3819 = vmatpush2.bf16.msra.mxu0 %v1867
  %3820 = vmatprep.subr.bf16.mxu0 %v1864
  %3821 = vmatpush2.bf16.msra.mxu0 %v1863
  %3822 = vmatprep.subr.bf16.mxu0 %v1860
  %3823 = vmatpush2.bf16.msra.mxu0 %v1859
  %3824 = vmatprep.subr.bf16.mxu0 %v1856
  %3825 = vmatpush2.bf16.msra.mxu0 %v1855
  %3826 = vmatprep.subr.bf16.mxu0 %v1852
  %3827 = vmatpush2.bf16.msra.mxu0 %v1851
  %3828 = vmatprep.subr.bf16.mxu0 %v1848
  %3829 = vmatpush2.bf16.msra.mxu0 %v1847
  %3830 = vmatprep.mubr.bf16.mxu0 %v3674
  %3831 = vmatmul.mubr.bf16.gmra.mxu0 %v3673
  %v3832 = vpop.f32.mrf.mxu0
  %v3833 = vadd.f32 %v3792, %v3832
  %v3834 = vpop.f32.mrf.mxu0
  %v3835 = vadd.f32 %v3794, %v3834
  %v3836 = vpop.f32.mrf.mxu0
  %v3837 = vpop.f32.mrf.mxu0
  %3838 = vdwg.mxu0
  %vm3839 = vcmp.ge.f32.partialorder %v3751, 0.0
  %vm3840 = vcmp.ge.f32.partialorder %v3753, 0.0
  %vm3841 = vcmp.ge.f32.partialorder %v3833, 0.0
  %vm3842 = vcmp.ge.f32.partialorder %v3835, 0.0
  %v3843 = vmul.f32 %v3751, 0.2
  %v3844 = vmul.f32 %v3753, 0.2
  %v3845 = vmul.f32 %v3833, 0.2
  %v3846 = vmul.f32 %v3835, 0.2
  %v3847 = vsel %vm3839, %v3751, %v3843
  %v3848 = vsel %vm3840, %v3753, %v3844
  %v3849 = vsel %vm3841, %v3833, %v3845
  %v3850 = vsel %vm3842, %v3835, %v3846
  %v3851 = vadd.f32 %v3847, %v3667
  %v3852 = vadd.f32 %v3848, %v3668
  %v3853 = vadd.f32 %v3849, %v3669
  %v3854 = vadd.f32 %v3850, %v3670
  %v3855 = vld [vmem:[%s1] sm:$0xf]
  %v3858 = vunpack.c.l.s4 1983009808
  %v3859 = vunpack.c.0.s8 %v3858
  %v3860 = vlaneseq
  %v3861 = vshrl.u32 %v3860, 7
  %v3862 = vsub.s32 %v3859, %v3861
  %v3863 = vrot.slane %v3855, %v3862
  %v3864 = vcombine.high %v3863, %v3863
  %v3867 = vld [vmem:[%s7] sm:$0x3]
  %v3868 = vld [vmem:[%s9] sm:$0x3]
  %v3869 = vld [vmem:[%s8] sm:$0xff]
  %v3870 = vld [vmem:[%s8 + $0x8] sm:$0xff]
  %v3871 = vld [vmem:[%s8 + $0x10] sm:$0xff]
  %v3872 = vld [vmem:[%s8 + $0x18] sm:$0xff]
  %v3873 = vld [vmem:[%s8 + $0x20] sm:$0xff]
  %v3874 = vld [vmem:[%s8 + $0x28] sm:$0xff]
  %v3875 = vld [vmem:[%s8 + $0x30] sm:$0xff]
  %v3876 = vld [vmem:[%s8 + $0x38] sm:$0xff]
  %v3877 = vld [vmem:[%s8 + $0x40] sm:$0xff]
  %v3878 = vld [vmem:[%s8 + $0x48] sm:$0xff]
  %v3879 = vld [vmem:[%s8 + $0x50] sm:$0xff]
  %v3880 = vld [vmem:[%s8 + $0x58] sm:$0xff]
  %v3881 = vld [vmem:[%s8 + $0x60] sm:$0xff]
  %v3882 = vld [vmem:[%s8 + $0x68] sm:$0xff]
  %v3883 = vld [vmem:[%s8 + $0x70] sm:$0xff]
  %v3884 = vld [vmem:[%s8 + $0x78] sm:$0xff]
  %v3885 = vld [vmem:[%s8 + $0x80] sm:$0xff]
  %v3886 = vld [vmem:[%s8 + $0x88] sm:$0xff]
  %v3887 = vld [vmem:[%s8 + $0x90] sm:$0xff]
  %v3888 = vld [vmem:[%s8 + $0x98] sm:$0xff]
  %v3889 = vld [vmem:[%s8 + $0xa0] sm:$0xff]
  %v3890 = vld [vmem:[%s8 + $0xa8] sm:$0xff]
  %v3891 = vld [vmem:[%s8 + $0xb0] sm:$0xff]
  %v3892 = vld [vmem:[%s8 + $0xb8] sm:$0xff]
  %v3893 = vld [vmem:[%s8 + $0xc0] sm:$0xff]
  %v3894 = vld [vmem:[%s8 + $0xc8] sm:$0xff]
  %v3895 = vld [vmem:[%s8 + $0xd0] sm:$0xff]
  %v3896 = vld [vmem:[%s8 + $0xd8] sm:$0xff]
  %v3897 = vld [vmem:[%s8 + $0xe0] sm:$0xff]
  %v3898 = vld [vmem:[%s8 + $0xe8] sm:$0xff]
  %v3899 = vld [vmem:[%s8 + $0xf0] sm:$0xff]
  %v3900 = vld [vmem:[%s8 + $0xf8] sm:$0xff]
  %v3901 = vld [vmem:[%s6] sm:$0xff]
  %v3902 = vld [vmem:[%s6 + $0x8] sm:$0xff]
  %v3903 = vld [vmem:[%s6 + $0x10] sm:$0xff]
  %v3904 = vld [vmem:[%s6 + $0x18] sm:$0xff]
  %v3905 = vld [vmem:[%s6 + $0x20] sm:$0xff]
  %v3906 = vld [vmem:[%s6 + $0x28] sm:$0xff]
  %v3907 = vld [vmem:[%s6 + $0x30] sm:$0xff]
  %v3908 = vld [vmem:[%s6 + $0x38] sm:$0xff]
  %v3909 = vld [vmem:[%s6 + $0x40] sm:$0xff]
  %v3910 = vld [vmem:[%s6 + $0x48] sm:$0xff]
  %v3911 = vld [vmem:[%s6 + $0x50] sm:$0xff]
  %v3912 = vld [vmem:[%s6 + $0x58] sm:$0xff]
  %v3913 = vld [vmem:[%s6 + $0x60] sm:$0xff]
  %v3914 = vld [vmem:[%s6 + $0x68] sm:$0xff]
  %v3915 = vld [vmem:[%s6 + $0x70] sm:$0xff]
  %v3916 = vld [vmem:[%s6 + $0x78] sm:$0xff]
  %v3917 = vld [vmem:[%s6 + $0x80] sm:$0xff]
  %v3918 = vld [vmem:[%s6 + $0x88] sm:$0xff]
  %v3919 = vld [vmem:[%s6 + $0x90] sm:$0xff]
  %v3920 = vld [vmem:[%s6 + $0x98] sm:$0xff]
  %v3921 = vld [vmem:[%s6 + $0xa0] sm:$0xff]
  %v3922 = vld [vmem:[%s6 + $0xa8] sm:$0xff]
  %v3923 = vld [vmem:[%s6 + $0xb0] sm:$0xff]
  %v3924 = vld [vmem:[%s6 + $0xb8] sm:$0xff]
  %v3925 = vld [vmem:[%s6 + $0xc0] sm:$0xff]
  %v3926 = vld [vmem:[%s6 + $0xc8] sm:$0xff]
  %v3927 = vld [vmem:[%s6 + $0xd0] sm:$0xff]
  %v3928 = vld [vmem:[%s6 + $0xd8] sm:$0xff]
  %v3929 = vld [vmem:[%s6 + $0xe0] sm:$0xff]
  %v3930 = vld [vmem:[%s6 + $0xe8] sm:$0xff]
  %v3931 = vld [vmem:[%s6 + $0xf0] sm:$0xff]
  %v3932 = vld [vmem:[%s6 + $0xf8] sm:$0xff]
  %v3933 = vld [vmem:[%s6 + $0x100] sm:$0xff]
  %v3934 = vld [vmem:[%s6 + $0x108] sm:$0xff]
  %v3935 = vld [vmem:[%s6 + $0x110] sm:$0xff]
  %v3936 = vld [vmem:[%s6 + $0x118] sm:$0xff]
  %v3937 = vld [vmem:[%s6 + $0x120] sm:$0xff]
  %v3938 = vld [vmem:[%s6 + $0x128] sm:$0xff]
  %v3939 = vld [vmem:[%s6 + $0x130] sm:$0xff]
  %v3940 = vld [vmem:[%s6 + $0x138] sm:$0xff]
  %v3941 = vld [vmem:[%s6 + $0x140] sm:$0xff]
  %v3942 = vld [vmem:[%s6 + $0x148] sm:$0xff]
  %v3943 = vld [vmem:[%s6 + $0x150] sm:$0xff]
  %v3944 = vld [vmem:[%s6 + $0x158] sm:$0xff]
  %v3945 = vld [vmem:[%s6 + $0x160] sm:$0xff]
  %v3946 = vld [vmem:[%s6 + $0x168] sm:$0xff]
  %v3947 = vld [vmem:[%s6 + $0x170] sm:$0xff]
  %v3948 = vld [vmem:[%s6 + $0x178] sm:$0xff]
  %v3949 = vld [vmem:[%s6 + $0x180] sm:$0xff]
  %v3950 = vld [vmem:[%s6 + $0x188] sm:$0xff]
  %v3951 = vld [vmem:[%s6 + $0x190] sm:$0xff]
  %v3952 = vld [vmem:[%s6 + $0x198] sm:$0xff]
  %v3953 = vld [vmem:[%s6 + $0x1a0] sm:$0xff]
  %v3954 = vld [vmem:[%s6 + $0x1a8] sm:$0xff]
  %v3955 = vld [vmem:[%s6 + $0x1b0] sm:$0xff]
  %v3956 = vld [vmem:[%s6 + $0x1b8] sm:$0xff]
  %v3957 = vld [vmem:[%s6 + $0x1c0] sm:$0xff]
  %v3958 = vld [vmem:[%s6 + $0x1c8] sm:$0xff]
  %v3959 = vld [vmem:[%s6 + $0x1d0] sm:$0xff]
  %v3960 = vld [vmem:[%s6 + $0x1d8] sm:$0xff]
  %v3961 = vld [vmem:[%s6 + $0x1e0] sm:$0xff]
  %v3962 = vld [vmem:[%s6 + $0x1e8] sm:$0xff]
  %v3963 = vld [vmem:[%s6 + $0x1f0] sm:$0xff]
  %v3964 = vld [vmem:[%s6 + $0x1f8] sm:$0xff]
  %v3965 = vld [vmem:[%s6 + $0x200] sm:$0xff]
  %v3966 = vld [vmem:[%s6 + $0x208] sm:$0xff]
  %v3967 = vld [vmem:[%s6 + $0x210] sm:$0xff]
  %v3968 = vld [vmem:[%s6 + $0x218] sm:$0xff]
  %v3969 = vld [vmem:[%s6 + $0x220] sm:$0xff]
  %v3970 = vld [vmem:[%s6 + $0x228] sm:$0xff]
  %v3971 = vld [vmem:[%s6 + $0x230] sm:$0xff]
  %v3972 = vld [vmem:[%s6 + $0x238] sm:$0xff]
  %v3973 = vld [vmem:[%s6 + $0x240] sm:$0xff]
  %v3974 = vld [vmem:[%s6 + $0x248] sm:$0xff]
  %v3975 = vld [vmem:[%s6 + $0x250] sm:$0xff]
  %v3976 = vld [vmem:[%s6 + $0x258] sm:$0xff]
  %v3977 = vld [vmem:[%s6 + $0x260] sm:$0xff]
  %v3978 = vld [vmem:[%s6 + $0x268] sm:$0xff]
  %v3979 = vld [vmem:[%s6 + $0x270] sm:$0xff]
  %v3980 = vld [vmem:[%s6 + $0x278] sm:$0xff]
  %v3981 = vld [vmem:[%s6 + $0x280] sm:$0xff]
  %v3982 = vld [vmem:[%s6 + $0x288] sm:$0xff]
  %v3983 = vld [vmem:[%s6 + $0x290] sm:$0xff]
  %v3984 = vld [vmem:[%s6 + $0x298] sm:$0xff]
  %v3985 = vld [vmem:[%s6 + $0x2a0] sm:$0xff]
  %v3986 = vld [vmem:[%s6 + $0x2a8] sm:$0xff]
  %v3987 = vld [vmem:[%s6 + $0x2b0] sm:$0xff]
  %v3988 = vld [vmem:[%s6 + $0x2b8] sm:$0xff]
  %v3989 = vld [vmem:[%s6 + $0x2c0] sm:$0xff]
  %v3990 = vld [vmem:[%s6 + $0x2c8] sm:$0xff]
  %v3991 = vld [vmem:[%s6 + $0x2d0] sm:$0xff]
  %v3992 = vld [vmem:[%s6 + $0x2d8] sm:$0xff]
  %v3993 = vld [vmem:[%s6 + $0x2e0] sm:$0xff]
  %v3994 = vld [vmem:[%s6 + $0x2e8] sm:$0xff]
  %v3995 = vld [vmem:[%s6 + $0x2f0] sm:$0xff]
  %v3996 = vld [vmem:[%s6 + $0x2f8] sm:$0xff]
  %s3997 = scalar_lea.vmem %s6, 768
  %v3998 = vld [vmem:[%s3997] sm:$0xff]
  %v3999 = vld [vmem:[%s3997 + $0x8] sm:$0xff]
  %v4000 = vld [vmem:[%s3997 + $0x10] sm:$0xff]
  %v4001 = vld [vmem:[%s3997 + $0x18] sm:$0xff]
  %v4002 = vld [vmem:[%s3997 + $0x20] sm:$0xff]
  %v4003 = vld [vmem:[%s3997 + $0x28] sm:$0xff]
  %v4004 = vld [vmem:[%s3997 + $0x30] sm:$0xff]
  %v4005 = vld [vmem:[%s3997 + $0x38] sm:$0xff]
  %v4006 = vld [vmem:[%s3997 + $0x40] sm:$0xff]
  %v4007 = vld [vmem:[%s3997 + $0x48] sm:$0xff]
  %v4008 = vld [vmem:[%s3997 + $0x50] sm:$0xff]
  %v4009 = vld [vmem:[%s3997 + $0x58] sm:$0xff]
  %v4010 = vld [vmem:[%s3997 + $0x60] sm:$0xff]
  %v4011 = vld [vmem:[%s3997 + $0x68] sm:$0xff]
  %v4012 = vld [vmem:[%s3997 + $0x70] sm:$0xff]
  %v4013 = vld [vmem:[%s3997 + $0x78] sm:$0xff]
  %v4014 = vld [vmem:[%s3997 + $0x80] sm:$0xff]
  %v4015 = vld [vmem:[%s3997 + $0x88] sm:$0xff]
  %v4016 = vld [vmem:[%s3997 + $0x90] sm:$0xff]
  %v4017 = vld [vmem:[%s3997 + $0x98] sm:$0xff]
  %v4018 = vld [vmem:[%s3997 + $0xa0] sm:$0xff]
  %v4019 = vld [vmem:[%s3997 + $0xa8] sm:$0xff]
  %v4020 = vld [vmem:[%s3997 + $0xb0] sm:$0xff]
  %v4021 = vld [vmem:[%s3997 + $0xb8] sm:$0xff]
  %v4022 = vld [vmem:[%s3997 + $0xc0] sm:$0xff]
  %v4023 = vld [vmem:[%s3997 + $0xc8] sm:$0xff]
  %v4024 = vld [vmem:[%s3997 + $0xd0] sm:$0xff]
  %v4025 = vld [vmem:[%s3997 + $0xd8] sm:$0xff]
  %v4026 = vld [vmem:[%s3997 + $0xe0] sm:$0xff]
  %v4027 = vld [vmem:[%s3997 + $0xe8] sm:$0xff]
  %v4028 = vld [vmem:[%s3997 + $0xf0] sm:$0xff]
  %v4029 = vld [vmem:[%s3997 + $0xf8] sm:$0xff]
  %v4030 = vld [vmem:[%s3997 + $0x100] sm:$0xff]
  %v4031 = vld [vmem:[%s3997 + $0x108] sm:$0xff]
  %v4032 = vld [vmem:[%s3997 + $0x110] sm:$0xff]
  %v4033 = vld [vmem:[%s3997 + $0x118] sm:$0xff]
  %v4034 = vld [vmem:[%s3997 + $0x120] sm:$0xff]
  %v4035 = vld [vmem:[%s3997 + $0x128] sm:$0xff]
  %v4036 = vld [vmem:[%s3997 + $0x130] sm:$0xff]
  %v4037 = vld [vmem:[%s3997 + $0x138] sm:$0xff]
  %v4038 = vld [vmem:[%s3997 + $0x140] sm:$0xff]
  %v4039 = vld [vmem:[%s3997 + $0x148] sm:$0xff]
  %v4040 = vld [vmem:[%s3997 + $0x150] sm:$0xff]
  %v4041 = vld [vmem:[%s3997 + $0x158] sm:$0xff]
  %v4042 = vld [vmem:[%s3997 + $0x160] sm:$0xff]
  %v4043 = vld [vmem:[%s3997 + $0x168] sm:$0xff]
  %v4044 = vld [vmem:[%s3997 + $0x170] sm:$0xff]
  %v4045 = vld [vmem:[%s3997 + $0x178] sm:$0xff]
  %v4046 = vld [vmem:[%s3997 + $0x180] sm:$0xff]
  %v4047 = vld [vmem:[%s3997 + $0x188] sm:$0xff]
  %v4048 = vld [vmem:[%s3997 + $0x190] sm:$0xff]
  %v4049 = vld [vmem:[%s3997 + $0x198] sm:$0xff]
  %v4050 = vld [vmem:[%s3997 + $0x1a0] sm:$0xff]
  %v4051 = vld [vmem:[%s3997 + $0x1a8] sm:$0xff]
  %v4052 = vld [vmem:[%s3997 + $0x1b0] sm:$0xff]
  %v4053 = vld [vmem:[%s3997 + $0x1b8] sm:$0xff]
  %v4054 = vld [vmem:[%s3997 + $0x1c0] sm:$0xff]
  %v4055 = vld [vmem:[%s3997 + $0x1c8] sm:$0xff]
  %v4056 = vld [vmem:[%s3997 + $0x1d0] sm:$0xff]
  %v4057 = vld [vmem:[%s3997 + $0x1d8] sm:$0xff]
  %v4058 = vld [vmem:[%s3997 + $0x1e0] sm:$0xff]
  %v4059 = vld [vmem:[%s3997 + $0x1e8] sm:$0xff]
  %v4060 = vld [vmem:[%s3997 + $0x1f0] sm:$0xff]
  %v4061 = vld [vmem:[%s3997 + $0x1f8] sm:$0xff]
  %v4062 = vld [vmem:[%s3997 + $0x200] sm:$0xff]
  %v4063 = vld [vmem:[%s3997 + $0x208] sm:$0xff]
  %v4064 = vld [vmem:[%s3997 + $0x210] sm:$0xff]
  %v4065 = vld [vmem:[%s3997 + $0x218] sm:$0xff]
  %v4066 = vld [vmem:[%s3997 + $0x220] sm:$0xff]
  %v4067 = vld [vmem:[%s3997 + $0x228] sm:$0xff]
  %v4068 = vld [vmem:[%s3997 + $0x230] sm:$0xff]
  %v4069 = vld [vmem:[%s3997 + $0x238] sm:$0xff]
  %v4070 = vld [vmem:[%s3997 + $0x240] sm:$0xff]
  %v4071 = vld [vmem:[%s3997 + $0x248] sm:$0xff]
  %v4072 = vld [vmem:[%s3997 + $0x250] sm:$0xff]
  %v4073 = vld [vmem:[%s3997 + $0x258] sm:$0xff]
  %v4074 = vld [vmem:[%s3997 + $0x260] sm:$0xff]
  %v4075 = vld [vmem:[%s3997 + $0x268] sm:$0xff]
  %v4076 = vld [vmem:[%s3997 + $0x270] sm:$0xff]
  %v4077 = vld [vmem:[%s3997 + $0x278] sm:$0xff]
  %v4078 = vld [vmem:[%s3997 + $0x280] sm:$0xff]
  %v4079 = vld [vmem:[%s3997 + $0x288] sm:$0xff]
  %v4080 = vld [vmem:[%s3997 + $0x290] sm:$0xff]
  %v4081 = vld [vmem:[%s3997 + $0x298] sm:$0xff]
  %v4082 = vld [vmem:[%s3997 + $0x2a0] sm:$0xff]
  %v4083 = vld [vmem:[%s3997 + $0x2a8] sm:$0xff]
  %v4084 = vld [vmem:[%s3997 + $0x2b0] sm:$0xff]
  %v4085 = vld [vmem:[%s3997 + $0x2b8] sm:$0xff]
  %v4086 = vld [vmem:[%s3997 + $0x2c0] sm:$0xff]
  %v4087 = vld [vmem:[%s3997 + $0x2c8] sm:$0xff]
  %v4088 = vld [vmem:[%s3997 + $0x2d0] sm:$0xff]
  %v4089 = vld [vmem:[%s3997 + $0x2d8] sm:$0xff]
  %v4090 = vld [vmem:[%s3997 + $0x2e0] sm:$0xff]
  %v4091 = vld [vmem:[%s3997 + $0x2e8] sm:$0xff]
  %v4092 = vld [vmem:[%s3997 + $0x2f0] sm:$0xff]
  %v4093 = vld [vmem:[%s3997 + $0x2f8] sm:$0xff]
  %s4094 = scalar_lea.vmem %s6, 1536
  %v4095 = vld [vmem:[%s4094] sm:$0xff]
  %v4096 = vld [vmem:[%s4094 + $0x8] sm:$0xff]
  %v4097 = vld [vmem:[%s4094 + $0x10] sm:$0xff]
  %v4098 = vld [vmem:[%s4094 + $0x18] sm:$0xff]
  %v4099 = vld [vmem:[%s4094 + $0x20] sm:$0xff]
  %v4100 = vld [vmem:[%s4094 + $0x28] sm:$0xff]
  %v4101 = vld [vmem:[%s4094 + $0x30] sm:$0xff]
  %v4102 = vld [vmem:[%s4094 + $0x38] sm:$0xff]
  %v4103 = vld [vmem:[%s4094 + $0x40] sm:$0xff]
  %v4104 = vld [vmem:[%s4094 + $0x48] sm:$0xff]
  %v4105 = vld [vmem:[%s4094 + $0x50] sm:$0xff]
  %v4106 = vld [vmem:[%s4094 + $0x58] sm:$0xff]
  %v4107 = vld [vmem:[%s4094 + $0x60] sm:$0xff]
  %v4108 = vld [vmem:[%s4094 + $0x68] sm:$0xff]
  %v4109 = vld [vmem:[%s4094 + $0x70] sm:$0xff]
  %v4110 = vld [vmem:[%s4094 + $0x78] sm:$0xff]
  %v4111 = vld [vmem:[%s4094 + $0x80] sm:$0xff]
  %v4112 = vld [vmem:[%s4094 + $0x88] sm:$0xff]
  %v4113 = vld [vmem:[%s4094 + $0x90] sm:$0xff]
  %v4114 = vld [vmem:[%s4094 + $0x98] sm:$0xff]
  %v4115 = vld [vmem:[%s4094 + $0xa0] sm:$0xff]
  %v4116 = vld [vmem:[%s4094 + $0xa8] sm:$0xff]
  %v4117 = vld [vmem:[%s4094 + $0xb0] sm:$0xff]
  %v4118 = vld [vmem:[%s4094 + $0xb8] sm:$0xff]
  %v4119 = vld [vmem:[%s4094 + $0xc0] sm:$0xff]
  %v4120 = vld [vmem:[%s4094 + $0xc8] sm:$0xff]
  %v4121 = vld [vmem:[%s4094 + $0xd0] sm:$0xff]
  %v4122 = vld [vmem:[%s4094 + $0xd8] sm:$0xff]
  %v4123 = vld [vmem:[%s4094 + $0xe0] sm:$0xff]
  %v4124 = vld [vmem:[%s4094 + $0xe8] sm:$0xff]
  %v4125 = vld [vmem:[%s4094 + $0xf0] sm:$0xff]
  %v4126 = vld [vmem:[%s4094 + $0xf8] sm:$0xff]
  %v4127 = vld [vmem:[%s4094 + $0x100] sm:$0xff]
  %v4128 = vld [vmem:[%s4094 + $0x108] sm:$0xff]
  %v4129 = vld [vmem:[%s4094 + $0x110] sm:$0xff]
  %v4130 = vld [vmem:[%s4094 + $0x118] sm:$0xff]
  %v4131 = vld [vmem:[%s4094 + $0x120] sm:$0xff]
  %v4132 = vld [vmem:[%s4094 + $0x128] sm:$0xff]
  %v4133 = vld [vmem:[%s4094 + $0x130] sm:$0xff]
  %v4134 = vld [vmem:[%s4094 + $0x138] sm:$0xff]
  %v4135 = vld [vmem:[%s4094 + $0x140] sm:$0xff]
  %v4136 = vld [vmem:[%s4094 + $0x148] sm:$0xff]
  %v4137 = vld [vmem:[%s4094 + $0x150] sm:$0xff]
  %v4138 = vld [vmem:[%s4094 + $0x158] sm:$0xff]
  %v4139 = vld [vmem:[%s4094 + $0x160] sm:$0xff]
  %v4140 = vld [vmem:[%s4094 + $0x168] sm:$0xff]
  %v4141 = vld [vmem:[%s4094 + $0x170] sm:$0xff]
  %v4142 = vld [vmem:[%s4094 + $0x178] sm:$0xff]
  %v4143 = vld [vmem:[%s4094 + $0x180] sm:$0xff]
  %v4144 = vld [vmem:[%s4094 + $0x188] sm:$0xff]
  %v4145 = vld [vmem:[%s4094 + $0x190] sm:$0xff]
  %v4146 = vld [vmem:[%s4094 + $0x198] sm:$0xff]
  %v4147 = vld [vmem:[%s4094 + $0x1a0] sm:$0xff]
  %v4148 = vld [vmem:[%s4094 + $0x1a8] sm:$0xff]
  %v4149 = vld [vmem:[%s4094 + $0x1b0] sm:$0xff]
  %v4150 = vld [vmem:[%s4094 + $0x1b8] sm:$0xff]
  %v4151 = vld [vmem:[%s4094 + $0x1c0] sm:$0xff]
  %v4152 = vld [vmem:[%s4094 + $0x1c8] sm:$0xff]
  %v4153 = vld [vmem:[%s4094 + $0x1d0] sm:$0xff]
  %v4154 = vld [vmem:[%s4094 + $0x1d8] sm:$0xff]
  %v4155 = vld [vmem:[%s4094 + $0x1e0] sm:$0xff]
  %v4156 = vld [vmem:[%s4094 + $0x1e8] sm:$0xff]
  %v4157 = vld [vmem:[%s4094 + $0x1f0] sm:$0xff]
  %v4158 = vld [vmem:[%s4094 + $0x1f8] sm:$0xff]
  %v4159 = vld [vmem:[%s4094 + $0x200] sm:$0xff]
  %v4160 = vld [vmem:[%s4094 + $0x208] sm:$0xff]
  %v4161 = vld [vmem:[%s4094 + $0x210] sm:$0xff]
  %v4162 = vld [vmem:[%s4094 + $0x218] sm:$0xff]
  %v4163 = vld [vmem:[%s4094 + $0x220] sm:$0xff]
  %v4164 = vld [vmem:[%s4094 + $0x228] sm:$0xff]
  %v4165 = vld [vmem:[%s4094 + $0x230] sm:$0xff]
  %v4166 = vld [vmem:[%s4094 + $0x238] sm:$0xff]
  %v4167 = vld [vmem:[%s4094 + $0x240] sm:$0xff]
  %v4168 = vld [vmem:[%s4094 + $0x248] sm:$0xff]
  %v4169 = vld [vmem:[%s4094 + $0x250] sm:$0xff]
  %v4170 = vld [vmem:[%s4094 + $0x258] sm:$0xff]
  %v4171 = vld [vmem:[%s4094 + $0x260] sm:$0xff]
  %v4172 = vld [vmem:[%s4094 + $0x268] sm:$0xff]
  %v4173 = vld [vmem:[%s4094 + $0x270] sm:$0xff]
  %v4174 = vld [vmem:[%s4094 + $0x278] sm:$0xff]
  %v4175 = vld [vmem:[%s4094 + $0x280] sm:$0xff]
  %v4176 = vld [vmem:[%s4094 + $0x288] sm:$0xff]
  %v4177 = vld [vmem:[%s4094 + $0x290] sm:$0xff]
  %v4178 = vld [vmem:[%s4094 + $0x298] sm:$0xff]
  %v4179 = vld [vmem:[%s4094 + $0x2a0] sm:$0xff]
  %v4180 = vld [vmem:[%s4094 + $0x2a8] sm:$0xff]
  %v4181 = vld [vmem:[%s4094 + $0x2b0] sm:$0xff]
  %v4182 = vld [vmem:[%s4094 + $0x2b8] sm:$0xff]
  %v4183 = vld [vmem:[%s4094 + $0x2c0] sm:$0xff]
  %v4184 = vld [vmem:[%s4094 + $0x2c8] sm:$0xff]
  %v4185 = vld [vmem:[%s4094 + $0x2d0] sm:$0xff]
  %v4186 = vld [vmem:[%s4094 + $0x2d8] sm:$0xff]
  %v4187 = vld [vmem:[%s4094 + $0x2e0] sm:$0xff]
  %v4188 = vld [vmem:[%s4094 + $0x2e8] sm:$0xff]
  %v4189 = vld [vmem:[%s4094 + $0x2f0] sm:$0xff]
  %v4190 = vld [vmem:[%s4094 + $0x2f8] sm:$0xff]
  %v4191 = vpack.c.bf16 %v2181, %v2181
  %v4192 = vpack.c.bf16 %v2182, %v2182
  %v4193 = vpack.c.bf16 %v2183, %v2183
  %v4194 = vpack.c.bf16 %v2184, %v2184
  %v4195 = vpack.c.bf16 %v3863, %v3863
  %v4196 = vpack.c.bf16 %v3864, %v3864
  %v4197 = vpack.c.bf16 %v2951, %v2951
  %v4198 = vpack.c.bf16 %v2952, %v2952
  %v4199 = vpack.c.bf16 %v2953, %v2953
  %v4200 = vpack.c.bf16 %v2954, %v2954
  %v4201 = vpack.c.bf16 %v3401, %v3401
  %v4202 = vpack.c.bf16 %v3402, %v3402
  %v4203 = vpack.c.bf16 %v3403, %v3403
  %v4204 = vpack.c.bf16 %v3404, %v3404
  %v4205 = vpack.c.bf16 %v3851, %v3851
  %v4206 = vpack.c.bf16 %v3852, %v3852
  %v4207 = vpack.c.bf16 %v3853, %v3853
  %v4208 = vpack.c.bf16 %v3854, %v3854
  %v4305 = vunpack.c.l.b16 %v4095
  %v4306 = vunpack.c.h.b16 %v4095
  %v4307 = vunpack.c.l.b16 %v4096
  %v4308 = vunpack.c.h.b16 %v4096
  %v4309 = vunpack.c.l.b16 %v4097
  %v4310 = vunpack.c.h.b16 %v4097
  %v4311 = vunpack.c.l.b16 %v4098
  %v4312 = vunpack.c.h.b16 %v4098
  %v4313 = vunpack.c.l.b16 %v4099
  %v4314 = vunpack.c.h.b16 %v4099
  %v4315 = vunpack.c.l.b16 %v4100
  %v4316 = vunpack.c.h.b16 %v4100
  %v4317 = vunpack.c.l.b16 %v4101
  %v4318 = vunpack.c.h.b16 %v4101
  %v4319 = vunpack.c.l.b16 %v4102
  %v4320 = vunpack.c.h.b16 %v4102
  %v4321 = vunpack.c.l.b16 %v4103
  %v4322 = vunpack.c.h.b16 %v4103
  %v4323 = vunpack.c.l.b16 %v4104
  %v4324 = vunpack.c.h.b16 %v4104
  %v4325 = vunpack.c.l.b16 %v4105
  %v4326 = vunpack.c.h.b16 %v4105
  %v4327 = vunpack.c.l.b16 %v4106
  %v4328 = vunpack.c.h.b16 %v4106
  %v4329 = vunpack.c.l.b16 %v4107
  %v4330 = vunpack.c.h.b16 %v4107
  %v4331 = vunpack.c.l.b16 %v4108
  %v4332 = vunpack.c.h.b16 %v4108
  %v4333 = vunpack.c.l.b16 %v4109
  %v4334 = vunpack.c.h.b16 %v4109
  %v4335 = vunpack.c.l.b16 %v4110
  %v4336 = vunpack.c.h.b16 %v4110
  %v4337 = vunpack.c.l.b16 %v4111
  %v4338 = vunpack.c.h.b16 %v4111
  %v4339 = vunpack.c.l.b16 %v4112
  %v4340 = vunpack.c.h.b16 %v4112
  %v4341 = vunpack.c.l.b16 %v4113
  %v4342 = vunpack.c.h.b16 %v4113
  %v4343 = vunpack.c.l.b16 %v4114
  %v4344 = vunpack.c.h.b16 %v4114
  %v4345 = vunpack.c.l.b16 %v4115
  %v4346 = vunpack.c.h.b16 %v4115
  %v4347 = vunpack.c.l.b16 %v4116
  %v4348 = vunpack.c.h.b16 %v4116
  %v4349 = vunpack.c.l.b16 %v4117
  %v4350 = vunpack.c.h.b16 %v4117
  %v4351 = vunpack.c.l.b16 %v4118
  %v4352 = vunpack.c.h.b16 %v4118
  %v4353 = vunpack.c.l.b16 %v4119
  %v4354 = vunpack.c.h.b16 %v4119
  %v4355 = vunpack.c.l.b16 %v4120
  %v4356 = vunpack.c.h.b16 %v4120
  %v4357 = vunpack.c.l.b16 %v4121
  %v4358 = vunpack.c.h.b16 %v4121
  %v4359 = vunpack.c.l.b16 %v4122
  %v4360 = vunpack.c.h.b16 %v4122
  %v4361 = vunpack.c.l.b16 %v4123
  %v4362 = vunpack.c.h.b16 %v4123
  %v4363 = vunpack.c.l.b16 %v4124
  %v4364 = vunpack.c.h.b16 %v4124
  %v4365 = vunpack.c.l.b16 %v4125
  %v4366 = vunpack.c.h.b16 %v4125
  %v4367 = vunpack.c.l.b16 %v4126
  %v4368 = vunpack.c.h.b16 %v4126
  %v4369 = vunpack.c.l.b16 %v4127
  %v4370 = vunpack.c.h.b16 %v4127
  %v4371 = vunpack.c.l.b16 %v4128
  %v4372 = vunpack.c.h.b16 %v4128
  %v4373 = vunpack.c.l.b16 %v4129
  %v4374 = vunpack.c.h.b16 %v4129
  %v4375 = vunpack.c.l.b16 %v4130
  %v4376 = vunpack.c.h.b16 %v4130
  %v4377 = vunpack.c.l.b16 %v4131
  %v4378 = vunpack.c.h.b16 %v4131
  %v4379 = vunpack.c.l.b16 %v4132
  %v4380 = vunpack.c.h.b16 %v4132
  %v4381 = vunpack.c.l.b16 %v4133
  %v4382 = vunpack.c.h.b16 %v4133
  %v4383 = vunpack.c.l.b16 %v4134
  %v4384 = vunpack.c.h.b16 %v4134
  %v4385 = vunpack.c.l.b16 %v4135
  %v4386 = vunpack.c.h.b16 %v4135
  %v4387 = vunpack.c.l.b16 %v4136
  %v4388 = vunpack.c.h.b16 %v4136
  %v4389 = vunpack.c.l.b16 %v4137
  %v4390 = vunpack.c.h.b16 %v4137
  %v4391 = vunpack.c.l.b16 %v4138
  %v4392 = vunpack.c.h.b16 %v4138
  %v4393 = vunpack.c.l.b16 %v4139
  %v4394 = vunpack.c.h.b16 %v4139
  %v4395 = vunpack.c.l.b16 %v4140
  %v4396 = vunpack.c.h.b16 %v4140
  %v4397 = vunpack.c.l.b16 %v4141
  %v4398 = vunpack.c.h.b16 %v4141
  %v4399 = vunpack.c.l.b16 %v4142
  %v4400 = vunpack.c.h.b16 %v4142
  %v4401 = vunpack.c.l.b16 %v4143
  %v4402 = vunpack.c.h.b16 %v4143
  %v4403 = vunpack.c.l.b16 %v4144
  %v4404 = vunpack.c.h.b16 %v4144
  %v4405 = vunpack.c.l.b16 %v4145
  %v4406 = vunpack.c.h.b16 %v4145
  %v4407 = vunpack.c.l.b16 %v4146
  %v4408 = vunpack.c.h.b16 %v4146
  %v4409 = vunpack.c.l.b16 %v4147
  %v4410 = vunpack.c.h.b16 %v4147
  %v4411 = vunpack.c.l.b16 %v4148
  %v4412 = vunpack.c.h.b16 %v4148
  %v4413 = vunpack.c.l.b16 %v4149
  %v4414 = vunpack.c.h.b16 %v4149
  %v4415 = vunpack.c.l.b16 %v4150
  %v4416 = vunpack.c.h.b16 %v4150
  %v4417 = vunpack.c.l.b16 %v4151
  %v4418 = vunpack.c.h.b16 %v4151
  %v4419 = vunpack.c.l.b16 %v4152
  %v4420 = vunpack.c.h.b16 %v4152
  %v4421 = vunpack.c.l.b16 %v4153
  %v4422 = vunpack.c.h.b16 %v4153
  %v4423 = vunpack.c.l.b16 %v4154
  %v4424 = vunpack.c.h.b16 %v4154
  %v4425 = vunpack.c.l.b16 %v4155
  %v4426 = vunpack.c.h.b16 %v4155
  %v4427 = vunpack.c.l.b16 %v4156
  %v4428 = vunpack.c.h.b16 %v4156
  %v4429 = vunpack.c.l.b16 %v4157
  %v4430 = vunpack.c.h.b16 %v4157
  %v4431 = vunpack.c.l.b16 %v4158
  %v4432 = vunpack.c.h.b16 %v4158
  %v4433 = vunpack.c.l.b16 %v4159
  %v4434 = vunpack.c.h.b16 %v4159
  %v4435 = vunpack.c.l.b16 %v4160
  %v4436 = vunpack.c.h.b16 %v4160
  %v4437 = vunpack.c.l.b16 %v4161
  %v4438 = vunpack.c.h.b16 %v4161
  %v4439 = vunpack.c.l.b16 %v4162
  %v4440 = vunpack.c.h.b16 %v4162
  %v4441 = vunpack.c.l.b16 %v4163
  %v4442 = vunpack.c.h.b16 %v4163
  %v4443 = vunpack.c.l.b16 %v4164
  %v4444 = vunpack.c.h.b16 %v4164
  %v4445 = vunpack.c.l.b16 %v4165
  %v4446 = vunpack.c.h.b16 %v4165
  %v4447 = vunpack.c.l.b16 %v4166
  %v4448 = vunpack.c.h.b16 %v4166
  %v4449 = vunpack.c.l.b16 %v4167
  %v4450 = vunpack.c.h.b16 %v4167
  %v4451 = vunpack.c.l.b16 %v4168
  %v4452 = vunpack.c.h.b16 %v4168
  %v4453 = vunpack.c.l.b16 %v4169
  %v4454 = vunpack.c.h.b16 %v4169
  %v4455 = vunpack.c.l.b16 %v4170
  %v4456 = vunpack.c.h.b16 %v4170
  %v4457 = vunpack.c.l.b16 %v4171
  %v4458 = vunpack.c.h.b16 %v4171
  %v4459 = vunpack.c.l.b16 %v4172
  %v4460 = vunpack.c.h.b16 %v4172
  %v4461 = vunpack.c.l.b16 %v4173
  %v4462 = vunpack.c.h.b16 %v4173
  %v4463 = vunpack.c.l.b16 %v4174
  %v4464 = vunpack.c.h.b16 %v4174
  %v4465 = vunpack.c.l.b16 %v4175
  %v4466 = vunpack.c.h.b16 %v4175
  %v4467 = vunpack.c.l.b16 %v4176
  %v4468 = vunpack.c.h.b16 %v4176
  %v4469 = vunpack.c.l.b16 %v4177
  %v4470 = vunpack.c.h.b16 %v4177
  %v4471 = vunpack.c.l.b16 %v4178
  %v4472 = vunpack.c.h.b16 %v4178
  %v4473 = vunpack.c.l.b16 %v4179
  %v4474 = vunpack.c.h.b16 %v4179
  %v4475 = vunpack.c.l.b16 %v4180
  %v4476 = vunpack.c.h.b16 %v4180
  %v4477 = vunpack.c.l.b16 %v4181
  %v4478 = vunpack.c.h.b16 %v4181
  %v4479 = vunpack.c.l.b16 %v4182
  %v4480 = vunpack.c.h.b16 %v4182
  %v4481 = vunpack.c.l.b16 %v4183
  %v4482 = vunpack.c.h.b16 %v4183
  %v4483 = vunpack.c.l.b16 %v4184
  %v4484 = vunpack.c.h.b16 %v4184
  %v4485 = vunpack.c.l.b16 %v4185
  %v4486 = vunpack.c.h.b16 %v4185
  %v4487 = vunpack.c.l.b16 %v4186
  %v4488 = vunpack.c.h.b16 %v4186
  %v4489 = vunpack.c.l.b16 %v4187
  %v4490 = vunpack.c.h.b16 %v4187
  %v4491 = vunpack.c.l.b16 %v4188
  %v4492 = vunpack.c.h.b16 %v4188
  %v4493 = vunpack.c.l.b16 %v4189
  %v4494 = vunpack.c.h.b16 %v4189
  %v4495 = vunpack.c.l.b16 %v4190
  %v4496 = vunpack.c.h.b16 %v4190
  %v4497 = vpack.c.b16 %v4307, %v4305
  %v4498 = vpack.c.b16 %v4308, %v4306
  %v4499 = vpack.c.b16 %v4311, %v4309
  %v4500 = vpack.c.b16 %v4312, %v4310
  %v4501 = vpack.c.b16 %v4315, %v4313
  %v4502 = vpack.c.b16 %v4316, %v4314
  %v4503 = vpack.c.b16 %v4319, %v4317
  %v4504 = vpack.c.b16 %v4320, %v4318
  %v4505 = vpack.c.b16 %v4323, %v4321
  %v4506 = vpack.c.b16 %v4324, %v4322
  %v4507 = vpack.c.b16 %v4327, %v4325
  %v4508 = vpack.c.b16 %v4328, %v4326
  %v4509 = vpack.c.b16 %v4331, %v4329
  %v4510 = vpack.c.b16 %v4332, %v4330
  %v4511 = vpack.c.b16 %v4335, %v4333
  %v4512 = vpack.c.b16 %v4336, %v4334
  %v4513 = vpack.c.b16 %v4339, %v4337
  %v4514 = vpack.c.b16 %v4340, %v4338
  %v4515 = vpack.c.b16 %v4343, %v4341
  %v4516 = vpack.c.b16 %v4344, %v4342
  %v4517 = vpack.c.b16 %v4347, %v4345
  %v4518 = vpack.c.b16 %v4348, %v4346
  %v4519 = vpack.c.b16 %v4351, %v4349
  %v4520 = vpack.c.b16 %v4352, %v4350
  %v4521 = vpack.c.b16 %v4355, %v4353
  %v4522 = vpack.c.b16 %v4356, %v4354
  %v4523 = vpack.c.b16 %v4359, %v4357
  %v4524 = vpack.c.b16 %v4360, %v4358
  %v4525 = vpack.c.b16 %v4363, %v4361
  %v4526 = vpack.c.b16 %v4364, %v4362
  %v4527 = vpack.c.b16 %v4367, %v4365
  %v4528 = vpack.c.b16 %v4368, %v4366
  %v4529 = vpack.c.b16 %v4371, %v4369
  %v4530 = vpack.c.b16 %v4372, %v4370
  %v4531 = vpack.c.b16 %v4375, %v4373
  %v4532 = vpack.c.b16 %v4376, %v4374
  %v4533 = vpack.c.b16 %v4379, %v4377
  %v4534 = vpack.c.b16 %v4380, %v4378
  %v4535 = vpack.c.b16 %v4383, %v4381
  %v4536 = vpack.c.b16 %v4384, %v4382
  %v4537 = vpack.c.b16 %v4387, %v4385
  %v4538 = vpack.c.b16 %v4388, %v4386
  %v4539 = vpack.c.b16 %v4391, %v4389
  %v4540 = vpack.c.b16 %v4392, %v4390
  %v4541 = vpack.c.b16 %v4395, %v4393
  %v4542 = vpack.c.b16 %v4396, %v4394
  %v4543 = vpack.c.b16 %v4399, %v4397
  %v4544 = vpack.c.b16 %v4400, %v4398
  %v4545 = vpack.c.b16 %v4403, %v4401
  %v4546 = vpack.c.b16 %v4404, %v4402
  %v4547 = vpack.c.b16 %v4407, %v4405
  %v4548 = vpack.c.b16 %v4408, %v4406
  %v4549 = vpack.c.b16 %v4411, %v4409
  %v4550 = vpack.c.b16 %v4412, %v4410
  %v4551 = vpack.c.b16 %v4415, %v4413
  %v4552 = vpack.c.b16 %v4416, %v4414
  %v4553 = vpack.c.b16 %v4419, %v4417
  %v4554 = vpack.c.b16 %v4420, %v4418
  %v4555 = vpack.c.b16 %v4423, %v4421
  %v4556 = vpack.c.b16 %v4424, %v4422
  %v4557 = vpack.c.b16 %v4427, %v4425
  %v4558 = vpack.c.b16 %v4428, %v4426
  %v4559 = vpack.c.b16 %v4431, %v4429
  %v4560 = vpack.c.b16 %v4432, %v4430
  %v4561 = vpack.c.b16 %v4435, %v4433
  %v4562 = vpack.c.b16 %v4436, %v4434
  %v4563 = vpack.c.b16 %v4439, %v4437
  %v4564 = vpack.c.b16 %v4440, %v4438
  %v4565 = vpack.c.b16 %v4443, %v4441
  %v4566 = vpack.c.b16 %v4444, %v4442
  %v4567 = vpack.c.b16 %v4447, %v4445
  %v4568 = vpack.c.b16 %v4448, %v4446
  %v4569 = vpack.c.b16 %v4451, %v4449
  %v4570 = vpack.c.b16 %v4452, %v4450
  %v4571 = vpack.c.b16 %v4455, %v4453
  %v4572 = vpack.c.b16 %v4456, %v4454
  %v4573 = vpack.c.b16 %v4459, %v4457
  %v4574 = vpack.c.b16 %v4460, %v4458
  %v4575 = vpack.c.b16 %v4463, %v4461
  %v4576 = vpack.c.b16 %v4464, %v4462
  %v4577 = vpack.c.b16 %v4467, %v4465
  %v4578 = vpack.c.b16 %v4468, %v4466
  %v4579 = vpack.c.b16 %v4471, %v4469
  %v4580 = vpack.c.b16 %v4472, %v4470
  %v4581 = vpack.c.b16 %v4475, %v4473
  %v4582 = vpack.c.b16 %v4476, %v4474
  %v4583 = vpack.c.b16 %v4479, %v4477
  %v4584 = vpack.c.b16 %v4480, %v4478
  %v4585 = vpack.c.b16 %v4483, %v4481
  %v4586 = vpack.c.b16 %v4484, %v4482
  %v4587 = vpack.c.b16 %v4487, %v4485
  %v4588 = vpack.c.b16 %v4488, %v4486
  %v4589 = vpack.c.b16 %v4491, %v4489
  %v4590 = vpack.c.b16 %v4492, %v4490
  %v4591 = vpack.c.b16 %v4495, %v4493
  %v4592 = vpack.c.b16 %v4496, %v4494
  %4689 = vmatprep.subr.bf16.mxu0 %v4512
  %4690 = vmatpush1.bf16.msra.mxu0 %v4511
  %4691 = vmatprep.subr.bf16.mxu0 %v4510
  %4692 = vmatpush1.bf16.msra.mxu0 %v4509
  %4693 = vmatprep.subr.bf16.mxu0 %v4508
  %4694 = vmatpush1.bf16.msra.mxu0 %v4507
  %4695 = vmatprep.subr.bf16.mxu0 %v4506
  %4696 = vmatpush1.bf16.msra.mxu0 %v4505
  %4697 = vmatprep.subr.bf16.mxu0 %v4504
  %4698 = vmatpush1.bf16.msra.mxu0 %v4503
  %4699 = vmatprep.subr.bf16.mxu0 %v4502
  %4700 = vmatpush1.bf16.msra.mxu0 %v4501
  %4701 = vmatprep.subr.bf16.mxu0 %v4500
  %4702 = vmatpush1.bf16.msra.mxu0 %v4499
  %4703 = vmatprep.subr.bf16.mxu0 %v4498
  %4704 = vmatpush1.bf16.msra.mxu0 %v4497
  %4705 = vmatprep.subr.bf16.mxu0 %v4528
  %4706 = vmatpush2.bf16.msra.mxu0 %v4527
  %4707 = vmatprep.subr.bf16.mxu0 %v4526
  %4708 = vmatpush2.bf16.msra.mxu0 %v4525
  %4709 = vmatprep.subr.bf16.mxu0 %v4524
  %4710 = vmatpush2.bf16.msra.mxu0 %v4523
  %4711 = vmatprep.subr.bf16.mxu0 %v4522
  %4712 = vmatpush2.bf16.msra.mxu0 %v4521
  %4713 = vmatprep.subr.bf16.mxu0 %v4520
  %4714 = vmatpush2.bf16.msra.mxu0 %v4519
  %4715 = vmatprep.subr.bf16.mxu0 %v4518
  %4716 = vmatpush2.bf16.msra.mxu0 %v4517
  %4717 = vmatprep.subr.bf16.mxu0 %v4516
  %4718 = vmatpush2.bf16.msra.mxu0 %v4515
  %4719 = vmatprep.subr.bf16.mxu0 %v4514
  %4720 = vmatpush2.bf16.msra.mxu0 %v4513
  %4721 = vmatprep.mubr.bf16.mxu0 %v4198
  %4722 = vmatmul.mubr.bf16.gmra.mxu0 %v4197
  %v4723 = vpop.f32.mrf.mxu0
  %v4724 = vadd.f32 0.0, %v4723
  %v4725 = vpop.f32.mrf.mxu0
  %v4726 = vadd.f32 0.0, %v4725
  %v4727 = vpop.f32.mrf.mxu0
  %v4728 = vpop.f32.mrf.mxu0
  %4729 = vdwg.mxu0
  %4730 = vmatprep.subr.bf16.mxu0 %v4544
  %4731 = vmatpush1.bf16.msra.mxu0 %v4543
  %4732 = vmatprep.subr.bf16.mxu0 %v4542
  %4733 = vmatpush1.bf16.msra.mxu0 %v4541
  %4734 = vmatprep.subr.bf16.mxu0 %v4540
  %4735 = vmatpush1.bf16.msra.mxu0 %v4539
  %4736 = vmatprep.subr.bf16.mxu0 %v4538
  %4737 = vmatpush1.bf16.msra.mxu0 %v4537
  %4738 = vmatprep.subr.bf16.mxu0 %v4536
  %4739 = vmatpush1.bf16.msra.mxu0 %v4535
  %4740 = vmatprep.subr.bf16.mxu0 %v4534
  %4741 = vmatpush1.bf16.msra.mxu0 %v4533
  %4742 = vmatprep.subr.bf16.mxu0 %v4532
  %4743 = vmatpush1.bf16.msra.mxu0 %v4531
  %4744 = vmatprep.subr.bf16.mxu0 %v4530
  %4745 = vmatpush1.bf16.msra.mxu0 %v4529
  %4746 = vmatprep.subr.bf16.mxu0 %v4560
  %4747 = vmatpush2.bf16.msra.mxu0 %v4559
  %4748 = vmatprep.subr.bf16.mxu0 %v4558
  %4749 = vmatpush2.bf16.msra.mxu0 %v4557
  %4750 = vmatprep.subr.bf16.mxu0 %v4556
  %4751 = vmatpush2.bf16.msra.mxu0 %v4555
  %4752 = vmatprep.subr.bf16.mxu0 %v4554
  %4753 = vmatpush2.bf16.msra.mxu0 %v4553
  %4754 = vmatprep.subr.bf16.mxu0 %v4552
  %4755 = vmatpush2.bf16.msra.mxu0 %v4551
  %4756 = vmatprep.subr.bf16.mxu0 %v4550
  %4757 = vmatpush2.bf16.msra.mxu0 %v4549
  %4758 = vmatprep.subr.bf16.mxu0 %v4548
  %4759 = vmatpush2.bf16.msra.mxu0 %v4547
  %4760 = vmatprep.subr.bf16.mxu0 %v4546
  %4761 = vmatpush2.bf16.msra.mxu0 %v4545
  %4762 = vmatprep.mubr.bf16.mxu0 %v4200
  %4763 = vmatmul.mubr.bf16.gmra.mxu0 %v4199
  %v4764 = vpop.f32.mrf.mxu0
  %v4765 = vadd.f32 %v4724, %v4764
  %v4766 = vpop.f32.mrf.mxu0
  %v4767 = vadd.f32 %v4726, %v4766
  %v4768 = vpop.f32.mrf.mxu0
  %v4769 = vpop.f32.mrf.mxu0
  %4770 = vdwg.mxu0
  %4771 = vmatprep.subr.bf16.mxu0 %v4576
  %4772 = vmatpush1.bf16.msra.mxu0 %v4575
  %4773 = vmatprep.subr.bf16.mxu0 %v4574
  %4774 = vmatpush1.bf16.msra.mxu0 %v4573
  %4775 = vmatprep.subr.bf16.mxu0 %v4572
  %4776 = vmatpush1.bf16.msra.mxu0 %v4571
  %4777 = vmatprep.subr.bf16.mxu0 %v4570
  %4778 = vmatpush1.bf16.msra.mxu0 %v4569
  %4779 = vmatprep.subr.bf16.mxu0 %v4568
  %4780 = vmatpush1.bf16.msra.mxu0 %v4567
  %4781 = vmatprep.subr.bf16.mxu0 %v4566
  %4782 = vmatpush1.bf16.msra.mxu0 %v4565
  %4783 = vmatprep.subr.bf16.mxu0 %v4564
  %4784 = vmatpush1.bf16.msra.mxu0 %v4563
  %4785 = vmatprep.subr.bf16.mxu0 %v4562
  %4786 = vmatpush1.bf16.msra.mxu0 %v4561
  %4787 = vmatprep.subr.bf16.mxu0 %v4592
  %4788 = vmatpush2.bf16.msra.mxu0 %v4591
  %4789 = vmatprep.subr.bf16.mxu0 %v4590
  %4790 = vmatpush2.bf16.msra.mxu0 %v4589
  %4791 = vmatprep.subr.bf16.mxu0 %v4588
  %4792 = vmatpush2.bf16.msra.mxu0 %v4587
  %4793 = vmatprep.subr.bf16.mxu0 %v4586
  %4794 = vmatpush2.bf16.msra.mxu0 %v4585
  %4795 = vmatprep.subr.bf16.mxu0 %v4584
  %4796 = vmatpush2.bf16.msra.mxu0 %v4583
  %4797 = vmatprep.subr.bf16.mxu0 %v4582
  %4798 = vmatpush2.bf16.msra.mxu0 %v4581
  %4799 = vmatprep.subr.bf16.mxu0 %v4580
  %4800 = vmatpush2.bf16.msra.mxu0 %v4579
  %4801 = vmatprep.subr.bf16.mxu0 %v4578
  %4802 = vmatpush2.bf16.msra.mxu0 %v4577
  %4803 = vmatprep.mubr.bf16.mxu0 %v4196
  %4804 = vmatmul.mubr.bf16.gmra.mxu0 %v4195
  %v4805 = vpop.f32.mrf.mxu0
  %v4806 = vadd.f32 %v4765, %v4805
  %v4807 = vpop.f32.mrf.mxu0
  %v4808 = vadd.f32 %v4767, %v4807
  %v4809 = vpop.f32.mrf.mxu0
  %v4810 = vpop.f32.mrf.mxu0
  %4811 = vdwg.mxu0
  %v4908 = vunpack.c.l.b16 %v3998
  %v4909 = vunpack.c.h.b16 %v3998
  %v4910 = vunpack.c.l.b16 %v3999
  %v4911 = vunpack.c.h.b16 %v3999
  %v4912 = vunpack.c.l.b16 %v4000
  %v4913 = vunpack.c.h.b16 %v4000
  %v4914 = vunpack.c.l.b16 %v4001
  %v4915 = vunpack.c.h.b16 %v4001
  %v4916 = vunpack.c.l.b16 %v4002
  %v4917 = vunpack.c.h.b16 %v4002
  %v4918 = vunpack.c.l.b16 %v4003
  %v4919 = vunpack.c.h.b16 %v4003
  %v4920 = vunpack.c.l.b16 %v4004
  %v4921 = vunpack.c.h.b16 %v4004
  %v4922 = vunpack.c.l.b16 %v4005
  %v4923 = vunpack.c.h.b16 %v4005
  %v4924 = vunpack.c.l.b16 %v4006
  %v4925 = vunpack.c.h.b16 %v4006
  %v4926 = vunpack.c.l.b16 %v4007
  %v4927 = vunpack.c.h.b16 %v4007
  %v4928 = vunpack.c.l.b16 %v4008
  %v4929 = vunpack.c.h.b16 %v4008
  %v4930 = vunpack.c.l.b16 %v4009
  %v4931 = vunpack.c.h.b16 %v4009
  %v4932 = vunpack.c.l.b16 %v4010
  %v4933 = vunpack.c.h.b16 %v4010
  %v4934 = vunpack.c.l.b16 %v4011
  %v4935 = vunpack.c.h.b16 %v4011
  %v4936 = vunpack.c.l.b16 %v4012
  %v4937 = vunpack.c.h.b16 %v4012
  %v4938 = vunpack.c.l.b16 %v4013
  %v4939 = vunpack.c.h.b16 %v4013
  %v4940 = vunpack.c.l.b16 %v4014
  %v4941 = vunpack.c.h.b16 %v4014
  %v4942 = vunpack.c.l.b16 %v4015
  %v4943 = vunpack.c.h.b16 %v4015
  %v4944 = vunpack.c.l.b16 %v4016
  %v4945 = vunpack.c.h.b16 %v4016
  %v4946 = vunpack.c.l.b16 %v4017
  %v4947 = vunpack.c.h.b16 %v4017
  %v4948 = vunpack.c.l.b16 %v4018
  %v4949 = vunpack.c.h.b16 %v4018
  %v4950 = vunpack.c.l.b16 %v4019
  %v4951 = vunpack.c.h.b16 %v4019
  %v4952 = vunpack.c.l.b16 %v4020
  %v4953 = vunpack.c.h.b16 %v4020
  %v4954 = vunpack.c.l.b16 %v4021
  %v4955 = vunpack.c.h.b16 %v4021
  %v4956 = vunpack.c.l.b16 %v4022
  %v4957 = vunpack.c.h.b16 %v4022
  %v4958 = vunpack.c.l.b16 %v4023
  %v4959 = vunpack.c.h.b16 %v4023
  %v4960 = vunpack.c.l.b16 %v4024
  %v4961 = vunpack.c.h.b16 %v4024
  %v4962 = vunpack.c.l.b16 %v4025
  %v4963 = vunpack.c.h.b16 %v4025
  %v4964 = vunpack.c.l.b16 %v4026
  %v4965 = vunpack.c.h.b16 %v4026
  %v4966 = vunpack.c.l.b16 %v4027
  %v4967 = vunpack.c.h.b16 %v4027
  %v4968 = vunpack.c.l.b16 %v4028
  %v4969 = vunpack.c.h.b16 %v4028
  %v4970 = vunpack.c.l.b16 %v4029
  %v4971 = vunpack.c.h.b16 %v4029
  %v4972 = vunpack.c.l.b16 %v4030
  %v4973 = vunpack.c.h.b16 %v4030
  %v4974 = vunpack.c.l.b16 %v4031
  %v4975 = vunpack.c.h.b16 %v4031
  %v4976 = vunpack.c.l.b16 %v4032
  %v4977 = vunpack.c.h.b16 %v4032
  %v4978 = vunpack.c.l.b16 %v4033
  %v4979 = vunpack.c.h.b16 %v4033
  %v4980 = vunpack.c.l.b16 %v4034
  %v4981 = vunpack.c.h.b16 %v4034
  %v4982 = vunpack.c.l.b16 %v4035
  %v4983 = vunpack.c.h.b16 %v4035
  %v4984 = vunpack.c.l.b16 %v4036
  %v4985 = vunpack.c.h.b16 %v4036
  %v4986 = vunpack.c.l.b16 %v4037
  %v4987 = vunpack.c.h.b16 %v4037
  %v4988 = vunpack.c.l.b16 %v4038
  %v4989 = vunpack.c.h.b16 %v4038
  %v4990 = vunpack.c.l.b16 %v4039
  %v4991 = vunpack.c.h.b16 %v4039
  %v4992 = vunpack.c.l.b16 %v4040
  %v4993 = vunpack.c.h.b16 %v4040
  %v4994 = vunpack.c.l.b16 %v4041
  %v4995 = vunpack.c.h.b16 %v4041
  %v4996 = vunpack.c.l.b16 %v4042
  %v4997 = vunpack.c.h.b16 %v4042
  %v4998 = vunpack.c.l.b16 %v4043
  %v4999 = vunpack.c.h.b16 %v4043
  %v5000 = vunpack.c.l.b16 %v4044
  %v5001 = vunpack.c.h.b16 %v4044
  %v5002 = vunpack.c.l.b16 %v4045
  %v5003 = vunpack.c.h.b16 %v4045
  %v5004 = vunpack.c.l.b16 %v4046
  %v5005 = vunpack.c.h.b16 %v4046
  %v5006 = vunpack.c.l.b16 %v4047
  %v5007 = vunpack.c.h.b16 %v4047
  %v5008 = vunpack.c.l.b16 %v4048
  %v5009 = vunpack.c.h.b16 %v4048
  %v5010 = vunpack.c.l.b16 %v4049
  %v5011 = vunpack.c.h.b16 %v4049
  %v5012 = vunpack.c.l.b16 %v4050
  %v5013 = vunpack.c.h.b16 %v4050
  %v5014 = vunpack.c.l.b16 %v4051
  %v5015 = vunpack.c.h.b16 %v4051
  %v5016 = vunpack.c.l.b16 %v4052
  %v5017 = vunpack.c.h.b16 %v4052
  %v5018 = vunpack.c.l.b16 %v4053
  %v5019 = vunpack.c.h.b16 %v4053
  %v5020 = vunpack.c.l.b16 %v4054
  %v5021 = vunpack.c.h.b16 %v4054
  %v5022 = vunpack.c.l.b16 %v4055
  %v5023 = vunpack.c.h.b16 %v4055
  %v5024 = vunpack.c.l.b16 %v4056
  %v5025 = vunpack.c.h.b16 %v4056
  %v5026 = vunpack.c.l.b16 %v4057
  %v5027 = vunpack.c.h.b16 %v4057
  %v5028 = vunpack.c.l.b16 %v4058
  %v5029 = vunpack.c.h.b16 %v4058
  %v5030 = vunpack.c.l.b16 %v4059
  %v5031 = vunpack.c.h.b16 %v4059
  %v5032 = vunpack.c.l.b16 %v4060
  %v5033 = vunpack.c.h.b16 %v4060
  %v5034 = vunpack.c.l.b16 %v4061
  %v5035 = vunpack.c.h.b16 %v4061
  %v5036 = vunpack.c.l.b16 %v4062
  %v5037 = vunpack.c.h.b16 %v4062
  %v5038 = vunpack.c.l.b16 %v4063
  %v5039 = vunpack.c.h.b16 %v4063
  %v5040 = vunpack.c.l.b16 %v4064
  %v5041 = vunpack.c.h.b16 %v4064
  %v5042 = vunpack.c.l.b16 %v4065
  %v5043 = vunpack.c.h.b16 %v4065
  %v5044 = vunpack.c.l.b16 %v4066
  %v5045 = vunpack.c.h.b16 %v4066
  %v5046 = vunpack.c.l.b16 %v4067
  %v5047 = vunpack.c.h.b16 %v4067
  %v5048 = vunpack.c.l.b16 %v4068
  %v5049 = vunpack.c.h.b16 %v4068
  %v5050 = vunpack.c.l.b16 %v4069
  %v5051 = vunpack.c.h.b16 %v4069
  %v5052 = vunpack.c.l.b16 %v4070
  %v5053 = vunpack.c.h.b16 %v4070
  %v5054 = vunpack.c.l.b16 %v4071
  %v5055 = vunpack.c.h.b16 %v4071
  %v5056 = vunpack.c.l.b16 %v4072
  %v5057 = vunpack.c.h.b16 %v4072
  %v5058 = vunpack.c.l.b16 %v4073
  %v5059 = vunpack.c.h.b16 %v4073
  %v5060 = vunpack.c.l.b16 %v4074
  %v5061 = vunpack.c.h.b16 %v4074
  %v5062 = vunpack.c.l.b16 %v4075
  %v5063 = vunpack.c.h.b16 %v4075
  %v5064 = vunpack.c.l.b16 %v4076
  %v5065 = vunpack.c.h.b16 %v4076
  %v5066 = vunpack.c.l.b16 %v4077
  %v5067 = vunpack.c.h.b16 %v4077
  %v5068 = vunpack.c.l.b16 %v4078
  %v5069 = vunpack.c.h.b16 %v4078
  %v5070 = vunpack.c.l.b16 %v4079
  %v5071 = vunpack.c.h.b16 %v4079
  %v5072 = vunpack.c.l.b16 %v4080
  %v5073 = vunpack.c.h.b16 %v4080
  %v5074 = vunpack.c.l.b16 %v4081
  %v5075 = vunpack.c.h.b16 %v4081
  %v5076 = vunpack.c.l.b16 %v4082
  %v5077 = vunpack.c.h.b16 %v4082
  %v5078 = vunpack.c.l.b16 %v4083
  %v5079 = vunpack.c.h.b16 %v4083
  %v5080 = vunpack.c.l.b16 %v4084
  %v5081 = vunpack.c.h.b16 %v4084
  %v5082 = vunpack.c.l.b16 %v4085
  %v5083 = vunpack.c.h.b16 %v4085
  %v5084 = vunpack.c.l.b16 %v4086
  %v5085 = vunpack.c.h.b16 %v4086
  %v5086 = vunpack.c.l.b16 %v4087
  %v5087 = vunpack.c.h.b16 %v4087
  %v5088 = vunpack.c.l.b16 %v4088
  %v5089 = vunpack.c.h.b16 %v4088
  %v5090 = vunpack.c.l.b16 %v4089
  %v5091 = vunpack.c.h.b16 %v4089
  %v5092 = vunpack.c.l.b16 %v4090
  %v5093 = vunpack.c.h.b16 %v4090
  %v5094 = vunpack.c.l.b16 %v4091
  %v5095 = vunpack.c.h.b16 %v4091
  %v5096 = vunpack.c.l.b16 %v4092
  %v5097 = vunpack.c.h.b16 %v4092
  %v5098 = vunpack.c.l.b16 %v4093
  %v5099 = vunpack.c.h.b16 %v4093
  %v5100 = vpack.c.b16 %v4910, %v4908
  %v5101 = vpack.c.b16 %v4911, %v4909
  %v5102 = vpack.c.b16 %v4914, %v4912
  %v5103 = vpack.c.b16 %v4915, %v4913
  %v5104 = vpack.c.b16 %v4918, %v4916
  %v5105 = vpack.c.b16 %v4919, %v4917
  %v5106 = vpack.c.b16 %v4922, %v4920
  %v5107 = vpack.c.b16 %v4923, %v4921
  %v5108 = vpack.c.b16 %v4926, %v4924
  %v5109 = vpack.c.b16 %v4927, %v4925
  %v5110 = vpack.c.b16 %v4930, %v4928
  %v5111 = vpack.c.b16 %v4931, %v4929
  %v5112 = vpack.c.b16 %v4934, %v4932
  %v5113 = vpack.c.b16 %v4935, %v4933
  %v5114 = vpack.c.b16 %v4938, %v4936
  %v5115 = vpack.c.b16 %v4939, %v4937
  %v5116 = vpack.c.b16 %v4942, %v4940
  %v5117 = vpack.c.b16 %v4943, %v4941
  %v5118 = vpack.c.b16 %v4946, %v4944
  %v5119 = vpack.c.b16 %v4947, %v4945
  %v5120 = vpack.c.b16 %v4950, %v4948
  %v5121 = vpack.c.b16 %v4951, %v4949
  %v5122 = vpack.c.b16 %v4954, %v4952
  %v5123 = vpack.c.b16 %v4955, %v4953
  %v5124 = vpack.c.b16 %v4958, %v4956
  %v5125 = vpack.c.b16 %v4959, %v4957
  %v5126 = vpack.c.b16 %v4962, %v4960
  %v5127 = vpack.c.b16 %v4963, %v4961
  %v5128 = vpack.c.b16 %v4966, %v4964
  %v5129 = vpack.c.b16 %v4967, %v4965
  %v5130 = vpack.c.b16 %v4970, %v4968
  %v5131 = vpack.c.b16 %v4971, %v4969
  %v5132 = vpack.c.b16 %v4974, %v4972
  %v5133 = vpack.c.b16 %v4975, %v4973
  %v5134 = vpack.c.b16 %v4978, %v4976
  %v5135 = vpack.c.b16 %v4979, %v4977
  %v5136 = vpack.c.b16 %v4982, %v4980
  %v5137 = vpack.c.b16 %v4983, %v4981
  %v5138 = vpack.c.b16 %v4986, %v4984
  %v5139 = vpack.c.b16 %v4987, %v4985
  %v5140 = vpack.c.b16 %v4990, %v4988
  %v5141 = vpack.c.b16 %v4991, %v4989
  %v5142 = vpack.c.b16 %v4994, %v4992
  %v5143 = vpack.c.b16 %v4995, %v4993
  %v5144 = vpack.c.b16 %v4998, %v4996
  %v5145 = vpack.c.b16 %v4999, %v4997
  %v5146 = vpack.c.b16 %v5002, %v5000
  %v5147 = vpack.c.b16 %v5003, %v5001
  %v5148 = vpack.c.b16 %v5006, %v5004
  %v5149 = vpack.c.b16 %v5007, %v5005
  %v5150 = vpack.c.b16 %v5010, %v5008
  %v5151 = vpack.c.b16 %v5011, %v5009
  %v5152 = vpack.c.b16 %v5014, %v5012
  %v5153 = vpack.c.b16 %v5015, %v5013
  %v5154 = vpack.c.b16 %v5018, %v5016
  %v5155 = vpack.c.b16 %v5019, %v5017
  %v5156 = vpack.c.b16 %v5022, %v5020
  %v5157 = vpack.c.b16 %v5023, %v5021
  %v5158 = vpack.c.b16 %v5026, %v5024
  %v5159 = vpack.c.b16 %v5027, %v5025
  %v5160 = vpack.c.b16 %v5030, %v5028
  %v5161 = vpack.c.b16 %v5031, %v5029
  %v5162 = vpack.c.b16 %v5034, %v5032
  %v5163 = vpack.c.b16 %v5035, %v5033
  %v5164 = vpack.c.b16 %v5038, %v5036
  %v5165 = vpack.c.b16 %v5039, %v5037
  %v5166 = vpack.c.b16 %v5042, %v5040
  %v5167 = vpack.c.b16 %v5043, %v5041
  %v5168 = vpack.c.b16 %v5046, %v5044
  %v5169 = vpack.c.b16 %v5047, %v5045
  %v5170 = vpack.c.b16 %v5050, %v5048
  %v5171 = vpack.c.b16 %v5051, %v5049
  %v5172 = vpack.c.b16 %v5054, %v5052
  %v5173 = vpack.c.b16 %v5055, %v5053
  %v5174 = vpack.c.b16 %v5058, %v5056
  %v5175 = vpack.c.b16 %v5059, %v5057
  %v5176 = vpack.c.b16 %v5062, %v5060
  %v5177 = vpack.c.b16 %v5063, %v5061
  %v5178 = vpack.c.b16 %v5066, %v5064
  %v5179 = vpack.c.b16 %v5067, %v5065
  %v5180 = vpack.c.b16 %v5070, %v5068
  %v5181 = vpack.c.b16 %v5071, %v5069
  %v5182 = vpack.c.b16 %v5074, %v5072
  %v5183 = vpack.c.b16 %v5075, %v5073
  %v5184 = vpack.c.b16 %v5078, %v5076
  %v5185 = vpack.c.b16 %v5079, %v5077
  %v5186 = vpack.c.b16 %v5082, %v5080
  %v5187 = vpack.c.b16 %v5083, %v5081
  %v5188 = vpack.c.b16 %v5086, %v5084
  %v5189 = vpack.c.b16 %v5087, %v5085
  %v5190 = vpack.c.b16 %v5090, %v5088
  %v5191 = vpack.c.b16 %v5091, %v5089
  %v5192 = vpack.c.b16 %v5094, %v5092
  %v5193 = vpack.c.b16 %v5095, %v5093
  %v5194 = vpack.c.b16 %v5098, %v5096
  %v5195 = vpack.c.b16 %v5099, %v5097
  %5292 = vmatprep.subr.bf16.mxu0 %v5115
  %5293 = vmatpush1.bf16.msra.mxu0 %v5114
  %5294 = vmatprep.subr.bf16.mxu0 %v5113
  %5295 = vmatpush1.bf16.msra.mxu0 %v5112
  %5296 = vmatprep.subr.bf16.mxu0 %v5111
  %5297 = vmatpush1.bf16.msra.mxu0 %v5110
  %5298 = vmatprep.subr.bf16.mxu0 %v5109
  %5299 = vmatpush1.bf16.msra.mxu0 %v5108
  %5300 = vmatprep.subr.bf16.mxu0 %v5107
  %5301 = vmatpush1.bf16.msra.mxu0 %v5106
  %5302 = vmatprep.subr.bf16.mxu0 %v5105
  %5303 = vmatpush1.bf16.msra.mxu0 %v5104
  %5304 = vmatprep.subr.bf16.mxu0 %v5103
  %5305 = vmatpush1.bf16.msra.mxu0 %v5102
  %5306 = vmatprep.subr.bf16.mxu0 %v5101
  %5307 = vmatpush1.bf16.msra.mxu0 %v5100
  %5308 = vmatprep.subr.bf16.mxu0 %v5131
  %5309 = vmatpush2.bf16.msra.mxu0 %v5130
  %5310 = vmatprep.subr.bf16.mxu0 %v5129
  %5311 = vmatpush2.bf16.msra.mxu0 %v5128
  %5312 = vmatprep.subr.bf16.mxu0 %v5127
  %5313 = vmatpush2.bf16.msra.mxu0 %v5126
  %5314 = vmatprep.subr.bf16.mxu0 %v5125
  %5315 = vmatpush2.bf16.msra.mxu0 %v5124
  %5316 = vmatprep.subr.bf16.mxu0 %v5123
  %5317 = vmatpush2.bf16.msra.mxu0 %v5122
  %5318 = vmatprep.subr.bf16.mxu0 %v5121
  %5319 = vmatpush2.bf16.msra.mxu0 %v5120
  %5320 = vmatprep.subr.bf16.mxu0 %v5119
  %5321 = vmatpush2.bf16.msra.mxu0 %v5118
  %5322 = vmatprep.subr.bf16.mxu0 %v5117
  %5323 = vmatpush2.bf16.msra.mxu0 %v5116
  %5324 = vmatprep.mubr.bf16.mxu0 %v4192
  %5325 = vmatmul.mubr.bf16.gmra.mxu0 %v4191
  %v5326 = vpop.f32.mrf.mxu0
  %v5327 = vadd.f32 %v4806, %v5326
  %v5328 = vpop.f32.mrf.mxu0
  %v5329 = vadd.f32 %v4808, %v5328
  %v5330 = vpop.f32.mrf.mxu0
  %v5331 = vpop.f32.mrf.mxu0
  %5332 = vdwg.mxu0
  %5333 = vmatprep.subr.bf16.mxu0 %v5147
  %5334 = vmatpush1.bf16.msra.mxu0 %v5146
  %5335 = vmatprep.subr.bf16.mxu0 %v5145
  %5336 = vmatpush1.bf16.msra.mxu0 %v5144
  %5337 = vmatprep.subr.bf16.mxu0 %v5143
  %5338 = vmatpush1.bf16.msra.mxu0 %v5142
  %5339 = vmatprep.subr.bf16.mxu0 %v5141
  %5340 = vmatpush1.bf16.msra.mxu0 %v5140
  %5341 = vmatprep.subr.bf16.mxu0 %v5139
  %5342 = vmatpush1.bf16.msra.mxu0 %v5138
  %5343 = vmatprep.subr.bf16.mxu0 %v5137
  %5344 = vmatpush1.bf16.msra.mxu0 %v5136
  %5345 = vmatprep.subr.bf16.mxu0 %v5135
  %5346 = vmatpush1.bf16.msra.mxu0 %v5134
  %5347 = vmatprep.subr.bf16.mxu0 %v5133
  %5348 = vmatpush1.bf16.msra.mxu0 %v5132
  %5349 = vmatprep.subr.bf16.mxu0 %v5163
  %5350 = vmatpush2.bf16.msra.mxu0 %v5162
  %5351 = vmatprep.subr.bf16.mxu0 %v5161
  %5352 = vmatpush2.bf16.msra.mxu0 %v5160
  %5353 = vmatprep.subr.bf16.mxu0 %v5159
  %5354 = vmatpush2.bf16.msra.mxu0 %v5158
  %5355 = vmatprep.subr.bf16.mxu0 %v5157
  %5356 = vmatpush2.bf16.msra.mxu0 %v5156
  %5357 = vmatprep.subr.bf16.mxu0 %v5155
  %5358 = vmatpush2.bf16.msra.mxu0 %v5154
  %5359 = vmatprep.subr.bf16.mxu0 %v5153
  %5360 = vmatpush2.bf16.msra.mxu0 %v5152
  %5361 = vmatprep.subr.bf16.mxu0 %v5151
  %5362 = vmatpush2.bf16.msra.mxu0 %v5150
  %5363 = vmatprep.subr.bf16.mxu0 %v5149
  %5364 = vmatpush2.bf16.msra.mxu0 %v5148
  %5365 = vmatprep.mubr.bf16.mxu0 %v4194
  %5366 = vmatmul.mubr.bf16.gmra.mxu0 %v4193
  %v5367 = vpop.f32.mrf.mxu0
  %v5368 = vadd.f32 %v5327, %v5367
  %v5369 = vpop.f32.mrf.mxu0
  %v5370 = vadd.f32 %v5329, %v5369
  %v5371 = vpop.f32.mrf.mxu0
  %v5372 = vpop.f32.mrf.mxu0
  %5373 = vdwg.mxu0
  %5374 = vmatprep.subr.bf16.mxu0 %v5179
  %5375 = vmatpush1.bf16.msra.mxu0 %v5178
  %5376 = vmatprep.subr.bf16.mxu0 %v5177
  %5377 = vmatpush1.bf16.msra.mxu0 %v5176
  %5378 = vmatprep.subr.bf16.mxu0 %v5175
  %5379 = vmatpush1.bf16.msra.mxu0 %v5174
  %5380 = vmatprep.subr.bf16.mxu0 %v5173
  %5381 = vmatpush1.bf16.msra.mxu0 %v5172
  %5382 = vmatprep.subr.bf16.mxu0 %v5171
  %5383 = vmatpush1.bf16.msra.mxu0 %v5170
  %5384 = vmatprep.subr.bf16.mxu0 %v5169
  %5385 = vmatpush1.bf16.msra.mxu0 %v5168
  %5386 = vmatprep.subr.bf16.mxu0 %v5167
  %5387 = vmatpush1.bf16.msra.mxu0 %v5166
  %5388 = vmatprep.subr.bf16.mxu0 %v5165
  %5389 = vmatpush1.bf16.msra.mxu0 %v5164
  %5390 = vmatprep.subr.bf16.mxu0 %v5195
  %5391 = vmatpush2.bf16.msra.mxu0 %v5194
  %5392 = vmatprep.subr.bf16.mxu0 %v5193
  %5393 = vmatpush2.bf16.msra.mxu0 %v5192
  %5394 = vmatprep.subr.bf16.mxu0 %v5191
  %5395 = vmatpush2.bf16.msra.mxu0 %v5190
  %5396 = vmatprep.subr.bf16.mxu0 %v5189
  %5397 = vmatpush2.bf16.msra.mxu0 %v5188
  %5398 = vmatprep.subr.bf16.mxu0 %v5187
  %5399 = vmatpush2.bf16.msra.mxu0 %v5186
  %5400 = vmatprep.subr.bf16.mxu0 %v5185
  %5401 = vmatpush2.bf16.msra.mxu0 %v5184
  %5402 = vmatprep.subr.bf16.mxu0 %v5183
  %5403 = vmatpush2.bf16.msra.mxu0 %v5182
  %5404 = vmatprep.subr.bf16.mxu0 %v5181
  %5405 = vmatpush2.bf16.msra.mxu0 %v5180
  %5406 = vmatprep.mubr.bf16.mxu0 %v4196
  %5407 = vmatmul.mubr.bf16.gmra.mxu0 %v4195
  %v5408 = vpop.f32.mrf.mxu0
  %v5409 = vadd.f32 %v5368, %v5408
  %v5410 = vpop.f32.mrf.mxu0
  %v5411 = vadd.f32 %v5370, %v5410
  %v5412 = vpop.f32.mrf.mxu0
  %v5413 = vpop.f32.mrf.mxu0
  %5414 = vdwg.mxu0
  %v5416 = vlaneseq
  %v5417 = vshrl.u32 %v5416, 7
  %v5418 = vsub.s32 0, %v5417
  %v5419 = vrot.slane %v3867, %v5418
  %v5420 = vlaneseq
  %v5421 = vshrl.u32 %v5420, 7
  %v5422 = vsub.s32 1, %v5421
  %v5423 = vrot.slane %v3867, %v5422
  %v5426 = vadd.f32 %v5409, %v5419
  %v5427 = vadd.f32 %v5411, %v5423
  %vm5428 = vcmp.ge.f32.partialorder %v5426, 0.0
  %vm5429 = vcmp.ge.f32.partialorder %v5427, 0.0
  %v5430 = vmul.f32 %v5426, 0.2
  %v5431 = vmul.f32 %v5427, 0.2
  %v5432 = vsel %vm5428, %v5426, %v5430
  %v5433 = vsel %vm5429, %v5427, %v5431
  %v5434 = vpack.c.bf16 %v5432, %v5432
  %v5435 = vpack.c.bf16 %v5433, %v5433
  %v5437 = vlaneseq
  %v5438 = vshrl.u32 %v5437, 7
  %v5439 = vsub.s32 0, %v5438
  %v5440 = vrot.slane %v3868, %v5439
  %v5441 = vlaneseq
  %v5442 = vshrl.u32 %v5441, 7
  %v5443 = vsub.s32 1, %v5442
  %v5444 = vrot.slane %v3868, %v5443
  %v5479 = vunpack.c.l.b16 %v3869
  %v5480 = vunpack.c.h.b16 %v3869
  %v5481 = vunpack.c.l.b16 %v3870
  %v5482 = vunpack.c.h.b16 %v3870
  %v5483 = vunpack.c.l.b16 %v3871
  %v5484 = vunpack.c.h.b16 %v3871
  %v5485 = vunpack.c.l.b16 %v3872
  %v5486 = vunpack.c.h.b16 %v3872
  %v5487 = vunpack.c.l.b16 %v3873
  %v5488 = vunpack.c.h.b16 %v3873
  %v5489 = vunpack.c.l.b16 %v3874
  %v5490 = vunpack.c.h.b16 %v3874
  %v5491 = vunpack.c.l.b16 %v3875
  %v5492 = vunpack.c.h.b16 %v3875
  %v5493 = vunpack.c.l.b16 %v3876
  %v5494 = vunpack.c.h.b16 %v3876
  %v5495 = vunpack.c.l.b16 %v3877
  %v5496 = vunpack.c.h.b16 %v3877
  %v5497 = vunpack.c.l.b16 %v3878
  %v5498 = vunpack.c.h.b16 %v3878
  %v5499 = vunpack.c.l.b16 %v3879
  %v5500 = vunpack.c.h.b16 %v3879
  %v5501 = vunpack.c.l.b16 %v3880
  %v5502 = vunpack.c.h.b16 %v3880
  %v5503 = vunpack.c.l.b16 %v3881
  %v5504 = vunpack.c.h.b16 %v3881
  %v5505 = vunpack.c.l.b16 %v3882
  %v5506 = vunpack.c.h.b16 %v3882
  %v5507 = vunpack.c.l.b16 %v3883
  %v5508 = vunpack.c.h.b16 %v3883
  %v5509 = vunpack.c.l.b16 %v3884
  %v5510 = vunpack.c.h.b16 %v3884
  %v5511 = vunpack.c.l.b16 %v3885
  %v5512 = vunpack.c.h.b16 %v3885
  %v5513 = vunpack.c.l.b16 %v3886
  %v5514 = vunpack.c.h.b16 %v3886
  %v5515 = vunpack.c.l.b16 %v3887
  %v5516 = vunpack.c.h.b16 %v3887
  %v5517 = vunpack.c.l.b16 %v3888
  %v5518 = vunpack.c.h.b16 %v3888
  %v5519 = vunpack.c.l.b16 %v3889
  %v5520 = vunpack.c.h.b16 %v3889
  %v5521 = vunpack.c.l.b16 %v3890
  %v5522 = vunpack.c.h.b16 %v3890
  %v5523 = vunpack.c.l.b16 %v3891
  %v5524 = vunpack.c.h.b16 %v3891
  %v5525 = vunpack.c.l.b16 %v3892
  %v5526 = vunpack.c.h.b16 %v3892
  %v5527 = vunpack.c.l.b16 %v3893
  %v5528 = vunpack.c.h.b16 %v3893
  %v5529 = vunpack.c.l.b16 %v3894
  %v5530 = vunpack.c.h.b16 %v3894
  %v5531 = vunpack.c.l.b16 %v3895
  %v5532 = vunpack.c.h.b16 %v3895
  %v5533 = vunpack.c.l.b16 %v3896
  %v5534 = vunpack.c.h.b16 %v3896
  %v5535 = vunpack.c.l.b16 %v3897
  %v5536 = vunpack.c.h.b16 %v3897
  %v5537 = vunpack.c.l.b16 %v3898
  %v5538 = vunpack.c.h.b16 %v3898
  %v5539 = vunpack.c.l.b16 %v3899
  %v5540 = vunpack.c.h.b16 %v3899
  %v5541 = vunpack.c.l.b16 %v3900
  %v5542 = vunpack.c.h.b16 %v3900
  %v5543 = vpack.c.b16 %v5481, %v5479
  %v5544 = vpack.c.b16 %v5482, %v5480
  %v5545 = vpack.c.b16 %v5485, %v5483
  %v5546 = vpack.c.b16 %v5486, %v5484
  %v5547 = vpack.c.b16 %v5489, %v5487
  %v5548 = vpack.c.b16 %v5490, %v5488
  %v5549 = vpack.c.b16 %v5493, %v5491
  %v5550 = vpack.c.b16 %v5494, %v5492
  %v5551 = vpack.c.b16 %v5497, %v5495
  %v5552 = vpack.c.b16 %v5498, %v5496
  %v5553 = vpack.c.b16 %v5501, %v5499
  %v5554 = vpack.c.b16 %v5502, %v5500
  %v5555 = vpack.c.b16 %v5505, %v5503
  %v5556 = vpack.c.b16 %v5506, %v5504
  %v5557 = vpack.c.b16 %v5509, %v5507
  %v5558 = vpack.c.b16 %v5510, %v5508
  %v5559 = vpack.c.b16 %v5513, %v5511
  %v5560 = vpack.c.b16 %v5514, %v5512
  %v5561 = vpack.c.b16 %v5517, %v5515
  %v5562 = vpack.c.b16 %v5518, %v5516
  %v5563 = vpack.c.b16 %v5521, %v5519
  %v5564 = vpack.c.b16 %v5522, %v5520
  %v5565 = vpack.c.b16 %v5525, %v5523
  %v5566 = vpack.c.b16 %v5526, %v5524
  %v5567 = vpack.c.b16 %v5529, %v5527
  %v5568 = vpack.c.b16 %v5530, %v5528
  %v5569 = vpack.c.b16 %v5533, %v5531
  %v5570 = vpack.c.b16 %v5534, %v5532
  %v5571 = vpack.c.b16 %v5537, %v5535
  %v5572 = vpack.c.b16 %v5538, %v5536
  %v5573 = vpack.c.b16 %v5541, %v5539
  %v5574 = vpack.c.b16 %v5542, %v5540
  %5607 = vmatprep.subr.bf16.mxu0 %v5558
  %5608 = vmatpush1.bf16.msra.mxu0 %v5557
  %5609 = vmatprep.subr.bf16.mxu0 %v5556
  %5610 = vmatpush1.bf16.msra.mxu0 %v5555
  %5611 = vmatprep.subr.bf16.mxu0 %v5554
  %5612 = vmatpush1.bf16.msra.mxu0 %v5553
  %5613 = vmatprep.subr.bf16.mxu0 %v5552
  %5614 = vmatpush1.bf16.msra.mxu0 %v5551
  %5615 = vmatprep.subr.bf16.mxu0 %v5550
  %5616 = vmatpush1.bf16.msra.mxu0 %v5549
  %5617 = vmatprep.subr.bf16.mxu0 %v5548
  %5618 = vmatpush1.bf16.msra.mxu0 %v5547
  %5619 = vmatprep.subr.bf16.mxu0 %v5546
  %5620 = vmatpush1.bf16.msra.mxu0 %v5545
  %5621 = vmatprep.subr.bf16.mxu0 %v5544
  %5622 = vmatpush1.bf16.msra.mxu0 %v5543
  %5623 = vmatprep.subr.bf16.mxu0 %v5574
  %5624 = vmatpush2.bf16.msra.mxu0 %v5573
  %5625 = vmatprep.subr.bf16.mxu0 %v5572
  %5626 = vmatpush2.bf16.msra.mxu0 %v5571
  %5627 = vmatprep.subr.bf16.mxu0 %v5570
  %5628 = vmatpush2.bf16.msra.mxu0 %v5569
  %5629 = vmatprep.subr.bf16.mxu0 %v5568
  %5630 = vmatpush2.bf16.msra.mxu0 %v5567
  %5631 = vmatprep.subr.bf16.mxu0 %v5566
  %5632 = vmatpush2.bf16.msra.mxu0 %v5565
  %5633 = vmatprep.subr.bf16.mxu0 %v5564
  %5634 = vmatpush2.bf16.msra.mxu0 %v5563
  %5635 = vmatprep.subr.bf16.mxu0 %v5562
  %5636 = vmatpush2.bf16.msra.mxu0 %v5561
  %5637 = vmatprep.subr.bf16.mxu0 %v5560
  %5638 = vmatpush2.bf16.msra.mxu0 %v5559
  %5639 = vmatprep.mubr.bf16.mxu0 %v5435
  %5640 = vmatmul.mubr.bf16.gmra.mxu0 %v5434
  %v5641 = vpop.f32.mrf.mxu0
  %v5642 = vadd.f32 %v5440, %v5641
  %v5643 = vpop.f32.mrf.mxu0
  %v5644 = vadd.f32 %v5444, %v5643
  %v5645 = vpop.f32.mrf.mxu0
  %v5646 = vpop.f32.mrf.mxu0
  %5647 = vdwg.mxu0
  %vm5648 = vcmp.ge.f32.partialorder %v5642, 0.0
  %vm5649 = vcmp.ge.f32.partialorder %v5644, 0.0
  %v5650 = vmul.f32 %v5642, 0.2
  %v5651 = vmul.f32 %v5644, 0.2
  %v5652 = vsel %vm5648, %v5642, %v5650
  %v5653 = vsel %vm5649, %v5644, %v5651
  %v5654 = vadd.f32 %v5652, %v5432
  %v5655 = vadd.f32 %v5653, %v5433
  %5656 = vmatprep.subr.bf16.mxu0 %v5115
  %5657 = vmatpush1.bf16.msra.mxu0 %v5114
  %5658 = vmatprep.subr.bf16.mxu0 %v5113
  %5659 = vmatpush1.bf16.msra.mxu0 %v5112
  %5660 = vmatprep.subr.bf16.mxu0 %v5111
  %5661 = vmatpush1.bf16.msra.mxu0 %v5110
  %5662 = vmatprep.subr.bf16.mxu0 %v5109
  %5663 = vmatpush1.bf16.msra.mxu0 %v5108
  %5664 = vmatprep.subr.bf16.mxu0 %v5107
  %5665 = vmatpush1.bf16.msra.mxu0 %v5106
  %5666 = vmatprep.subr.bf16.mxu0 %v5105
  %5667 = vmatpush1.bf16.msra.mxu0 %v5104
  %5668 = vmatprep.subr.bf16.mxu0 %v5103
  %5669 = vmatpush1.bf16.msra.mxu0 %v5102
  %5670 = vmatprep.subr.bf16.mxu0 %v5101
  %5671 = vmatpush1.bf16.msra.mxu0 %v5100
  %5672 = vmatprep.subr.bf16.mxu0 %v5131
  %5673 = vmatpush2.bf16.msra.mxu0 %v5130
  %5674 = vmatprep.subr.bf16.mxu0 %v5129
  %5675 = vmatpush2.bf16.msra.mxu0 %v5128
  %5676 = vmatprep.subr.bf16.mxu0 %v5127
  %5677 = vmatpush2.bf16.msra.mxu0 %v5126
  %5678 = vmatprep.subr.bf16.mxu0 %v5125
  %5679 = vmatpush2.bf16.msra.mxu0 %v5124
  %5680 = vmatprep.subr.bf16.mxu0 %v5123
  %5681 = vmatpush2.bf16.msra.mxu0 %v5122
  %5682 = vmatprep.subr.bf16.mxu0 %v5121
  %5683 = vmatpush2.bf16.msra.mxu0 %v5120
  %5684 = vmatprep.subr.bf16.mxu0 %v5119
  %5685 = vmatpush2.bf16.msra.mxu0 %v5118
  %5686 = vmatprep.subr.bf16.mxu0 %v5117
  %5687 = vmatpush2.bf16.msra.mxu0 %v5116
  %5688 = vmatprep.mubr.bf16.mxu0 %v4202
  %5689 = vmatmul.mubr.bf16.gmra.mxu0 %v4201
  %v5690 = vpop.f32.mrf.mxu0
  %v5691 = vadd.f32 0.0, %v5690
  %v5692 = vpop.f32.mrf.mxu0
  %v5693 = vadd.f32 0.0, %v5692
  %v5694 = vpop.f32.mrf.mxu0
  %v5695 = vpop.f32.mrf.mxu0
  %5696 = vdwg.mxu0
  %5697 = vmatprep.subr.bf16.mxu0 %v5147
  %5698 = vmatpush1.bf16.msra.mxu0 %v5146
  %5699 = vmatprep.subr.bf16.mxu0 %v5145
  %5700 = vmatpush1.bf16.msra.mxu0 %v5144
  %5701 = vmatprep.subr.bf16.mxu0 %v5143
  %5702 = vmatpush1.bf16.msra.mxu0 %v5142
  %5703 = vmatprep.subr.bf16.mxu0 %v5141
  %5704 = vmatpush1.bf16.msra.mxu0 %v5140
  %5705 = vmatprep.subr.bf16.mxu0 %v5139
  %5706 = vmatpush1.bf16.msra.mxu0 %v5138
  %5707 = vmatprep.subr.bf16.mxu0 %v5137
  %5708 = vmatpush1.bf16.msra.mxu0 %v5136
  %5709 = vmatprep.subr.bf16.mxu0 %v5135
  %5710 = vmatpush1.bf16.msra.mxu0 %v5134
  %5711 = vmatprep.subr.bf16.mxu0 %v5133
  %5712 = vmatpush1.bf16.msra.mxu0 %v5132
  %5713 = vmatprep.subr.bf16.mxu0 %v5163
  %5714 = vmatpush2.bf16.msra.mxu0 %v5162
  %5715 = vmatprep.subr.bf16.mxu0 %v5161
  %5716 = vmatpush2.bf16.msra.mxu0 %v5160
  %5717 = vmatprep.subr.bf16.mxu0 %v5159
  %5718 = vmatpush2.bf16.msra.mxu0 %v5158
  %5719 = vmatprep.subr.bf16.mxu0 %v5157
  %5720 = vmatpush2.bf16.msra.mxu0 %v5156
  %5721 = vmatprep.subr.bf16.mxu0 %v5155
  %5722 = vmatpush2.bf16.msra.mxu0 %v5154
  %5723 = vmatprep.subr.bf16.mxu0 %v5153
  %5724 = vmatpush2.bf16.msra.mxu0 %v5152
  %5725 = vmatprep.subr.bf16.mxu0 %v5151
  %5726 = vmatpush2.bf16.msra.mxu0 %v5150
  %5727 = vmatprep.subr.bf16.mxu0 %v5149
  %5728 = vmatpush2.bf16.msra.mxu0 %v5148
  %5729 = vmatprep.mubr.bf16.mxu0 %v4204
  %5730 = vmatmul.mubr.bf16.gmra.mxu0 %v4203
  %v5731 = vpop.f32.mrf.mxu0
  %v5732 = vadd.f32 %v5691, %v5731
  %v5733 = vpop.f32.mrf.mxu0
  %v5734 = vadd.f32 %v5693, %v5733
  %v5735 = vpop.f32.mrf.mxu0
  %v5736 = vpop.f32.mrf.mxu0
  %5737 = vdwg.mxu0
  %5738 = vmatprep.subr.bf16.mxu0 %v5179
  %5739 = vmatpush1.bf16.msra.mxu0 %v5178
  %5740 = vmatprep.subr.bf16.mxu0 %v5177
  %5741 = vmatpush1.bf16.msra.mxu0 %v5176
  %5742 = vmatprep.subr.bf16.mxu0 %v5175
  %5743 = vmatpush1.bf16.msra.mxu0 %v5174
  %5744 = vmatprep.subr.bf16.mxu0 %v5173
  %5745 = vmatpush1.bf16.msra.mxu0 %v5172
  %5746 = vmatprep.subr.bf16.mxu0 %v5171
  %5747 = vmatpush1.bf16.msra.mxu0 %v5170
  %5748 = vmatprep.subr.bf16.mxu0 %v5169
  %5749 = vmatpush1.bf16.msra.mxu0 %v5168
  %5750 = vmatprep.subr.bf16.mxu0 %v5167
  %5751 = vmatpush1.bf16.msra.mxu0 %v5166
  %5752 = vmatprep.subr.bf16.mxu0 %v5165
  %5753 = vmatpush1.bf16.msra.mxu0 %v5164
  %5754 = vmatprep.subr.bf16.mxu0 %v5195
  %5755 = vmatpush2.bf16.msra.mxu0 %v5194
  %5756 = vmatprep.subr.bf16.mxu0 %v5193
  %5757 = vmatpush2.bf16.msra.mxu0 %v5192
  %5758 = vmatprep.subr.bf16.mxu0 %v5191
  %5759 = vmatpush2.bf16.msra.mxu0 %v5190
  %5760 = vmatprep.subr.bf16.mxu0 %v5189
  %5761 = vmatpush2.bf16.msra.mxu0 %v5188
  %5762 = vmatprep.subr.bf16.mxu0 %v5187
  %5763 = vmatpush2.bf16.msra.mxu0 %v5186
  %5764 = vmatprep.subr.bf16.mxu0 %v5185
  %5765 = vmatpush2.bf16.msra.mxu0 %v5184
  %5766 = vmatprep.subr.bf16.mxu0 %v5183
  %5767 = vmatpush2.bf16.msra.mxu0 %v5182
  %5768 = vmatprep.subr.bf16.mxu0 %v5181
  %5769 = vmatpush2.bf16.msra.mxu0 %v5180
  %5770 = vmatprep.mubr.bf16.mxu0 %v4196
  %5771 = vmatmul.mubr.bf16.gmra.mxu0 %v4195
  %v5772 = vpop.f32.mrf.mxu0
  %v5773 = vadd.f32 %v5732, %v5772
  %v5774 = vpop.f32.mrf.mxu0
  %v5775 = vadd.f32 %v5734, %v5774
  %v5776 = vpop.f32.mrf.mxu0
  %v5777 = vpop.f32.mrf.mxu0
  %5778 = vdwg.mxu0
  %v5875 = vunpack.c.l.b16 %v3901
  %v5876 = vunpack.c.h.b16 %v3901
  %v5877 = vunpack.c.l.b16 %v3902
  %v5878 = vunpack.c.h.b16 %v3902
  %v5879 = vunpack.c.l.b16 %v3903
  %v5880 = vunpack.c.h.b16 %v3903
  %v5881 = vunpack.c.l.b16 %v3904
  %v5882 = vunpack.c.h.b16 %v3904
  %v5883 = vunpack.c.l.b16 %v3905
  %v5884 = vunpack.c.h.b16 %v3905
  %v5885 = vunpack.c.l.b16 %v3906
  %v5886 = vunpack.c.h.b16 %v3906
  %v5887 = vunpack.c.l.b16 %v3907
  %v5888 = vunpack.c.h.b16 %v3907
  %v5889 = vunpack.c.l.b16 %v3908
  %v5890 = vunpack.c.h.b16 %v3908
  %v5891 = vunpack.c.l.b16 %v3909
  %v5892 = vunpack.c.h.b16 %v3909
  %v5893 = vunpack.c.l.b16 %v3910
  %v5894 = vunpack.c.h.b16 %v3910
  %v5895 = vunpack.c.l.b16 %v3911
  %v5896 = vunpack.c.h.b16 %v3911
  %v5897 = vunpack.c.l.b16 %v3912
  %v5898 = vunpack.c.h.b16 %v3912
  %v5899 = vunpack.c.l.b16 %v3913
  %v5900 = vunpack.c.h.b16 %v3913
  %v5901 = vunpack.c.l.b16 %v3914
  %v5902 = vunpack.c.h.b16 %v3914
  %v5903 = vunpack.c.l.b16 %v3915
  %v5904 = vunpack.c.h.b16 %v3915
  %v5905 = vunpack.c.l.b16 %v3916
  %v5906 = vunpack.c.h.b16 %v3916
  %v5907 = vunpack.c.l.b16 %v3917
  %v5908 = vunpack.c.h.b16 %v3917
  %v5909 = vunpack.c.l.b16 %v3918
  %v5910 = vunpack.c.h.b16 %v3918
  %v5911 = vunpack.c.l.b16 %v3919
  %v5912 = vunpack.c.h.b16 %v3919
  %v5913 = vunpack.c.l.b16 %v3920
  %v5914 = vunpack.c.h.b16 %v3920
  %v5915 = vunpack.c.l.b16 %v3921
  %v5916 = vunpack.c.h.b16 %v3921
  %v5917 = vunpack.c.l.b16 %v3922
  %v5918 = vunpack.c.h.b16 %v3922
  %v5919 = vunpack.c.l.b16 %v3923
  %v5920 = vunpack.c.h.b16 %v3923
  %v5921 = vunpack.c.l.b16 %v3924
  %v5922 = vunpack.c.h.b16 %v3924
  %v5923 = vunpack.c.l.b16 %v3925
  %v5924 = vunpack.c.h.b16 %v3925
  %v5925 = vunpack.c.l.b16 %v3926
  %v5926 = vunpack.c.h.b16 %v3926
  %v5927 = vunpack.c.l.b16 %v3927
  %v5928 = vunpack.c.h.b16 %v3927
  %v5929 = vunpack.c.l.b16 %v3928
  %v5930 = vunpack.c.h.b16 %v3928
  %v5931 = vunpack.c.l.b16 %v3929
  %v5932 = vunpack.c.h.b16 %v3929
  %v5933 = vunpack.c.l.b16 %v3930
  %v5934 = vunpack.c.h.b16 %v3930
  %v5935 = vunpack.c.l.b16 %v3931
  %v5936 = vunpack.c.h.b16 %v3931
  %v5937 = vunpack.c.l.b16 %v3932
  %v5938 = vunpack.c.h.b16 %v3932
  %v5939 = vunpack.c.l.b16 %v3933
  %v5940 = vunpack.c.h.b16 %v3933
  %v5941 = vunpack.c.l.b16 %v3934
  %v5942 = vunpack.c.h.b16 %v3934
  %v5943 = vunpack.c.l.b16 %v3935
  %v5944 = vunpack.c.h.b16 %v3935
  %v5945 = vunpack.c.l.b16 %v3936
  %v5946 = vunpack.c.h.b16 %v3936
  %v5947 = vunpack.c.l.b16 %v3937
  %v5948 = vunpack.c.h.b16 %v3937
  %v5949 = vunpack.c.l.b16 %v3938
  %v5950 = vunpack.c.h.b16 %v3938
  %v5951 = vunpack.c.l.b16 %v3939
  %v5952 = vunpack.c.h.b16 %v3939
  %v5953 = vunpack.c.l.b16 %v3940
  %v5954 = vunpack.c.h.b16 %v3940
  %v5955 = vunpack.c.l.b16 %v3941
  %v5956 = vunpack.c.h.b16 %v3941
  %v5957 = vunpack.c.l.b16 %v3942
  %v5958 = vunpack.c.h.b16 %v3942
  %v5959 = vunpack.c.l.b16 %v3943
  %v5960 = vunpack.c.h.b16 %v3943
  %v5961 = vunpack.c.l.b16 %v3944
  %v5962 = vunpack.c.h.b16 %v3944
  %v5963 = vunpack.c.l.b16 %v3945
  %v5964 = vunpack.c.h.b16 %v3945
  %v5965 = vunpack.c.l.b16 %v3946
  %v5966 = vunpack.c.h.b16 %v3946
  %v5967 = vunpack.c.l.b16 %v3947
  %v5968 = vunpack.c.h.b16 %v3947
  %v5969 = vunpack.c.l.b16 %v3948
  %v5970 = vunpack.c.h.b16 %v3948
  %v5971 = vunpack.c.l.b16 %v3949
  %v5972 = vunpack.c.h.b16 %v3949
  %v5973 = vunpack.c.l.b16 %v3950
  %v5974 = vunpack.c.h.b16 %v3950
  %v5975 = vunpack.c.l.b16 %v3951
  %v5976 = vunpack.c.h.b16 %v3951
  %v5977 = vunpack.c.l.b16 %v3952
  %v5978 = vunpack.c.h.b16 %v3952
  %v5979 = vunpack.c.l.b16 %v3953
  %v5980 = vunpack.c.h.b16 %v3953
  %v5981 = vunpack.c.l.b16 %v3954
  %v5982 = vunpack.c.h.b16 %v3954
  %v5983 = vunpack.c.l.b16 %v3955
  %v5984 = vunpack.c.h.b16 %v3955
  %v5985 = vunpack.c.l.b16 %v3956
  %v5986 = vunpack.c.h.b16 %v3956
  %v5987 = vunpack.c.l.b16 %v3957
  %v5988 = vunpack.c.h.b16 %v3957
  %v5989 = vunpack.c.l.b16 %v3958
  %v5990 = vunpack.c.h.b16 %v3958
  %v5991 = vunpack.c.l.b16 %v3959
  %v5992 = vunpack.c.h.b16 %v3959
  %v5993 = vunpack.c.l.b16 %v3960
  %v5994 = vunpack.c.h.b16 %v3960
  %v5995 = vunpack.c.l.b16 %v3961
  %v5996 = vunpack.c.h.b16 %v3961
  %v5997 = vunpack.c.l.b16 %v3962
  %v5998 = vunpack.c.h.b16 %v3962
  %v5999 = vunpack.c.l.b16 %v3963
  %v6000 = vunpack.c.h.b16 %v3963
  %v6001 = vunpack.c.l.b16 %v3964
  %v6002 = vunpack.c.h.b16 %v3964
  %v6003 = vunpack.c.l.b16 %v3965
  %v6004 = vunpack.c.h.b16 %v3965
  %v6005 = vunpack.c.l.b16 %v3966
  %v6006 = vunpack.c.h.b16 %v3966
  %v6007 = vunpack.c.l.b16 %v3967
  %v6008 = vunpack.c.h.b16 %v3967
  %v6009 = vunpack.c.l.b16 %v3968
  %v6010 = vunpack.c.h.b16 %v3968
  %v6011 = vunpack.c.l.b16 %v3969
  %v6012 = vunpack.c.h.b16 %v3969
  %v6013 = vunpack.c.l.b16 %v3970
  %v6014 = vunpack.c.h.b16 %v3970
  %v6015 = vunpack.c.l.b16 %v3971
  %v6016 = vunpack.c.h.b16 %v3971
  %v6017 = vunpack.c.l.b16 %v3972
  %v6018 = vunpack.c.h.b16 %v3972
  %v6019 = vunpack.c.l.b16 %v3973
  %v6020 = vunpack.c.h.b16 %v3973
  %v6021 = vunpack.c.l.b16 %v3974
  %v6022 = vunpack.c.h.b16 %v3974
  %v6023 = vunpack.c.l.b16 %v3975
  %v6024 = vunpack.c.h.b16 %v3975
  %v6025 = vunpack.c.l.b16 %v3976
  %v6026 = vunpack.c.h.b16 %v3976
  %v6027 = vunpack.c.l.b16 %v3977
  %v6028 = vunpack.c.h.b16 %v3977
  %v6029 = vunpack.c.l.b16 %v3978
  %v6030 = vunpack.c.h.b16 %v3978
  %v6031 = vunpack.c.l.b16 %v3979
  %v6032 = vunpack.c.h.b16 %v3979
  %v6033 = vunpack.c.l.b16 %v3980
  %v6034 = vunpack.c.h.b16 %v3980
  %v6035 = vunpack.c.l.b16 %v3981
  %v6036 = vunpack.c.h.b16 %v3981
  %v6037 = vunpack.c.l.b16 %v3982
  %v6038 = vunpack.c.h.b16 %v3982
  %v6039 = vunpack.c.l.b16 %v3983
  %v6040 = vunpack.c.h.b16 %v3983
  %v6041 = vunpack.c.l.b16 %v3984
  %v6042 = vunpack.c.h.b16 %v3984
  %v6043 = vunpack.c.l.b16 %v3985
  %v6044 = vunpack.c.h.b16 %v3985
  %v6045 = vunpack.c.l.b16 %v3986
  %v6046 = vunpack.c.h.b16 %v3986
  %v6047 = vunpack.c.l.b16 %v3987
  %v6048 = vunpack.c.h.b16 %v3987
  %v6049 = vunpack.c.l.b16 %v3988
  %v6050 = vunpack.c.h.b16 %v3988
  %v6051 = vunpack.c.l.b16 %v3989
  %v6052 = vunpack.c.h.b16 %v3989
  %v6053 = vunpack.c.l.b16 %v3990
  %v6054 = vunpack.c.h.b16 %v3990
  %v6055 = vunpack.c.l.b16 %v3991
  %v6056 = vunpack.c.h.b16 %v3991
  %v6057 = vunpack.c.l.b16 %v3992
  %v6058 = vunpack.c.h.b16 %v3992
  %v6059 = vunpack.c.l.b16 %v3993
  %v6060 = vunpack.c.h.b16 %v3993
  %v6061 = vunpack.c.l.b16 %v3994
  %v6062 = vunpack.c.h.b16 %v3994
  %v6063 = vunpack.c.l.b16 %v3995
  %v6064 = vunpack.c.h.b16 %v3995
  %v6065 = vunpack.c.l.b16 %v3996
  %v6066 = vunpack.c.h.b16 %v3996
  %v6067 = vpack.c.b16 %v5877, %v5875
  %v6068 = vpack.c.b16 %v5878, %v5876
  %v6069 = vpack.c.b16 %v5881, %v5879
  %v6070 = vpack.c.b16 %v5882, %v5880
  %v6071 = vpack.c.b16 %v5885, %v5883
  %v6072 = vpack.c.b16 %v5886, %v5884
  %v6073 = vpack.c.b16 %v5889, %v5887
  %v6074 = vpack.c.b16 %v5890, %v5888
  %v6075 = vpack.c.b16 %v5893, %v5891
  %v6076 = vpack.c.b16 %v5894, %v5892
  %v6077 = vpack.c.b16 %v5897, %v5895
  %v6078 = vpack.c.b16 %v5898, %v5896
  %v6079 = vpack.c.b16 %v5901, %v5899
  %v6080 = vpack.c.b16 %v5902, %v5900
  %v6081 = vpack.c.b16 %v5905, %v5903
  %v6082 = vpack.c.b16 %v5906, %v5904
  %v6083 = vpack.c.b16 %v5909, %v5907
  %v6084 = vpack.c.b16 %v5910, %v5908
  %v6085 = vpack.c.b16 %v5913, %v5911
  %v6086 = vpack.c.b16 %v5914, %v5912
  %v6087 = vpack.c.b16 %v5917, %v5915
  %v6088 = vpack.c.b16 %v5918, %v5916
  %v6089 = vpack.c.b16 %v5921, %v5919
  %v6090 = vpack.c.b16 %v5922, %v5920
  %v6091 = vpack.c.b16 %v5925, %v5923
  %v6092 = vpack.c.b16 %v5926, %v5924
  %v6093 = vpack.c.b16 %v5929, %v5927
  %v6094 = vpack.c.b16 %v5930, %v5928
  %v6095 = vpack.c.b16 %v5933, %v5931
  %v6096 = vpack.c.b16 %v5934, %v5932
  %v6097 = vpack.c.b16 %v5937, %v5935
  %v6098 = vpack.c.b16 %v5938, %v5936
  %v6099 = vpack.c.b16 %v5941, %v5939
  %v6100 = vpack.c.b16 %v5942, %v5940
  %v6101 = vpack.c.b16 %v5945, %v5943
  %v6102 = vpack.c.b16 %v5946, %v5944
  %v6103 = vpack.c.b16 %v5949, %v5947
  %v6104 = vpack.c.b16 %v5950, %v5948
  %v6105 = vpack.c.b16 %v5953, %v5951
  %v6106 = vpack.c.b16 %v5954, %v5952
  %v6107 = vpack.c.b16 %v5957, %v5955
  %v6108 = vpack.c.b16 %v5958, %v5956
  %v6109 = vpack.c.b16 %v5961, %v5959
  %v6110 = vpack.c.b16 %v5962, %v5960
  %v6111 = vpack.c.b16 %v5965, %v5963
  %v6112 = vpack.c.b16 %v5966, %v5964
  %v6113 = vpack.c.b16 %v5969, %v5967
  %v6114 = vpack.c.b16 %v5970, %v5968
  %v6115 = vpack.c.b16 %v5973, %v5971
  %v6116 = vpack.c.b16 %v5974, %v5972
  %v6117 = vpack.c.b16 %v5977, %v5975
  %v6118 = vpack.c.b16 %v5978, %v5976
  %v6119 = vpack.c.b16 %v5981, %v5979
  %v6120 = vpack.c.b16 %v5982, %v5980
  %v6121 = vpack.c.b16 %v5985, %v5983
  %v6122 = vpack.c.b16 %v5986, %v5984
  %v6123 = vpack.c.b16 %v5989, %v5987
  %v6124 = vpack.c.b16 %v5990, %v5988
  %v6125 = vpack.c.b16 %v5993, %v5991
  %v6126 = vpack.c.b16 %v5994, %v5992
  %v6127 = vpack.c.b16 %v5997, %v5995
  %v6128 = vpack.c.b16 %v5998, %v5996
  %v6129 = vpack.c.b16 %v6001, %v5999
  %v6130 = vpack.c.b16 %v6002, %v6000
  %v6131 = vpack.c.b16 %v6005, %v6003
  %v6132 = vpack.c.b16 %v6006, %v6004
  %v6133 = vpack.c.b16 %v6009, %v6007
  %v6134 = vpack.c.b16 %v6010, %v6008
  %v6135 = vpack.c.b16 %v6013, %v6011
  %v6136 = vpack.c.b16 %v6014, %v6012
  %v6137 = vpack.c.b16 %v6017, %v6015
  %v6138 = vpack.c.b16 %v6018, %v6016
  %v6139 = vpack.c.b16 %v6021, %v6019
  %v6140 = vpack.c.b16 %v6022, %v6020
  %v6141 = vpack.c.b16 %v6025, %v6023
  %v6142 = vpack.c.b16 %v6026, %v6024
  %v6143 = vpack.c.b16 %v6029, %v6027
  %v6144 = vpack.c.b16 %v6030, %v6028
  %v6145 = vpack.c.b16 %v6033, %v6031
  %v6146 = vpack.c.b16 %v6034, %v6032
  %v6147 = vpack.c.b16 %v6037, %v6035
  %v6148 = vpack.c.b16 %v6038, %v6036
  %v6149 = vpack.c.b16 %v6041, %v6039
  %v6150 = vpack.c.b16 %v6042, %v6040
  %v6151 = vpack.c.b16 %v6045, %v6043
  %v6152 = vpack.c.b16 %v6046, %v6044
  %v6153 = vpack.c.b16 %v6049, %v6047
  %v6154 = vpack.c.b16 %v6050, %v6048
  %v6155 = vpack.c.b16 %v6053, %v6051
  %v6156 = vpack.c.b16 %v6054, %v6052
  %v6157 = vpack.c.b16 %v6057, %v6055
  %v6158 = vpack.c.b16 %v6058, %v6056
  %v6159 = vpack.c.b16 %v6061, %v6059
  %v6160 = vpack.c.b16 %v6062, %v6060
  %v6161 = vpack.c.b16 %v6065, %v6063
  %v6162 = vpack.c.b16 %v6066, %v6064
  %6259 = vmatprep.subr.bf16.mxu0 %v6082
  %6260 = vmatpush1.bf16.msra.mxu0 %v6081
  %6261 = vmatprep.subr.bf16.mxu0 %v6080
  %6262 = vmatpush1.bf16.msra.mxu0 %v6079
  %6263 = vmatprep.subr.bf16.mxu0 %v6078
  %6264 = vmatpush1.bf16.msra.mxu0 %v6077
  %6265 = vmatprep.subr.bf16.mxu0 %v6076
  %6266 = vmatpush1.bf16.msra.mxu0 %v6075
  %6267 = vmatprep.subr.bf16.mxu0 %v6074
  %6268 = vmatpush1.bf16.msra.mxu0 %v6073
  %6269 = vmatprep.subr.bf16.mxu0 %v6072
  %6270 = vmatpush1.bf16.msra.mxu0 %v6071
  %6271 = vmatprep.subr.bf16.mxu0 %v6070
  %6272 = vmatpush1.bf16.msra.mxu0 %v6069
  %6273 = vmatprep.subr.bf16.mxu0 %v6068
  %6274 = vmatpush1.bf16.msra.mxu0 %v6067
  %6275 = vmatprep.subr.bf16.mxu0 %v6098
  %6276 = vmatpush2.bf16.msra.mxu0 %v6097
  %6277 = vmatprep.subr.bf16.mxu0 %v6096
  %6278 = vmatpush2.bf16.msra.mxu0 %v6095
  %6279 = vmatprep.subr.bf16.mxu0 %v6094
  %6280 = vmatpush2.bf16.msra.mxu0 %v6093
  %6281 = vmatprep.subr.bf16.mxu0 %v6092
  %6282 = vmatpush2.bf16.msra.mxu0 %v6091
  %6283 = vmatprep.subr.bf16.mxu0 %v6090
  %6284 = vmatpush2.bf16.msra.mxu0 %v6089
  %6285 = vmatprep.subr.bf16.mxu0 %v6088
  %6286 = vmatpush2.bf16.msra.mxu0 %v6087
  %6287 = vmatprep.subr.bf16.mxu0 %v6086
  %6288 = vmatpush2.bf16.msra.mxu0 %v6085
  %6289 = vmatprep.subr.bf16.mxu0 %v6084
  %6290 = vmatpush2.bf16.msra.mxu0 %v6083
  %6291 = vmatprep.mubr.bf16.mxu0 %v4198
  %6292 = vmatmul.mubr.bf16.gmra.mxu0 %v4197
  %v6293 = vpop.f32.mrf.mxu0
  %v6294 = vadd.f32 %v5773, %v6293
  %v6295 = vpop.f32.mrf.mxu0
  %v6296 = vadd.f32 %v5775, %v6295
  %v6297 = vpop.f32.mrf.mxu0
  %v6298 = vpop.f32.mrf.mxu0
  %6299 = vdwg.mxu0
  %6300 = vmatprep.subr.bf16.mxu0 %v6114
  %6301 = vmatpush1.bf16.msra.mxu0 %v6113
  %6302 = vmatprep.subr.bf16.mxu0 %v6112
  %6303 = vmatpush1.bf16.msra.mxu0 %v6111
  %6304 = vmatprep.subr.bf16.mxu0 %v6110
  %6305 = vmatpush1.bf16.msra.mxu0 %v6109
  %6306 = vmatprep.subr.bf16.mxu0 %v6108
  %6307 = vmatpush1.bf16.msra.mxu0 %v6107
  %6308 = vmatprep.subr.bf16.mxu0 %v6106
  %6309 = vmatpush1.bf16.msra.mxu0 %v6105
  %6310 = vmatprep.subr.bf16.mxu0 %v6104
  %6311 = vmatpush1.bf16.msra.mxu0 %v6103
  %6312 = vmatprep.subr.bf16.mxu0 %v6102
  %6313 = vmatpush1.bf16.msra.mxu0 %v6101
  %6314 = vmatprep.subr.bf16.mxu0 %v6100
  %6315 = vmatpush1.bf16.msra.mxu0 %v6099
  %6316 = vmatprep.subr.bf16.mxu0 %v6130
  %6317 = vmatpush2.bf16.msra.mxu0 %v6129
  %6318 = vmatprep.subr.bf16.mxu0 %v6128
  %6319 = vmatpush2.bf16.msra.mxu0 %v6127
  %6320 = vmatprep.subr.bf16.mxu0 %v6126
  %6321 = vmatpush2.bf16.msra.mxu0 %v6125
  %6322 = vmatprep.subr.bf16.mxu0 %v6124
  %6323 = vmatpush2.bf16.msra.mxu0 %v6123
  %6324 = vmatprep.subr.bf16.mxu0 %v6122
  %6325 = vmatpush2.bf16.msra.mxu0 %v6121
  %6326 = vmatprep.subr.bf16.mxu0 %v6120
  %6327 = vmatpush2.bf16.msra.mxu0 %v6119
  %6328 = vmatprep.subr.bf16.mxu0 %v6118
  %6329 = vmatpush2.bf16.msra.mxu0 %v6117
  %6330 = vmatprep.subr.bf16.mxu0 %v6116
  %6331 = vmatpush2.bf16.msra.mxu0 %v6115
  %6332 = vmatprep.mubr.bf16.mxu0 %v4200
  %6333 = vmatmul.mubr.bf16.gmra.mxu0 %v4199
  %v6334 = vpop.f32.mrf.mxu0
  %v6335 = vadd.f32 %v6294, %v6334
  %v6336 = vpop.f32.mrf.mxu0
  %v6337 = vadd.f32 %v6296, %v6336
  %v6338 = vpop.f32.mrf.mxu0
  %v6339 = vpop.f32.mrf.mxu0
  %6340 = vdwg.mxu0
  %6341 = vmatprep.subr.bf16.mxu0 %v6146
  %6342 = vmatpush1.bf16.msra.mxu0 %v6145
  %6343 = vmatprep.subr.bf16.mxu0 %v6144
  %6344 = vmatpush1.bf16.msra.mxu0 %v6143
  %6345 = vmatprep.subr.bf16.mxu0 %v6142
  %6346 = vmatpush1.bf16.msra.mxu0 %v6141
  %6347 = vmatprep.subr.bf16.mxu0 %v6140
  %6348 = vmatpush1.bf16.msra.mxu0 %v6139
  %6349 = vmatprep.subr.bf16.mxu0 %v6138
  %6350 = vmatpush1.bf16.msra.mxu0 %v6137
  %6351 = vmatprep.subr.bf16.mxu0 %v6136
  %6352 = vmatpush1.bf16.msra.mxu0 %v6135
  %6353 = vmatprep.subr.bf16.mxu0 %v6134
  %6354 = vmatpush1.bf16.msra.mxu0 %v6133
  %6355 = vmatprep.subr.bf16.mxu0 %v6132
  %6356 = vmatpush1.bf16.msra.mxu0 %v6131
  %6357 = vmatprep.subr.bf16.mxu0 %v6162
  %6358 = vmatpush2.bf16.msra.mxu0 %v6161
  %6359 = vmatprep.subr.bf16.mxu0 %v6160
  %6360 = vmatpush2.bf16.msra.mxu0 %v6159
  %6361 = vmatprep.subr.bf16.mxu0 %v6158
  %6362 = vmatpush2.bf16.msra.mxu0 %v6157
  %6363 = vmatprep.subr.bf16.mxu0 %v6156
  %6364 = vmatpush2.bf16.msra.mxu0 %v6155
  %6365 = vmatprep.subr.bf16.mxu0 %v6154
  %6366 = vmatpush2.bf16.msra.mxu0 %v6153
  %6367 = vmatprep.subr.bf16.mxu0 %v6152
  %6368 = vmatpush2.bf16.msra.mxu0 %v6151
  %6369 = vmatprep.subr.bf16.mxu0 %v6150
  %6370 = vmatpush2.bf16.msra.mxu0 %v6149
  %6371 = vmatprep.subr.bf16.mxu0 %v6148
  %6372 = vmatpush2.bf16.msra.mxu0 %v6147
  %6373 = vmatprep.mubr.bf16.mxu0 %v4196
  %6374 = vmatmul.mubr.bf16.gmra.mxu0 %v4195
  %v6375 = vpop.f32.mrf.mxu0
  %v6376 = vadd.f32 %v6335, %v6375
  %v6377 = vpop.f32.mrf.mxu0
  %v6378 = vadd.f32 %v6337, %v6377
  %v6379 = vpop.f32.mrf.mxu0
  %v6380 = vpop.f32.mrf.mxu0
  %6381 = vdwg.mxu0
  %6382 = vmatprep.subr.bf16.mxu0 %v4512
  %6383 = vmatpush1.bf16.msra.mxu0 %v4511
  %6384 = vmatprep.subr.bf16.mxu0 %v4510
  %6385 = vmatpush1.bf16.msra.mxu0 %v4509
  %6386 = vmatprep.subr.bf16.mxu0 %v4508
  %6387 = vmatpush1.bf16.msra.mxu0 %v4507
  %6388 = vmatprep.subr.bf16.mxu0 %v4506
  %6389 = vmatpush1.bf16.msra.mxu0 %v4505
  %6390 = vmatprep.subr.bf16.mxu0 %v4504
  %6391 = vmatpush1.bf16.msra.mxu0 %v4503
  %6392 = vmatprep.subr.bf16.mxu0 %v4502
  %6393 = vmatpush1.bf16.msra.mxu0 %v4501
  %6394 = vmatprep.subr.bf16.mxu0 %v4500
  %6395 = vmatpush1.bf16.msra.mxu0 %v4499
  %6396 = vmatprep.subr.bf16.mxu0 %v4498
  %6397 = vmatpush1.bf16.msra.mxu0 %v4497
  %6398 = vmatprep.subr.bf16.mxu0 %v4528
  %6399 = vmatpush2.bf16.msra.mxu0 %v4527
  %6400 = vmatprep.subr.bf16.mxu0 %v4526
  %6401 = vmatpush2.bf16.msra.mxu0 %v4525
  %6402 = vmatprep.subr.bf16.mxu0 %v4524
  %6403 = vmatpush2.bf16.msra.mxu0 %v4523
  %6404 = vmatprep.subr.bf16.mxu0 %v4522
  %6405 = vmatpush2.bf16.msra.mxu0 %v4521
  %6406 = vmatprep.subr.bf16.mxu0 %v4520
  %6407 = vmatpush2.bf16.msra.mxu0 %v4519
  %6408 = vmatprep.subr.bf16.mxu0 %v4518
  %6409 = vmatpush2.bf16.msra.mxu0 %v4517
  %6410 = vmatprep.subr.bf16.mxu0 %v4516
  %6411 = vmatpush2.bf16.msra.mxu0 %v4515
  %6412 = vmatprep.subr.bf16.mxu0 %v4514
  %6413 = vmatpush2.bf16.msra.mxu0 %v4513
  %6414 = vmatprep.mubr.bf16.mxu0 %v4206
  %6415 = vmatmul.mubr.bf16.gmra.mxu0 %v4205
  %v6416 = vpop.f32.mrf.mxu0
  %v6417 = vadd.f32 0.0, %v6416
  %v6418 = vpop.f32.mrf.mxu0
  %v6419 = vadd.f32 0.0, %v6418
  %v6420 = vpop.f32.mrf.mxu0
  %v6421 = vpop.f32.mrf.mxu0
  %6422 = vdwg.mxu0
  %6423 = vmatprep.subr.bf16.mxu0 %v4544
  %6424 = vmatpush1.bf16.msra.mxu0 %v4543
  %6425 = vmatprep.subr.bf16.mxu0 %v4542
  %6426 = vmatpush1.bf16.msra.mxu0 %v4541
  %6427 = vmatprep.subr.bf16.mxu0 %v4540
  %6428 = vmatpush1.bf16.msra.mxu0 %v4539
  %6429 = vmatprep.subr.bf16.mxu0 %v4538
  %6430 = vmatpush1.bf16.msra.mxu0 %v4537
  %6431 = vmatprep.subr.bf16.mxu0 %v4536
  %6432 = vmatpush1.bf16.msra.mxu0 %v4535
  %6433 = vmatprep.subr.bf16.mxu0 %v4534
  %6434 = vmatpush1.bf16.msra.mxu0 %v4533
  %6435 = vmatprep.subr.bf16.mxu0 %v4532
  %6436 = vmatpush1.bf16.msra.mxu0 %v4531
  %6437 = vmatprep.subr.bf16.mxu0 %v4530
  %6438 = vmatpush1.bf16.msra.mxu0 %v4529
  %6439 = vmatprep.subr.bf16.mxu0 %v4560
  %6440 = vmatpush2.bf16.msra.mxu0 %v4559
  %6441 = vmatprep.subr.bf16.mxu0 %v4558
  %6442 = vmatpush2.bf16.msra.mxu0 %v4557
  %6443 = vmatprep.subr.bf16.mxu0 %v4556
  %6444 = vmatpush2.bf16.msra.mxu0 %v4555
  %6445 = vmatprep.subr.bf16.mxu0 %v4554
  %6446 = vmatpush2.bf16.msra.mxu0 %v4553
  %6447 = vmatprep.subr.bf16.mxu0 %v4552
  %6448 = vmatpush2.bf16.msra.mxu0 %v4551
  %6449 = vmatprep.subr.bf16.mxu0 %v4550
  %6450 = vmatpush2.bf16.msra.mxu0 %v4549
  %6451 = vmatprep.subr.bf16.mxu0 %v4548
  %6452 = vmatpush2.bf16.msra.mxu0 %v4547
  %6453 = vmatprep.subr.bf16.mxu0 %v4546
  %6454 = vmatpush2.bf16.msra.mxu0 %v4545
  %6455 = vmatprep.mubr.bf16.mxu0 %v4208
  %6456 = vmatmul.mubr.bf16.gmra.mxu0 %v4207
  %v6457 = vpop.f32.mrf.mxu0
  %v6458 = vadd.f32 %v6417, %v6457
  %v6459 = vpop.f32.mrf.mxu0
  %v6460 = vadd.f32 %v6419, %v6459
  %v6461 = vpop.f32.mrf.mxu0
  %v6462 = vpop.f32.mrf.mxu0
  %6463 = vdwg.mxu0
  %6464 = vmatprep.subr.bf16.mxu0 %v4576
  %6465 = vmatpush1.bf16.msra.mxu0 %v4575
  %6466 = vmatprep.subr.bf16.mxu0 %v4574
  %6467 = vmatpush1.bf16.msra.mxu0 %v4573
  %6468 = vmatprep.subr.bf16.mxu0 %v4572
  %6469 = vmatpush1.bf16.msra.mxu0 %v4571
  %6470 = vmatprep.subr.bf16.mxu0 %v4570
  %6471 = vmatpush1.bf16.msra.mxu0 %v4569
  %6472 = vmatprep.subr.bf16.mxu0 %v4568
  %6473 = vmatpush1.bf16.msra.mxu0 %v4567
  %6474 = vmatprep.subr.bf16.mxu0 %v4566
  %6475 = vmatpush1.bf16.msra.mxu0 %v4565
  %6476 = vmatprep.subr.bf16.mxu0 %v4564
  %6477 = vmatpush1.bf16.msra.mxu0 %v4563
  %6478 = vmatprep.subr.bf16.mxu0 %v4562
  %6479 = vmatpush1.bf16.msra.mxu0 %v4561
  %6480 = vmatprep.subr.bf16.mxu0 %v4592
  %6481 = vmatpush2.bf16.msra.mxu0 %v4591
  %6482 = vmatprep.subr.bf16.mxu0 %v4590
  %6483 = vmatpush2.bf16.msra.mxu0 %v4589
  %6484 = vmatprep.subr.bf16.mxu0 %v4588
  %6485 = vmatpush2.bf16.msra.mxu0 %v4587
  %6486 = vmatprep.subr.bf16.mxu0 %v4586
  %6487 = vmatpush2.bf16.msra.mxu0 %v4585
  %6488 = vmatprep.subr.bf16.mxu0 %v4584
  %6489 = vmatpush2.bf16.msra.mxu0 %v4583
  %6490 = vmatprep.subr.bf16.mxu0 %v4582
  %6491 = vmatpush2.bf16.msra.mxu0 %v4581
  %6492 = vmatprep.subr.bf16.mxu0 %v4580
  %6493 = vmatpush2.bf16.msra.mxu0 %v4579
  %6494 = vmatprep.subr.bf16.mxu0 %v4578
  %6495 = vmatpush2.bf16.msra.mxu0 %v4577
  %6496 = vmatprep.mubr.bf16.mxu0 %v4196
  %6497 = vmatmul.mubr.bf16.gmra.mxu0 %v4195
  %v6498 = vpop.f32.mrf.mxu0
  %v6499 = vadd.f32 %v6458, %v6498
  %v6500 = vpop.f32.mrf.mxu0
  %v6501 = vadd.f32 %v6460, %v6500
  %v6502 = vpop.f32.mrf.mxu0
  %v6503 = vpop.f32.mrf.mxu0
  %6504 = vdwg.mxu0
  %v6505 = vadd.f32 %v6376, %v6499
  %v6506 = vadd.f32 %v6378, %v6501
  %v6507 = vadd.f32 %v6505, %v5419
  %v6508 = vadd.f32 %v6506, %v5423
  %vm6509 = vcmp.ge.f32.partialorder %v6507, 0.0
  %vm6510 = vcmp.ge.f32.partialorder %v6508, 0.0
  %v6511 = vmul.f32 %v6507, 0.2
  %v6512 = vmul.f32 %v6508, 0.2
  %v6513 = vsel %vm6509, %v6507, %v6511
  %v6514 = vsel %vm6510, %v6508, %v6512
  %v6515 = vpack.c.bf16 %v6513, %v6513
  %v6516 = vpack.c.bf16 %v6514, %v6514
  %6517 = vmatprep.subr.bf16.mxu0 %v5558
  %6518 = vmatpush1.bf16.msra.mxu0 %v5557
  %6519 = vmatprep.subr.bf16.mxu0 %v5556
  %6520 = vmatpush1.bf16.msra.mxu0 %v5555
  %6521 = vmatprep.subr.bf16.mxu0 %v5554
  %6522 = vmatpush1.bf16.msra.mxu0 %v5553
  %6523 = vmatprep.subr.bf16.mxu0 %v5552
  %6524 = vmatpush1.bf16.msra.mxu0 %v5551
  %6525 = vmatprep.subr.bf16.mxu0 %v5550
  %6526 = vmatpush1.bf16.msra.mxu0 %v5549
  %6527 = vmatprep.subr.bf16.mxu0 %v5548
  %6528 = vmatpush1.bf16.msra.mxu0 %v5547
  %6529 = vmatprep.subr.bf16.mxu0 %v5546
  %6530 = vmatpush1.bf16.msra.mxu0 %v5545
  %6531 = vmatprep.subr.bf16.mxu0 %v5544
  %6532 = vmatpush1.bf16.msra.mxu0 %v5543
  %6533 = vmatprep.subr.bf16.mxu0 %v5574
  %6534 = vmatpush2.bf16.msra.mxu0 %v5573
  %6535 = vmatprep.subr.bf16.mxu0 %v5572
  %6536 = vmatpush2.bf16.msra.mxu0 %v5571
  %6537 = vmatprep.subr.bf16.mxu0 %v5570
  %6538 = vmatpush2.bf16.msra.mxu0 %v5569
  %6539 = vmatprep.subr.bf16.mxu0 %v5568
  %6540 = vmatpush2.bf16.msra.mxu0 %v5567
  %6541 = vmatprep.subr.bf16.mxu0 %v5566
  %6542 = vmatpush2.bf16.msra.mxu0 %v5565
  %6543 = vmatprep.subr.bf16.mxu0 %v5564
  %6544 = vmatpush2.bf16.msra.mxu0 %v5563
  %6545 = vmatprep.subr.bf16.mxu0 %v5562
  %6546 = vmatpush2.bf16.msra.mxu0 %v5561
  %6547 = vmatprep.subr.bf16.mxu0 %v5560
  %6548 = vmatpush2.bf16.msra.mxu0 %v5559
  %6549 = vmatprep.mubr.bf16.mxu0 %v6516
  %6550 = vmatmul.mubr.bf16.gmra.mxu0 %v6515
  %v6551 = vpop.f32.mrf.mxu0
  %v6552 = vadd.f32 %v5440, %v6551
  %v6553 = vpop.f32.mrf.mxu0
  %v6554 = vadd.f32 %v5444, %v6553
  %v6555 = vpop.f32.mrf.mxu0
  %v6556 = vpop.f32.mrf.mxu0
  %6557 = vdwg.mxu0
  %vm6558 = vcmp.ge.f32.partialorder %v6552, 0.0
  %vm6559 = vcmp.ge.f32.partialorder %v6554, 0.0
  %v6560 = vmul.f32 %v6552, 0.2
  %v6561 = vmul.f32 %v6554, 0.2
  %v6562 = vsel %vm6558, %v6552, %v6560
  %v6563 = vsel %vm6559, %v6554, %v6561
  %v6564 = vadd.f32 %v6562, %v6513
  %v6565 = vadd.f32 %v6563, %v6514
  %v6566 = vld [vmem:[%s11] sm:$0x1]
  %v6567 = vld [vmem:[%s13] sm:$0x1]
  %v6568 = vld [vmem:[%s12] sm:$0xf]
  %v6569 = vld [vmem:[%s12 + $0x4] sm:$0xf]
  %v6570 = vld [vmem:[%s12 + $0x8] sm:$0xf]
  %v6571 = vld [vmem:[%s12 + $0xc] sm:$0xf]
  %s6572 = scalar_lea.vmem %s10, 128
  %v6573 = vld [vmem:[%s6572] sm:$0xf]
  %v6574 = vld [vmem:[%s6572 + $0x4] sm:$0xf]
  %v6575 = vld [vmem:[%s6572 + $0x8] sm:$0xf]
  %v6576 = vld [vmem:[%s6572 + $0xc] sm:$0xf]
  %v6577 = vld [vmem:[%s6572 + $0x10] sm:$0xf]
  %v6578 = vld [vmem:[%s6572 + $0x14] sm:$0xf]
  %v6579 = vld [vmem:[%s6572 + $0x18] sm:$0xf]
  %v6580 = vld [vmem:[%s6572 + $0x1c] sm:$0xf]
  %v6581 = vld [vmem:[%s6572 + $0x20] sm:$0xf]
  %v6582 = vld [vmem:[%s6572 + $0x24] sm:$0xf]
  %v6583 = vld [vmem:[%s6572 + $0x28] sm:$0xf]
  %v6584 = vld [vmem:[%s6572 + $0x2c] sm:$0xf]
  %v6585 = vld [vmem:[%s6572 + $0x30] sm:$0xf]
  %v6586 = vld [vmem:[%s6572 + $0x34] sm:$0xf]
  %v6587 = vld [vmem:[%s6572 + $0x38] sm:$0xf]
  %v6588 = vld [vmem:[%s6572 + $0x3c] sm:$0xf]
  %v6589 = vld [vmem:[%s6572 + $0x40] sm:$0xf]
  %v6590 = vld [vmem:[%s6572 + $0x44] sm:$0xf]
  %v6591 = vld [vmem:[%s6572 + $0x48] sm:$0xf]
  %v6592 = vld [vmem:[%s6572 + $0x4c] sm:$0xf]
  %v6593 = vld [vmem:[%s6572 + $0x50] sm:$0xf]
  %v6594 = vld [vmem:[%s6572 + $0x54] sm:$0xf]
  %v6595 = vld [vmem:[%s6572 + $0x58] sm:$0xf]
  %v6596 = vld [vmem:[%s6572 + $0x5c] sm:$0xf]
  %v6597 = vld [vmem:[%s6572 + $0x60] sm:$0xf]
  %v6598 = vld [vmem:[%s6572 + $0x64] sm:$0xf]
  %v6599 = vld [vmem:[%s6572 + $0x68] sm:$0xf]
  %v6600 = vld [vmem:[%s6572 + $0x6c] sm:$0xf]
  %v6601 = vld [vmem:[%s6572 + $0x70] sm:$0xf]
  %v6602 = vld [vmem:[%s6572 + $0x74] sm:$0xf]
  %v6603 = vld [vmem:[%s6572 + $0x78] sm:$0xf]
  %v6604 = vld [vmem:[%s6572 + $0x7c] sm:$0xf]
  %s6605 = scalar_lea.vmem %s10, 256
  %v6606 = vld [vmem:[%s6605] sm:$0xf]
  %v6607 = vld [vmem:[%s6605 + $0x4] sm:$0xf]
  %v6608 = vld [vmem:[%s6605 + $0x8] sm:$0xf]
  %v6609 = vld [vmem:[%s6605 + $0xc] sm:$0xf]
  %v6610 = vld [vmem:[%s6605 + $0x10] sm:$0xf]
  %v6611 = vld [vmem:[%s6605 + $0x14] sm:$0xf]
  %v6612 = vld [vmem:[%s6605 + $0x18] sm:$0xf]
  %v6613 = vld [vmem:[%s6605 + $0x1c] sm:$0xf]
  %v6614 = vld [vmem:[%s6605 + $0x20] sm:$0xf]
  %v6615 = vld [vmem:[%s6605 + $0x24] sm:$0xf]
  %v6616 = vld [vmem:[%s6605 + $0x28] sm:$0xf]
  %v6617 = vld [vmem:[%s6605 + $0x2c] sm:$0xf]
  %v6618 = vld [vmem:[%s6605 + $0x30] sm:$0xf]
  %v6619 = vld [vmem:[%s6605 + $0x34] sm:$0xf]
  %v6620 = vld [vmem:[%s6605 + $0x38] sm:$0xf]
  %v6621 = vld [vmem:[%s6605 + $0x3c] sm:$0xf]
  %v6622 = vld [vmem:[%s6605 + $0x40] sm:$0xf]
  %v6623 = vld [vmem:[%s6605 + $0x44] sm:$0xf]
  %v6624 = vld [vmem:[%s6605 + $0x48] sm:$0xf]
  %v6625 = vld [vmem:[%s6605 + $0x4c] sm:$0xf]
  %v6626 = vld [vmem:[%s6605 + $0x50] sm:$0xf]
  %v6627 = vld [vmem:[%s6605 + $0x54] sm:$0xf]
  %v6628 = vld [vmem:[%s6605 + $0x58] sm:$0xf]
  %v6629 = vld [vmem:[%s6605 + $0x5c] sm:$0xf]
  %v6630 = vld [vmem:[%s6605 + $0x60] sm:$0xf]
  %v6631 = vld [vmem:[%s6605 + $0x64] sm:$0xf]
  %v6632 = vld [vmem:[%s6605 + $0x68] sm:$0xf]
  %v6633 = vld [vmem:[%s6605 + $0x6c] sm:$0xf]
  %v6634 = vld [vmem:[%s6605 + $0x70] sm:$0xf]
  %v6635 = vld [vmem:[%s6605 + $0x74] sm:$0xf]
  %v6636 = vld [vmem:[%s6605 + $0x78] sm:$0xf]
  %v6637 = vld [vmem:[%s6605 + $0x7c] sm:$0xf]
  %v6638 = vpack.c.bf16 %v5654, %v5654
  %v6639 = vpack.c.bf16 %v5655, %v5655
  %v6640 = vpack.c.bf16 %v6564, %v6564
  %v6641 = vpack.c.bf16 %v6565, %v6565
  %v6674 = vunpack.c.l.b16 %v6606
  %v6675 = vunpack.c.l.b16 %v6607
  %v6676 = vunpack.c.l.b16 %v6608
  %v6677 = vunpack.c.l.b16 %v6609
  %v6678 = vunpack.c.l.b16 %v6610
  %v6679 = vunpack.c.l.b16 %v6611
  %v6680 = vunpack.c.l.b16 %v6612
  %v6681 = vunpack.c.l.b16 %v6613
  %v6682 = vunpack.c.l.b16 %v6614
  %v6683 = vunpack.c.l.b16 %v6615
  %v6684 = vunpack.c.l.b16 %v6616
  %v6685 = vunpack.c.l.b16 %v6617
  %v6686 = vunpack.c.l.b16 %v6618
  %v6687 = vunpack.c.l.b16 %v6619
  %v6688 = vunpack.c.l.b16 %v6620
  %v6689 = vunpack.c.l.b16 %v6621
  %v6690 = vunpack.c.l.b16 %v6622
  %v6691 = vunpack.c.l.b16 %v6623
  %v6692 = vunpack.c.l.b16 %v6624
  %v6693 = vunpack.c.l.b16 %v6625
  %v6694 = vunpack.c.l.b16 %v6626
  %v6695 = vunpack.c.l.b16 %v6627
  %v6696 = vunpack.c.l.b16 %v6628
  %v6697 = vunpack.c.l.b16 %v6629
  %v6698 = vunpack.c.l.b16 %v6630
  %v6699 = vunpack.c.l.b16 %v6631
  %v6700 = vunpack.c.l.b16 %v6632
  %v6701 = vunpack.c.l.b16 %v6633
  %v6702 = vunpack.c.l.b16 %v6634
  %v6703 = vunpack.c.l.b16 %v6635
  %v6704 = vunpack.c.l.b16 %v6636
  %v6705 = vunpack.c.l.b16 %v6637
  %v6706 = vpack.c.b16 %v6675, %v6674
  %v6707 = vpack.c.b16 %v6677, %v6676
  %v6708 = vpack.c.b16 %v6679, %v6678
  %v6709 = vpack.c.b16 %v6681, %v6680
  %v6710 = vpack.c.b16 %v6683, %v6682
  %v6711 = vpack.c.b16 %v6685, %v6684
  %v6712 = vpack.c.b16 %v6687, %v6686
  %v6713 = vpack.c.b16 %v6689, %v6688
  %v6714 = vpack.c.b16 %v6691, %v6690
  %v6715 = vpack.c.b16 %v6693, %v6692
  %v6716 = vpack.c.b16 %v6695, %v6694
  %v6717 = vpack.c.b16 %v6697, %v6696
  %v6718 = vpack.c.b16 %v6699, %v6698
  %v6719 = vpack.c.b16 %v6701, %v6700
  %v6720 = vpack.c.b16 %v6703, %v6702
  %v6721 = vpack.c.b16 %v6705, %v6704
  %6738 = vmatprep.subr.bf16.mxu0 0
  %6739 = vmatpush1.bf16.msra.mxu0 %v6713
  %6740 = vmatprep.subr.bf16.mxu0 0
  %6741 = vmatpush1.bf16.msra.mxu0 %v6712
  %6742 = vmatprep.subr.bf16.mxu0 0
  %6743 = vmatpush1.bf16.msra.mxu0 %v6711
  %6744 = vmatprep.subr.bf16.mxu0 0
  %6745 = vmatpush1.bf16.msra.mxu0 %v6710
  %6746 = vmatprep.subr.bf16.mxu0 0
  %6747 = vmatpush1.bf16.msra.mxu0 %v6709
  %6748 = vmatprep.subr.bf16.mxu0 0
  %6749 = vmatpush1.bf16.msra.mxu0 %v6708
  %6750 = vmatprep.subr.bf16.mxu0 0
  %6751 = vmatpush1.bf16.msra.mxu0 %v6707
  %6752 = vmatprep.subr.bf16.mxu0 0
  %6753 = vmatpush1.bf16.msra.mxu0 %v6706
  %6754 = vmatprep.subr.bf16.mxu0 0
  %6755 = vmatpush2.bf16.msra.mxu0 %v6721
  %6756 = vmatprep.subr.bf16.mxu0 0
  %6757 = vmatpush2.bf16.msra.mxu0 %v6720
  %6758 = vmatprep.subr.bf16.mxu0 0
  %6759 = vmatpush2.bf16.msra.mxu0 %v6719
  %6760 = vmatprep.subr.bf16.mxu0 0
  %6761 = vmatpush2.bf16.msra.mxu0 %v6718
  %6762 = vmatprep.subr.bf16.mxu0 0
  %6763 = vmatpush2.bf16.msra.mxu0 %v6717
  %6764 = vmatprep.subr.bf16.mxu0 0
  %6765 = vmatpush2.bf16.msra.mxu0 %v6716
  %6766 = vmatprep.subr.bf16.mxu0 0
  %6767 = vmatpush2.bf16.msra.mxu0 %v6715
  %6768 = vmatprep.subr.bf16.mxu0 0
  %6769 = vmatpush2.bf16.msra.mxu0 %v6714
  %6770 = vmatprep.mubr.bf16.mxu0 %v6641
  %6771 = vmatmul.mubr.bf16.gmra.mxu0 %v6640
  %v6772 = vpop.f32.mrf.mxu0
  %v6773 = vadd.f32 0.0, %v6772
  %v6774 = vpop.f32.mrf.mxu0
  %v6775 = vpop.f32.mrf.mxu0
  %v6776 = vpop.f32.mrf.mxu0
  %6777 = vdwg.mxu0
  %v6810 = vunpack.c.l.b16 %v6573
  %v6811 = vunpack.c.l.b16 %v6574
  %v6812 = vunpack.c.l.b16 %v6575
  %v6813 = vunpack.c.l.b16 %v6576
  %v6814 = vunpack.c.l.b16 %v6577
  %v6815 = vunpack.c.l.b16 %v6578
  %v6816 = vunpack.c.l.b16 %v6579
  %v6817 = vunpack.c.l.b16 %v6580
  %v6818 = vunpack.c.l.b16 %v6581
  %v6819 = vunpack.c.l.b16 %v6582
  %v6820 = vunpack.c.l.b16 %v6583
  %v6821 = vunpack.c.l.b16 %v6584
  %v6822 = vunpack.c.l.b16 %v6585
  %v6823 = vunpack.c.l.b16 %v6586
  %v6824 = vunpack.c.l.b16 %v6587
  %v6825 = vunpack.c.l.b16 %v6588
  %v6826 = vunpack.c.l.b16 %v6589
  %v6827 = vunpack.c.l.b16 %v6590
  %v6828 = vunpack.c.l.b16 %v6591
  %v6829 = vunpack.c.l.b16 %v6592
  %v6830 = vunpack.c.l.b16 %v6593
  %v6831 = vunpack.c.l.b16 %v6594
  %v6832 = vunpack.c.l.b16 %v6595
  %v6833 = vunpack.c.l.b16 %v6596
  %v6834 = vunpack.c.l.b16 %v6597
  %v6835 = vunpack.c.l.b16 %v6598
  %v6836 = vunpack.c.l.b16 %v6599
  %v6837 = vunpack.c.l.b16 %v6600
  %v6838 = vunpack.c.l.b16 %v6601
  %v6839 = vunpack.c.l.b16 %v6602
  %v6840 = vunpack.c.l.b16 %v6603
  %v6841 = vunpack.c.l.b16 %v6604
  %v6842 = vpack.c.b16 %v6811, %v6810
  %v6843 = vpack.c.b16 %v6813, %v6812
  %v6844 = vpack.c.b16 %v6815, %v6814
  %v6845 = vpack.c.b16 %v6817, %v6816
  %v6846 = vpack.c.b16 %v6819, %v6818
  %v6847 = vpack.c.b16 %v6821, %v6820
  %v6848 = vpack.c.b16 %v6823, %v6822
  %v6849 = vpack.c.b16 %v6825, %v6824
  %v6850 = vpack.c.b16 %v6827, %v6826
  %v6851 = vpack.c.b16 %v6829, %v6828
  %v6852 = vpack.c.b16 %v6831, %v6830
  %v6853 = vpack.c.b16 %v6833, %v6832
  %v6854 = vpack.c.b16 %v6835, %v6834
  %v6855 = vpack.c.b16 %v6837, %v6836
  %v6856 = vpack.c.b16 %v6839, %v6838
  %v6857 = vpack.c.b16 %v6841, %v6840
  %6874 = vmatprep.subr.bf16.mxu0 0
  %6875 = vmatpush1.bf16.msra.mxu0 %v6849
  %6876 = vmatprep.subr.bf16.mxu0 0
  %6877 = vmatpush1.bf16.msra.mxu0 %v6848
  %6878 = vmatprep.subr.bf16.mxu0 0
  %6879 = vmatpush1.bf16.msra.mxu0 %v6847
  %6880 = vmatprep.subr.bf16.mxu0 0
  %6881 = vmatpush1.bf16.msra.mxu0 %v6846
  %6882 = vmatprep.subr.bf16.mxu0 0
  %6883 = vmatpush1.bf16.msra.mxu0 %v6845
  %6884 = vmatprep.subr.bf16.mxu0 0
  %6885 = vmatpush1.bf16.msra.mxu0 %v6844
  %6886 = vmatprep.subr.bf16.mxu0 0
  %6887 = vmatpush1.bf16.msra.mxu0 %v6843
  %6888 = vmatprep.subr.bf16.mxu0 0
  %6889 = vmatpush1.bf16.msra.mxu0 %v6842
  %6890 = vmatprep.subr.bf16.mxu0 0
  %6891 = vmatpush2.bf16.msra.mxu0 %v6857
  %6892 = vmatprep.subr.bf16.mxu0 0
  %6893 = vmatpush2.bf16.msra.mxu0 %v6856
  %6894 = vmatprep.subr.bf16.mxu0 0
  %6895 = vmatpush2.bf16.msra.mxu0 %v6855
  %6896 = vmatprep.subr.bf16.mxu0 0
  %6897 = vmatpush2.bf16.msra.mxu0 %v6854
  %6898 = vmatprep.subr.bf16.mxu0 0
  %6899 = vmatpush2.bf16.msra.mxu0 %v6853
  %6900 = vmatprep.subr.bf16.mxu0 0
  %6901 = vmatpush2.bf16.msra.mxu0 %v6852
  %6902 = vmatprep.subr.bf16.mxu0 0
  %6903 = vmatpush2.bf16.msra.mxu0 %v6851
  %6904 = vmatprep.subr.bf16.mxu0 0
  %6905 = vmatpush2.bf16.msra.mxu0 %v6850
  %6906 = vmatprep.mubr.bf16.mxu0 %v6639
  %6907 = vmatmul.mubr.bf16.gmra.mxu0 %v6638
  %v6908 = vpop.f32.mrf.mxu0
  %v6909 = vadd.f32 %v6773, %v6908
  %v6910 = vpop.f32.mrf.mxu0
  %v6911 = vpop.f32.mrf.mxu0
  %v6912 = vpop.f32.mrf.mxu0
  %6913 = vdwg.mxu0
  %v6915 = vlaneseq
  %v6916 = vshrl.u32 %v6915, 7
  %v6917 = vsub.s32 0, %v6916
  %v6918 = vrot.slane %v6566, %v6917
  %v6920 = vadd.f32 %v6909, %v6918
  %vm6921 = vcmp.ge.f32.partialorder %v6920, 0.0
  %v6922 = vmul.f32 %v6920, 0.2
  %v6923 = vsel %vm6921, %v6920, %v6922
  %v6924 = vpack.c.bf16 %v6923, %v6923
  %v6926 = vlaneseq
  %v6927 = vshrl.u32 %v6926, 7
  %v6928 = vsub.s32 0, %v6927
  %v6929 = vrot.slane %v6567, %v6928
  %v6935 = vunpack.c.l.b16 %v6568
  %v6936 = vunpack.c.l.b16 %v6569
  %v6937 = vunpack.c.l.b16 %v6570
  %v6938 = vunpack.c.l.b16 %v6571
  %v6939 = vpack.c.b16 %v6936, %v6935
  %v6940 = vpack.c.b16 %v6938, %v6937
  %vm6943 = vcmask 261120
  %v6945 = vsel %vm6943, %v6924, 0
  %6947 = vmatprep.subr.bf16.mxu0 0
  %6948 = vmatpush1.bf16.msra.mxu0 0
  %6949 = vmatprep.subr.bf16.mxu0 0
  %6950 = vmatpush1.bf16.msra.mxu0 0
  %6951 = vmatprep.subr.bf16.mxu0 0
  %6952 = vmatpush1.bf16.msra.mxu0 0
  %6953 = vmatprep.subr.bf16.mxu0 0
  %6954 = vmatpush1.bf16.msra.mxu0 0
  %6955 = vmatprep.subr.bf16.mxu0 0
  %6956 = vmatpush1.bf16.msra.mxu0 0
  %6957 = vmatprep.subr.bf16.mxu0 0
  %6958 = vmatpush1.bf16.msra.mxu0 0
  %6959 = vmatprep.subr.bf16.mxu0 0
  %6960 = vmatpush1.bf16.msra.mxu0 %v6940
  %6961 = vmatprep.subr.bf16.mxu0 0
  %6962 = vmatpush1.bf16.msra.mxu0 %v6939
  %6963 = vmatprep.subr.bf16.mxu0 0
  %6964 = vmatpush2.bf16.msra.mxu0 0
  %6965 = vmatprep.subr.bf16.mxu0 0
  %6966 = vmatpush2.bf16.msra.mxu0 0
  %6967 = vmatprep.subr.bf16.mxu0 0
  %6968 = vmatpush2.bf16.msra.mxu0 0
  %6969 = vmatprep.subr.bf16.mxu0 0
  %6970 = vmatpush2.bf16.msra.mxu0 0
  %6971 = vmatprep.subr.bf16.mxu0 0
  %6972 = vmatpush2.bf16.msra.mxu0 0
  %6973 = vmatprep.subr.bf16.mxu0 0
  %6974 = vmatpush2.bf16.msra.mxu0 0
  %6975 = vmatprep.subr.bf16.mxu0 0
  %6976 = vmatpush2.bf16.msra.mxu0 0
  %6977 = vmatprep.subr.bf16.mxu0 0
  %6978 = vmatpush2.bf16.msra.mxu0 0
  %6979 = vmatprep.mubr.bf16.mxu0 0
  %6980 = vmatmul.mubr.bf16.gmra.mxu0 %v6945
  %v6981 = vpop.f32.mrf.mxu0
  %v6982 = vadd.f32 %v6929, %v6981
  %v6983 = vpop.f32.mrf.mxu0
  %v6984 = vpop.f32.mrf.mxu0
  %v6985 = vpop.f32.mrf.mxu0
  %6986 = vdwg.mxu0
  %vm6987 = vcmp.ge.f32.partialorder %v6982, 0.0
  %v6988 = vmul.f32 %v6982, 0.2
  %v6989 = vsel %vm6987, %v6982, %v6988
  %v6990 = vadd.f32 %v6989, %v6923
  %v6991 = vld [vmem:[%s14] sm:$0x1]
  %v6993 = vlaneseq
  %v6994 = vshrl.u32 %v6993, 7
  %v6995 = vsub.s32 0, %v6994
  %v6996 = vrot.slane %v6991, %v6995
  %v6998 = vmul.f32 %v6990, %v6996
  %vm6999 = vcmask 254976
  %v7000 = vsel %vm6999, %v6998, 0.0
  %7001 = vadd.xlane.f32.xlu0 %v7000
  %v7002 = vpop.xlane.xlu0 %7001
  %v7003 = vld [vmem:[#allocation2] sm:$0x1]
  %v7005 = vlaneseq
  %v7006 = vshrl.u32 %v7005, 7
  %v7007 = vsub.s32 0, %v7006
  %v7008 = vrot.slane %v7003, %v7007
  %v7010 = vadd.f32 %v7002, %v7008
  %vm7011 = vcmask 1024
  %7012 = vst.msk [vmem:[%s16] sm:$0x3] %vm7011, %v7010
  // Predicated region
  $region66: #{_lambda_.1} parent=0 // pred_check
    _
  $region67: #{_lambda_.1} parent=0 // pred_check_branch
    %7014 = sbr.rel (0) target = $region69
  $region68: #{_lambda_.1} parent=0 // pred_region
    _
  $region69: #{_lambda_.1} parent=0 // pred_fallthru
    _
  // Predicated region
  $region70: #{_lambda_.1} parent=0 // pred_check
    _
  $region71: #{_lambda_.1} parent=0 // pred_check_branch
    %7016 = sbr.rel (0) target = $region73
  $region72: #{_lambda_.1} parent=0 // pred_region
    _
  $region73: #{_lambda_.1} parent=0 // pred_fallthru
    _

</llo_original>
